<compile_context>
chip_gen: v5e
topology: v5e:2x2
jax: 0.10.0
libtpu: 0.0.40
codegen_flags: <defaults>
</compile_context>

<pallas_src>
import jax
import jax.numpy as jnp
import numpy as np
from jax.experimental import pallas as pl
from jax.experimental.pallas import tpu as pltpu


# Stage configuration mirroring the truncated EfficientNet-B0 (features[0..3]):
#   channels 3->32->16->24->40, strides 2,1,2,2 ; threshold = 40.
STAGE_CIN = (3, 32, 16, 24)
STAGE_COUT = (32, 16, 24, 40)
STAGE_STRIDE = (2, 1, 2, 2)
N_CLASSES = 4          # output_type='classification': Linear(40, n_classes)
N_PAD = 128            # lane-dense padded width of the head output
HEAD_DIM = 16          # AxialAttention dim_heads=16, heads=1


# ----------------------------------------------------------------------------
# In-kernel helpers (traced Python, all 2-D token-major math)
# ----------------------------------------------------------------------------
def _conv_silu(x, g_ref, w_ref):
    """Folded 3x3 conv + bias + SiLU.

    x:      (T_in, Cin) tokens of one image.
    g_ref:  (9, T_out, T_in) precomputed 0/1 tap-gather matrices.
    w_ref:  (10, Cin, Cout): taps 0..8 are per-tap weights, row [9, 0, :] = bias.
    """
    t_out = g_ref.shape[1]
    cout = w_ref.shape[2]
    acc = jnp.zeros((t_out, cout), jnp.float32)
    for tap in range(9):
        gx = jnp.dot(g_ref[tap], x, preferred_element_type=jnp.float32)      # (T_out, Cin)
        acc = acc + jnp.dot(gx, w_ref[tap], preferred_element_type=jnp.float32)
    acc = acc + w_ref[9, 0:1, :]                                             # bias
    return acc * jax.nn.sigmoid(acc)                                         # SiLU


def _axial_cross_attn(left, right, qkv_ref, wo_ref, mask_ref):
    """Cross AxialAttention (heads=1, dim_heads=16, sum_axial_out=True).

    Queries from `right` (stream being updated), keys/values from `left`.
    Both axial attentions (along W and along H) are computed from one full
    (T, T) score matrix using additive group masks, then summed and projected.
    """
    dim = qkv_ref.shape[1] - 1
    d = qkv_ref.shape[2]
    q = jnp.dot(right, qkv_ref[0, 0:dim, :],
                preferred_element_type=jnp.float32) + qkv_ref[0, dim:dim + 1, :]
    k = jnp.dot(left, qkv_ref[1, 0:dim, :],
                preferred_element_type=jnp.float32) + qkv_ref[1, dim:dim + 1, :]
    v = jnp.dot(left, qkv_ref[2, 0:dim, :],
                preferred_element_type=jnp.float32) + qkv_ref[2, dim:dim + 1, :]

    scale = 1.0 / float(np.sqrt(d))
    s = jax.lax.dot_general(q, k, (((1,), (1,)), ((), ())),
                            preferred_element_type=jnp.float32) * scale      # (T, T)

    out = jnp.zeros_like(v)
    for ax in range(2):                      # ax=0: along W (same row), ax=1: along H (same col)
        sm = s + mask_ref[ax]
        sm = sm - jnp.max(sm, axis=-1, keepdims=True)
        p = jnp.exp(sm)
        p = p * pl.reciprocal(jnp.sum(p, axis=-1, keepdims=True), approx=True)
        out = out + jnp.dot(p, v, preferred_element_type=jnp.float32)

    return (jnp.dot(out, wo_ref[0:d, :], preferred_element_type=jnp.float32)
            + wo_ref[d:d + 1, :])


# ----------------------------------------------------------------------------
# The single fused kernel (grid over batch; one image per grid step)
# ----------------------------------------------------------------------------
def _fused_forward_kernel(xl_ref, xr_ref,
                          g0_ref, g1_ref, g2_ref, g3_ref,
                          cl0_ref, cl1_ref, cl2_ref, cl3_ref,
                          cr0_ref, cr1_ref, cr2_ref, cr3_ref,
                          qkv2_ref, wo2_ref, qkv3_ref, wo3_ref,
                          m2_ref, m3_ref, head_ref,
                          out_ref):
    left = xl_ref[0]                     # (H*W, 3) tokens of this image
    right = xr_ref[0]

    g_refs = (g0_ref, g1_ref, g2_ref, g3_ref)
    cl_refs = (cl0_ref, cl1_ref, cl2_ref, cl3_ref)
    cr_refs = (cr0_ref, cr1_ref, cr2_ref, cr3_ref)

    for i in range(4):                   # right_layers[0..3]; channels always <= threshold(40)
        right = _conv_silu(right, g_refs[i], cr_refs[i])
        left = _conv_silu(left, g_refs[i], cl_refs[i])
        if i == 2:
            right = _axial_cross_attn(left, right, qkv2_ref, wo2_ref, m2_ref)
        if i == 3:
            right = _axial_cross_attn(left, right, qkv3_ref, wo3_ref, m3_ref)
            # channel cosine-normalisation (channel = last axis here)
            rs = jnp.sum(right * right, axis=-1, keepdims=True)
            ls = jnp.sum(left * left, axis=-1, keepdims=True)
            right = right * left * jax.lax.rsqrt(rs * ls + 1e-6)

    # adaptive avgpool(1) + squeeze, dropout(identity in eval), linear head
    pooled = jnp.sum(right, axis=0, keepdims=True) * (1.0 / right.shape[0])  # (1, 40)
    c_last = head_ref.shape[0] - 1
    logits = (jnp.dot(pooled, head_ref[0:c_last, :],
                      preferred_element_type=jnp.float32)
              + head_ref[c_last:c_last + 1, :])                               # (1, N_PAD)
    # lane-dense, unmasked (8,128) store; padding stripped outside.
    out_ref[0] = jnp.broadcast_to(logits, (out_ref.shape[1], out_ref.shape[2]))


# ----------------------------------------------------------------------------
# Host-side constant builders (numpy, done once at init)
# ----------------------------------------------------------------------------
def _stage_spatial(h, w):
    dims = []
    for s in STAGE_STRIDE:
        h = (h + 2 - 3) // s + 1
        w = (w + 2 - 3) // s + 1
        dims.append((h, w))
    return dims


def _build_gather(h_in, w_in, h_out, w_out, stride):
    """9 x (T_out, T_in) 0/1 matrices selecting the 3x3 (pad=1) conv taps."""
    g = np.zeros((9, h_out * w_out, h_in * w_in), np.float32)
    for di in range(3):
        for dj in range(3):
            tap = di * 3 + dj
            for oh in range(h_out):
                ih = oh * stride + di - 1
                if ih < 0 or ih >= h_in:
                    continue
                for ow in range(w_out):
                    iw = ow * stride + dj - 1
                    if iw < 0 or iw >= w_in:
                        continue
                    g[tap, oh * w_out + ow, ih * w_in + iw] = 1.0
    return jnp.asarray(g)


def _build_axial_masks(h, w):
    """(2, T, T) additive masks: [0]=attend along W (same row), [1]=along H (same col)."""
    t = h * w
    row = np.arange(t) // w
    col = np.arange(t) % w
    neg = np.float32(-1e30)
    m_w = np.where(row[:, None] == row[None, :], np.float32(0.0), neg)
    m_h = np.where(col[:, None] == col[None, :], np.float32(0.0), neg)
    return jnp.asarray(np.stack([m_w, m_h]).astype(np.float32))


# ----------------------------------------------------------------------------
# deterministic synthetic parameters
# ----------------------------------------------------------------------------
def _init_conv(key, cin, cout):
    w = jax.random.normal(key, (cout, cin, 3, 3), jnp.float32) * (1.0 / np.sqrt(cin * 9))
    w_taps = jnp.transpose(w, (2, 3, 1, 0)).reshape(9, cin, cout)   # [tap, cin, cout]
    bias_slab = jnp.zeros((1, cin, cout), jnp.float32)              # bias lives in [9, 0, :]
    return jnp.concatenate([w_taps, bias_slab], axis=0)             # (10, cin, cout)


def _init_attn(key, dim, d=HEAD_DIM):
    ks = jax.random.split(key, 4)
    s_in = 1.0 / np.sqrt(dim)
    s_out = 1.0 / np.sqrt(d)

    def lin(k, n_in, n_out, scale):
        w = jax.random.normal(k, (n_in, n_out), jnp.float32) * scale
        return jnp.concatenate([w, jnp.zeros((1, n_out), jnp.float32)], axis=0)

    qkv = jnp.stack([lin(ks[0], dim, d, s_in),
                     lin(ks[1], dim, d, s_in),
                     lin(ks[2], dim, d, s_in)])                      # (3, dim+1, d)
    wo = lin(ks[3], d, dim, s_out)                                   # (d+1, dim)
    return qkv, wo


def _init_head(key, c_in, n_classes):
    w = jax.random.normal(key, (c_in, n_classes), jnp.float32) * (1.0 / np.sqrt(c_in))
    w_pad = jnp.zeros((c_in, N_PAD), jnp.float32).at[:, :n_classes].set(w)
    b_pad = jnp.zeros((1, N_PAD), jnp.float32)
    return jnp.concatenate([w_pad, b_pad], axis=0)                   # (c_in+1, N_PAD)


def init_params(key, h=16, w=16):
    keys = jax.random.split(key, 16)
    dims = _stage_spatial(h, w)
    in_dims = [(h, w)] + dims[:-1]
    g = [_build_gather(in_dims[i][0], in_dims[i][1], dims[i][0], dims[i][1],
                       STAGE_STRIDE[i]) for i in range(4)]
    conv_l = [_init_conv(keys[i], STAGE_CIN[i], STAGE_COUT[i]) for i in range(4)]
    conv_r = [_init_conv(keys[4 + i], STAGE_CIN[i], STAGE_COUT[i]) for i in range(4)]
    qkv2, wo2 = _init_attn(keys[8], dim=STAGE_COUT[2])   # dim=24, mask_padding=2 (unused)
    qkv3, wo3 = _init_attn(keys[9], dim=STAGE_COUT[3])   # dim=40, mask_padding=1 (unused)
    m2 = _build_axial_masks(*dims[2])
    m3 = _build_axial_masks(*dims[3])
    head = _init_head(keys[10], STAGE_COUT[3], N_CLASSES)
    return {'g': g, 'conv_l': conv_l, 'conv_r': conv_r,
            'qkv2': qkv2, 'wo2': wo2, 'qkv3': qkv3, 'wo3': wo3,
            'm2': m2, 'm3': m3, 'head': head}


# ----------------------------------------------------------------------------
# forward: one pallas_call, grid over batch
# ----------------------------------------------------------------------------
def attentive_forward(params, image_1, image_2):
    B, _, H, W = image_1.shape
    # boundary layout conversion only: NCHW -> (B, H*W, 3) token matrices
    xl = jnp.transpose(image_1, (0, 2, 3, 1)).reshape(B, H * W, STAGE_CIN[0])
    xr = jnp.transpose(image_2, (0, 2, 3, 1)).reshape(B, H * W, STAGE_CIN[0])

    shared = (params['g'][0], params['g'][1], params['g'][2], params['g'][3],
              params['conv_l'][0], params['conv_l'][1], params['conv_l'][2], params['conv_l'][3],
              params['conv_r'][0], params['conv_r'][1], params['conv_r'][2], params['conv_r'][3],
              params['qkv2'], params['wo2'], params['qkv3'], params['wo3'],
              params['m2'], params['m3'], params['head'])

    def _shared_spec(arr):
        if arr.ndim == 2:
            return pl.BlockSpec(arr.shape, lambda b: (0, 0))
        return pl.BlockSpec(arr.shape, lambda b: (0, 0, 0))

    tok_spec = pl.BlockSpec((1, H * W, STAGE_CIN[0]), lambda b: (b, 0, 0))
    in_specs = [tok_spec, tok_spec] + [_shared_spec(a) for a in shared]
    out_spec = pl.BlockSpec((1, 8, N_PAD), lambda b: (b, 0, 0))

    out = pl.pallas_call(
        _fused_forward_kernel,
        out_shape=jax.ShapeDtypeStruct((B, 8, N_PAD), jnp.float32),
        grid=(B,),
        in_specs=in_specs,
        out_specs=out_spec,
        compiler_params=pltpu.CompilerParams(
            dimension_semantics=("parallel",)),   # batch-split across v7x's 2 TCs
    )(xl, xr, *shared)

    return out[:, 0, :N_CLASSES]                  # strip lane / sublane padding


if __name__ == "__main__":
    root = jax.random.PRNGKey(0)
    k_params, k_img1, k_img2 = jax.random.split(root, 3)
    params = init_params(k_params, h=16, w=16)

    # NCHW images, B=2, C=3, 16x16 spatial
    image_1 = jax.random.normal(k_img1, (2, 3, 16, 16), jnp.float32)
    image_2 = jax.random.normal(k_img2, (2, 3, 16, 16), jnp.float32)

    fwd = jax.jit(attentive_forward)
    out = jax.block_until_ready(fwd(params, image_1, image_2))
    assert out.shape == (2, N_CLASSES) and out.dtype == jnp.float32
    assert bool(jnp.all(jnp.isfinite(out)))
    print("KERNEL_OK")
</pallas_src>

<mosaic_0001>
module attributes {stable_mosaic.version = 11 : i64} {
  func.func @_fused_forward_kernel(%arg0: i32, %arg1: memref<1x256x3xf32, #tpu.memory_space<vmem>>, %arg2: memref<1x256x3xf32, #tpu.memory_space<vmem>>, %arg3: memref<9x64x256xf32, #tpu.memory_space<vmem>>, %arg4: memref<9x64x64xf32, #tpu.memory_space<vmem>>, %arg5: memref<9x16x64xf32, #tpu.memory_space<vmem>>, %arg6: memref<9x4x16xf32, #tpu.memory_space<vmem>>, %arg7: memref<10x3x32xf32, #tpu.memory_space<vmem>>, %arg8: memref<10x32x16xf32, #tpu.memory_space<vmem>>, %arg9: memref<10x16x24xf32, #tpu.memory_space<vmem>>, %arg10: memref<10x24x40xf32, #tpu.memory_space<vmem>>, %arg11: memref<10x3x32xf32, #tpu.memory_space<vmem>>, %arg12: memref<10x32x16xf32, #tpu.memory_space<vmem>>, %arg13: memref<10x16x24xf32, #tpu.memory_space<vmem>>, %arg14: memref<10x24x40xf32, #tpu.memory_space<vmem>>, %arg15: memref<3x25x16xf32, #tpu.memory_space<vmem>>, %arg16: memref<17x24xf32, #tpu.memory_space<vmem>>, %arg17: memref<3x41x16xf32, #tpu.memory_space<vmem>>, %arg18: memref<17x40xf32, #tpu.memory_space<vmem>>, %arg19: memref<2x16x16xf32, #tpu.memory_space<vmem>>, %arg20: memref<2x4x4xf32, #tpu.memory_space<vmem>>, %arg21: memref<41x128xf32, #tpu.memory_space<vmem>>, %arg22: memref<1x8x128xf32, #tpu.memory_space<vmem>>) attributes {dimension_semantics = [#tpu.dimension_semantics<parallel>], iteration_bounds = array<i64: 2>, scalar_prefetch = 0 : i64, scratch_operands = 0 : i64, tpu.core_type = #tpu.core_type<tc>, window_params = [{transform_indices = @transform_0, window_bounds = array<i64: 1, 256, 3>}, {transform_indices = @transform_1, window_bounds = array<i64: 1, 256, 3>}, {pipeline_mode = #tpu.pipeline_mode<synchronous>, transform_indices = @transform_2, window_bounds = array<i64: 9, 64, 256>}, {pipeline_mode = #tpu.pipeline_mode<synchronous>, transform_indices = @transform_3, window_bounds = array<i64: 9, 64, 64>}, {pipeline_mode = #tpu.pipeline_mode<synchronous>, transform_indices = @transform_4, window_bounds = array<i64: 9, 16, 64>}, {pipeline_mode = #tpu.pipeline_mode<synchronous>, transform_indices = @transform_5, window_bounds = array<i64: 9, 4, 16>}, {pipeline_mode = #tpu.pipeline_mode<synchronous>, transform_indices = @transform_6, window_bounds = array<i64: 10, 3, 32>}, {pipeline_mode = #tpu.pipeline_mode<synchronous>, transform_indices = @transform_7, window_bounds = array<i64: 10, 32, 16>}, {pipeline_mode = #tpu.pipeline_mode<synchronous>, transform_indices = @transform_8, window_bounds = array<i64: 10, 16, 24>}, {pipeline_mode = #tpu.pipeline_mode<synchronous>, transform_indices = @transform_9, window_bounds = array<i64: 10, 24, 40>}, {pipeline_mode = #tpu.pipeline_mode<synchronous>, transform_indices = @transform_10, window_bounds = array<i64: 10, 3, 32>}, {pipeline_mode = #tpu.pipeline_mode<synchronous>, transform_indices = @transform_11, window_bounds = array<i64: 10, 32, 16>}, {pipeline_mode = #tpu.pipeline_mode<synchronous>, transform_indices = @transform_12, window_bounds = array<i64: 10, 16, 24>}, {pipeline_mode = #tpu.pipeline_mode<synchronous>, transform_indices = @transform_13, window_bounds = array<i64: 10, 24, 40>}, {pipeline_mode = #tpu.pipeline_mode<synchronous>, transform_indices = @transform_14, window_bounds = array<i64: 3, 25, 16>}, {pipeline_mode = #tpu.pipeline_mode<synchronous>, transform_indices = @transform_15, window_bounds = array<i64: 17, 24>}, {pipeline_mode = #tpu.pipeline_mode<synchronous>, transform_indices = @transform_16, window_bounds = array<i64: 3, 41, 16>}, {pipeline_mode = #tpu.pipeline_mode<synchronous>, transform_indices = @transform_17, window_bounds = array<i64: 17, 40>}, {pipeline_mode = #tpu.pipeline_mode<synchronous>, transform_indices = @transform_18, window_bounds = array<i64: 2, 16, 16>}, {pipeline_mode = #tpu.pipeline_mode<synchronous>, transform_indices = @transform_19, window_bounds = array<i64: 2, 4, 4>}, {pipeline_mode = #tpu.pipeline_mode<synchronous>, transform_indices = @transform_20, window_bounds = array<i64: 41, 128>}, {transform_indices = @transform_21, window_bounds = array<i64: 1, 8, 128>}]} {
    %c0 = arith.constant 0 : index
    %c0_0 = arith.constant 0 : index
    %c0_1 = arith.constant 0 : index
    %0 = vector.load %arg1[%c0, %c0_0, %c0_1] : memref<1x256x3xf32, #tpu.memory_space<vmem>>, vector<1x256x3xf32>
    %1 = vector.shape_cast %0 : vector<1x256x3xf32> to vector<256x3xf32>
    %c0_2 = arith.constant 0 : index
    %c0_3 = arith.constant 0 : index
    %c0_4 = arith.constant 0 : index
    %2 = vector.load %arg2[%c0_2, %c0_3, %c0_4] : memref<1x256x3xf32, #tpu.memory_space<vmem>>, vector<1x256x3xf32>
    %3 = vector.shape_cast %2 : vector<1x256x3xf32> to vector<256x3xf32>
    %cst = arith.constant 0.000000e+00 : f32
    %4 = vector.broadcast %cst : f32 to vector<64x32xf32>
    %c0_5 = arith.constant 0 : index
    %c0_6 = arith.constant 0 : index
    %c0_7 = arith.constant 0 : index
    %5 = vector.load %arg3[%c0_5, %c0_6, %c0_7] : memref<9x64x256xf32, #tpu.memory_space<vmem>>, vector<1x64x256xf32>
    %6 = vector.shape_cast %5 : vector<1x64x256xf32> to vector<64x256xf32>
    %cst_8 = arith.constant dense<0.000000e+00> : vector<64x3xf32>
    %7 = tpu.matmul %6, %3, %cst_8 {dimension_numbers = #tpu.dot_dimension_numbers<[1], [0], [0], [1], [0, 0, 1, 1], [], []>} : vector<64x256xf32>, vector<256x3xf32>, vector<64x3xf32> -> vector<64x3xf32>
    %c0_9 = arith.constant 0 : index
    %c0_10 = arith.constant 0 : index
    %c0_11 = arith.constant 0 : index
    %8 = vector.load %arg11[%c0_9, %c0_10, %c0_11] : memref<10x3x32xf32, #tpu.memory_space<vmem>>, vector<1x3x32xf32>
    %9 = vector.shape_cast %8 : vector<1x3x32xf32> to vector<3x32xf32>
    %cst_12 = arith.constant dense<0.000000e+00> : vector<64x32xf32>
    %10 = tpu.matmul %7, %9, %cst_12 {dimension_numbers = #tpu.dot_dimension_numbers<[1], [0], [0], [1], [0, 0, 1, 1], [], []>} : vector<64x3xf32>, vector<3x32xf32>, vector<64x32xf32> -> vector<64x32xf32>
    %11 = arith.addf %4, %10 : vector<64x32xf32>
    %c1 = arith.constant 1 : index
    %c0_13 = arith.constant 0 : index
    %c0_14 = arith.constant 0 : index
    %12 = vector.load %arg3[%c1, %c0_13, %c0_14] : memref<9x64x256xf32, #tpu.memory_space<vmem>>, vector<1x64x256xf32>
    %13 = vector.shape_cast %12 : vector<1x64x256xf32> to vector<64x256xf32>
    %cst_15 = arith.constant dense<0.000000e+00> : vector<64x3xf32>
    %14 = tpu.matmul %13, %3, %cst_15 {dimension_numbers = #tpu.dot_dimension_numbers<[1], [0], [0], [1], [0, 0, 1, 1], [], []>} : vector<64x256xf32>, vector<256x3xf32>, vector<64x3xf32> -> vector<64x3xf32>
    %c1_16 = arith.constant 1 : index
    %c0_17 = arith.constant 0 : index
    %c0_18 = arith.constant 0 : index
    %15 = vector.load %arg11[%c1_16, %c0_17, %c0_18] : memref<10x3x32xf32, #tpu.memory_space<vmem>>, vector<1x3x32xf32>
    %16 = vector.shape_cast %15 : vector<1x3x32xf32> to vector<3x32xf32>
    %cst_19 = arith.constant dense<0.000000e+00> : vector<64x32xf32>
    %17 = tpu.matmul %14, %16, %cst_19 {dimension_numbers = #tpu.dot_dimension_numbers<[1], [0], [0], [1], [0, 0, 1, 1], [], []>} : vector<64x3xf32>, vector<3x32xf32>, vector<64x32xf32> -> vector<64x32xf32>
    %18 = arith.addf %11, %17 : vector<64x32xf32>
    %c2 = arith.constant 2 : index
    %c0_20 = arith.constant 0 : index
    %c0_21 = arith.constant 0 : index
    %19 = vector.load %arg3[%c2, %c0_20, %c0_21] : memref<9x64x256xf32, #tpu.memory_space<vmem>>, vector<1x64x256xf32>
    %20 = vector.shape_cast %19 : vector<1x64x256xf32> to vector<64x256xf32>
    %cst_22 = arith.constant dense<0.000000e+00> : vector<64x3xf32>
    %21 = tpu.matmul %20, %3, %cst_22 {dimension_numbers = #tpu.dot_dimension_numbers<[1], [0], [0], [1], [0, 0, 1, 1], [], []>} : vector<64x256xf32>, vector<256x3xf32>, vector<64x3xf32> -> vector<64x3xf32>
    %c2_23 = arith.constant 2 : index
    %c0_24 = arith.constant 0 : index
    %c0_25 = arith.constant 0 : index
    %22 = vector.load %arg11[%c2_23, %c0_24, %c0_25] : memref<10x3x32xf32, #tpu.memory_space<vmem>>, vector<1x3x32xf32>
    %23 = vector.shape_cast %22 : vector<1x3x32xf32> to vector<3x32xf32>
    %cst_26 = arith.constant dense<0.000000e+00> : vector<64x32xf32>
    %24 = tpu.matmul %21, %23, %cst_26 {dimension_numbers = #tpu.dot_dimension_numbers<[1], [0], [0], [1], [0, 0, 1, 1], [], []>} : vector<64x3xf32>, vector<3x32xf32>, vector<64x32xf32> -> vector<64x32xf32>
    %25 = arith.addf %18, %24 : vector<64x32xf32>
    %c3 = arith.constant 3 : index
    %c0_27 = arith.constant 0 : index
    %c0_28 = arith.constant 0 : index
    %26 = vector.load %arg3[%c3, %c0_27, %c0_28] : memref<9x64x256xf32, #tpu.memory_space<vmem>>, vector<1x64x256xf32>
    %27 = vector.shape_cast %26 : vector<1x64x256xf32> to vector<64x256xf32>
    %cst_29 = arith.constant dense<0.000000e+00> : vector<64x3xf32>
    %28 = tpu.matmul %27, %3, %cst_29 {dimension_numbers = #tpu.dot_dimension_numbers<[1], [0], [0], [1], [0, 0, 1, 1], [], []>} : vector<64x256xf32>, vector<256x3xf32>, vector<64x3xf32> -> vector<64x3xf32>
    %c3_30 = arith.constant 3 : index
    %c0_31 = arith.constant 0 : index
    %c0_32 = arith.constant 0 : index
    %29 = vector.load %arg11[%c3_30, %c0_31, %c0_32] : memref<10x3x32xf32, #tpu.memory_space<vmem>>, vector<1x3x32xf32>
    %30 = vector.shape_cast %29 : vector<1x3x32xf32> to vector<3x32xf32>
    %cst_33 = arith.constant dense<0.000000e+00> : vector<64x32xf32>
    %31 = tpu.matmul %28, %30, %cst_33 {dimension_numbers = #tpu.dot_dimension_numbers<[1], [0], [0], [1], [0, 0, 1, 1], [], []>} : vector<64x3xf32>, vector<3x32xf32>, vector<64x32xf32> -> vector<64x32xf32>
    %32 = arith.addf %25, %31 : vector<64x32xf32>
    %c4 = arith.constant 4 : index
    %c0_34 = arith.constant 0 : index
    %c0_35 = arith.constant 0 : index
    %33 = vector.load %arg3[%c4, %c0_34, %c0_35] : memref<9x64x256xf32, #tpu.memory_space<vmem>>, vector<1x64x256xf32>
    %34 = vector.shape_cast %33 : vector<1x64x256xf32> to vector<64x256xf32>
    %cst_36 = arith.constant dense<0.000000e+00> : vector<64x3xf32>
    %35 = tpu.matmul %34, %3, %cst_36 {dimension_numbers = #tpu.dot_dimension_numbers<[1], [0], [0], [1], [0, 0, 1, 1], [], []>} : vector<64x256xf32>, vector<256x3xf32>, vector<64x3xf32> -> vector<64x3xf32>
    %c4_37 = arith.constant 4 : index
    %c0_38 = arith.constant 0 : index
    %c0_39 = arith.constant 0 : index
    %36 = vector.load %arg11[%c4_37, %c0_38, %c0_39] : memref<10x3x32xf32, #tpu.memory_space<vmem>>, vector<1x3x32xf32>
    %37 = vector.shape_cast %36 : vector<1x3x32xf32> to vector<3x32xf32>
    %cst_40 = arith.constant dense<0.000000e+00> : vector<64x32xf32>
    %38 = tpu.matmul %35, %37, %cst_40 {dimension_numbers = #tpu.dot_dimension_numbers<[1], [0], [0], [1], [0, 0, 1, 1], [], []>} : vector<64x3xf32>, vector<3x32xf32>, vector<64x32xf32> -> vector<64x32xf32>
    %39 = arith.addf %32, %38 : vector<64x32xf32>
    %c5 = arith.constant 5 : index
    %c0_41 = arith.constant 0 : index
    %c0_42 = arith.constant 0 : index
    %40 = vector.load %arg3[%c5, %c0_41, %c0_42] : memref<9x64x256xf32, #tpu.memory_space<vmem>>, vector<1x64x256xf32>
    %41 = vector.shape_cast %40 : vector<1x64x256xf32> to vector<64x256xf32>
    %cst_43 = arith.constant dense<0.000000e+00> : vector<64x3xf32>
    %42 = tpu.matmul %41, %3, %cst_43 {dimension_numbers = #tpu.dot_dimension_numbers<[1], [0], [0], [1], [0, 0, 1, 1], [], []>} : vector<64x256xf32>, vector<256x3xf32>, vector<64x3xf32> -> vector<64x3xf32>
    %c5_44 = arith.constant 5 : index
    %c0_45 = arith.constant 0 : index
    %c0_46 = arith.constant 0 : index
    %43 = vector.load %arg11[%c5_44, %c0_45, %c0_46] : memref<10x3x32xf32, #tpu.memory_space<vmem>>, vector<1x3x32xf32>
    %44 = vector.shape_cast %43 : vector<1x3x32xf32> to vector<3x32xf32>
    %cst_47 = arith.constant dense<0.000000e+00> : vector<64x32xf32>
    %45 = tpu.matmul %42, %44, %cst_47 {dimension_numbers = #tpu.dot_dimension_numbers<[1], [0], [0], [1], [0, 0, 1, 1], [], []>} : vector<64x3xf32>, vector<3x32xf32>, vector<64x32xf32> -> vector<64x32xf32>
    %46 = arith.addf %39, %45 : vector<64x32xf32>
    %c6 = arith.constant 6 : index
    %c0_48 = arith.constant 0 : index
    %c0_49 = arith.constant 0 : index
    %47 = vector.load %arg3[%c6, %c0_48, %c0_49] : memref<9x64x256xf32, #tpu.memory_space<vmem>>, vector<1x64x256xf32>
    %48 = vector.shape_cast %47 : vector<1x64x256xf32> to vector<64x256xf32>
    %cst_50 = arith.constant dense<0.000000e+00> : vector<64x3xf32>
    %49 = tpu.matmul %48, %3, %cst_50 {dimension_numbers = #tpu.dot_dimension_numbers<[1], [0], [0], [1], [0, 0, 1, 1], [], []>} : vector<64x256xf32>, vector<256x3xf32>, vector<64x3xf32> -> vector<64x3xf32>
    %c6_51 = arith.constant 6 : index
    %c0_52 = arith.constant 0 : index
    %c0_53 = arith.constant 0 : index
    %50 = vector.load %arg11[%c6_51, %c0_52, %c0_53] : memref<10x3x32xf32, #tpu.memory_space<vmem>>, vector<1x3x32xf32>
    %51 = vector.shape_cast %50 : vector<1x3x32xf32> to vector<3x32xf32>
    %cst_54 = arith.constant dense<0.000000e+00> : vector<64x32xf32>
    %52 = tpu.matmul %49, %51, %cst_54 {dimension_numbers = #tpu.dot_dimension_numbers<[1], [0], [0], [1], [0, 0, 1, 1], [], []>} : vector<64x3xf32>, vector<3x32xf32>, vector<64x32xf32> -> vector<64x32xf32>
    %53 = arith.addf %46, %52 : vector<64x32xf32>
    %c7 = arith.constant 7 : index
    %c0_55 = arith.constant 0 : index
    %c0_56 = arith.constant 0 : index
    %54 = vector.load %arg3[%c7, %c0_55, %c0_56] : memref<9x64x256xf32, #tpu.memory_space<vmem>>, vector<1x64x256xf32>
    %55 = vector.shape_cast %54 : vector<1x64x256xf32> to vector<64x256xf32>
    %cst_57 = arith.constant dense<0.000000e+00> : vector<64x3xf32>
    %56 = tpu.matmul %55, %3, %cst_57 {dimension_numbers = #tpu.dot_dimension_numbers<[1], [0], [0], [1], [0, 0, 1, 1], [], []>} : vector<64x256xf32>, vector<256x3xf32>, vector<64x3xf32> -> vector<64x3xf32>
    %c7_58 = arith.constant 7 : index
    %c0_59 = arith.constant 0 : index
    %c0_60 = arith.constant 0 : index
    %57 = vector.load %arg11[%c7_58, %c0_59, %c0_60] : memref<10x3x32xf32, #tpu.memory_space<vmem>>, vector<1x3x32xf32>
    %58 = vector.shape_cast %57 : vector<1x3x32xf32> to vector<3x32xf32>
    %cst_61 = arith.constant dense<0.000000e+00> : vector<64x32xf32>
    %59 = tpu.matmul %56, %58, %cst_61 {dimension_numbers = #tpu.dot_dimension_numbers<[1], [0], [0], [1], [0, 0, 1, 1], [], []>} : vector<64x3xf32>, vector<3x32xf32>, vector<64x32xf32> -> vector<64x32xf32>
    %60 = arith.addf %53, %59 : vector<64x32xf32>
    %c8 = arith.constant 8 : index
    %c0_62 = arith.constant 0 : index
    %c0_63 = arith.constant 0 : index
    %61 = vector.load %arg3[%c8, %c0_62, %c0_63] : memref<9x64x256xf32, #tpu.memory_space<vmem>>, vector<1x64x256xf32>
    %62 = vector.shape_cast %61 : vector<1x64x256xf32> to vector<64x256xf32>
    %cst_64 = arith.constant dense<0.000000e+00> : vector<64x3xf32>
    %63 = tpu.matmul %62, %3, %cst_64 {dimension_numbers = #tpu.dot_dimension_numbers<[1], [0], [0], [1], [0, 0, 1, 1], [], []>} : vector<64x256xf32>, vector<256x3xf32>, vector<64x3xf32> -> vector<64x3xf32>
    %c8_65 = arith.constant 8 : index
    %c0_66 = arith.constant 0 : index
    %c0_67 = arith.constant 0 : index
    %64 = vector.load %arg11[%c8_65, %c0_66, %c0_67] : memref<10x3x32xf32, #tpu.memory_space<vmem>>, vector<1x3x32xf32>
    %65 = vector.shape_cast %64 : vector<1x3x32xf32> to vector<3x32xf32>
    %cst_68 = arith.constant dense<0.000000e+00> : vector<64x32xf32>
    %66 = tpu.matmul %63, %65, %cst_68 {dimension_numbers = #tpu.dot_dimension_numbers<[1], [0], [0], [1], [0, 0, 1, 1], [], []>} : vector<64x3xf32>, vector<3x32xf32>, vector<64x32xf32> -> vector<64x32xf32>
    %67 = arith.addf %60, %66 : vector<64x32xf32>
    %c9 = arith.constant 9 : index
    %c0_69 = arith.constant 0 : index
    %c0_70 = arith.constant 0 : index
    %68 = vector.load %arg11[%c9, %c0_69, %c0_70] : memref<10x3x32xf32, #tpu.memory_space<vmem>>, vector<1x1x32xf32>
    %69 = vector.shape_cast %68 : vector<1x1x32xf32> to vector<1x32xf32>
    %70 = vector.broadcast %69 : vector<1x32xf32> to vector<64x32xf32>
    %71 = arith.addf %67, %70 : vector<64x32xf32>
    %72 = arith.negf %71 : vector<64x32xf32>
    %73 = math.exp %72 : vector<64x32xf32>
    %cst_71 = arith.constant 1.000000e+00 : f32
    %74 = vector.broadcast %cst_71 : f32 to vector<64x32xf32>
    %75 = arith.addf %74, %73 : vector<64x32xf32>
    %76 = arith.divf %74, %75 : vector<64x32xf32>
    %77 = arith.mulf %71, %76 : vector<64x32xf32>
    %cst_72 = arith.constant 0.000000e+00 : f32
    %78 = vector.broadcast %cst_72 : f32 to vector<64x32xf32>
    %c0_73 = arith.constant 0 : index
    %c0_74 = arith.constant 0 : index
    %c0_75 = arith.constant 0 : index
    %79 = vector.load %arg3[%c0_73, %c0_74, %c0_75] : memref<9x64x256xf32, #tpu.memory_space<vmem>>, vector<1x64x256xf32>
    %80 = vector.shape_cast %79 : vector<1x64x256xf32> to vector<64x256xf32>
    %cst_76 = arith.constant dense<0.000000e+00> : vector<64x3xf32>
    %81 = tpu.matmul %80, %1, %cst_76 {dimension_numbers = #tpu.dot_dimension_numbers<[1], [0], [0], [1], [0, 0, 1, 1], [], []>} : vector<64x256xf32>, vector<256x3xf32>, vector<64x3xf32> -> vector<64x3xf32>
    %c0_77 = arith.constant 0 : index
    %c0_78 = arith.constant 0 : index
    %c0_79 = arith.constant 0 : index
    %82 = vector.load %arg7[%c0_77, %c0_78, %c0_79] : memref<10x3x32xf32, #tpu.memory_space<vmem>>, vector<1x3x32xf32>
    %83 = vector.shape_cast %82 : vector<1x3x32xf32> to vector<3x32xf32>
    %cst_80 = arith.constant dense<0.000000e+00> : vector<64x32xf32>
    %84 = tpu.matmul %81, %83, %cst_80 {dimension_numbers = #tpu.dot_dimension_numbers<[1], [0], [0], [1], [0, 0, 1, 1], [], []>} : vector<64x3xf32>, vector<3x32xf32>, vector<64x32xf32> -> vector<64x32xf32>
    %85 = arith.addf %78, %84 : vector<64x32xf32>
    %c1_81 = arith.constant 1 : index
    %c0_82 = arith.constant 0 : index
    %c0_83 = arith.constant 0 : index
    %86 = vector.load %arg3[%c1_81, %c0_82, %c0_83] : memref<9x64x256xf32, #tpu.memory_space<vmem>>, vector<1x64x256xf32>
    %87 = vector.shape_cast %86 : vector<1x64x256xf32> to vector<64x256xf32>
    %cst_84 = arith.constant dense<0.000000e+00> : vector<64x3xf32>
    %88 = tpu.matmul %87, %1, %cst_84 {dimension_numbers = #tpu.dot_dimension_numbers<[1], [0], [0], [1], [0, 0, 1, 1], [], []>} : vector<64x256xf32>, vector<256x3xf32>, vector<64x3xf32> -> vector<64x3xf32>
    %c1_85 = arith.constant 1 : index
    %c0_86 = arith.constant 0 : index
    %c0_87 = arith.constant 0 : index
    %89 = vector.load %arg7[%c1_85, %c0_86, %c0_87] : memref<10x3x32xf32, #tpu.memory_space<vmem>>, vector<1x3x32xf32>
    %90 = vector.shape_cast %89 : vector<1x3x32xf32> to vector<3x32xf32>
    %cst_88 = arith.constant dense<0.000000e+00> : vector<64x32xf32>
    %91 = tpu.matmul %88, %90, %cst_88 {dimension_numbers = #tpu.dot_dimension_numbers<[1], [0], [0], [1], [0, 0, 1, 1], [], []>} : vector<64x3xf32>, vector<3x32xf32>, vector<64x32xf32> -> vector<64x32xf32>
    %92 = arith.addf %85, %91 : vector<64x32xf32>
    %c2_89 = arith.constant 2 : index
    %c0_90 = arith.constant 0 : index
    %c0_91 = arith.constant 0 : index
    %93 = vector.load %arg3[%c2_89, %c0_90, %c0_91] : memref<9x64x256xf32, #tpu.memory_space<vmem>>, vector<1x64x256xf32>
    %94 = vector.shape_cast %93 : vector<1x64x256xf32> to vector<64x256xf32>
    %cst_92 = arith.constant dense<0.000000e+00> : vector<64x3xf32>
    %95 = tpu.matmul %94, %1, %cst_92 {dimension_numbers = #tpu.dot_dimension_numbers<[1], [0], [0], [1], [0, 0, 1, 1], [], []>} : vector<64x256xf32>, vector<256x3xf32>, vector<64x3xf32> -> vector<64x3xf32>
    %c2_93 = arith.constant 2 : index
    %c0_94 = arith.constant 0 : index
    %c0_95 = arith.constant 0 : index
    %96 = vector.load %arg7[%c2_93, %c0_94, %c0_95] : memref<10x3x32xf32, #tpu.memory_space<vmem>>, vector<1x3x32xf32>
    %97 = vector.shape_cast %96 : vector<1x3x32xf32> to vector<3x32xf32>
    %cst_96 = arith.constant dense<0.000000e+00> : vector<64x32xf32>
    %98 = tpu.matmul %95, %97, %cst_96 {dimension_numbers = #tpu.dot_dimension_numbers<[1], [0], [0], [1], [0, 0, 1, 1], [], []>} : vector<64x3xf32>, vector<3x32xf32>, vector<64x32xf32> -> vector<64x32xf32>
    %99 = arith.addf %92, %98 : vector<64x32xf32>
    %c3_97 = arith.constant 3 : index
    %c0_98 = arith.constant 0 : index
    %c0_99 = arith.constant 0 : index
    %100 = vector.load %arg3[%c3_97, %c0_98, %c0_99] : memref<9x64x256xf32, #tpu.memory_space<vmem>>, vector<1x64x256xf32>
    %101 = vector.shape_cast %100 : vector<1x64x256xf32> to vector<64x256xf32>
    %cst_100 = arith.constant dense<0.000000e+00> : vector<64x3xf32>
    %102 = tpu.matmul %101, %1, %cst_100 {dimension_numbers = #tpu.dot_dimension_numbers<[1], [0], [0], [1], [0, 0, 1, 1], [], []>} : vector<64x256xf32>, vector<256x3xf32>, vector<64x3xf32> -> vector<64x3xf32>
    %c3_101 = arith.constant 3 : index
    %c0_102 = arith.constant 0 : index
    %c0_103 = arith.constant 0 : index
    %103 = vector.load %arg7[%c3_101, %c0_102, %c0_103] : memref<10x3x32xf32, #tpu.memory_space<vmem>>, vector<1x3x32xf32>
    %104 = vector.shape_cast %103 : vector<1x3x32xf32> to vector<3x32xf32>
    %cst_104 = arith.constant dense<0.000000e+00> : vector<64x32xf32>
    %105 = tpu.matmul %102, %104, %cst_104 {dimension_numbers = #tpu.dot_dimension_numbers<[1], [0], [0], [1], [0, 0, 1, 1], [], []>} : vector<64x3xf32>, vector<3x32xf32>, vector<64x32xf32> -> vector<64x32xf32>
    %106 = arith.addf %99, %105 : vector<64x32xf32>
    %c4_105 = arith.constant 4 : index
    %c0_106 = arith.constant 0 : index
    %c0_107 = arith.constant 0 : index
    %107 = vector.load %arg3[%c4_105, %c0_106, %c0_107] : memref<9x64x256xf32, #tpu.memory_space<vmem>>, vector<1x64x256xf32>
    %108 = vector.shape_cast %107 : vector<1x64x256xf32> to vector<64x256xf32>
    %cst_108 = arith.constant dense<0.000000e+00> : vector<64x3xf32>
    %109 = tpu.matmul %108, %1, %cst_108 {dimension_numbers = #tpu.dot_dimension_numbers<[1], [0], [0], [1], [0, 0, 1, 1], [], []>} : vector<64x256xf32>, vector<256x3xf32>, vector<64x3xf32> -> vector<64x3xf32>
    %c4_109 = arith.constant 4 : index
    %c0_110 = arith.constant 0 : index
    %c0_111 = arith.constant 0 : index
    %110 = vector.load %arg7[%c4_109, %c0_110, %c0_111] : memref<10x3x32xf32, #tpu.memory_space<vmem>>, vector<1x3x32xf32>
    %111 = vector.shape_cast %110 : vector<1x3x32xf32> to vector<3x32xf32>
    %cst_112 = arith.constant dense<0.000000e+00> : vector<64x32xf32>
    %112 = tpu.matmul %109, %111, %cst_112 {dimension_numbers = #tpu.dot_dimension_numbers<[1], [0], [0], [1], [0, 0, 1, 1], [], []>} : vector<64x3xf32>, vector<3x32xf32>, vector<64x32xf32> -> vector<64x32xf32>
    %113 = arith.addf %106, %112 : vector<64x32xf32>
    %c5_113 = arith.constant 5 : index
    %c0_114 = arith.constant 0 : index
    %c0_115 = arith.constant 0 : index
    %114 = vector.load %arg3[%c5_113, %c0_114, %c0_115] : memref<9x64x256xf32, #tpu.memory_space<vmem>>, vector<1x64x256xf32>
    %115 = vector.shape_cast %114 : vector<1x64x256xf32> to vector<64x256xf32>
    %cst_116 = arith.constant dense<0.000000e+00> : vector<64x3xf32>
    %116 = tpu.matmul %115, %1, %cst_116 {dimension_numbers = #tpu.dot_dimension_numbers<[1], [0], [0], [1], [0, 0, 1, 1], [], []>} : vector<64x256xf32>, vector<256x3xf32>, vector<64x3xf32> -> vector<64x3xf32>
    %c5_117 = arith.constant 5 : index
    %c0_118 = arith.constant 0 : index
    %c0_119 = arith.constant 0 : index
    %117 = vector.load %arg7[%c5_117, %c0_118, %c0_119] : memref<10x3x32xf32, #tpu.memory_space<vmem>>, vector<1x3x32xf32>
    %118 = vector.shape_cast %117 : vector<1x3x32xf32> to vector<3x32xf32>
    %cst_120 = arith.constant dense<0.000000e+00> : vector<64x32xf32>
    %119 = tpu.matmul %116, %118, %cst_120 {dimension_numbers = #tpu.dot_dimension_numbers<[1], [0], [0], [1], [0, 0, 1, 1], [], []>} : vector<64x3xf32>, vector<3x32xf32>, vector<64x32xf32> -> vector<64x32xf32>
    %120 = arith.addf %113, %119 : vector<64x32xf32>
    %c6_121 = arith.constant 6 : index
    %c0_122 = arith.constant 0 : index
    %c0_123 = arith.constant 0 : index
    %121 = vector.load %arg3[%c6_121, %c0_122, %c0_123] : memref<9x64x256xf32, #tpu.memory_space<vmem>>, vector<1x64x256xf32>
    %122 = vector.shape_cast %121 : vector<1x64x256xf32> to vector<64x256xf32>
    %cst_124 = arith.constant dense<0.000000e+00> : vector<64x3xf32>
    %123 = tpu.matmul %122, %1, %cst_124 {dimension_numbers = #tpu.dot_dimension_numbers<[1], [0], [0], [1], [0, 0, 1, 1], [], []>} : vector<64x256xf32>, vector<256x3xf32>, vector<64x3xf32> -> vector<64x3xf32>
    %c6_125 = arith.constant 6 : index
    %c0_126 = arith.constant 0 : index
    %c0_127 = arith.constant 0 : index
    %124 = vector.load %arg7[%c6_125, %c0_126, %c0_127] : memref<10x3x32xf32, #tpu.memory_space<vmem>>, vector<1x3x32xf32>
    %125 = vector.shape_cast %124 : vector<1x3x32xf32> to vector<3x32xf32>
    %cst_128 = arith.constant dense<0.000000e+00> : vector<64x32xf32>
    %126 = tpu.matmul %123, %125, %cst_128 {dimension_numbers = #tpu.dot_dimension_numbers<[1], [0], [0], [1], [0, 0, 1, 1], [], []>} : vector<64x3xf32>, vector<3x32xf32>, vector<64x32xf32> -> vector<64x32xf32>
    %127 = arith.addf %120, %126 : vector<64x32xf32>
    %c7_129 = arith.constant 7 : index
    %c0_130 = arith.constant 0 : index
    %c0_131 = arith.constant 0 : index
    %128 = vector.load %arg3[%c7_129, %c0_130, %c0_131] : memref<9x64x256xf32, #tpu.memory_space<vmem>>, vector<1x64x256xf32>
    %129 = vector.shape_cast %128 : vector<1x64x256xf32> to vector<64x256xf32>
    %cst_132 = arith.constant dense<0.000000e+00> : vector<64x3xf32>
    %130 = tpu.matmul %129, %1, %cst_132 {dimension_numbers = #tpu.dot_dimension_numbers<[1], [0], [0], [1], [0, 0, 1, 1], [], []>} : vector<64x256xf32>, vector<256x3xf32>, vector<64x3xf32> -> vector<64x3xf32>
    %c7_133 = arith.constant 7 : index
    %c0_134 = arith.constant 0 : index
    %c0_135 = arith.constant 0 : index
    %131 = vector.load %arg7[%c7_133, %c0_134, %c0_135] : memref<10x3x32xf32, #tpu.memory_space<vmem>>, vector<1x3x32xf32>
    %132 = vector.shape_cast %131 : vector<1x3x32xf32> to vector<3x32xf32>
    %cst_136 = arith.constant dense<0.000000e+00> : vector<64x32xf32>
    %133 = tpu.matmul %130, %132, %cst_136 {dimension_numbers = #tpu.dot_dimension_numbers<[1], [0], [0], [1], [0, 0, 1, 1], [], []>} : vector<64x3xf32>, vector<3x32xf32>, vector<64x32xf32> -> vector<64x32xf32>
    %134 = arith.addf %127, %133 : vector<64x32xf32>
    %c8_137 = arith.constant 8 : index
    %c0_138 = arith.constant 0 : index
    %c0_139 = arith.constant 0 : index
    %135 = vector.load %arg3[%c8_137, %c0_138, %c0_139] : memref<9x64x256xf32, #tpu.memory_space<vmem>>, vector<1x64x256xf32>
    %136 = vector.shape_cast %135 : vector<1x64x256xf32> to vector<64x256xf32>
    %cst_140 = arith.constant dense<0.000000e+00> : vector<64x3xf32>
    %137 = tpu.matmul %136, %1, %cst_140 {dimension_numbers = #tpu.dot_dimension_numbers<[1], [0], [0], [1], [0, 0, 1, 1], [], []>} : vector<64x256xf32>, vector<256x3xf32>, vector<64x3xf32> -> vector<64x3xf32>
    %c8_141 = arith.constant 8 : index
    %c0_142 = arith.constant 0 : index
    %c0_143 = arith.constant 0 : index
    %138 = vector.load %arg7[%c8_141, %c0_142, %c0_143] : memref<10x3x32xf32, #tpu.memory_space<vmem>>, vector<1x3x32xf32>
    %139 = vector.shape_cast %138 : vector<1x3x32xf32> to vector<3x32xf32>
    %cst_144 = arith.constant dense<0.000000e+00> : vector<64x32xf32>
    %140 = tpu.matmul %137, %139, %cst_144 {dimension_numbers = #tpu.dot_dimension_numbers<[1], [0], [0], [1], [0, 0, 1, 1], [], []>} : vector<64x3xf32>, vector<3x32xf32>, vector<64x32xf32> -> vector<64x32xf32>
    %141 = arith.addf %134, %140 : vector<64x32xf32>
    %c9_145 = arith.constant 9 : index
    %c0_146 = arith.constant 0 : index
    %c0_147 = arith.constant 0 : index
    %142 = vector.load %arg7[%c9_145, %c0_146, %c0_147] : memref<10x3x32xf32, #tpu.memory_space<vmem>>, vector<1x1x32xf32>
    %143 = vector.shape_cast %142 : vector<1x1x32xf32> to vector<1x32xf32>
    %144 = vector.broadcast %143 : vector<1x32xf32> to vector<64x32xf32>
    %145 = arith.addf %141, %144 : vector<64x32xf32>
    %146 = arith.negf %145 : vector<64x32xf32>
    %147 = math.exp %146 : vector<64x32xf32>
    %cst_148 = arith.constant 1.000000e+00 : f32
    %148 = vector.broadcast %cst_148 : f32 to vector<64x32xf32>
    %149 = arith.addf %148, %147 : vector<64x32xf32>
    %150 = arith.divf %148, %149 : vector<64x32xf32>
    %151 = arith.mulf %145, %150 : vector<64x32xf32>
    %cst_149 = arith.constant 0.000000e+00 : f32
    %152 = vector.broadcast %cst_149 : f32 to vector<64x16xf32>
    %c0_150 = arith.constant 0 : index
    %c0_151 = arith.constant 0 : index
    %c0_152 = arith.constant 0 : index
    %153 = vector.load %arg4[%c0_150, %c0_151, %c0_152] : memref<9x64x64xf32, #tpu.memory_space<vmem>>, vector<1x64x64xf32>
    %154 = vector.shape_cast %153 : vector<1x64x64xf32> to vector<64x64xf32>
    %cst_153 = arith.constant dense<0.000000e+00> : vector<64x32xf32>
    %155 = tpu.matmul %154, %77, %cst_153 {dimension_numbers = #tpu.dot_dimension_numbers<[1], [0], [0], [1], [0, 0, 1, 1], [], []>} : vector<64x64xf32>, vector<64x32xf32>, vector<64x32xf32> -> vector<64x32xf32>
    %c0_154 = arith.constant 0 : index
    %c0_155 = arith.constant 0 : index
    %c0_156 = arith.constant 0 : index
    %156 = vector.load %arg12[%c0_154, %c0_155, %c0_156] : memref<10x32x16xf32, #tpu.memory_space<vmem>>, vector<1x32x16xf32>
    %157 = vector.shape_cast %156 : vector<1x32x16xf32> to vector<32x16xf32>
    %cst_157 = arith.constant dense<0.000000e+00> : vector<64x16xf32>
    %158 = tpu.matmul %155, %157, %cst_157 {dimension_numbers = #tpu.dot_dimension_numbers<[1], [0], [0], [1], [0, 0, 1, 1], [], []>} : vector<64x32xf32>, vector<32x16xf32>, vector<64x16xf32> -> vector<64x16xf32>
    %159 = arith.addf %152, %158 : vector<64x16xf32>
    %c1_158 = arith.constant 1 : index
    %c0_159 = arith.constant 0 : index
    %c0_160 = arith.constant 0 : index
    %160 = vector.load %arg4[%c1_158, %c0_159, %c0_160] : memref<9x64x64xf32, #tpu.memory_space<vmem>>, vector<1x64x64xf32>
    %161 = vector.shape_cast %160 : vector<1x64x64xf32> to vector<64x64xf32>
    %cst_161 = arith.constant dense<0.000000e+00> : vector<64x32xf32>
    %162 = tpu.matmul %161, %77, %cst_161 {dimension_numbers = #tpu.dot_dimension_numbers<[1], [0], [0], [1], [0, 0, 1, 1], [], []>} : vector<64x64xf32>, vector<64x32xf32>, vector<64x32xf32> -> vector<64x32xf32>
    %c1_162 = arith.constant 1 : index
    %c0_163 = arith.constant 0 : index
    %c0_164 = arith.constant 0 : index
    %163 = vector.load %arg12[%c1_162, %c0_163, %c0_164] : memref<10x32x16xf32, #tpu.memory_space<vmem>>, vector<1x32x16xf32>
    %164 = vector.shape_cast %163 : vector<1x32x16xf32> to vector<32x16xf32>
    %cst_165 = arith.constant dense<0.000000e+00> : vector<64x16xf32>
    %165 = tpu.matmul %162, %164, %cst_165 {dimension_numbers = #tpu.dot_dimension_numbers<[1], [0], [0], [1], [0, 0, 1, 1], [], []>} : vector<64x32xf32>, vector<32x16xf32>, vector<64x16xf32> -> vector<64x16xf32>
    %166 = arith.addf %159, %165 : vector<64x16xf32>
    %c2_166 = arith.constant 2 : index
    %c0_167 = arith.constant 0 : index
    %c0_168 = arith.constant 0 : index
    %167 = vector.load %arg4[%c2_166, %c0_167, %c0_168] : memref<9x64x64xf32, #tpu.memory_space<vmem>>, vector<1x64x64xf32>
    %168 = vector.shape_cast %167 : vector<1x64x64xf32> to vector<64x64xf32>
    %cst_169 = arith.constant dense<0.000000e+00> : vector<64x32xf32>
    %169 = tpu.matmul %168, %77, %cst_169 {dimension_numbers = #tpu.dot_dimension_numbers<[1], [0], [0], [1], [0, 0, 1, 1], [], []>} : vector<64x64xf32>, vector<64x32xf32>, vector<64x32xf32> -> vector<64x32xf32>
    %c2_170 = arith.constant 2 : index
    %c0_171 = arith.constant 0 : index
    %c0_172 = arith.constant 0 : index
    %170 = vector.load %arg12[%c2_170, %c0_171, %c0_172] : memref<10x32x16xf32, #tpu.memory_space<vmem>>, vector<1x32x16xf32>
    %171 = vector.shape_cast %170 : vector<1x32x16xf32> to vector<32x16xf32>
    %cst_173 = arith.constant dense<0.000000e+00> : vector<64x16xf32>
    %172 = tpu.matmul %169, %171, %cst_173 {dimension_numbers = #tpu.dot_dimension_numbers<[1], [0], [0], [1], [0, 0, 1, 1], [], []>} : vector<64x32xf32>, vector<32x16xf32>, vector<64x16xf32> -> vector<64x16xf32>
    %173 = arith.addf %166, %172 : vector<64x16xf32>
    %c3_174 = arith.constant 3 : index
    %c0_175 = arith.constant 0 : index
    %c0_176 = arith.constant 0 : index
    %174 = vector.load %arg4[%c3_174, %c0_175, %c0_176] : memref<9x64x64xf32, #tpu.memory_space<vmem>>, vector<1x64x64xf32>
    %175 = vector.shape_cast %174 : vector<1x64x64xf32> to vector<64x64xf32>
    %cst_177 = arith.constant dense<0.000000e+00> : vector<64x32xf32>
    %176 = tpu.matmul %175, %77, %cst_177 {dimension_numbers = #tpu.dot_dimension_numbers<[1], [0], [0], [1], [0, 0, 1, 1], [], []>} : vector<64x64xf32>, vector<64x32xf32>, vector<64x32xf32> -> vector<64x32xf32>
    %c3_178 = arith.constant 3 : index
    %c0_179 = arith.constant 0 : index
    %c0_180 = arith.constant 0 : index
    %177 = vector.load %arg12[%c3_178, %c0_179, %c0_180] : memref<10x32x16xf32, #tpu.memory_space<vmem>>, vector<1x32x16xf32>
    %178 = vector.shape_cast %177 : vector<1x32x16xf32> to vector<32x16xf32>
    %cst_181 = arith.constant dense<0.000000e+00> : vector<64x16xf32>
    %179 = tpu.matmul %176, %178, %cst_181 {dimension_numbers = #tpu.dot_dimension_numbers<[1], [0], [0], [1], [0, 0, 1, 1], [], []>} : vector<64x32xf32>, vector<32x16xf32>, vector<64x16xf32> -> vector<64x16xf32>
    %180 = arith.addf %173, %179 : vector<64x16xf32>
    %c4_182 = arith.constant 4 : index
    %c0_183 = arith.constant 0 : index
    %c0_184 = arith.constant 0 : index
    %181 = vector.load %arg4[%c4_182, %c0_183, %c0_184] : memref<9x64x64xf32, #tpu.memory_space<vmem>>, vector<1x64x64xf32>
    %182 = vector.shape_cast %181 : vector<1x64x64xf32> to vector<64x64xf32>
    %cst_185 = arith.constant dense<0.000000e+00> : vector<64x32xf32>
    %183 = tpu.matmul %182, %77, %cst_185 {dimension_numbers = #tpu.dot_dimension_numbers<[1], [0], [0], [1], [0, 0, 1, 1], [], []>} : vector<64x64xf32>, vector<64x32xf32>, vector<64x32xf32> -> vector<64x32xf32>
    %c4_186 = arith.constant 4 : index
    %c0_187 = arith.constant 0 : index
    %c0_188 = arith.constant 0 : index
    %184 = vector.load %arg12[%c4_186, %c0_187, %c0_188] : memref<10x32x16xf32, #tpu.memory_space<vmem>>, vector<1x32x16xf32>
    %185 = vector.shape_cast %184 : vector<1x32x16xf32> to vector<32x16xf32>
    %cst_189 = arith.constant dense<0.000000e+00> : vector<64x16xf32>
    %186 = tpu.matmul %183, %185, %cst_189 {dimension_numbers = #tpu.dot_dimension_numbers<[1], [0], [0], [1], [0, 0, 1, 1], [], []>} : vector<64x32xf32>, vector<32x16xf32>, vector<64x16xf32> -> vector<64x16xf32>
    %187 = arith.addf %180, %186 : vector<64x16xf32>
    %c5_190 = arith.constant 5 : index
    %c0_191 = arith.constant 0 : index
    %c0_192 = arith.constant 0 : index
    %188 = vector.load %arg4[%c5_190, %c0_191, %c0_192] : memref<9x64x64xf32, #tpu.memory_space<vmem>>, vector<1x64x64xf32>
    %189 = vector.shape_cast %188 : vector<1x64x64xf32> to vector<64x64xf32>
    %cst_193 = arith.constant dense<0.000000e+00> : vector<64x32xf32>
    %190 = tpu.matmul %189, %77, %cst_193 {dimension_numbers = #tpu.dot_dimension_numbers<[1], [0], [0], [1], [0, 0, 1, 1], [], []>} : vector<64x64xf32>, vector<64x32xf32>, vector<64x32xf32> -> vector<64x32xf32>
    %c5_194 = arith.constant 5 : index
    %c0_195 = arith.constant 0 : index
    %c0_196 = arith.constant 0 : index
    %191 = vector.load %arg12[%c5_194, %c0_195, %c0_196] : memref<10x32x16xf32, #tpu.memory_space<vmem>>, vector<1x32x16xf32>
    %192 = vector.shape_cast %191 : vector<1x32x16xf32> to vector<32x16xf32>
    %cst_197 = arith.constant dense<0.000000e+00> : vector<64x16xf32>
    %193 = tpu.matmul %190, %192, %cst_197 {dimension_numbers = #tpu.dot_dimension_numbers<[1], [0], [0], [1], [0, 0, 1, 1], [], []>} : vector<64x32xf32>, vector<32x16xf32>, vector<64x16xf32> -> vector<64x16xf32>
    %194 = arith.addf %187, %193 : vector<64x16xf32>
    %c6_198 = arith.constant 6 : index
    %c0_199 = arith.constant 0 : index
    %c0_200 = arith.constant 0 : index
    %195 = vector.load %arg4[%c6_198, %c0_199, %c0_200] : memref<9x64x64xf32, #tpu.memory_space<vmem>>, vector<1x64x64xf32>
    %196 = vector.shape_cast %195 : vector<1x64x64xf32> to vector<64x64xf32>
    %cst_201 = arith.constant dense<0.000000e+00> : vector<64x32xf32>
    %197 = tpu.matmul %196, %77, %cst_201 {dimension_numbers = #tpu.dot_dimension_numbers<[1], [0], [0], [1], [0, 0, 1, 1], [], []>} : vector<64x64xf32>, vector<64x32xf32>, vector<64x32xf32> -> vector<64x32xf32>
    %c6_202 = arith.constant 6 : index
    %c0_203 = arith.constant 0 : index
    %c0_204 = arith.constant 0 : index
    %198 = vector.load %arg12[%c6_202, %c0_203, %c0_204] : memref<10x32x16xf32, #tpu.memory_space<vmem>>, vector<1x32x16xf32>
    %199 = vector.shape_cast %198 : vector<1x32x16xf32> to vector<32x16xf32>
    %cst_205 = arith.constant dense<0.000000e+00> : vector<64x16xf32>
    %200 = tpu.matmul %197, %199, %cst_205 {dimension_numbers = #tpu.dot_dimension_numbers<[1], [0], [0], [1], [0, 0, 1, 1], [], []>} : vector<64x32xf32>, vector<32x16xf32>, vector<64x16xf32> -> vector<64x16xf32>
    %201 = arith.addf %194, %200 : vector<64x16xf32>
    %c7_206 = arith.constant 7 : index
    %c0_207 = arith.constant 0 : index
    %c0_208 = arith.constant 0 : index
    %202 = vector.load %arg4[%c7_206, %c0_207, %c0_208] : memref<9x64x64xf32, #tpu.memory_space<vmem>>, vector<1x64x64xf32>
    %203 = vector.shape_cast %202 : vector<1x64x64xf32> to vector<64x64xf32>
    %cst_209 = arith.constant dense<0.000000e+00> : vector<64x32xf32>
    %204 = tpu.matmul %203, %77, %cst_209 {dimension_numbers = #tpu.dot_dimension_numbers<[1], [0], [0], [1], [0, 0, 1, 1], [], []>} : vector<64x64xf32>, vector<64x32xf32>, vector<64x32xf32> -> vector<64x32xf32>
    %c7_210 = arith.constant 7 : index
    %c0_211 = arith.constant 0 : index
    %c0_212 = arith.constant 0 : index
    %205 = vector.load %arg12[%c7_210, %c0_211, %c0_212] : memref<10x32x16xf32, #tpu.memory_space<vmem>>, vector<1x32x16xf32>
    %206 = vector.shape_cast %205 : vector<1x32x16xf32> to vector<32x16xf32>
    %cst_213 = arith.constant dense<0.000000e+00> : vector<64x16xf32>
    %207 = tpu.matmul %204, %206, %cst_213 {dimension_numbers = #tpu.dot_dimension_numbers<[1], [0], [0], [1], [0, 0, 1, 1], [], []>} : vector<64x32xf32>, vector<32x16xf32>, vector<64x16xf32> -> vector<64x16xf32>
    %208 = arith.addf %201, %207 : vector<64x16xf32>
    %c8_214 = arith.constant 8 : index
    %c0_215 = arith.constant 0 : index
    %c0_216 = arith.constant 0 : index
    %209 = vector.load %arg4[%c8_214, %c0_215, %c0_216] : memref<9x64x64xf32, #tpu.memory_space<vmem>>, vector<1x64x64xf32>
    %210 = vector.shape_cast %209 : vector<1x64x64xf32> to vector<64x64xf32>
    %cst_217 = arith.constant dense<0.000000e+00> : vector<64x32xf32>
    %211 = tpu.matmul %210, %77, %cst_217 {dimension_numbers = #tpu.dot_dimension_numbers<[1], [0], [0], [1], [0, 0, 1, 1], [], []>} : vector<64x64xf32>, vector<64x32xf32>, vector<64x32xf32> -> vector<64x32xf32>
    %c8_218 = arith.constant 8 : index
    %c0_219 = arith.constant 0 : index
    %c0_220 = arith.constant 0 : index
    %212 = vector.load %arg12[%c8_218, %c0_219, %c0_220] : memref<10x32x16xf32, #tpu.memory_space<vmem>>, vector<1x32x16xf32>
    %213 = vector.shape_cast %212 : vector<1x32x16xf32> to vector<32x16xf32>
    %cst_221 = arith.constant dense<0.000000e+00> : vector<64x16xf32>
    %214 = tpu.matmul %211, %213, %cst_221 {dimension_numbers = #tpu.dot_dimension_numbers<[1], [0], [0], [1], [0, 0, 1, 1], [], []>} : vector<64x32xf32>, vector<32x16xf32>, vector<64x16xf32> -> vector<64x16xf32>
    %215 = arith.addf %208, %214 : vector<64x16xf32>
    %c9_222 = arith.constant 9 : index
    %c0_223 = arith.constant 0 : index
    %c0_224 = arith.constant 0 : index
    %216 = vector.load %arg12[%c9_222, %c0_223, %c0_224] : memref<10x32x16xf32, #tpu.memory_space<vmem>>, vector<1x1x16xf32>
    %217 = vector.shape_cast %216 : vector<1x1x16xf32> to vector<1x16xf32>
    %218 = vector.broadcast %217 : vector<1x16xf32> to vector<64x16xf32>
    %219 = arith.addf %215, %218 : vector<64x16xf32>
    %220 = arith.negf %219 : vector<64x16xf32>
    %221 = math.exp %220 : vector<64x16xf32>
    %cst_225 = arith.constant 1.000000e+00 : f32
    %222 = vector.broadcast %cst_225 : f32 to vector<64x16xf32>
    %223 = arith.addf %222, %221 : vector<64x16xf32>
    %224 = arith.divf %222, %223 : vector<64x16xf32>
    %225 = arith.mulf %219, %224 : vector<64x16xf32>
    %cst_226 = arith.constant 0.000000e+00 : f32
    %226 = vector.broadcast %cst_226 : f32 to vector<64x16xf32>
    %c0_227 = arith.constant 0 : index
    %c0_228 = arith.constant 0 : index
    %c0_229 = arith.constant 0 : index
    %227 = vector.load %arg4[%c0_227, %c0_228, %c0_229] : memref<9x64x64xf32, #tpu.memory_space<vmem>>, vector<1x64x64xf32>
    %228 = vector.shape_cast %227 : vector<1x64x64xf32> to vector<64x64xf32>
    %cst_230 = arith.constant dense<0.000000e+00> : vector<64x32xf32>
    %229 = tpu.matmul %228, %151, %cst_230 {dimension_numbers = #tpu.dot_dimension_numbers<[1], [0], [0], [1], [0, 0, 1, 1], [], []>} : vector<64x64xf32>, vector<64x32xf32>, vector<64x32xf32> -> vector<64x32xf32>
    %c0_231 = arith.constant 0 : index
    %c0_232 = arith.constant 0 : index
    %c0_233 = arith.constant 0 : index
    %230 = vector.load %arg8[%c0_231, %c0_232, %c0_233] : memref<10x32x16xf32, #tpu.memory_space<vmem>>, vector<1x32x16xf32>
    %231 = vector.shape_cast %230 : vector<1x32x16xf32> to vector<32x16xf32>
    %cst_234 = arith.constant dense<0.000000e+00> : vector<64x16xf32>
    %232 = tpu.matmul %229, %231, %cst_234 {dimension_numbers = #tpu.dot_dimension_numbers<[1], [0], [0], [1], [0, 0, 1, 1], [], []>} : vector<64x32xf32>, vector<32x16xf32>, vector<64x16xf32> -> vector<64x16xf32>
    %233 = arith.addf %226, %232 : vector<64x16xf32>
    %c1_235 = arith.constant 1 : index
    %c0_236 = arith.constant 0 : index
    %c0_237 = arith.constant 0 : index
    %234 = vector.load %arg4[%c1_235, %c0_236, %c0_237] : memref<9x64x64xf32, #tpu.memory_space<vmem>>, vector<1x64x64xf32>
    %235 = vector.shape_cast %234 : vector<1x64x64xf32> to vector<64x64xf32>
    %cst_238 = arith.constant dense<0.000000e+00> : vector<64x32xf32>
    %236 = tpu.matmul %235, %151, %cst_238 {dimension_numbers = #tpu.dot_dimension_numbers<[1], [0], [0], [1], [0, 0, 1, 1], [], []>} : vector<64x64xf32>, vector<64x32xf32>, vector<64x32xf32> -> vector<64x32xf32>
    %c1_239 = arith.constant 1 : index
    %c0_240 = arith.constant 0 : index
    %c0_241 = arith.constant 0 : index
    %237 = vector.load %arg8[%c1_239, %c0_240, %c0_241] : memref<10x32x16xf32, #tpu.memory_space<vmem>>, vector<1x32x16xf32>
    %238 = vector.shape_cast %237 : vector<1x32x16xf32> to vector<32x16xf32>
    %cst_242 = arith.constant dense<0.000000e+00> : vector<64x16xf32>
    %239 = tpu.matmul %236, %238, %cst_242 {dimension_numbers = #tpu.dot_dimension_numbers<[1], [0], [0], [1], [0, 0, 1, 1], [], []>} : vector<64x32xf32>, vector<32x16xf32>, vector<64x16xf32> -> vector<64x16xf32>
    %240 = arith.addf %233, %239 : vector<64x16xf32>
    %c2_243 = arith.constant 2 : index
    %c0_244 = arith.constant 0 : index
    %c0_245 = arith.constant 0 : index
    %241 = vector.load %arg4[%c2_243, %c0_244, %c0_245] : memref<9x64x64xf32, #tpu.memory_space<vmem>>, vector<1x64x64xf32>
    %242 = vector.shape_cast %241 : vector<1x64x64xf32> to vector<64x64xf32>
    %cst_246 = arith.constant dense<0.000000e+00> : vector<64x32xf32>
    %243 = tpu.matmul %242, %151, %cst_246 {dimension_numbers = #tpu.dot_dimension_numbers<[1], [0], [0], [1], [0, 0, 1, 1], [], []>} : vector<64x64xf32>, vector<64x32xf32>, vector<64x32xf32> -> vector<64x32xf32>
    %c2_247 = arith.constant 2 : index
    %c0_248 = arith.constant 0 : index
    %c0_249 = arith.constant 0 : index
    %244 = vector.load %arg8[%c2_247, %c0_248, %c0_249] : memref<10x32x16xf32, #tpu.memory_space<vmem>>, vector<1x32x16xf32>
    %245 = vector.shape_cast %244 : vector<1x32x16xf32> to vector<32x16xf32>
    %cst_250 = arith.constant dense<0.000000e+00> : vector<64x16xf32>
    %246 = tpu.matmul %243, %245, %cst_250 {dimension_numbers = #tpu.dot_dimension_numbers<[1], [0], [0], [1], [0, 0, 1, 1], [], []>} : vector<64x32xf32>, vector<32x16xf32>, vector<64x16xf32> -> vector<64x16xf32>
    %247 = arith.addf %240, %246 : vector<64x16xf32>
    %c3_251 = arith.constant 3 : index
    %c0_252 = arith.constant 0 : index
    %c0_253 = arith.constant 0 : index
    %248 = vector.load %arg4[%c3_251, %c0_252, %c0_253] : memref<9x64x64xf32, #tpu.memory_space<vmem>>, vector<1x64x64xf32>
    %249 = vector.shape_cast %248 : vector<1x64x64xf32> to vector<64x64xf32>
    %cst_254 = arith.constant dense<0.000000e+00> : vector<64x32xf32>
    %250 = tpu.matmul %249, %151, %cst_254 {dimension_numbers = #tpu.dot_dimension_numbers<[1], [0], [0], [1], [0, 0, 1, 1], [], []>} : vector<64x64xf32>, vector<64x32xf32>, vector<64x32xf32> -> vector<64x32xf32>
    %c3_255 = arith.constant 3 : index
    %c0_256 = arith.constant 0 : index
    %c0_257 = arith.constant 0 : index
    %251 = vector.load %arg8[%c3_255, %c0_256, %c0_257] : memref<10x32x16xf32, #tpu.memory_space<vmem>>, vector<1x32x16xf32>
    %252 = vector.shape_cast %251 : vector<1x32x16xf32> to vector<32x16xf32>
    %cst_258 = arith.constant dense<0.000000e+00> : vector<64x16xf32>
    %253 = tpu.matmul %250, %252, %cst_258 {dimension_numbers = #tpu.dot_dimension_numbers<[1], [0], [0], [1], [0, 0, 1, 1], [], []>} : vector<64x32xf32>, vector<32x16xf32>, vector<64x16xf32> -> vector<64x16xf32>
    %254 = arith.addf %247, %253 : vector<64x16xf32>
    %c4_259 = arith.constant 4 : index
    %c0_260 = arith.constant 0 : index
    %c0_261 = arith.constant 0 : index
    %255 = vector.load %arg4[%c4_259, %c0_260, %c0_261] : memref<9x64x64xf32, #tpu.memory_space<vmem>>, vector<1x64x64xf32>
    %256 = vector.shape_cast %255 : vector<1x64x64xf32> to vector<64x64xf32>
    %cst_262 = arith.constant dense<0.000000e+00> : vector<64x32xf32>
    %257 = tpu.matmul %256, %151, %cst_262 {dimension_numbers = #tpu.dot_dimension_numbers<[1], [0], [0], [1], [0, 0, 1, 1], [], []>} : vector<64x64xf32>, vector<64x32xf32>, vector<64x32xf32> -> vector<64x32xf32>
    %c4_263 = arith.constant 4 : index
    %c0_264 = arith.constant 0 : index
    %c0_265 = arith.constant 0 : index
    %258 = vector.load %arg8[%c4_263, %c0_264, %c0_265] : memref<10x32x16xf32, #tpu.memory_space<vmem>>, vector<1x32x16xf32>
    %259 = vector.shape_cast %258 : vector<1x32x16xf32> to vector<32x16xf32>
    %cst_266 = arith.constant dense<0.000000e+00> : vector<64x16xf32>
    %260 = tpu.matmul %257, %259, %cst_266 {dimension_numbers = #tpu.dot_dimension_numbers<[1], [0], [0], [1], [0, 0, 1, 1], [], []>} : vector<64x32xf32>, vector<32x16xf32>, vector<64x16xf32> -> vector<64x16xf32>
    %261 = arith.addf %254, %260 : vector<64x16xf32>
    %c5_267 = arith.constant 5 : index
    %c0_268 = arith.constant 0 : index
    %c0_269 = arith.constant 0 : index
    %262 = vector.load %arg4[%c5_267, %c0_268, %c0_269] : memref<9x64x64xf32, #tpu.memory_space<vmem>>, vector<1x64x64xf32>
    %263 = vector.shape_cast %262 : vector<1x64x64xf32> to vector<64x64xf32>
    %cst_270 = arith.constant dense<0.000000e+00> : vector<64x32xf32>
    %264 = tpu.matmul %263, %151, %cst_270 {dimension_numbers = #tpu.dot_dimension_numbers<[1], [0], [0], [1], [0, 0, 1, 1], [], []>} : vector<64x64xf32>, vector<64x32xf32>, vector<64x32xf32> -> vector<64x32xf32>
    %c5_271 = arith.constant 5 : index
    %c0_272 = arith.constant 0 : index
    %c0_273 = arith.constant 0 : index
    %265 = vector.load %arg8[%c5_271, %c0_272, %c0_273] : memref<10x32x16xf32, #tpu.memory_space<vmem>>, vector<1x32x16xf32>
    %266 = vector.shape_cast %265 : vector<1x32x16xf32> to vector<32x16xf32>
    %cst_274 = arith.constant dense<0.000000e+00> : vector<64x16xf32>
    %267 = tpu.matmul %264, %266, %cst_274 {dimension_numbers = #tpu.dot_dimension_numbers<[1], [0], [0], [1], [0, 0, 1, 1], [], []>} : vector<64x32xf32>, vector<32x16xf32>, vector<64x16xf32> -> vector<64x16xf32>
    %268 = arith.addf %261, %267 : vector<64x16xf32>
    %c6_275 = arith.constant 6 : index
    %c0_276 = arith.constant 0 : index
    %c0_277 = arith.constant 0 : index
    %269 = vector.load %arg4[%c6_275, %c0_276, %c0_277] : memref<9x64x64xf32, #tpu.memory_space<vmem>>, vector<1x64x64xf32>
    %270 = vector.shape_cast %269 : vector<1x64x64xf32> to vector<64x64xf32>
    %cst_278 = arith.constant dense<0.000000e+00> : vector<64x32xf32>
    %271 = tpu.matmul %270, %151, %cst_278 {dimension_numbers = #tpu.dot_dimension_numbers<[1], [0], [0], [1], [0, 0, 1, 1], [], []>} : vector<64x64xf32>, vector<64x32xf32>, vector<64x32xf32> -> vector<64x32xf32>
    %c6_279 = arith.constant 6 : index
    %c0_280 = arith.constant 0 : index
    %c0_281 = arith.constant 0 : index
    %272 = vector.load %arg8[%c6_279, %c0_280, %c0_281] : memref<10x32x16xf32, #tpu.memory_space<vmem>>, vector<1x32x16xf32>
    %273 = vector.shape_cast %272 : vector<1x32x16xf32> to vector<32x16xf32>
    %cst_282 = arith.constant dense<0.000000e+00> : vector<64x16xf32>
    %274 = tpu.matmul %271, %273, %cst_282 {dimension_numbers = #tpu.dot_dimension_numbers<[1], [0], [0], [1], [0, 0, 1, 1], [], []>} : vector<64x32xf32>, vector<32x16xf32>, vector<64x16xf32> -> vector<64x16xf32>
    %275 = arith.addf %268, %274 : vector<64x16xf32>
    %c7_283 = arith.constant 7 : index
    %c0_284 = arith.constant 0 : index
    %c0_285 = arith.constant 0 : index
    %276 = vector.load %arg4[%c7_283, %c0_284, %c0_285] : memref<9x64x64xf32, #tpu.memory_space<vmem>>, vector<1x64x64xf32>
    %277 = vector.shape_cast %276 : vector<1x64x64xf32> to vector<64x64xf32>
    %cst_286 = arith.constant dense<0.000000e+00> : vector<64x32xf32>
    %278 = tpu.matmul %277, %151, %cst_286 {dimension_numbers = #tpu.dot_dimension_numbers<[1], [0], [0], [1], [0, 0, 1, 1], [], []>} : vector<64x64xf32>, vector<64x32xf32>, vector<64x32xf32> -> vector<64x32xf32>
    %c7_287 = arith.constant 7 : index
    %c0_288 = arith.constant 0 : index
    %c0_289 = arith.constant 0 : index
    %279 = vector.load %arg8[%c7_287, %c0_288, %c0_289] : memref<10x32x16xf32, #tpu.memory_space<vmem>>, vector<1x32x16xf32>
    %280 = vector.shape_cast %279 : vector<1x32x16xf32> to vector<32x16xf32>
    %cst_290 = arith.constant dense<0.000000e+00> : vector<64x16xf32>
    %281 = tpu.matmul %278, %280, %cst_290 {dimension_numbers = #tpu.dot_dimension_numbers<[1], [0], [0], [1], [0, 0, 1, 1], [], []>} : vector<64x32xf32>, vector<32x16xf32>, vector<64x16xf32> -> vector<64x16xf32>
    %282 = arith.addf %275, %281 : vector<64x16xf32>
    %c8_291 = arith.constant 8 : index
    %c0_292 = arith.constant 0 : index
    %c0_293 = arith.constant 0 : index
    %283 = vector.load %arg4[%c8_291, %c0_292, %c0_293] : memref<9x64x64xf32, #tpu.memory_space<vmem>>, vector<1x64x64xf32>
    %284 = vector.shape_cast %283 : vector<1x64x64xf32> to vector<64x64xf32>
    %cst_294 = arith.constant dense<0.000000e+00> : vector<64x32xf32>
    %285 = tpu.matmul %284, %151, %cst_294 {dimension_numbers = #tpu.dot_dimension_numbers<[1], [0], [0], [1], [0, 0, 1, 1], [], []>} : vector<64x64xf32>, vector<64x32xf32>, vector<64x32xf32> -> vector<64x32xf32>
    %c8_295 = arith.constant 8 : index
    %c0_296 = arith.constant 0 : index
    %c0_297 = arith.constant 0 : index
    %286 = vector.load %arg8[%c8_295, %c0_296, %c0_297] : memref<10x32x16xf32, #tpu.memory_space<vmem>>, vector<1x32x16xf32>
    %287 = vector.shape_cast %286 : vector<1x32x16xf32> to vector<32x16xf32>
    %cst_298 = arith.constant dense<0.000000e+00> : vector<64x16xf32>
    %288 = tpu.matmul %285, %287, %cst_298 {dimension_numbers = #tpu.dot_dimension_numbers<[1], [0], [0], [1], [0, 0, 1, 1], [], []>} : vector<64x32xf32>, vector<32x16xf32>, vector<64x16xf32> -> vector<64x16xf32>
    %289 = arith.addf %282, %288 : vector<64x16xf32>
    %c9_299 = arith.constant 9 : index
    %c0_300 = arith.constant 0 : index
    %c0_301 = arith.constant 0 : index
    %290 = vector.load %arg8[%c9_299, %c0_300, %c0_301] : memref<10x32x16xf32, #tpu.memory_space<vmem>>, vector<1x1x16xf32>
    %291 = vector.shape_cast %290 : vector<1x1x16xf32> to vector<1x16xf32>
    %292 = vector.broadcast %291 : vector<1x16xf32> to vector<64x16xf32>
    %293 = arith.addf %289, %292 : vector<64x16xf32>
    %294 = arith.negf %293 : vector<64x16xf32>
    %295 = math.exp %294 : vector<64x16xf32>
    %cst_302 = arith.constant 1.000000e+00 : f32
    %296 = vector.broadcast %cst_302 : f32 to vector<64x16xf32>
    %297 = arith.addf %296, %295 : vector<64x16xf32>
    %298 = arith.divf %296, %297 : vector<64x16xf32>
    %299 = arith.mulf %293, %298 : vector<64x16xf32>
    %cst_303 = arith.constant 0.000000e+00 : f32
    %300 = vector.broadcast %cst_303 : f32 to vector<16x24xf32>
    %c0_304 = arith.constant 0 : index
    %c0_305 = arith.constant 0 : index
    %c0_306 = arith.constant 0 : index
    %301 = vector.load %arg5[%c0_304, %c0_305, %c0_306] : memref<9x16x64xf32, #tpu.memory_space<vmem>>, vector<1x16x64xf32>
    %302 = vector.shape_cast %301 : vector<1x16x64xf32> to vector<16x64xf32>
    %cst_307 = arith.constant dense<0.000000e+00> : vector<16x16xf32>
    %303 = tpu.matmul %302, %225, %cst_307 {dimension_numbers = #tpu.dot_dimension_numbers<[1], [0], [0], [1], [0, 0, 1, 1], [], []>} : vector<16x64xf32>, vector<64x16xf32>, vector<16x16xf32> -> vector<16x16xf32>
    %c0_308 = arith.constant 0 : index
    %c0_309 = arith.constant 0 : index
    %c0_310 = arith.constant 0 : index
    %304 = vector.load %arg13[%c0_308, %c0_309, %c0_310] : memref<10x16x24xf32, #tpu.memory_space<vmem>>, vector<1x16x24xf32>
    %305 = vector.shape_cast %304 : vector<1x16x24xf32> to vector<16x24xf32>
    %cst_311 = arith.constant dense<0.000000e+00> : vector<16x24xf32>
    %306 = tpu.matmul %303, %305, %cst_311 {dimension_numbers = #tpu.dot_dimension_numbers<[1], [0], [0], [1], [0, 0, 1, 1], [], []>} : vector<16x16xf32>, vector<16x24xf32>, vector<16x24xf32> -> vector<16x24xf32>
    %307 = arith.addf %300, %306 : vector<16x24xf32>
    %c1_312 = arith.constant 1 : index
    %c0_313 = arith.constant 0 : index
    %c0_314 = arith.constant 0 : index
    %308 = vector.load %arg5[%c1_312, %c0_313, %c0_314] : memref<9x16x64xf32, #tpu.memory_space<vmem>>, vector<1x16x64xf32>
    %309 = vector.shape_cast %308 : vector<1x16x64xf32> to vector<16x64xf32>
    %cst_315 = arith.constant dense<0.000000e+00> : vector<16x16xf32>
    %310 = tpu.matmul %309, %225, %cst_315 {dimension_numbers = #tpu.dot_dimension_numbers<[1], [0], [0], [1], [0, 0, 1, 1], [], []>} : vector<16x64xf32>, vector<64x16xf32>, vector<16x16xf32> -> vector<16x16xf32>
    %c1_316 = arith.constant 1 : index
    %c0_317 = arith.constant 0 : index
    %c0_318 = arith.constant 0 : index
    %311 = vector.load %arg13[%c1_316, %c0_317, %c0_318] : memref<10x16x24xf32, #tpu.memory_space<vmem>>, vector<1x16x24xf32>
    %312 = vector.shape_cast %311 : vector<1x16x24xf32> to vector<16x24xf32>
    %cst_319 = arith.constant dense<0.000000e+00> : vector<16x24xf32>
    %313 = tpu.matmul %310, %312, %cst_319 {dimension_numbers = #tpu.dot_dimension_numbers<[1], [0], [0], [1], [0, 0, 1, 1], [], []>} : vector<16x16xf32>, vector<16x24xf32>, vector<16x24xf32> -> vector<16x24xf32>
    %314 = arith.addf %307, %313 : vector<16x24xf32>
    %c2_320 = arith.constant 2 : index
    %c0_321 = arith.constant 0 : index
    %c0_322 = arith.constant 0 : index
    %315 = vector.load %arg5[%c2_320, %c0_321, %c0_322] : memref<9x16x64xf32, #tpu.memory_space<vmem>>, vector<1x16x64xf32>
    %316 = vector.shape_cast %315 : vector<1x16x64xf32> to vector<16x64xf32>
    %cst_323 = arith.constant dense<0.000000e+00> : vector<16x16xf32>
    %317 = tpu.matmul %316, %225, %cst_323 {dimension_numbers = #tpu.dot_dimension_numbers<[1], [0], [0], [1], [0, 0, 1, 1], [], []>} : vector<16x64xf32>, vector<64x16xf32>, vector<16x16xf32> -> vector<16x16xf32>
    %c2_324 = arith.constant 2 : index
    %c0_325 = arith.constant 0 : index
    %c0_326 = arith.constant 0 : index
    %318 = vector.load %arg13[%c2_324, %c0_325, %c0_326] : memref<10x16x24xf32, #tpu.memory_space<vmem>>, vector<1x16x24xf32>
    %319 = vector.shape_cast %318 : vector<1x16x24xf32> to vector<16x24xf32>
    %cst_327 = arith.constant dense<0.000000e+00> : vector<16x24xf32>
    %320 = tpu.matmul %317, %319, %cst_327 {dimension_numbers = #tpu.dot_dimension_numbers<[1], [0], [0], [1], [0, 0, 1, 1], [], []>} : vector<16x16xf32>, vector<16x24xf32>, vector<16x24xf32> -> vector<16x24xf32>
    %321 = arith.addf %314, %320 : vector<16x24xf32>
    %c3_328 = arith.constant 3 : index
    %c0_329 = arith.constant 0 : index
    %c0_330 = arith.constant 0 : index
    %322 = vector.load %arg5[%c3_328, %c0_329, %c0_330] : memref<9x16x64xf32, #tpu.memory_space<vmem>>, vector<1x16x64xf32>
    %323 = vector.shape_cast %322 : vector<1x16x64xf32> to vector<16x64xf32>
    %cst_331 = arith.constant dense<0.000000e+00> : vector<16x16xf32>
    %324 = tpu.matmul %323, %225, %cst_331 {dimension_numbers = #tpu.dot_dimension_numbers<[1], [0], [0], [1], [0, 0, 1, 1], [], []>} : vector<16x64xf32>, vector<64x16xf32>, vector<16x16xf32> -> vector<16x16xf32>
    %c3_332 = arith.constant 3 : index
    %c0_333 = arith.constant 0 : index
    %c0_334 = arith.constant 0 : index
    %325 = vector.load %arg13[%c3_332, %c0_333, %c0_334] : memref<10x16x24xf32, #tpu.memory_space<vmem>>, vector<1x16x24xf32>
    %326 = vector.shape_cast %325 : vector<1x16x24xf32> to vector<16x24xf32>
    %cst_335 = arith.constant dense<0.000000e+00> : vector<16x24xf32>
    %327 = tpu.matmul %324, %326, %cst_335 {dimension_numbers = #tpu.dot_dimension_numbers<[1], [0], [0], [1], [0, 0, 1, 1], [], []>} : vector<16x16xf32>, vector<16x24xf32>, vector<16x24xf32> -> vector<16x24xf32>
    %328 = arith.addf %321, %327 : vector<16x24xf32>
    %c4_336 = arith.constant 4 : index
    %c0_337 = arith.constant 0 : index
    %c0_338 = arith.constant 0 : index
    %329 = vector.load %arg5[%c4_336, %c0_337, %c0_338] : memref<9x16x64xf32, #tpu.memory_space<vmem>>, vector<1x16x64xf32>
    %330 = vector.shape_cast %329 : vector<1x16x64xf32> to vector<16x64xf32>
    %cst_339 = arith.constant dense<0.000000e+00> : vector<16x16xf32>
    %331 = tpu.matmul %330, %225, %cst_339 {dimension_numbers = #tpu.dot_dimension_numbers<[1], [0], [0], [1], [0, 0, 1, 1], [], []>} : vector<16x64xf32>, vector<64x16xf32>, vector<16x16xf32> -> vector<16x16xf32>
    %c4_340 = arith.constant 4 : index
    %c0_341 = arith.constant 0 : index
    %c0_342 = arith.constant 0 : index
    %332 = vector.load %arg13[%c4_340, %c0_341, %c0_342] : memref<10x16x24xf32, #tpu.memory_space<vmem>>, vector<1x16x24xf32>
    %333 = vector.shape_cast %332 : vector<1x16x24xf32> to vector<16x24xf32>
    %cst_343 = arith.constant dense<0.000000e+00> : vector<16x24xf32>
    %334 = tpu.matmul %331, %333, %cst_343 {dimension_numbers = #tpu.dot_dimension_numbers<[1], [0], [0], [1], [0, 0, 1, 1], [], []>} : vector<16x16xf32>, vector<16x24xf32>, vector<16x24xf32> -> vector<16x24xf32>
    %335 = arith.addf %328, %334 : vector<16x24xf32>
    %c5_344 = arith.constant 5 : index
    %c0_345 = arith.constant 0 : index
    %c0_346 = arith.constant 0 : index
    %336 = vector.load %arg5[%c5_344, %c0_345, %c0_346] : memref<9x16x64xf32, #tpu.memory_space<vmem>>, vector<1x16x64xf32>
    %337 = vector.shape_cast %336 : vector<1x16x64xf32> to vector<16x64xf32>
    %cst_347 = arith.constant dense<0.000000e+00> : vector<16x16xf32>
    %338 = tpu.matmul %337, %225, %cst_347 {dimension_numbers = #tpu.dot_dimension_numbers<[1], [0], [0], [1], [0, 0, 1, 1], [], []>} : vector<16x64xf32>, vector<64x16xf32>, vector<16x16xf32> -> vector<16x16xf32>
    %c5_348 = arith.constant 5 : index
    %c0_349 = arith.constant 0 : index
    %c0_350 = arith.constant 0 : index
    %339 = vector.load %arg13[%c5_348, %c0_349, %c0_350] : memref<10x16x24xf32, #tpu.memory_space<vmem>>, vector<1x16x24xf32>
    %340 = vector.shape_cast %339 : vector<1x16x24xf32> to vector<16x24xf32>
    %cst_351 = arith.constant dense<0.000000e+00> : vector<16x24xf32>
    %341 = tpu.matmul %338, %340, %cst_351 {dimension_numbers = #tpu.dot_dimension_numbers<[1], [0], [0], [1], [0, 0, 1, 1], [], []>} : vector<16x16xf32>, vector<16x24xf32>, vector<16x24xf32> -> vector<16x24xf32>
    %342 = arith.addf %335, %341 : vector<16x24xf32>
    %c6_352 = arith.constant 6 : index
    %c0_353 = arith.constant 0 : index
    %c0_354 = arith.constant 0 : index
    %343 = vector.load %arg5[%c6_352, %c0_353, %c0_354] : memref<9x16x64xf32, #tpu.memory_space<vmem>>, vector<1x16x64xf32>
    %344 = vector.shape_cast %343 : vector<1x16x64xf32> to vector<16x64xf32>
    %cst_355 = arith.constant dense<0.000000e+00> : vector<16x16xf32>
    %345 = tpu.matmul %344, %225, %cst_355 {dimension_numbers = #tpu.dot_dimension_numbers<[1], [0], [0], [1], [0, 0, 1, 1], [], []>} : vector<16x64xf32>, vector<64x16xf32>, vector<16x16xf32> -> vector<16x16xf32>
    %c6_356 = arith.constant 6 : index
    %c0_357 = arith.constant 0 : index
    %c0_358 = arith.constant 0 : index
    %346 = vector.load %arg13[%c6_356, %c0_357, %c0_358] : memref<10x16x24xf32, #tpu.memory_space<vmem>>, vector<1x16x24xf32>
    %347 = vector.shape_cast %346 : vector<1x16x24xf32> to vector<16x24xf32>
    %cst_359 = arith.constant dense<0.000000e+00> : vector<16x24xf32>
    %348 = tpu.matmul %345, %347, %cst_359 {dimension_numbers = #tpu.dot_dimension_numbers<[1], [0], [0], [1], [0, 0, 1, 1], [], []>} : vector<16x16xf32>, vector<16x24xf32>, vector<16x24xf32> -> vector<16x24xf32>
    %349 = arith.addf %342, %348 : vector<16x24xf32>
    %c7_360 = arith.constant 7 : index
    %c0_361 = arith.constant 0 : index
    %c0_362 = arith.constant 0 : index
    %350 = vector.load %arg5[%c7_360, %c0_361, %c0_362] : memref<9x16x64xf32, #tpu.memory_space<vmem>>, vector<1x16x64xf32>
    %351 = vector.shape_cast %350 : vector<1x16x64xf32> to vector<16x64xf32>
    %cst_363 = arith.constant dense<0.000000e+00> : vector<16x16xf32>
    %352 = tpu.matmul %351, %225, %cst_363 {dimension_numbers = #tpu.dot_dimension_numbers<[1], [0], [0], [1], [0, 0, 1, 1], [], []>} : vector<16x64xf32>, vector<64x16xf32>, vector<16x16xf32> -> vector<16x16xf32>
    %c7_364 = arith.constant 7 : index
    %c0_365 = arith.constant 0 : index
    %c0_366 = arith.constant 0 : index
    %353 = vector.load %arg13[%c7_364, %c0_365, %c0_366] : memref<10x16x24xf32, #tpu.memory_space<vmem>>, vector<1x16x24xf32>
    %354 = vector.shape_cast %353 : vector<1x16x24xf32> to vector<16x24xf32>
    %cst_367 = arith.constant dense<0.000000e+00> : vector<16x24xf32>
    %355 = tpu.matmul %352, %354, %cst_367 {dimension_numbers = #tpu.dot_dimension_numbers<[1], [0], [0], [1], [0, 0, 1, 1], [], []>} : vector<16x16xf32>, vector<16x24xf32>, vector<16x24xf32> -> vector<16x24xf32>
    %356 = arith.addf %349, %355 : vector<16x24xf32>
    %c8_368 = arith.constant 8 : index
    %c0_369 = arith.constant 0 : index
    %c0_370 = arith.constant 0 : index
    %357 = vector.load %arg5[%c8_368, %c0_369, %c0_370] : memref<9x16x64xf32, #tpu.memory_space<vmem>>, vector<1x16x64xf32>
    %358 = vector.shape_cast %357 : vector<1x16x64xf32> to vector<16x64xf32>
    %cst_371 = arith.constant dense<0.000000e+00> : vector<16x16xf32>
    %359 = tpu.matmul %358, %225, %cst_371 {dimension_numbers = #tpu.dot_dimension_numbers<[1], [0], [0], [1], [0, 0, 1, 1], [], []>} : vector<16x64xf32>, vector<64x16xf32>, vector<16x16xf32> -> vector<16x16xf32>
    %c8_372 = arith.constant 8 : index
    %c0_373 = arith.constant 0 : index
    %c0_374 = arith.constant 0 : index
    %360 = vector.load %arg13[%c8_372, %c0_373, %c0_374] : memref<10x16x24xf32, #tpu.memory_space<vmem>>, vector<1x16x24xf32>
    %361 = vector.shape_cast %360 : vector<1x16x24xf32> to vector<16x24xf32>
    %cst_375 = arith.constant dense<0.000000e+00> : vector<16x24xf32>
    %362 = tpu.matmul %359, %361, %cst_375 {dimension_numbers = #tpu.dot_dimension_numbers<[1], [0], [0], [1], [0, 0, 1, 1], [], []>} : vector<16x16xf32>, vector<16x24xf32>, vector<16x24xf32> -> vector<16x24xf32>
    %363 = arith.addf %356, %362 : vector<16x24xf32>
    %c9_376 = arith.constant 9 : index
    %c0_377 = arith.constant 0 : index
    %c0_378 = arith.constant 0 : index
    %364 = vector.load %arg13[%c9_376, %c0_377, %c0_378] : memref<10x16x24xf32, #tpu.memory_space<vmem>>, vector<1x1x24xf32>
    %365 = vector.shape_cast %364 : vector<1x1x24xf32> to vector<1x24xf32>
    %366 = vector.broadcast %365 : vector<1x24xf32> to vector<16x24xf32>
    %367 = arith.addf %363, %366 : vector<16x24xf32>
    %368 = arith.negf %367 : vector<16x24xf32>
    %369 = math.exp %368 : vector<16x24xf32>
    %cst_379 = arith.constant 1.000000e+00 : f32
    %370 = vector.broadcast %cst_379 : f32 to vector<16x24xf32>
    %371 = arith.addf %370, %369 : vector<16x24xf32>
    %372 = arith.divf %370, %371 : vector<16x24xf32>
    %373 = arith.mulf %367, %372 : vector<16x24xf32>
    %cst_380 = arith.constant 0.000000e+00 : f32
    %374 = vector.broadcast %cst_380 : f32 to vector<16x24xf32>
    %c0_381 = arith.constant 0 : index
    %c0_382 = arith.constant 0 : index
    %c0_383 = arith.constant 0 : index
    %375 = vector.load %arg5[%c0_381, %c0_382, %c0_383] : memref<9x16x64xf32, #tpu.memory_space<vmem>>, vector<1x16x64xf32>
    %376 = vector.shape_cast %375 : vector<1x16x64xf32> to vector<16x64xf32>
    %cst_384 = arith.constant dense<0.000000e+00> : vector<16x16xf32>
    %377 = tpu.matmul %376, %299, %cst_384 {dimension_numbers = #tpu.dot_dimension_numbers<[1], [0], [0], [1], [0, 0, 1, 1], [], []>} : vector<16x64xf32>, vector<64x16xf32>, vector<16x16xf32> -> vector<16x16xf32>
    %c0_385 = arith.constant 0 : index
    %c0_386 = arith.constant 0 : index
    %c0_387 = arith.constant 0 : index
    %378 = vector.load %arg9[%c0_385, %c0_386, %c0_387] : memref<10x16x24xf32, #tpu.memory_space<vmem>>, vector<1x16x24xf32>
    %379 = vector.shape_cast %378 : vector<1x16x24xf32> to vector<16x24xf32>
    %cst_388 = arith.constant dense<0.000000e+00> : vector<16x24xf32>
    %380 = tpu.matmul %377, %379, %cst_388 {dimension_numbers = #tpu.dot_dimension_numbers<[1], [0], [0], [1], [0, 0, 1, 1], [], []>} : vector<16x16xf32>, vector<16x24xf32>, vector<16x24xf32> -> vector<16x24xf32>
    %381 = arith.addf %374, %380 : vector<16x24xf32>
    %c1_389 = arith.constant 1 : index
    %c0_390 = arith.constant 0 : index
    %c0_391 = arith.constant 0 : index
    %382 = vector.load %arg5[%c1_389, %c0_390, %c0_391] : memref<9x16x64xf32, #tpu.memory_space<vmem>>, vector<1x16x64xf32>
    %383 = vector.shape_cast %382 : vector<1x16x64xf32> to vector<16x64xf32>
    %cst_392 = arith.constant dense<0.000000e+00> : vector<16x16xf32>
    %384 = tpu.matmul %383, %299, %cst_392 {dimension_numbers = #tpu.dot_dimension_numbers<[1], [0], [0], [1], [0, 0, 1, 1], [], []>} : vector<16x64xf32>, vector<64x16xf32>, vector<16x16xf32> -> vector<16x16xf32>
    %c1_393 = arith.constant 1 : index
    %c0_394 = arith.constant 0 : index
    %c0_395 = arith.constant 0 : index
    %385 = vector.load %arg9[%c1_393, %c0_394, %c0_395] : memref<10x16x24xf32, #tpu.memory_space<vmem>>, vector<1x16x24xf32>
    %386 = vector.shape_cast %385 : vector<1x16x24xf32> to vector<16x24xf32>
    %cst_396 = arith.constant dense<0.000000e+00> : vector<16x24xf32>
    %387 = tpu.matmul %384, %386, %cst_396 {dimension_numbers = #tpu.dot_dimension_numbers<[1], [0], [0], [1], [0, 0, 1, 1], [], []>} : vector<16x16xf32>, vector<16x24xf32>, vector<16x24xf32> -> vector<16x24xf32>
    %388 = arith.addf %381, %387 : vector<16x24xf32>
    %c2_397 = arith.constant 2 : index
    %c0_398 = arith.constant 0 : index
    %c0_399 = arith.constant 0 : index
    %389 = vector.load %arg5[%c2_397, %c0_398, %c0_399] : memref<9x16x64xf32, #tpu.memory_space<vmem>>, vector<1x16x64xf32>
    %390 = vector.shape_cast %389 : vector<1x16x64xf32> to vector<16x64xf32>
    %cst_400 = arith.constant dense<0.000000e+00> : vector<16x16xf32>
    %391 = tpu.matmul %390, %299, %cst_400 {dimension_numbers = #tpu.dot_dimension_numbers<[1], [0], [0], [1], [0, 0, 1, 1], [], []>} : vector<16x64xf32>, vector<64x16xf32>, vector<16x16xf32> -> vector<16x16xf32>
    %c2_401 = arith.constant 2 : index
    %c0_402 = arith.constant 0 : index
    %c0_403 = arith.constant 0 : index
    %392 = vector.load %arg9[%c2_401, %c0_402, %c0_403] : memref<10x16x24xf32, #tpu.memory_space<vmem>>, vector<1x16x24xf32>
    %393 = vector.shape_cast %392 : vector<1x16x24xf32> to vector<16x24xf32>
    %cst_404 = arith.constant dense<0.000000e+00> : vector<16x24xf32>
    %394 = tpu.matmul %391, %393, %cst_404 {dimension_numbers = #tpu.dot_dimension_numbers<[1], [0], [0], [1], [0, 0, 1, 1], [], []>} : vector<16x16xf32>, vector<16x24xf32>, vector<16x24xf32> -> vector<16x24xf32>
    %395 = arith.addf %388, %394 : vector<16x24xf32>
    %c3_405 = arith.constant 3 : index
    %c0_406 = arith.constant 0 : index
    %c0_407 = arith.constant 0 : index
    %396 = vector.load %arg5[%c3_405, %c0_406, %c0_407] : memref<9x16x64xf32, #tpu.memory_space<vmem>>, vector<1x16x64xf32>
    %397 = vector.shape_cast %396 : vector<1x16x64xf32> to vector<16x64xf32>
    %cst_408 = arith.constant dense<0.000000e+00> : vector<16x16xf32>
    %398 = tpu.matmul %397, %299, %cst_408 {dimension_numbers = #tpu.dot_dimension_numbers<[1], [0], [0], [1], [0, 0, 1, 1], [], []>} : vector<16x64xf32>, vector<64x16xf32>, vector<16x16xf32> -> vector<16x16xf32>
    %c3_409 = arith.constant 3 : index
    %c0_410 = arith.constant 0 : index
    %c0_411 = arith.constant 0 : index
    %399 = vector.load %arg9[%c3_409, %c0_410, %c0_411] : memref<10x16x24xf32, #tpu.memory_space<vmem>>, vector<1x16x24xf32>
    %400 = vector.shape_cast %399 : vector<1x16x24xf32> to vector<16x24xf32>
    %cst_412 = arith.constant dense<0.000000e+00> : vector<16x24xf32>
    %401 = tpu.matmul %398, %400, %cst_412 {dimension_numbers = #tpu.dot_dimension_numbers<[1], [0], [0], [1], [0, 0, 1, 1], [], []>} : vector<16x16xf32>, vector<16x24xf32>, vector<16x24xf32> -> vector<16x24xf32>
    %402 = arith.addf %395, %401 : vector<16x24xf32>
    %c4_413 = arith.constant 4 : index
    %c0_414 = arith.constant 0 : index
    %c0_415 = arith.constant 0 : index
    %403 = vector.load %arg5[%c4_413, %c0_414, %c0_415] : memref<9x16x64xf32, #tpu.memory_space<vmem>>, vector<1x16x64xf32>
    %404 = vector.shape_cast %403 : vector<1x16x64xf32> to vector<16x64xf32>
    %cst_416 = arith.constant dense<0.000000e+00> : vector<16x16xf32>
    %405 = tpu.matmul %404, %299, %cst_416 {dimension_numbers = #tpu.dot_dimension_numbers<[1], [0], [0], [1], [0, 0, 1, 1], [], []>} : vector<16x64xf32>, vector<64x16xf32>, vector<16x16xf32> -> vector<16x16xf32>
    %c4_417 = arith.constant 4 : index
    %c0_418 = arith.constant 0 : index
    %c0_419 = arith.constant 0 : index
    %406 = vector.load %arg9[%c4_417, %c0_418, %c0_419] : memref<10x16x24xf32, #tpu.memory_space<vmem>>, vector<1x16x24xf32>
    %407 = vector.shape_cast %406 : vector<1x16x24xf32> to vector<16x24xf32>
    %cst_420 = arith.constant dense<0.000000e+00> : vector<16x24xf32>
    %408 = tpu.matmul %405, %407, %cst_420 {dimension_numbers = #tpu.dot_dimension_numbers<[1], [0], [0], [1], [0, 0, 1, 1], [], []>} : vector<16x16xf32>, vector<16x24xf32>, vector<16x24xf32> -> vector<16x24xf32>
    %409 = arith.addf %402, %408 : vector<16x24xf32>
    %c5_421 = arith.constant 5 : index
    %c0_422 = arith.constant 0 : index
    %c0_423 = arith.constant 0 : index
    %410 = vector.load %arg5[%c5_421, %c0_422, %c0_423] : memref<9x16x64xf32, #tpu.memory_space<vmem>>, vector<1x16x64xf32>
    %411 = vector.shape_cast %410 : vector<1x16x64xf32> to vector<16x64xf32>
    %cst_424 = arith.constant dense<0.000000e+00> : vector<16x16xf32>
    %412 = tpu.matmul %411, %299, %cst_424 {dimension_numbers = #tpu.dot_dimension_numbers<[1], [0], [0], [1], [0, 0, 1, 1], [], []>} : vector<16x64xf32>, vector<64x16xf32>, vector<16x16xf32> -> vector<16x16xf32>
    %c5_425 = arith.constant 5 : index
    %c0_426 = arith.constant 0 : index
    %c0_427 = arith.constant 0 : index
    %413 = vector.load %arg9[%c5_425, %c0_426, %c0_427] : memref<10x16x24xf32, #tpu.memory_space<vmem>>, vector<1x16x24xf32>
    %414 = vector.shape_cast %413 : vector<1x16x24xf32> to vector<16x24xf32>
    %cst_428 = arith.constant dense<0.000000e+00> : vector<16x24xf32>
    %415 = tpu.matmul %412, %414, %cst_428 {dimension_numbers = #tpu.dot_dimension_numbers<[1], [0], [0], [1], [0, 0, 1, 1], [], []>} : vector<16x16xf32>, vector<16x24xf32>, vector<16x24xf32> -> vector<16x24xf32>
    %416 = arith.addf %409, %415 : vector<16x24xf32>
    %c6_429 = arith.constant 6 : index
    %c0_430 = arith.constant 0 : index
    %c0_431 = arith.constant 0 : index
    %417 = vector.load %arg5[%c6_429, %c0_430, %c0_431] : memref<9x16x64xf32, #tpu.memory_space<vmem>>, vector<1x16x64xf32>
    %418 = vector.shape_cast %417 : vector<1x16x64xf32> to vector<16x64xf32>
    %cst_432 = arith.constant dense<0.000000e+00> : vector<16x16xf32>
    %419 = tpu.matmul %418, %299, %cst_432 {dimension_numbers = #tpu.dot_dimension_numbers<[1], [0], [0], [1], [0, 0, 1, 1], [], []>} : vector<16x64xf32>, vector<64x16xf32>, vector<16x16xf32> -> vector<16x16xf32>
    %c6_433 = arith.constant 6 : index
    %c0_434 = arith.constant 0 : index
    %c0_435 = arith.constant 0 : index
    %420 = vector.load %arg9[%c6_433, %c0_434, %c0_435] : memref<10x16x24xf32, #tpu.memory_space<vmem>>, vector<1x16x24xf32>
    %421 = vector.shape_cast %420 : vector<1x16x24xf32> to vector<16x24xf32>
    %cst_436 = arith.constant dense<0.000000e+00> : vector<16x24xf32>
    %422 = tpu.matmul %419, %421, %cst_436 {dimension_numbers = #tpu.dot_dimension_numbers<[1], [0], [0], [1], [0, 0, 1, 1], [], []>} : vector<16x16xf32>, vector<16x24xf32>, vector<16x24xf32> -> vector<16x24xf32>
    %423 = arith.addf %416, %422 : vector<16x24xf32>
    %c7_437 = arith.constant 7 : index
    %c0_438 = arith.constant 0 : index
    %c0_439 = arith.constant 0 : index
    %424 = vector.load %arg5[%c7_437, %c0_438, %c0_439] : memref<9x16x64xf32, #tpu.memory_space<vmem>>, vector<1x16x64xf32>
    %425 = vector.shape_cast %424 : vector<1x16x64xf32> to vector<16x64xf32>
    %cst_440 = arith.constant dense<0.000000e+00> : vector<16x16xf32>
    %426 = tpu.matmul %425, %299, %cst_440 {dimension_numbers = #tpu.dot_dimension_numbers<[1], [0], [0], [1], [0, 0, 1, 1], [], []>} : vector<16x64xf32>, vector<64x16xf32>, vector<16x16xf32> -> vector<16x16xf32>
    %c7_441 = arith.constant 7 : index
    %c0_442 = arith.constant 0 : index
    %c0_443 = arith.constant 0 : index
    %427 = vector.load %arg9[%c7_441, %c0_442, %c0_443] : memref<10x16x24xf32, #tpu.memory_space<vmem>>, vector<1x16x24xf32>
    %428 = vector.shape_cast %427 : vector<1x16x24xf32> to vector<16x24xf32>
    %cst_444 = arith.constant dense<0.000000e+00> : vector<16x24xf32>
    %429 = tpu.matmul %426, %428, %cst_444 {dimension_numbers = #tpu.dot_dimension_numbers<[1], [0], [0], [1], [0, 0, 1, 1], [], []>} : vector<16x16xf32>, vector<16x24xf32>, vector<16x24xf32> -> vector<16x24xf32>
    %430 = arith.addf %423, %429 : vector<16x24xf32>
    %c8_445 = arith.constant 8 : index
    %c0_446 = arith.constant 0 : index
    %c0_447 = arith.constant 0 : index
    %431 = vector.load %arg5[%c8_445, %c0_446, %c0_447] : memref<9x16x64xf32, #tpu.memory_space<vmem>>, vector<1x16x64xf32>
    %432 = vector.shape_cast %431 : vector<1x16x64xf32> to vector<16x64xf32>
    %cst_448 = arith.constant dense<0.000000e+00> : vector<16x16xf32>
    %433 = tpu.matmul %432, %299, %cst_448 {dimension_numbers = #tpu.dot_dimension_numbers<[1], [0], [0], [1], [0, 0, 1, 1], [], []>} : vector<16x64xf32>, vector<64x16xf32>, vector<16x16xf32> -> vector<16x16xf32>
    %c8_449 = arith.constant 8 : index
    %c0_450 = arith.constant 0 : index
    %c0_451 = arith.constant 0 : index
    %434 = vector.load %arg9[%c8_449, %c0_450, %c0_451] : memref<10x16x24xf32, #tpu.memory_space<vmem>>, vector<1x16x24xf32>
    %435 = vector.shape_cast %434 : vector<1x16x24xf32> to vector<16x24xf32>
    %cst_452 = arith.constant dense<0.000000e+00> : vector<16x24xf32>
    %436 = tpu.matmul %433, %435, %cst_452 {dimension_numbers = #tpu.dot_dimension_numbers<[1], [0], [0], [1], [0, 0, 1, 1], [], []>} : vector<16x16xf32>, vector<16x24xf32>, vector<16x24xf32> -> vector<16x24xf32>
    %437 = arith.addf %430, %436 : vector<16x24xf32>
    %c9_453 = arith.constant 9 : index
    %c0_454 = arith.constant 0 : index
    %c0_455 = arith.constant 0 : index
    %438 = vector.load %arg9[%c9_453, %c0_454, %c0_455] : memref<10x16x24xf32, #tpu.memory_space<vmem>>, vector<1x1x24xf32>
    %439 = vector.shape_cast %438 : vector<1x1x24xf32> to vector<1x24xf32>
    %440 = vector.broadcast %439 : vector<1x24xf32> to vector<16x24xf32>
    %441 = arith.addf %437, %440 : vector<16x24xf32>
    %442 = arith.negf %441 : vector<16x24xf32>
    %443 = math.exp %442 : vector<16x24xf32>
    %cst_456 = arith.constant 1.000000e+00 : f32
    %444 = vector.broadcast %cst_456 : f32 to vector<16x24xf32>
    %445 = arith.addf %444, %443 : vector<16x24xf32>
    %446 = arith.divf %444, %445 : vector<16x24xf32>
    %447 = arith.mulf %441, %446 : vector<16x24xf32>
    %c0_457 = arith.constant 0 : index
    %c0_458 = arith.constant 0 : index
    %c0_459 = arith.constant 0 : index
    %448 = vector.load %arg15[%c0_457, %c0_458, %c0_459] : memref<3x25x16xf32, #tpu.memory_space<vmem>>, vector<1x24x16xf32>
    %449 = vector.shape_cast %448 : vector<1x24x16xf32> to vector<24x16xf32>
    %cst_460 = arith.constant dense<0.000000e+00> : vector<16x16xf32>
    %450 = tpu.matmul %373, %449, %cst_460 {dimension_numbers = #tpu.dot_dimension_numbers<[1], [0], [0], [1], [0, 0, 1, 1], [], []>} : vector<16x24xf32>, vector<24x16xf32>, vector<16x16xf32> -> vector<16x16xf32>
    %c0_461 = arith.constant 0 : index
    %c24 = arith.constant 24 : index
    %c0_462 = arith.constant 0 : index
    %451 = vector.load %arg15[%c0_461, %c24, %c0_462] : memref<3x25x16xf32, #tpu.memory_space<vmem>>, vector<1x1x16xf32>
    %452 = vector.shape_cast %451 : vector<1x1x16xf32> to vector<1x16xf32>
    %453 = vector.broadcast %452 : vector<1x16xf32> to vector<16x16xf32>
    %454 = arith.addf %450, %453 : vector<16x16xf32>
    %c1_463 = arith.constant 1 : index
    %c0_464 = arith.constant 0 : index
    %c0_465 = arith.constant 0 : index
    %455 = vector.load %arg15[%c1_463, %c0_464, %c0_465] : memref<3x25x16xf32, #tpu.memory_space<vmem>>, vector<1x24x16xf32>
    %456 = vector.shape_cast %455 : vector<1x24x16xf32> to vector<24x16xf32>
    %cst_466 = arith.constant dense<0.000000e+00> : vector<16x16xf32>
    %457 = tpu.matmul %447, %456, %cst_466 {dimension_numbers = #tpu.dot_dimension_numbers<[1], [0], [0], [1], [0, 0, 1, 1], [], []>} : vector<16x24xf32>, vector<24x16xf32>, vector<16x16xf32> -> vector<16x16xf32>
    %c1_467 = arith.constant 1 : index
    %c24_468 = arith.constant 24 : index
    %c0_469 = arith.constant 0 : index
    %458 = vector.load %arg15[%c1_467, %c24_468, %c0_469] : memref<3x25x16xf32, #tpu.memory_space<vmem>>, vector<1x1x16xf32>
    %459 = vector.shape_cast %458 : vector<1x1x16xf32> to vector<1x16xf32>
    %460 = vector.broadcast %459 : vector<1x16xf32> to vector<16x16xf32>
    %461 = arith.addf %457, %460 : vector<16x16xf32>
    %c2_470 = arith.constant 2 : index
    %c0_471 = arith.constant 0 : index
    %c0_472 = arith.constant 0 : index
    %462 = vector.load %arg15[%c2_470, %c0_471, %c0_472] : memref<3x25x16xf32, #tpu.memory_space<vmem>>, vector<1x24x16xf32>
    %463 = vector.shape_cast %462 : vector<1x24x16xf32> to vector<24x16xf32>
    %cst_473 = arith.constant dense<0.000000e+00> : vector<16x16xf32>
    %464 = tpu.matmul %447, %463, %cst_473 {dimension_numbers = #tpu.dot_dimension_numbers<[1], [0], [0], [1], [0, 0, 1, 1], [], []>} : vector<16x24xf32>, vector<24x16xf32>, vector<16x16xf32> -> vector<16x16xf32>
    %c2_474 = arith.constant 2 : index
    %c24_475 = arith.constant 24 : index
    %c0_476 = arith.constant 0 : index
    %465 = vector.load %arg15[%c2_474, %c24_475, %c0_476] : memref<3x25x16xf32, #tpu.memory_space<vmem>>, vector<1x1x16xf32>
    %466 = vector.shape_cast %465 : vector<1x1x16xf32> to vector<1x16xf32>
    %467 = vector.broadcast %466 : vector<1x16xf32> to vector<16x16xf32>
    %468 = arith.addf %464, %467 : vector<16x16xf32>
    %cst_477 = arith.constant dense<0.000000e+00> : vector<16x16xf32>
    %469 = tpu.matmul %454, %461, %cst_477 {dimension_numbers = #tpu.dot_dimension_numbers<[1], [1], [0], [0], [0, 0, 1, 0], [], []>} : vector<16x16xf32>, vector<16x16xf32>, vector<16x16xf32> -> vector<16x16xf32>
    %cst_478 = arith.constant 2.500000e-01 : f32
    %470 = vector.broadcast %cst_478 : f32 to vector<16x16xf32>
    %471 = arith.mulf %469, %470 : vector<16x16xf32>
    %cst_479 = arith.constant 0.000000e+00 : f32
    %472 = vector.broadcast %cst_479 : f32 to vector<16x16xf32>
    %c0_480 = arith.constant 0 : index
    %c0_481 = arith.constant 0 : index
    %c0_482 = arith.constant 0 : index
    %473 = vector.load %arg19[%c0_480, %c0_481, %c0_482] : memref<2x16x16xf32, #tpu.memory_space<vmem>>, vector<1x16x16xf32>
    %474 = vector.shape_cast %473 : vector<1x16x16xf32> to vector<16x16xf32>
    %475 = arith.addf %471, %474 : vector<16x16xf32>
    %cst_483 = arith.constant dense<0xFF800000> : vector<16xf32>
    %476 = vector.multi_reduction <maximumf>, %475, %cst_483 [1] : vector<16x16xf32> to vector<16xf32>
    %477 = vector.shape_cast %476 : vector<16xf32> to vector<16x1xf32>
    %478 = vector.broadcast %477 : vector<16x1xf32> to vector<16x16xf32>
    %479 = arith.subf %475, %478 : vector<16x16xf32>
    %480 = math.exp %479 : vector<16x16xf32>
    %cst_484 = arith.constant dense<0.000000e+00> : vector<16xf32>
    %481 = vector.multi_reduction <add>, %480, %cst_484 [1] : vector<16x16xf32> to vector<16xf32>
    %482 = vector.shape_cast %481 : vector<16xf32> to vector<16x1xf32>
    %483 = tpu.reciprocal %482 {approx = true} : vector<16x1xf32> -> vector<16x1xf32>
    %484 = vector.broadcast %483 : vector<16x1xf32> to vector<16x16xf32>
    %485 = arith.mulf %480, %484 : vector<16x16xf32>
    %cst_485 = arith.constant dense<0.000000e+00> : vector<16x16xf32>
    %486 = tpu.matmul %485, %468, %cst_485 {dimension_numbers = #tpu.dot_dimension_numbers<[1], [0], [0], [1], [0, 0, 1, 1], [], []>} : vector<16x16xf32>, vector<16x16xf32>, vector<16x16xf32> -> vector<16x16xf32>
    %487 = arith.addf %472, %486 : vector<16x16xf32>
    %c1_486 = arith.constant 1 : index
    %c0_487 = arith.constant 0 : index
    %c0_488 = arith.constant 0 : index
    %488 = vector.load %arg19[%c1_486, %c0_487, %c0_488] : memref<2x16x16xf32, #tpu.memory_space<vmem>>, vector<1x16x16xf32>
    %489 = vector.shape_cast %488 : vector<1x16x16xf32> to vector<16x16xf32>
    %490 = arith.addf %471, %489 : vector<16x16xf32>
    %cst_489 = arith.constant dense<0xFF800000> : vector<16xf32>
    %491 = vector.multi_reduction <maximumf>, %490, %cst_489 [1] : vector<16x16xf32> to vector<16xf32>
    %492 = vector.shape_cast %491 : vector<16xf32> to vector<16x1xf32>
    %493 = vector.broadcast %492 : vector<16x1xf32> to vector<16x16xf32>
    %494 = arith.subf %490, %493 : vector<16x16xf32>
    %495 = math.exp %494 : vector<16x16xf32>
    %cst_490 = arith.constant dense<0.000000e+00> : vector<16xf32>
    %496 = vector.multi_reduction <add>, %495, %cst_490 [1] : vector<16x16xf32> to vector<16xf32>
    %497 = vector.shape_cast %496 : vector<16xf32> to vector<16x1xf32>
    %498 = tpu.reciprocal %497 {approx = true} : vector<16x1xf32> -> vector<16x1xf32>
    %499 = vector.broadcast %498 : vector<16x1xf32> to vector<16x16xf32>
    %500 = arith.mulf %495, %499 : vector<16x16xf32>
    %cst_491 = arith.constant dense<0.000000e+00> : vector<16x16xf32>
    %501 = tpu.matmul %500, %468, %cst_491 {dimension_numbers = #tpu.dot_dimension_numbers<[1], [0], [0], [1], [0, 0, 1, 1], [], []>} : vector<16x16xf32>, vector<16x16xf32>, vector<16x16xf32> -> vector<16x16xf32>
    %502 = arith.addf %487, %501 : vector<16x16xf32>
    %c0_492 = arith.constant 0 : index
    %c0_493 = arith.constant 0 : index
    %503 = vector.load %arg16[%c0_492, %c0_493] : memref<17x24xf32, #tpu.memory_space<vmem>>, vector<16x24xf32>
    %cst_494 = arith.constant dense<0.000000e+00> : vector<16x24xf32>
    %504 = tpu.matmul %502, %503, %cst_494 {dimension_numbers = #tpu.dot_dimension_numbers<[1], [0], [0], [1], [0, 0, 1, 1], [], []>} : vector<16x16xf32>, vector<16x24xf32>, vector<16x24xf32> -> vector<16x24xf32>
    %c16 = arith.constant 16 : index
    %c0_495 = arith.constant 0 : index
    %505 = vector.load %arg16[%c16, %c0_495] : memref<17x24xf32, #tpu.memory_space<vmem>>, vector<1x24xf32>
    %506 = vector.broadcast %505 : vector<1x24xf32> to vector<16x24xf32>
    %507 = arith.addf %504, %506 : vector<16x24xf32>
    %cst_496 = arith.constant 0.000000e+00 : f32
    %508 = vector.broadcast %cst_496 : f32 to vector<4x40xf32>
    %c0_497 = arith.constant 0 : index
    %c0_498 = arith.constant 0 : index
    %c0_499 = arith.constant 0 : index
    %509 = vector.load %arg6[%c0_497, %c0_498, %c0_499] : memref<9x4x16xf32, #tpu.memory_space<vmem>>, vector<1x4x16xf32>
    %510 = vector.shape_cast %509 : vector<1x4x16xf32> to vector<4x16xf32>
    %cst_500 = arith.constant dense<0.000000e+00> : vector<4x24xf32>
    %511 = tpu.matmul %510, %507, %cst_500 {dimension_numbers = #tpu.dot_dimension_numbers<[1], [0], [0], [1], [0, 0, 1, 1], [], []>} : vector<4x16xf32>, vector<16x24xf32>, vector<4x24xf32> -> vector<4x24xf32>
    %c0_501 = arith.constant 0 : index
    %c0_502 = arith.constant 0 : index
    %c0_503 = arith.constant 0 : index
    %512 = vector.load %arg14[%c0_501, %c0_502, %c0_503] : memref<10x24x40xf32, #tpu.memory_space<vmem>>, vector<1x24x40xf32>
    %513 = vector.shape_cast %512 : vector<1x24x40xf32> to vector<24x40xf32>
    %cst_504 = arith.constant dense<0.000000e+00> : vector<4x40xf32>
    %514 = tpu.matmul %511, %513, %cst_504 {dimension_numbers = #tpu.dot_dimension_numbers<[1], [0], [0], [1], [0, 0, 1, 1], [], []>} : vector<4x24xf32>, vector<24x40xf32>, vector<4x40xf32> -> vector<4x40xf32>
    %515 = arith.addf %508, %514 : vector<4x40xf32>
    %c1_505 = arith.constant 1 : index
    %c0_506 = arith.constant 0 : index
    %c0_507 = arith.constant 0 : index
    %516 = vector.load %arg6[%c1_505, %c0_506, %c0_507] : memref<9x4x16xf32, #tpu.memory_space<vmem>>, vector<1x4x16xf32>
    %517 = vector.shape_cast %516 : vector<1x4x16xf32> to vector<4x16xf32>
    %cst_508 = arith.constant dense<0.000000e+00> : vector<4x24xf32>
    %518 = tpu.matmul %517, %507, %cst_508 {dimension_numbers = #tpu.dot_dimension_numbers<[1], [0], [0], [1], [0, 0, 1, 1], [], []>} : vector<4x16xf32>, vector<16x24xf32>, vector<4x24xf32> -> vector<4x24xf32>
    %c1_509 = arith.constant 1 : index
    %c0_510 = arith.constant 0 : index
    %c0_511 = arith.constant 0 : index
    %519 = vector.load %arg14[%c1_509, %c0_510, %c0_511] : memref<10x24x40xf32, #tpu.memory_space<vmem>>, vector<1x24x40xf32>
    %520 = vector.shape_cast %519 : vector<1x24x40xf32> to vector<24x40xf32>
    %cst_512 = arith.constant dense<0.000000e+00> : vector<4x40xf32>
    %521 = tpu.matmul %518, %520, %cst_512 {dimension_numbers = #tpu.dot_dimension_numbers<[1], [0], [0], [1], [0, 0, 1, 1], [], []>} : vector<4x24xf32>, vector<24x40xf32>, vector<4x40xf32> -> vector<4x40xf32>
    %522 = arith.addf %515, %521 : vector<4x40xf32>
    %c2_513 = arith.constant 2 : index
    %c0_514 = arith.constant 0 : index
    %c0_515 = arith.constant 0 : index
    %523 = vector.load %arg6[%c2_513, %c0_514, %c0_515] : memref<9x4x16xf32, #tpu.memory_space<vmem>>, vector<1x4x16xf32>
    %524 = vector.shape_cast %523 : vector<1x4x16xf32> to vector<4x16xf32>
    %cst_516 = arith.constant dense<0.000000e+00> : vector<4x24xf32>
    %525 = tpu.matmul %524, %507, %cst_516 {dimension_numbers = #tpu.dot_dimension_numbers<[1], [0], [0], [1], [0, 0, 1, 1], [], []>} : vector<4x16xf32>, vector<16x24xf32>, vector<4x24xf32> -> vector<4x24xf32>
    %c2_517 = arith.constant 2 : index
    %c0_518 = arith.constant 0 : index
    %c0_519 = arith.constant 0 : index
    %526 = vector.load %arg14[%c2_517, %c0_518, %c0_519] : memref<10x24x40xf32, #tpu.memory_space<vmem>>, vector<1x24x40xf32>
    %527 = vector.shape_cast %526 : vector<1x24x40xf32> to vector<24x40xf32>
    %cst_520 = arith.constant dense<0.000000e+00> : vector<4x40xf32>
    %528 = tpu.matmul %525, %527, %cst_520 {dimension_numbers = #tpu.dot_dimension_numbers<[1], [0], [0], [1], [0, 0, 1, 1], [], []>} : vector<4x24xf32>, vector<24x40xf32>, vector<4x40xf32> -> vector<4x40xf32>
    %529 = arith.addf %522, %528 : vector<4x40xf32>
    %c3_521 = arith.constant 3 : index
    %c0_522 = arith.constant 0 : index
    %c0_523 = arith.constant 0 : index
    %530 = vector.load %arg6[%c3_521, %c0_522, %c0_523] : memref<9x4x16xf32, #tpu.memory_space<vmem>>, vector<1x4x16xf32>
    %531 = vector.shape_cast %530 : vector<1x4x16xf32> to vector<4x16xf32>
    %cst_524 = arith.constant dense<0.000000e+00> : vector<4x24xf32>
    %532 = tpu.matmul %531, %507, %cst_524 {dimension_numbers = #tpu.dot_dimension_numbers<[1], [0], [0], [1], [0, 0, 1, 1], [], []>} : vector<4x16xf32>, vector<16x24xf32>, vector<4x24xf32> -> vector<4x24xf32>
    %c3_525 = arith.constant 3 : index
    %c0_526 = arith.constant 0 : index
    %c0_527 = arith.constant 0 : index
    %533 = vector.load %arg14[%c3_525, %c0_526, %c0_527] : memref<10x24x40xf32, #tpu.memory_space<vmem>>, vector<1x24x40xf32>
    %534 = vector.shape_cast %533 : vector<1x24x40xf32> to vector<24x40xf32>
    %cst_528 = arith.constant dense<0.000000e+00> : vector<4x40xf32>
    %535 = tpu.matmul %532, %534, %cst_528 {dimension_numbers = #tpu.dot_dimension_numbers<[1], [0], [0], [1], [0, 0, 1, 1], [], []>} : vector<4x24xf32>, vector<24x40xf32>, vector<4x40xf32> -> vector<4x40xf32>
    %536 = arith.addf %529, %535 : vector<4x40xf32>
    %c4_529 = arith.constant 4 : index
    %c0_530 = arith.constant 0 : index
    %c0_531 = arith.constant 0 : index
    %537 = vector.load %arg6[%c4_529, %c0_530, %c0_531] : memref<9x4x16xf32, #tpu.memory_space<vmem>>, vector<1x4x16xf32>
    %538 = vector.shape_cast %537 : vector<1x4x16xf32> to vector<4x16xf32>
    %cst_532 = arith.constant dense<0.000000e+00> : vector<4x24xf32>
    %539 = tpu.matmul %538, %507, %cst_532 {dimension_numbers = #tpu.dot_dimension_numbers<[1], [0], [0], [1], [0, 0, 1, 1], [], []>} : vector<4x16xf32>, vector<16x24xf32>, vector<4x24xf32> -> vector<4x24xf32>
    %c4_533 = arith.constant 4 : index
    %c0_534 = arith.constant 0 : index
    %c0_535 = arith.constant 0 : index
    %540 = vector.load %arg14[%c4_533, %c0_534, %c0_535] : memref<10x24x40xf32, #tpu.memory_space<vmem>>, vector<1x24x40xf32>
    %541 = vector.shape_cast %540 : vector<1x24x40xf32> to vector<24x40xf32>
    %cst_536 = arith.constant dense<0.000000e+00> : vector<4x40xf32>
    %542 = tpu.matmul %539, %541, %cst_536 {dimension_numbers = #tpu.dot_dimension_numbers<[1], [0], [0], [1], [0, 0, 1, 1], [], []>} : vector<4x24xf32>, vector<24x40xf32>, vector<4x40xf32> -> vector<4x40xf32>
    %543 = arith.addf %536, %542 : vector<4x40xf32>
    %c5_537 = arith.constant 5 : index
    %c0_538 = arith.constant 0 : index
    %c0_539 = arith.constant 0 : index
    %544 = vector.load %arg6[%c5_537, %c0_538, %c0_539] : memref<9x4x16xf32, #tpu.memory_space<vmem>>, vector<1x4x16xf32>
    %545 = vector.shape_cast %544 : vector<1x4x16xf32> to vector<4x16xf32>
    %cst_540 = arith.constant dense<0.000000e+00> : vector<4x24xf32>
    %546 = tpu.matmul %545, %507, %cst_540 {dimension_numbers = #tpu.dot_dimension_numbers<[1], [0], [0], [1], [0, 0, 1, 1], [], []>} : vector<4x16xf32>, vector<16x24xf32>, vector<4x24xf32> -> vector<4x24xf32>
    %c5_541 = arith.constant 5 : index
    %c0_542 = arith.constant 0 : index
    %c0_543 = arith.constant 0 : index
    %547 = vector.load %arg14[%c5_541, %c0_542, %c0_543] : memref<10x24x40xf32, #tpu.memory_space<vmem>>, vector<1x24x40xf32>
    %548 = vector.shape_cast %547 : vector<1x24x40xf32> to vector<24x40xf32>
    %cst_544 = arith.constant dense<0.000000e+00> : vector<4x40xf32>
    %549 = tpu.matmul %546, %548, %cst_544 {dimension_numbers = #tpu.dot_dimension_numbers<[1], [0], [0], [1], [0, 0, 1, 1], [], []>} : vector<4x24xf32>, vector<24x40xf32>, vector<4x40xf32> -> vector<4x40xf32>
    %550 = arith.addf %543, %549 : vector<4x40xf32>
    %c6_545 = arith.constant 6 : index
    %c0_546 = arith.constant 0 : index
    %c0_547 = arith.constant 0 : index
    %551 = vector.load %arg6[%c6_545, %c0_546, %c0_547] : memref<9x4x16xf32, #tpu.memory_space<vmem>>, vector<1x4x16xf32>
    %552 = vector.shape_cast %551 : vector<1x4x16xf32> to vector<4x16xf32>
    %cst_548 = arith.constant dense<0.000000e+00> : vector<4x24xf32>
    %553 = tpu.matmul %552, %507, %cst_548 {dimension_numbers = #tpu.dot_dimension_numbers<[1], [0], [0], [1], [0, 0, 1, 1], [], []>} : vector<4x16xf32>, vector<16x24xf32>, vector<4x24xf32> -> vector<4x24xf32>
    %c6_549 = arith.constant 6 : index
    %c0_550 = arith.constant 0 : index
    %c0_551 = arith.constant 0 : index
    %554 = vector.load %arg14[%c6_549, %c0_550, %c0_551] : memref<10x24x40xf32, #tpu.memory_space<vmem>>, vector<1x24x40xf32>
    %555 = vector.shape_cast %554 : vector<1x24x40xf32> to vector<24x40xf32>
    %cst_552 = arith.constant dense<0.000000e+00> : vector<4x40xf32>
    %556 = tpu.matmul %553, %555, %cst_552 {dimension_numbers = #tpu.dot_dimension_numbers<[1], [0], [0], [1], [0, 0, 1, 1], [], []>} : vector<4x24xf32>, vector<24x40xf32>, vector<4x40xf32> -> vector<4x40xf32>
    %557 = arith.addf %550, %556 : vector<4x40xf32>
    %c7_553 = arith.constant 7 : index
    %c0_554 = arith.constant 0 : index
    %c0_555 = arith.constant 0 : index
    %558 = vector.load %arg6[%c7_553, %c0_554, %c0_555] : memref<9x4x16xf32, #tpu.memory_space<vmem>>, vector<1x4x16xf32>
    %559 = vector.shape_cast %558 : vector<1x4x16xf32> to vector<4x16xf32>
    %cst_556 = arith.constant dense<0.000000e+00> : vector<4x24xf32>
    %560 = tpu.matmul %559, %507, %cst_556 {dimension_numbers = #tpu.dot_dimension_numbers<[1], [0], [0], [1], [0, 0, 1, 1], [], []>} : vector<4x16xf32>, vector<16x24xf32>, vector<4x24xf32> -> vector<4x24xf32>
    %c7_557 = arith.constant 7 : index
    %c0_558 = arith.constant 0 : index
    %c0_559 = arith.constant 0 : index
    %561 = vector.load %arg14[%c7_557, %c0_558, %c0_559] : memref<10x24x40xf32, #tpu.memory_space<vmem>>, vector<1x24x40xf32>
    %562 = vector.shape_cast %561 : vector<1x24x40xf32> to vector<24x40xf32>
    %cst_560 = arith.constant dense<0.000000e+00> : vector<4x40xf32>
    %563 = tpu.matmul %560, %562, %cst_560 {dimension_numbers = #tpu.dot_dimension_numbers<[1], [0], [0], [1], [0, 0, 1, 1], [], []>} : vector<4x24xf32>, vector<24x40xf32>, vector<4x40xf32> -> vector<4x40xf32>
    %564 = arith.addf %557, %563 : vector<4x40xf32>
    %c8_561 = arith.constant 8 : index
    %c0_562 = arith.constant 0 : index
    %c0_563 = arith.constant 0 : index
    %565 = vector.load %arg6[%c8_561, %c0_562, %c0_563] : memref<9x4x16xf32, #tpu.memory_space<vmem>>, vector<1x4x16xf32>
    %566 = vector.shape_cast %565 : vector<1x4x16xf32> to vector<4x16xf32>
    %cst_564 = arith.constant dense<0.000000e+00> : vector<4x24xf32>
    %567 = tpu.matmul %566, %507, %cst_564 {dimension_numbers = #tpu.dot_dimension_numbers<[1], [0], [0], [1], [0, 0, 1, 1], [], []>} : vector<4x16xf32>, vector<16x24xf32>, vector<4x24xf32> -> vector<4x24xf32>
    %c8_565 = arith.constant 8 : index
    %c0_566 = arith.constant 0 : index
    %c0_567 = arith.constant 0 : index
    %568 = vector.load %arg14[%c8_565, %c0_566, %c0_567] : memref<10x24x40xf32, #tpu.memory_space<vmem>>, vector<1x24x40xf32>
    %569 = vector.shape_cast %568 : vector<1x24x40xf32> to vector<24x40xf32>
    %cst_568 = arith.constant dense<0.000000e+00> : vector<4x40xf32>
    %570 = tpu.matmul %567, %569, %cst_568 {dimension_numbers = #tpu.dot_dimension_numbers<[1], [0], [0], [1], [0, 0, 1, 1], [], []>} : vector<4x24xf32>, vector<24x40xf32>, vector<4x40xf32> -> vector<4x40xf32>
    %571 = arith.addf %564, %570 : vector<4x40xf32>
    %c9_569 = arith.constant 9 : index
    %c0_570 = arith.constant 0 : index
    %c0_571 = arith.constant 0 : index
    %572 = vector.load %arg14[%c9_569, %c0_570, %c0_571] : memref<10x24x40xf32, #tpu.memory_space<vmem>>, vector<1x1x40xf32>
    %573 = vector.shape_cast %572 : vector<1x1x40xf32> to vector<1x40xf32>
    %574 = vector.broadcast %573 : vector<1x40xf32> to vector<4x40xf32>
    %575 = arith.addf %571, %574 : vector<4x40xf32>
    %576 = arith.negf %575 : vector<4x40xf32>
    %577 = math.exp %576 : vector<4x40xf32>
    %cst_572 = arith.constant 1.000000e+00 : f32
    %578 = vector.broadcast %cst_572 : f32 to vector<4x40xf32>
    %579 = arith.addf %578, %577 : vector<4x40xf32>
    %580 = arith.divf %578, %579 : vector<4x40xf32>
    %581 = arith.mulf %575, %580 : vector<4x40xf32>
    %cst_573 = arith.constant 0.000000e+00 : f32
    %582 = vector.broadcast %cst_573 : f32 to vector<4x40xf32>
    %c0_574 = arith.constant 0 : index
    %c0_575 = arith.constant 0 : index
    %c0_576 = arith.constant 0 : index
    %583 = vector.load %arg6[%c0_574, %c0_575, %c0_576] : memref<9x4x16xf32, #tpu.memory_space<vmem>>, vector<1x4x16xf32>
    %584 = vector.shape_cast %583 : vector<1x4x16xf32> to vector<4x16xf32>
    %cst_577 = arith.constant dense<0.000000e+00> : vector<4x24xf32>
    %585 = tpu.matmul %584, %447, %cst_577 {dimension_numbers = #tpu.dot_dimension_numbers<[1], [0], [0], [1], [0, 0, 1, 1], [], []>} : vector<4x16xf32>, vector<16x24xf32>, vector<4x24xf32> -> vector<4x24xf32>
    %c0_578 = arith.constant 0 : index
    %c0_579 = arith.constant 0 : index
    %c0_580 = arith.constant 0 : index
    %586 = vector.load %arg10[%c0_578, %c0_579, %c0_580] : memref<10x24x40xf32, #tpu.memory_space<vmem>>, vector<1x24x40xf32>
    %587 = vector.shape_cast %586 : vector<1x24x40xf32> to vector<24x40xf32>
    %cst_581 = arith.constant dense<0.000000e+00> : vector<4x40xf32>
    %588 = tpu.matmul %585, %587, %cst_581 {dimension_numbers = #tpu.dot_dimension_numbers<[1], [0], [0], [1], [0, 0, 1, 1], [], []>} : vector<4x24xf32>, vector<24x40xf32>, vector<4x40xf32> -> vector<4x40xf32>
    %589 = arith.addf %582, %588 : vector<4x40xf32>
    %c1_582 = arith.constant 1 : index
    %c0_583 = arith.constant 0 : index
    %c0_584 = arith.constant 0 : index
    %590 = vector.load %arg6[%c1_582, %c0_583, %c0_584] : memref<9x4x16xf32, #tpu.memory_space<vmem>>, vector<1x4x16xf32>
    %591 = vector.shape_cast %590 : vector<1x4x16xf32> to vector<4x16xf32>
    %cst_585 = arith.constant dense<0.000000e+00> : vector<4x24xf32>
    %592 = tpu.matmul %591, %447, %cst_585 {dimension_numbers = #tpu.dot_dimension_numbers<[1], [0], [0], [1], [0, 0, 1, 1], [], []>} : vector<4x16xf32>, vector<16x24xf32>, vector<4x24xf32> -> vector<4x24xf32>
    %c1_586 = arith.constant 1 : index
    %c0_587 = arith.constant 0 : index
    %c0_588 = arith.constant 0 : index
    %593 = vector.load %arg10[%c1_586, %c0_587, %c0_588] : memref<10x24x40xf32, #tpu.memory_space<vmem>>, vector<1x24x40xf32>
    %594 = vector.shape_cast %593 : vector<1x24x40xf32> to vector<24x40xf32>
    %cst_589 = arith.constant dense<0.000000e+00> : vector<4x40xf32>
    %595 = tpu.matmul %592, %594, %cst_589 {dimension_numbers = #tpu.dot_dimension_numbers<[1], [0], [0], [1], [0, 0, 1, 1], [], []>} : vector<4x24xf32>, vector<24x40xf32>, vector<4x40xf32> -> vector<4x40xf32>
    %596 = arith.addf %589, %595 : vector<4x40xf32>
    %c2_590 = arith.constant 2 : index
    %c0_591 = arith.constant 0 : index
    %c0_592 = arith.constant 0 : index
    %597 = vector.load %arg6[%c2_590, %c0_591, %c0_592] : memref<9x4x16xf32, #tpu.memory_space<vmem>>, vector<1x4x16xf32>
    %598 = vector.shape_cast %597 : vector<1x4x16xf32> to vector<4x16xf32>
    %cst_593 = arith.constant dense<0.000000e+00> : vector<4x24xf32>
    %599 = tpu.matmul %598, %447, %cst_593 {dimension_numbers = #tpu.dot_dimension_numbers<[1], [0], [0], [1], [0, 0, 1, 1], [], []>} : vector<4x16xf32>, vector<16x24xf32>, vector<4x24xf32> -> vector<4x24xf32>
    %c2_594 = arith.constant 2 : index
    %c0_595 = arith.constant 0 : index
    %c0_596 = arith.constant 0 : index
    %600 = vector.load %arg10[%c2_594, %c0_595, %c0_596] : memref<10x24x40xf32, #tpu.memory_space<vmem>>, vector<1x24x40xf32>
    %601 = vector.shape_cast %600 : vector<1x24x40xf32> to vector<24x40xf32>
    %cst_597 = arith.constant dense<0.000000e+00> : vector<4x40xf32>
    %602 = tpu.matmul %599, %601, %cst_597 {dimension_numbers = #tpu.dot_dimension_numbers<[1], [0], [0], [1], [0, 0, 1, 1], [], []>} : vector<4x24xf32>, vector<24x40xf32>, vector<4x40xf32> -> vector<4x40xf32>
    %603 = arith.addf %596, %602 : vector<4x40xf32>
    %c3_598 = arith.constant 3 : index
    %c0_599 = arith.constant 0 : index
    %c0_600 = arith.constant 0 : index
    %604 = vector.load %arg6[%c3_598, %c0_599, %c0_600] : memref<9x4x16xf32, #tpu.memory_space<vmem>>, vector<1x4x16xf32>
    %605 = vector.shape_cast %604 : vector<1x4x16xf32> to vector<4x16xf32>
    %cst_601 = arith.constant dense<0.000000e+00> : vector<4x24xf32>
    %606 = tpu.matmul %605, %447, %cst_601 {dimension_numbers = #tpu.dot_dimension_numbers<[1], [0], [0], [1], [0, 0, 1, 1], [], []>} : vector<4x16xf32>, vector<16x24xf32>, vector<4x24xf32> -> vector<4x24xf32>
    %c3_602 = arith.constant 3 : index
    %c0_603 = arith.constant 0 : index
    %c0_604 = arith.constant 0 : index
    %607 = vector.load %arg10[%c3_602, %c0_603, %c0_604] : memref<10x24x40xf32, #tpu.memory_space<vmem>>, vector<1x24x40xf32>
    %608 = vector.shape_cast %607 : vector<1x24x40xf32> to vector<24x40xf32>
    %cst_605 = arith.constant dense<0.000000e+00> : vector<4x40xf32>
    %609 = tpu.matmul %606, %608, %cst_605 {dimension_numbers = #tpu.dot_dimension_numbers<[1], [0], [0], [1], [0, 0, 1, 1], [], []>} : vector<4x24xf32>, vector<24x40xf32>, vector<4x40xf32> -> vector<4x40xf32>
    %610 = arith.addf %603, %609 : vector<4x40xf32>
    %c4_606 = arith.constant 4 : index
    %c0_607 = arith.constant 0 : index
    %c0_608 = arith.constant 0 : index
    %611 = vector.load %arg6[%c4_606, %c0_607, %c0_608] : memref<9x4x16xf32, #tpu.memory_space<vmem>>, vector<1x4x16xf32>
    %612 = vector.shape_cast %611 : vector<1x4x16xf32> to vector<4x16xf32>
    %cst_609 = arith.constant dense<0.000000e+00> : vector<4x24xf32>
    %613 = tpu.matmul %612, %447, %cst_609 {dimension_numbers = #tpu.dot_dimension_numbers<[1], [0], [0], [1], [0, 0, 1, 1], [], []>} : vector<4x16xf32>, vector<16x24xf32>, vector<4x24xf32> -> vector<4x24xf32>
    %c4_610 = arith.constant 4 : index
    %c0_611 = arith.constant 0 : index
    %c0_612 = arith.constant 0 : index
    %614 = vector.load %arg10[%c4_610, %c0_611, %c0_612] : memref<10x24x40xf32, #tpu.memory_space<vmem>>, vector<1x24x40xf32>
    %615 = vector.shape_cast %614 : vector<1x24x40xf32> to vector<24x40xf32>
    %cst_613 = arith.constant dense<0.000000e+00> : vector<4x40xf32>
    %616 = tpu.matmul %613, %615, %cst_613 {dimension_numbers = #tpu.dot_dimension_numbers<[1], [0], [0], [1], [0, 0, 1, 1], [], []>} : vector<4x24xf32>, vector<24x40xf32>, vector<4x40xf32> -> vector<4x40xf32>
    %617 = arith.addf %610, %616 : vector<4x40xf32>
    %c5_614 = arith.constant 5 : index
    %c0_615 = arith.constant 0 : index
    %c0_616 = arith.constant 0 : index
    %618 = vector.load %arg6[%c5_614, %c0_615, %c0_616] : memref<9x4x16xf32, #tpu.memory_space<vmem>>, vector<1x4x16xf32>
    %619 = vector.shape_cast %618 : vector<1x4x16xf32> to vector<4x16xf32>
    %cst_617 = arith.constant dense<0.000000e+00> : vector<4x24xf32>
    %620 = tpu.matmul %619, %447, %cst_617 {dimension_numbers = #tpu.dot_dimension_numbers<[1], [0], [0], [1], [0, 0, 1, 1], [], []>} : vector<4x16xf32>, vector<16x24xf32>, vector<4x24xf32> -> vector<4x24xf32>
    %c5_618 = arith.constant 5 : index
    %c0_619 = arith.constant 0 : index
    %c0_620 = arith.constant 0 : index
    %621 = vector.load %arg10[%c5_618, %c0_619, %c0_620] : memref<10x24x40xf32, #tpu.memory_space<vmem>>, vector<1x24x40xf32>
    %622 = vector.shape_cast %621 : vector<1x24x40xf32> to vector<24x40xf32>
    %cst_621 = arith.constant dense<0.000000e+00> : vector<4x40xf32>
    %623 = tpu.matmul %620, %622, %cst_621 {dimension_numbers = #tpu.dot_dimension_numbers<[1], [0], [0], [1], [0, 0, 1, 1], [], []>} : vector<4x24xf32>, vector<24x40xf32>, vector<4x40xf32> -> vector<4x40xf32>
    %624 = arith.addf %617, %623 : vector<4x40xf32>
    %c6_622 = arith.constant 6 : index
    %c0_623 = arith.constant 0 : index
    %c0_624 = arith.constant 0 : index
    %625 = vector.load %arg6[%c6_622, %c0_623, %c0_624] : memref<9x4x16xf32, #tpu.memory_space<vmem>>, vector<1x4x16xf32>
    %626 = vector.shape_cast %625 : vector<1x4x16xf32> to vector<4x16xf32>
    %cst_625 = arith.constant dense<0.000000e+00> : vector<4x24xf32>
    %627 = tpu.matmul %626, %447, %cst_625 {dimension_numbers = #tpu.dot_dimension_numbers<[1], [0], [0], [1], [0, 0, 1, 1], [], []>} : vector<4x16xf32>, vector<16x24xf32>, vector<4x24xf32> -> vector<4x24xf32>
    %c6_626 = arith.constant 6 : index
    %c0_627 = arith.constant 0 : index
    %c0_628 = arith.constant 0 : index
    %628 = vector.load %arg10[%c6_626, %c0_627, %c0_628] : memref<10x24x40xf32, #tpu.memory_space<vmem>>, vector<1x24x40xf32>
    %629 = vector.shape_cast %628 : vector<1x24x40xf32> to vector<24x40xf32>
    %cst_629 = arith.constant dense<0.000000e+00> : vector<4x40xf32>
    %630 = tpu.matmul %627, %629, %cst_629 {dimension_numbers = #tpu.dot_dimension_numbers<[1], [0], [0], [1], [0, 0, 1, 1], [], []>} : vector<4x24xf32>, vector<24x40xf32>, vector<4x40xf32> -> vector<4x40xf32>
    %631 = arith.addf %624, %630 : vector<4x40xf32>
    %c7_630 = arith.constant 7 : index
    %c0_631 = arith.constant 0 : index
    %c0_632 = arith.constant 0 : index
    %632 = vector.load %arg6[%c7_630, %c0_631, %c0_632] : memref<9x4x16xf32, #tpu.memory_space<vmem>>, vector<1x4x16xf32>
    %633 = vector.shape_cast %632 : vector<1x4x16xf32> to vector<4x16xf32>
    %cst_633 = arith.constant dense<0.000000e+00> : vector<4x24xf32>
    %634 = tpu.matmul %633, %447, %cst_633 {dimension_numbers = #tpu.dot_dimension_numbers<[1], [0], [0], [1], [0, 0, 1, 1], [], []>} : vector<4x16xf32>, vector<16x24xf32>, vector<4x24xf32> -> vector<4x24xf32>
    %c7_634 = arith.constant 7 : index
    %c0_635 = arith.constant 0 : index
    %c0_636 = arith.constant 0 : index
    %635 = vector.load %arg10[%c7_634, %c0_635, %c0_636] : memref<10x24x40xf32, #tpu.memory_space<vmem>>, vector<1x24x40xf32>
    %636 = vector.shape_cast %635 : vector<1x24x40xf32> to vector<24x40xf32>
    %cst_637 = arith.constant dense<0.000000e+00> : vector<4x40xf32>
    %637 = tpu.matmul %634, %636, %cst_637 {dimension_numbers = #tpu.dot_dimension_numbers<[1], [0], [0], [1], [0, 0, 1, 1], [], []>} : vector<4x24xf32>, vector<24x40xf32>, vector<4x40xf32> -> vector<4x40xf32>
    %638 = arith.addf %631, %637 : vector<4x40xf32>
    %c8_638 = arith.constant 8 : index
    %c0_639 = arith.constant 0 : index
    %c0_640 = arith.constant 0 : index
    %639 = vector.load %arg6[%c8_638, %c0_639, %c0_640] : memref<9x4x16xf32, #tpu.memory_space<vmem>>, vector<1x4x16xf32>
    %640 = vector.shape_cast %639 : vector<1x4x16xf32> to vector<4x16xf32>
    %cst_641 = arith.constant dense<0.000000e+00> : vector<4x24xf32>
    %641 = tpu.matmul %640, %447, %cst_641 {dimension_numbers = #tpu.dot_dimension_numbers<[1], [0], [0], [1], [0, 0, 1, 1], [], []>} : vector<4x16xf32>, vector<16x24xf32>, vector<4x24xf32> -> vector<4x24xf32>
    %c8_642 = arith.constant 8 : index
    %c0_643 = arith.constant 0 : index
    %c0_644 = arith.constant 0 : index
    %642 = vector.load %arg10[%c8_642, %c0_643, %c0_644] : memref<10x24x40xf32, #tpu.memory_space<vmem>>, vector<1x24x40xf32>
    %643 = vector.shape_cast %642 : vector<1x24x40xf32> to vector<24x40xf32>
    %cst_645 = arith.constant dense<0.000000e+00> : vector<4x40xf32>
    %644 = tpu.matmul %641, %643, %cst_645 {dimension_numbers = #tpu.dot_dimension_numbers<[1], [0], [0], [1], [0, 0, 1, 1], [], []>} : vector<4x24xf32>, vector<24x40xf32>, vector<4x40xf32> -> vector<4x40xf32>
    %645 = arith.addf %638, %644 : vector<4x40xf32>
    %c9_646 = arith.constant 9 : index
    %c0_647 = arith.constant 0 : index
    %c0_648 = arith.constant 0 : index
    %646 = vector.load %arg10[%c9_646, %c0_647, %c0_648] : memref<10x24x40xf32, #tpu.memory_space<vmem>>, vector<1x1x40xf32>
    %647 = vector.shape_cast %646 : vector<1x1x40xf32> to vector<1x40xf32>
    %648 = vector.broadcast %647 : vector<1x40xf32> to vector<4x40xf32>
    %649 = arith.addf %645, %648 : vector<4x40xf32>
    %650 = arith.negf %649 : vector<4x40xf32>
    %651 = math.exp %650 : vector<4x40xf32>
    %cst_649 = arith.constant 1.000000e+00 : f32
    %652 = vector.broadcast %cst_649 : f32 to vector<4x40xf32>
    %653 = arith.addf %652, %651 : vector<4x40xf32>
    %654 = arith.divf %652, %653 : vector<4x40xf32>
    %655 = arith.mulf %649, %654 : vector<4x40xf32>
    %c0_650 = arith.constant 0 : index
    %c0_651 = arith.constant 0 : index
    %c0_652 = arith.constant 0 : index
    %656 = vector.load %arg17[%c0_650, %c0_651, %c0_652] : memref<3x41x16xf32, #tpu.memory_space<vmem>>, vector<1x40x16xf32>
    %657 = vector.shape_cast %656 : vector<1x40x16xf32> to vector<40x16xf32>
    %cst_653 = arith.constant dense<0.000000e+00> : vector<4x16xf32>
    %658 = tpu.matmul %581, %657, %cst_653 {dimension_numbers = #tpu.dot_dimension_numbers<[1], [0], [0], [1], [0, 0, 1, 1], [], []>} : vector<4x40xf32>, vector<40x16xf32>, vector<4x16xf32> -> vector<4x16xf32>
    %c0_654 = arith.constant 0 : index
    %c40 = arith.constant 40 : index
    %c0_655 = arith.constant 0 : index
    %659 = vector.load %arg17[%c0_654, %c40, %c0_655] : memref<3x41x16xf32, #tpu.memory_space<vmem>>, vector<1x1x16xf32>
    %660 = vector.shape_cast %659 : vector<1x1x16xf32> to vector<1x16xf32>
    %661 = vector.broadcast %660 : vector<1x16xf32> to vector<4x16xf32>
    %662 = arith.addf %658, %661 : vector<4x16xf32>
    %c1_656 = arith.constant 1 : index
    %c0_657 = arith.constant 0 : index
    %c0_658 = arith.constant 0 : index
    %663 = vector.load %arg17[%c1_656, %c0_657, %c0_658] : memref<3x41x16xf32, #tpu.memory_space<vmem>>, vector<1x40x16xf32>
    %664 = vector.shape_cast %663 : vector<1x40x16xf32> to vector<40x16xf32>
    %cst_659 = arith.constant dense<0.000000e+00> : vector<4x16xf32>
    %665 = tpu.matmul %655, %664, %cst_659 {dimension_numbers = #tpu.dot_dimension_numbers<[1], [0], [0], [1], [0, 0, 1, 1], [], []>} : vector<4x40xf32>, vector<40x16xf32>, vector<4x16xf32> -> vector<4x16xf32>
    %c1_660 = arith.constant 1 : index
    %c40_661 = arith.constant 40 : index
    %c0_662 = arith.constant 0 : index
    %666 = vector.load %arg17[%c1_660, %c40_661, %c0_662] : memref<3x41x16xf32, #tpu.memory_space<vmem>>, vector<1x1x16xf32>
    %667 = vector.shape_cast %666 : vector<1x1x16xf32> to vector<1x16xf32>
    %668 = vector.broadcast %667 : vector<1x16xf32> to vector<4x16xf32>
    %669 = arith.addf %665, %668 : vector<4x16xf32>
    %c2_663 = arith.constant 2 : index
    %c0_664 = arith.constant 0 : index
    %c0_665 = arith.constant 0 : index
    %670 = vector.load %arg17[%c2_663, %c0_664, %c0_665] : memref<3x41x16xf32, #tpu.memory_space<vmem>>, vector<1x40x16xf32>
    %671 = vector.shape_cast %670 : vector<1x40x16xf32> to vector<40x16xf32>
    %cst_666 = arith.constant dense<0.000000e+00> : vector<4x16xf32>
    %672 = tpu.matmul %655, %671, %cst_666 {dimension_numbers = #tpu.dot_dimension_numbers<[1], [0], [0], [1], [0, 0, 1, 1], [], []>} : vector<4x40xf32>, vector<40x16xf32>, vector<4x16xf32> -> vector<4x16xf32>
    %c2_667 = arith.constant 2 : index
    %c40_668 = arith.constant 40 : index
    %c0_669 = arith.constant 0 : index
    %673 = vector.load %arg17[%c2_667, %c40_668, %c0_669] : memref<3x41x16xf32, #tpu.memory_space<vmem>>, vector<1x1x16xf32>
    %674 = vector.shape_cast %673 : vector<1x1x16xf32> to vector<1x16xf32>
    %675 = vector.broadcast %674 : vector<1x16xf32> to vector<4x16xf32>
    %676 = arith.addf %672, %675 : vector<4x16xf32>
    %cst_670 = arith.constant dense<0.000000e+00> : vector<4x4xf32>
    %677 = tpu.matmul %662, %669, %cst_670 {dimension_numbers = #tpu.dot_dimension_numbers<[1], [1], [0], [0], [0, 0, 1, 0], [], []>} : vector<4x16xf32>, vector<4x16xf32>, vector<4x4xf32> -> vector<4x4xf32>
    %cst_671 = arith.constant 2.500000e-01 : f32
    %678 = vector.broadcast %cst_671 : f32 to vector<4x4xf32>
    %679 = arith.mulf %677, %678 : vector<4x4xf32>
    %cst_672 = arith.constant 0.000000e+00 : f32
    %680 = vector.broadcast %cst_672 : f32 to vector<4x16xf32>
    %c0_673 = arith.constant 0 : index
    %c0_674 = arith.constant 0 : index
    %c0_675 = arith.constant 0 : index
    %681 = vector.load %arg20[%c0_673, %c0_674, %c0_675] : memref<2x4x4xf32, #tpu.memory_space<vmem>>, vector<1x4x4xf32>
    %682 = vector.shape_cast %681 : vector<1x4x4xf32> to vector<4x4xf32>
    %683 = arith.addf %679, %682 : vector<4x4xf32>
    %cst_676 = arith.constant dense<0xFF800000> : vector<4xf32>
    %684 = vector.multi_reduction <maximumf>, %683, %cst_676 [1] : vector<4x4xf32> to vector<4xf32>
    %685 = vector.shape_cast %684 : vector<4xf32> to vector<4x1xf32>
    %686 = vector.broadcast %685 : vector<4x1xf32> to vector<4x4xf32>
    %687 = arith.subf %683, %686 : vector<4x4xf32>
    %688 = math.exp %687 : vector<4x4xf32>
    %cst_677 = arith.constant dense<0.000000e+00> : vector<4xf32>
    %689 = vector.multi_reduction <add>, %688, %cst_677 [1] : vector<4x4xf32> to vector<4xf32>
    %690 = vector.shape_cast %689 : vector<4xf32> to vector<4x1xf32>
    %691 = tpu.reciprocal %690 {approx = true} : vector<4x1xf32> -> vector<4x1xf32>
    %692 = vector.broadcast %691 : vector<4x1xf32> to vector<4x4xf32>
    %693 = arith.mulf %688, %692 : vector<4x4xf32>
    %cst_678 = arith.constant dense<0.000000e+00> : vector<4x16xf32>
    %694 = tpu.matmul %693, %676, %cst_678 {dimension_numbers = #tpu.dot_dimension_numbers<[1], [0], [0], [1], [0, 0, 1, 1], [], []>} : vector<4x4xf32>, vector<4x16xf32>, vector<4x16xf32> -> vector<4x16xf32>
    %695 = arith.addf %680, %694 : vector<4x16xf32>
    %c1_679 = arith.constant 1 : index
    %c0_680 = arith.constant 0 : index
    %c0_681 = arith.constant 0 : index
    %696 = vector.load %arg20[%c1_679, %c0_680, %c0_681] : memref<2x4x4xf32, #tpu.memory_space<vmem>>, vector<1x4x4xf32>
    %697 = vector.shape_cast %696 : vector<1x4x4xf32> to vector<4x4xf32>
    %698 = arith.addf %679, %697 : vector<4x4xf32>
    %cst_682 = arith.constant dense<0xFF800000> : vector<4xf32>
    %699 = vector.multi_reduction <maximumf>, %698, %cst_682 [1] : vector<4x4xf32> to vector<4xf32>
    %700 = vector.shape_cast %699 : vector<4xf32> to vector<4x1xf32>
    %701 = vector.broadcast %700 : vector<4x1xf32> to vector<4x4xf32>
    %702 = arith.subf %698, %701 : vector<4x4xf32>
    %703 = math.exp %702 : vector<4x4xf32>
    %cst_683 = arith.constant dense<0.000000e+00> : vector<4xf32>
    %704 = vector.multi_reduction <add>, %703, %cst_683 [1] : vector<4x4xf32> to vector<4xf32>
    %705 = vector.shape_cast %704 : vector<4xf32> to vector<4x1xf32>
    %706 = tpu.reciprocal %705 {approx = true} : vector<4x1xf32> -> vector<4x1xf32>
    %707 = vector.broadcast %706 : vector<4x1xf32> to vector<4x4xf32>
    %708 = arith.mulf %703, %707 : vector<4x4xf32>
    %cst_684 = arith.constant dense<0.000000e+00> : vector<4x16xf32>
    %709 = tpu.matmul %708, %676, %cst_684 {dimension_numbers = #tpu.dot_dimension_numbers<[1], [0], [0], [1], [0, 0, 1, 1], [], []>} : vector<4x4xf32>, vector<4x16xf32>, vector<4x16xf32> -> vector<4x16xf32>
    %710 = arith.addf %695, %709 : vector<4x16xf32>
    %c0_685 = arith.constant 0 : index
    %c0_686 = arith.constant 0 : index
    %711 = vector.load %arg18[%c0_685, %c0_686] : memref<17x40xf32, #tpu.memory_space<vmem>>, vector<16x40xf32>
    %cst_687 = arith.constant dense<0.000000e+00> : vector<4x40xf32>
    %712 = tpu.matmul %710, %711, %cst_687 {dimension_numbers = #tpu.dot_dimension_numbers<[1], [0], [0], [1], [0, 0, 1, 1], [], []>} : vector<4x16xf32>, vector<16x40xf32>, vector<4x40xf32> -> vector<4x40xf32>
    %c16_688 = arith.constant 16 : index
    %c0_689 = arith.constant 0 : index
    %713 = vector.load %arg18[%c16_688, %c0_689] : memref<17x40xf32, #tpu.memory_space<vmem>>, vector<1x40xf32>
    %714 = vector.broadcast %713 : vector<1x40xf32> to vector<4x40xf32>
    %715 = arith.addf %712, %714 : vector<4x40xf32>
    %716 = arith.mulf %715, %715 : vector<4x40xf32>
    %cst_690 = arith.constant dense<0.000000e+00> : vector<4xf32>
    %717 = vector.multi_reduction <add>, %716, %cst_690 [1] : vector<4x40xf32> to vector<4xf32>
    %718 = vector.shape_cast %717 : vector<4xf32> to vector<4x1xf32>
    %719 = arith.mulf %655, %655 : vector<4x40xf32>
    %cst_691 = arith.constant dense<0.000000e+00> : vector<4xf32>
    %720 = vector.multi_reduction <add>, %719, %cst_691 [1] : vector<4x40xf32> to vector<4xf32>
    %721 = vector.shape_cast %720 : vector<4xf32> to vector<4x1xf32>
    %722 = arith.mulf %715, %655 : vector<4x40xf32>
    %723 = arith.mulf %718, %721 : vector<4x1xf32>
    %cst_692 = arith.constant 9.99999997E-7 : f32
    %724 = vector.broadcast %cst_692 : f32 to vector<4x1xf32>
    %725 = arith.addf %723, %724 : vector<4x1xf32>
    %726 = math.rsqrt %725 : vector<4x1xf32>
    %727 = vector.broadcast %726 : vector<4x1xf32> to vector<4x40xf32>
    %728 = arith.mulf %722, %727 : vector<4x40xf32>
    %cst_693 = arith.constant dense<0.000000e+00> : vector<40xf32>
    %729 = vector.multi_reduction <add>, %728, %cst_693 [0] : vector<4x40xf32> to vector<40xf32>
    %730 = vector.shape_cast %729 : vector<40xf32> to vector<1x40xf32>
    %cst_694 = arith.constant 2.500000e-01 : f32
    %731 = vector.broadcast %cst_694 : f32 to vector<1x40xf32>
    %732 = arith.mulf %730, %731 : vector<1x40xf32>
    %c0_695 = arith.constant 0 : index
    %c0_696 = arith.constant 0 : index
    %733 = vector.load %arg21[%c0_695, %c0_696] : memref<41x128xf32, #tpu.memory_space<vmem>>, vector<40x128xf32>
    %cst_697 = arith.constant dense<0.000000e+00> : vector<1x128xf32>
    %734 = tpu.matmul %732, %733, %cst_697 {dimension_numbers = #tpu.dot_dimension_numbers<[1], [0], [0], [1], [0, 0, 1, 1], [], []>} : vector<1x40xf32>, vector<40x128xf32>, vector<1x128xf32> -> vector<1x128xf32>
    %c40_698 = arith.constant 40 : index
    %c0_699 = arith.constant 0 : index
    %735 = vector.load %arg21[%c40_698, %c0_699] : memref<41x128xf32, #tpu.memory_space<vmem>>, vector<1x128xf32>
    %736 = arith.addf %734, %735 : vector<1x128xf32>
    %737 = vector.shape_cast %736 : vector<1x128xf32> to vector<1x128xf32>
    %738 = vector.broadcast %737 : vector<1x128xf32> to vector<8x128xf32>
    %c0_700 = arith.constant 0 : index
    %c0_701 = arith.constant 0 : index
    %c0_702 = arith.constant 0 : index
    %739 = vector.load %arg22[%c0_700, %c0_701, %c0_702] : memref<1x8x128xf32, #tpu.memory_space<vmem>>, vector<1x8x128xf32>
    %740 = vector.shape_cast %739 : vector<1x8x128xf32> to vector<8x128xf32>
    %741 = vector.shape_cast %738 : vector<8x128xf32> to vector<1x8x128xf32>
    tpu.vector_store %arg22[%c0_700, %c0_701, %c0_702], %741 {strides = array<i32>} : memref<1x8x128xf32, #tpu.memory_space<vmem>>, vector<1x8x128xf32>,
    return
  }
  func.func @transform_0(%arg0: i32) -> (i32, i32, i32) {
    %c0_i32 = arith.constant 0 : i32
    %c0_i32_0 = arith.constant 0 : i32
    %c0_i32_1 = arith.constant 0 : i32
    return %arg0, %c0_i32, %c0_i32_0 : i32, i32, i32
  }
  func.func @transform_1(%arg0: i32) -> (i32, i32, i32) {
    %c0_i32 = arith.constant 0 : i32
    %c0_i32_0 = arith.constant 0 : i32
    %c0_i32_1 = arith.constant 0 : i32
    return %arg0, %c0_i32, %c0_i32_0 : i32, i32, i32
  }
  func.func @transform_2(%arg0: i32) -> (i32, i32, i32) {
    %c0_i32 = arith.constant 0 : i32
    %c0_i32_0 = arith.constant 0 : i32
    %c0_i32_1 = arith.constant 0 : i32
    %c0_i32_2 = arith.constant 0 : i32
    return %c0_i32, %c0_i32_0, %c0_i32_1 : i32, i32, i32
  }
  func.func @transform_3(%arg0: i32) -> (i32, i32, i32) {
    %c0_i32 = arith.constant 0 : i32
    %c0_i32_0 = arith.constant 0 : i32
    %c0_i32_1 = arith.constant 0 : i32
    %c0_i32_2 = arith.constant 0 : i32
    return %c0_i32, %c0_i32_0, %c0_i32_1 : i32, i32, i32
  }
  func.func @transform_4(%arg0: i32) -> (i32, i32, i32) {
    %c0_i32 = arith.constant 0 : i32
    %c0_i32_0 = arith.constant 0 : i32
    %c0_i32_1 = arith.constant 0 : i32
    %c0_i32_2 = arith.constant 0 : i32
    return %c0_i32, %c0_i32_0, %c0_i32_1 : i32, i32, i32
  }
  func.func @transform_5(%arg0: i32) -> (i32, i32, i32) {
    %c0_i32 = arith.constant 0 : i32
    %c0_i32_0 = arith.constant 0 : i32
    %c0_i32_1 = arith.constant 0 : i32
    %c0_i32_2 = arith.constant 0 : i32
    return %c0_i32, %c0_i32_0, %c0_i32_1 : i32, i32, i32
  }
  func.func @transform_6(%arg0: i32) -> (i32, i32, i32) {
    %c0_i32 = arith.constant 0 : i32
    %c0_i32_0 = arith.constant 0 : i32
    %c0_i32_1 = arith.constant 0 : i32
    %c0_i32_2 = arith.constant 0 : i32
    return %c0_i32, %c0_i32_0, %c0_i32_1 : i32, i32, i32
  }
  func.func @transform_7(%arg0: i32) -> (i32, i32, i32) {
    %c0_i32 = arith.constant 0 : i32
    %c0_i32_0 = arith.constant 0 : i32
    %c0_i32_1 = arith.constant 0 : i32
    %c0_i32_2 = arith.constant 0 : i32
    return %c0_i32, %c0_i32_0, %c0_i32_1 : i32, i32, i32
  }
  func.func @transform_8(%arg0: i32) -> (i32, i32, i32) {
    %c0_i32 = arith.constant 0 : i32
    %c0_i32_0 = arith.constant 0 : i32
    %c0_i32_1 = arith.constant 0 : i32
    %c0_i32_2 = arith.constant 0 : i32
    return %c0_i32, %c0_i32_0, %c0_i32_1 : i32, i32, i32
  }
  func.func @transform_9(%arg0: i32) -> (i32, i32, i32) {
    %c0_i32 = arith.constant 0 : i32
    %c0_i32_0 = arith.constant 0 : i32
    %c0_i32_1 = arith.constant 0 : i32
    %c0_i32_2 = arith.constant 0 : i32
    return %c0_i32, %c0_i32_0, %c0_i32_1 : i32, i32, i32
  }
  func.func @transform_10(%arg0: i32) -> (i32, i32, i32) {
    %c0_i32 = arith.constant 0 : i32
    %c0_i32_0 = arith.constant 0 : i32
    %c0_i32_1 = arith.constant 0 : i32
    %c0_i32_2 = arith.constant 0 : i32
    return %c0_i32, %c0_i32_0, %c0_i32_1 : i32, i32, i32
  }
  func.func @transform_11(%arg0: i32) -> (i32, i32, i32) {
    %c0_i32 = arith.constant 0 : i32
    %c0_i32_0 = arith.constant 0 : i32
    %c0_i32_1 = arith.constant 0 : i32
    %c0_i32_2 = arith.constant 0 : i32
    return %c0_i32, %c0_i32_0, %c0_i32_1 : i32, i32, i32
  }
  func.func @transform_12(%arg0: i32) -> (i32, i32, i32) {
    %c0_i32 = arith.constant 0 : i32
    %c0_i32_0 = arith.constant 0 : i32
    %c0_i32_1 = arith.constant 0 : i32
    %c0_i32_2 = arith.constant 0 : i32
    return %c0_i32, %c0_i32_0, %c0_i32_1 : i32, i32, i32
  }
  func.func @transform_13(%arg0: i32) -> (i32, i32, i32) {
    %c0_i32 = arith.constant 0 : i32
    %c0_i32_0 = arith.constant 0 : i32
    %c0_i32_1 = arith.constant 0 : i32
    %c0_i32_2 = arith.constant 0 : i32
    return %c0_i32, %c0_i32_0, %c0_i32_1 : i32, i32, i32
  }
  func.func @transform_14(%arg0: i32) -> (i32, i32, i32) {
    %c0_i32 = arith.constant 0 : i32
    %c0_i32_0 = arith.constant 0 : i32
    %c0_i32_1 = arith.constant 0 : i32
    %c0_i32_2 = arith.constant 0 : i32
    return %c0_i32, %c0_i32_0, %c0_i32_1 : i32, i32, i32
  }
  func.func @transform_15(%arg0: i32) -> (i32, i32) {
    %c0_i32 = arith.constant 0 : i32
    %c0_i32_0 = arith.constant 0 : i32
    %c0_i32_1 = arith.constant 0 : i32
    return %c0_i32, %c0_i32_0 : i32, i32
  }
  func.func @transform_16(%arg0: i32) -> (i32, i32, i32) {
    %c0_i32 = arith.constant 0 : i32
    %c0_i32_0 = arith.constant 0 : i32
    %c0_i32_1 = arith.constant 0 : i32
    %c0_i32_2 = arith.constant 0 : i32
    return %c0_i32, %c0_i32_0, %c0_i32_1 : i32, i32, i32
  }
  func.func @transform_17(%arg0: i32) -> (i32, i32) {
    %c0_i32 = arith.constant 0 : i32
    %c0_i32_0 = arith.constant 0 : i32
    %c0_i32_1 = arith.constant 0 : i32
    return %c0_i32, %c0_i32_0 : i32, i32
  }
  func.func @transform_18(%arg0: i32) -> (i32, i32, i32) {
    %c0_i32 = arith.constant 0 : i32
    %c0_i32_0 = arith.constant 0 : i32
    %c0_i32_1 = arith.constant 0 : i32
    %c0_i32_2 = arith.constant 0 : i32
    return %c0_i32, %c0_i32_0, %c0_i32_1 : i32, i32, i32
  }
  func.func @transform_19(%arg0: i32) -> (i32, i32, i32) {
    %c0_i32 = arith.constant 0 : i32
    %c0_i32_0 = arith.constant 0 : i32
    %c0_i32_1 = arith.constant 0 : i32
    %c0_i32_2 = arith.constant 0 : i32
    return %c0_i32, %c0_i32_0, %c0_i32_1 : i32, i32, i32
  }
  func.func @transform_20(%arg0: i32) -> (i32, i32) {
    %c0_i32 = arith.constant 0 : i32
    %c0_i32_0 = arith.constant 0 : i32
    %c0_i32_1 = arith.constant 0 : i32
    return %c0_i32, %c0_i32_0 : i32, i32
  }
  func.func @transform_21(%arg0: i32) -> (i32, i32, i32) {
    %c0_i32 = arith.constant 0 : i32
    %c0_i32_0 = arith.constant 0 : i32
    %c0_i32_1 = arith.constant 0 : i32
    return %arg0, %c0_i32, %c0_i32_0 : i32, i32, i32
  }
}

</mosaic_0001>

<llo_original>
// kernel: attentive_forward.1
$region0: #{attentive_forward.1}
  #allocation0 [shape = 'u32[]', space=smem, size = 0x4, offset = 0x4, fixed_abs, tag = 'smem constant byte address 0x4 - core index']
  #allocation1 [shape = 'u32[72,128]{1,0:T(1,128)}', space=vmem, size = 0x9000, scoped, tag = 'internal scratch']
  %s0 = inlined_call_operand.vmem [shape: f32[2,256,3], index: 0, kind: input, shape index: {}]
  %s1 = inlined_call_operand.vmem [shape: f32[2,256,3], index: 1, kind: input, shape index: {}]
  %s2 = inlined_call_operand.hbm [shape: f32[9,64,256], index: 2, kind: input, shape index: {}]
  %s3 = inlined_call_operand.vmem [shape: f32[9,64,64], index: 3, kind: input, shape index: {}]
  %s4 = inlined_call_operand.vmem [shape: f32[9,16,64], index: 4, kind: input, shape index: {}]
  %s5 = inlined_call_operand.vmem [shape: f32[9,4,16], index: 5, kind: input, shape index: {}]
  %s6 = inlined_call_operand.vmem [shape: f32[10,3,32], index: 6, kind: input, shape index: {}]
  %s7 = inlined_call_operand.vmem [shape: f32[10,32,16], index: 7, kind: input, shape index: {}]
  %s8 = inlined_call_operand.vmem [shape: f32[10,16,24], index: 8, kind: input, shape index: {}]
  %s9 = inlined_call_operand.vmem [shape: f32[10,24,40], index: 9, kind: input, shape index: {}]
  %s10 = inlined_call_operand.vmem [shape: f32[10,3,32], index: 10, kind: input, shape index: {}]
  %s11 = inlined_call_operand.vmem [shape: f32[10,32,16], index: 11, kind: input, shape index: {}]
  %s12 = inlined_call_operand.vmem [shape: f32[10,16,24], index: 12, kind: input, shape index: {}]
  %s13 = inlined_call_operand.vmem [shape: f32[10,24,40], index: 13, kind: input, shape index: {}]
  %s14 = inlined_call_operand.vmem [shape: f32[3,25,16], index: 14, kind: input, shape index: {}]
  %s15 = inlined_call_operand.vmem [shape: f32[17,24], index: 15, kind: input, shape index: {}]
  %s16 = inlined_call_operand.vmem [shape: f32[3,41,16], index: 16, kind: input, shape index: {}]
  %s17 = inlined_call_operand.vmem [shape: f32[17,40], index: 17, kind: input, shape index: {}]
  %s18 = inlined_call_operand.vmem [shape: f32[2,16,16], index: 18, kind: input, shape index: {}]
  %s19 = inlined_call_operand.vmem [shape: f32[2,4,4], index: 19, kind: input, shape index: {}]
  %s20 = inlined_call_operand.vmem [shape: f32[41,128], index: 20, kind: input, shape index: {}]
  %s21 = inlined_call_operand.vmem [shape: f32[2,8,128], index: 21, kind: output, shape index: {}]
  %s22 = sld [smem:[#allocation0]]
  $region121: #{attentive_forward.1} parent=0
    _
  %s24 = ssub.s32 1, %s22
  %s25 = scalar_select 0, %s24, %s22
  $region1: #{attentive_forward.1} parent=0
    #allocation2 [shape = 'u8[589824]{0}', space=vmem, size = 0x90000, scoped, tag = 'input window, operand 2, single buffered']
    #allocation3 [shape = 's32[2]{0}', space=sflag, size = 0x8, scoped, tag = 'scoped memory for attentive_forward.1']
    %26 = vsyncpa [#allocation3], 0
    loop: start=0, step=1, limit=4
    $region2: #{attentive_forward.1} parent=1 // loop_pre_header
      _
    $region3: #{attentive_forward.1} parent=1 // loop_header
      %s28 = sphi 0, %s32
      %p29 = scmp.ge.s32.totalorder %s28, 4
      %s38 = sphi 0, %s40
      %s41 = sphi 0, %s38
      %s42 = sphi 0, %s41
      %s58 = sphi 0, %s42
      %s64 = sphi 0, %s66
      %s67 = sphi 0, %s64
      %s68 = sphi 0, %s67
      %s84 = sphi 0, %s68
      %s88 = sphi 0, %s88
      %s90 = sphi 0, %s88
      %s91 = sphi 0, %s90
      %s105 = sphi 0, %s91
      %s109 = sphi 0, %s109
      %s111 = sphi 0, %s109
      %s112 = sphi 0, %s111
      %s126 = sphi 0, %s112
      %s130 = sphi 0, %s130
      %s132 = sphi 0, %s130
      %s133 = sphi 0, %s132
      %s147 = sphi 0, %s133
      %s151 = sphi 0, %s151
      %s153 = sphi 0, %s151
      %s154 = sphi 0, %s153
      %s168 = sphi 0, %s154
      %s172 = sphi 0, %s172
      %s174 = sphi 0, %s172
      %s175 = sphi 0, %s174
      %s189 = sphi 0, %s175
      %s193 = sphi 0, %s193
      %s195 = sphi 0, %s193
      %s196 = sphi 0, %s195
      %s210 = sphi 0, %s196
      %s214 = sphi 0, %s214
      %s216 = sphi 0, %s214
      %s217 = sphi 0, %s216
      %s231 = sphi 0, %s217
      %s235 = sphi 0, %s235
      %s237 = sphi 0, %s235
      %s238 = sphi 0, %s237
      %s252 = sphi 0, %s238
      %s256 = sphi 0, %s256
      %s258 = sphi 0, %s256
      %s259 = sphi 0, %s258
      %s273 = sphi 0, %s259
      %s277 = sphi 0, %s277
      %s279 = sphi 0, %s277
      %s280 = sphi 0, %s279
      %s294 = sphi 0, %s280
      %s298 = sphi 0, %s298
      %s300 = sphi 0, %s298
      %s301 = sphi 0, %s300
      %s315 = sphi 0, %s301
      %s319 = sphi 0, %s319
      %s321 = sphi 0, %s319
      %s322 = sphi 0, %s321
      %s336 = sphi 0, %s322
      %s340 = sphi 0, %s340
      %s342 = sphi 0, %s340
      %s343 = sphi 0, %s342
      %s357 = sphi 0, %s343
      %s361 = sphi 0, %s361
      %s363 = sphi 0, %s361
      %s364 = sphi 0, %s363
      %s378 = sphi 0, %s364
      %s382 = sphi 0, %s382
      %s384 = sphi 0, %s382
      %s385 = sphi 0, %s384
      %s399 = sphi 0, %s385
      %s403 = sphi 0, %s403
      %s405 = sphi 0, %s403
      %s406 = sphi 0, %s405
      %s420 = sphi 0, %s406
      %s424 = sphi 0, %s424
      %s426 = sphi 0, %s424
      %s427 = sphi 0, %s426
      %s441 = sphi 0, %s427
      %s445 = sphi 0, %s445
      %s447 = sphi 0, %s445
      %s448 = sphi 0, %s447
      %s462 = sphi 0, %s448
      %s466 = sphi 0, %s466
      %s468 = sphi 0, %s466
      %s469 = sphi 0, %s468
      %s483 = sphi 0, %s469
      %s489 = sphi 0, %s491
      %s492 = sphi 0, %s489
      %s493 = sphi 0, %s492
      %s509 = sphi 0, %s493
    $region4: #{attentive_forward.1} parent=1 // loop_header_branch
      %31 = sbr.rel (%p29) target = $region8
    $region5: #{attentive_forward.1} parent=1 // loop_body
      %s33 = ssub.s32 %s28, 1
      %s34 = ssub.s32 %s28, 2
      %s35 = sadd.s32 %s28, 1
      %s36 = ssub.s32 %s28, %s35
      %p37 = scmp.eq.s32.totalorder %s36, 0
      %s39 = sadd.s32 %s38, 1
      %s40 = scalar_select %p37, %s38, %s39
      %p43 = pneg %p37
      %p44 = scmp.eq.s32.totalorder %s28, 1
      %p45 = por %p43, %p44
      %p46 = scmp.ne.s32.totalorder %s38, %s41
      %p47 = scmp.eq.s32.totalorder %s28, 0
      %p48 = por %p46, %p47
      %p49 = scmp.ne.s32.totalorder %s38, %s41
      %p50 = scmp.eq.s32.totalorder %s33, 1
      %p51 = por %p49, %p50
      %p52 = scmp.ne.s32.totalorder %s41, %s42
      %p53 = scmp.eq.s32.totalorder %s33, 0
      %p54 = por %p52, %p53
      %p55 = scmp.ne.s32.totalorder %s41, %s42
      %p56 = scmp.eq.s32.totalorder %s34, 1
      %p57 = por %p55, %p56
      %p59 = scmp.ne.s32.totalorder %s42, %s58
      %p60 = scmp.eq.s32.totalorder %s34, 0
      %p61 = por %p59, %p60
      %s62 = ssub.s32 %s28, %s35
      %p63 = scmp.eq.s32.totalorder %s62, 0
      %s65 = sadd.s32 %s64, 1
      %s66 = scalar_select %p63, %s64, %s65
      %p69 = pneg %p63
      %p70 = scmp.eq.s32.totalorder %s28, 1
      %p71 = por %p69, %p70
      %p72 = scmp.ne.s32.totalorder %s64, %s67
      %p73 = scmp.eq.s32.totalorder %s28, 0
      %p74 = por %p72, %p73
      %p75 = scmp.ne.s32.totalorder %s64, %s67
      %p76 = scmp.eq.s32.totalorder %s33, 1
      %p77 = por %p75, %p76
      %p78 = scmp.ne.s32.totalorder %s67, %s68
      %p79 = scmp.eq.s32.totalorder %s33, 0
      %p80 = por %p78, %p79
      %p81 = scmp.ne.s32.totalorder %s67, %s68
      %p82 = scmp.eq.s32.totalorder %s34, 1
      %p83 = por %p81, %p82
      %p85 = scmp.ne.s32.totalorder %s68, %s84
      %p86 = scmp.eq.s32.totalorder %s34, 0
      %p87 = por %p85, %p86
      %s89 = sadd.s32 %s88, 1
      %p92 = scmp.eq.s32.totalorder %s28, 1
      %p93 = scmp.ne.s32.totalorder %s88, %s90
      %p94 = scmp.eq.s32.totalorder %s28, 0
      %p95 = por %p93, %p94
      %p96 = scmp.ne.s32.totalorder %s88, %s90
      %p97 = scmp.eq.s32.totalorder %s33, 1
      %p98 = por %p96, %p97
      %p99 = scmp.ne.s32.totalorder %s90, %s91
      %p100 = scmp.eq.s32.totalorder %s33, 0
      %p101 = por %p99, %p100
      %p102 = scmp.ne.s32.totalorder %s90, %s91
      %p103 = scmp.eq.s32.totalorder %s34, 1
      %p104 = por %p102, %p103
      %p106 = scmp.ne.s32.totalorder %s91, %s105
      %p107 = scmp.eq.s32.totalorder %s34, 0
      %p108 = por %p106, %p107
      %s110 = sadd.s32 %s109, 1
      %p113 = scmp.eq.s32.totalorder %s28, 1
      %p114 = scmp.ne.s32.totalorder %s109, %s111
      %p115 = scmp.eq.s32.totalorder %s28, 0
      %p116 = por %p114, %p115
      %p117 = scmp.ne.s32.totalorder %s109, %s111
      %p118 = scmp.eq.s32.totalorder %s33, 1
      %p119 = por %p117, %p118
      %p120 = scmp.ne.s32.totalorder %s111, %s112
      %p121 = scmp.eq.s32.totalorder %s33, 0
      %p122 = por %p120, %p121
      %p123 = scmp.ne.s32.totalorder %s111, %s112
      %p124 = scmp.eq.s32.totalorder %s34, 1
      %p125 = por %p123, %p124
      %p127 = scmp.ne.s32.totalorder %s112, %s126
      %p128 = scmp.eq.s32.totalorder %s34, 0
      %p129 = por %p127, %p128
      %s131 = sadd.s32 %s130, 1
      %p134 = scmp.eq.s32.totalorder %s28, 1
      %p135 = scmp.ne.s32.totalorder %s130, %s132
      %p136 = scmp.eq.s32.totalorder %s28, 0
      %p137 = por %p135, %p136
      %p138 = scmp.ne.s32.totalorder %s130, %s132
      %p139 = scmp.eq.s32.totalorder %s33, 1
      %p140 = por %p138, %p139
      %p141 = scmp.ne.s32.totalorder %s132, %s133
      %p142 = scmp.eq.s32.totalorder %s33, 0
      %p143 = por %p141, %p142
      %p144 = scmp.ne.s32.totalorder %s132, %s133
      %p145 = scmp.eq.s32.totalorder %s34, 1
      %p146 = por %p144, %p145
      %p148 = scmp.ne.s32.totalorder %s133, %s147
      %p149 = scmp.eq.s32.totalorder %s34, 0
      %p150 = por %p148, %p149
      %s152 = sadd.s32 %s151, 1
      %p155 = scmp.eq.s32.totalorder %s28, 1
      %p156 = scmp.ne.s32.totalorder %s151, %s153
      %p157 = scmp.eq.s32.totalorder %s28, 0
      %p158 = por %p156, %p157
      %p159 = scmp.ne.s32.totalorder %s151, %s153
      %p160 = scmp.eq.s32.totalorder %s33, 1
      %p161 = por %p159, %p160
      %p162 = scmp.ne.s32.totalorder %s153, %s154
      %p163 = scmp.eq.s32.totalorder %s33, 0
      %p164 = por %p162, %p163
      %p165 = scmp.ne.s32.totalorder %s153, %s154
      %p166 = scmp.eq.s32.totalorder %s34, 1
      %p167 = por %p165, %p166
      %p169 = scmp.ne.s32.totalorder %s154, %s168
      %p170 = scmp.eq.s32.totalorder %s34, 0
      %p171 = por %p169, %p170
      %s173 = sadd.s32 %s172, 1
      %p176 = scmp.eq.s32.totalorder %s28, 1
      %p177 = scmp.ne.s32.totalorder %s172, %s174
      %p178 = scmp.eq.s32.totalorder %s28, 0
      %p179 = por %p177, %p178
      %p180 = scmp.ne.s32.totalorder %s172, %s174
      %p181 = scmp.eq.s32.totalorder %s33, 1
      %p182 = por %p180, %p181
      %p183 = scmp.ne.s32.totalorder %s174, %s175
      %p184 = scmp.eq.s32.totalorder %s33, 0
      %p185 = por %p183, %p184
      %p186 = scmp.ne.s32.totalorder %s174, %s175
      %p187 = scmp.eq.s32.totalorder %s34, 1
      %p188 = por %p186, %p187
      %p190 = scmp.ne.s32.totalorder %s175, %s189
      %p191 = scmp.eq.s32.totalorder %s34, 0
      %p192 = por %p190, %p191
      %s194 = sadd.s32 %s193, 1
      %p197 = scmp.eq.s32.totalorder %s28, 1
      %p198 = scmp.ne.s32.totalorder %s193, %s195
      %p199 = scmp.eq.s32.totalorder %s28, 0
      %p200 = por %p198, %p199
      %p201 = scmp.ne.s32.totalorder %s193, %s195
      %p202 = scmp.eq.s32.totalorder %s33, 1
      %p203 = por %p201, %p202
      %p204 = scmp.ne.s32.totalorder %s195, %s196
      %p205 = scmp.eq.s32.totalorder %s33, 0
      %p206 = por %p204, %p205
      %p207 = scmp.ne.s32.totalorder %s195, %s196
      %p208 = scmp.eq.s32.totalorder %s34, 1
      %p209 = por %p207, %p208
      %p211 = scmp.ne.s32.totalorder %s196, %s210
      %p212 = scmp.eq.s32.totalorder %s34, 0
      %p213 = por %p211, %p212
      %s215 = sadd.s32 %s214, 1
      %p218 = scmp.eq.s32.totalorder %s28, 1
      %p219 = scmp.ne.s32.totalorder %s214, %s216
      %p220 = scmp.eq.s32.totalorder %s28, 0
      %p221 = por %p219, %p220
      %p222 = scmp.ne.s32.totalorder %s214, %s216
      %p223 = scmp.eq.s32.totalorder %s33, 1
      %p224 = por %p222, %p223
      %p225 = scmp.ne.s32.totalorder %s216, %s217
      %p226 = scmp.eq.s32.totalorder %s33, 0
      %p227 = por %p225, %p226
      %p228 = scmp.ne.s32.totalorder %s216, %s217
      %p229 = scmp.eq.s32.totalorder %s34, 1
      %p230 = por %p228, %p229
      %p232 = scmp.ne.s32.totalorder %s217, %s231
      %p233 = scmp.eq.s32.totalorder %s34, 0
      %p234 = por %p232, %p233
      %s236 = sadd.s32 %s235, 1
      %p239 = scmp.eq.s32.totalorder %s28, 1
      %p240 = scmp.ne.s32.totalorder %s235, %s237
      %p241 = scmp.eq.s32.totalorder %s28, 0
      %p242 = por %p240, %p241
      %p243 = scmp.ne.s32.totalorder %s235, %s237
      %p244 = scmp.eq.s32.totalorder %s33, 1
      %p245 = por %p243, %p244
      %p246 = scmp.ne.s32.totalorder %s237, %s238
      %p247 = scmp.eq.s32.totalorder %s33, 0
      %p248 = por %p246, %p247
      %p249 = scmp.ne.s32.totalorder %s237, %s238
      %p250 = scmp.eq.s32.totalorder %s34, 1
      %p251 = por %p249, %p250
      %p253 = scmp.ne.s32.totalorder %s238, %s252
      %p254 = scmp.eq.s32.totalorder %s34, 0
      %p255 = por %p253, %p254
      %s257 = sadd.s32 %s256, 1
      %p260 = scmp.eq.s32.totalorder %s28, 1
      %p261 = scmp.ne.s32.totalorder %s256, %s258
      %p262 = scmp.eq.s32.totalorder %s28, 0
      %p263 = por %p261, %p262
      %p264 = scmp.ne.s32.totalorder %s256, %s258
      %p265 = scmp.eq.s32.totalorder %s33, 1
      %p266 = por %p264, %p265
      %p267 = scmp.ne.s32.totalorder %s258, %s259
      %p268 = scmp.eq.s32.totalorder %s33, 0
      %p269 = por %p267, %p268
      %p270 = scmp.ne.s32.totalorder %s258, %s259
      %p271 = scmp.eq.s32.totalorder %s34, 1
      %p272 = por %p270, %p271
      %p274 = scmp.ne.s32.totalorder %s259, %s273
      %p275 = scmp.eq.s32.totalorder %s34, 0
      %p276 = por %p274, %p275
      %s278 = sadd.s32 %s277, 1
      %p281 = scmp.eq.s32.totalorder %s28, 1
      %p282 = scmp.ne.s32.totalorder %s277, %s279
      %p283 = scmp.eq.s32.totalorder %s28, 0
      %p284 = por %p282, %p283
      %p285 = scmp.ne.s32.totalorder %s277, %s279
      %p286 = scmp.eq.s32.totalorder %s33, 1
      %p287 = por %p285, %p286
      %p288 = scmp.ne.s32.totalorder %s279, %s280
      %p289 = scmp.eq.s32.totalorder %s33, 0
      %p290 = por %p288, %p289
      %p291 = scmp.ne.s32.totalorder %s279, %s280
      %p292 = scmp.eq.s32.totalorder %s34, 1
      %p293 = por %p291, %p292
      %p295 = scmp.ne.s32.totalorder %s280, %s294
      %p296 = scmp.eq.s32.totalorder %s34, 0
      %p297 = por %p295, %p296
      %s299 = sadd.s32 %s298, 1
      %p302 = scmp.eq.s32.totalorder %s28, 1
      %p303 = scmp.ne.s32.totalorder %s298, %s300
      %p304 = scmp.eq.s32.totalorder %s28, 0
      %p305 = por %p303, %p304
      %p306 = scmp.ne.s32.totalorder %s298, %s300
      %p307 = scmp.eq.s32.totalorder %s33, 1
      %p308 = por %p306, %p307
      %p309 = scmp.ne.s32.totalorder %s300, %s301
      %p310 = scmp.eq.s32.totalorder %s33, 0
      %p311 = por %p309, %p310
      %p312 = scmp.ne.s32.totalorder %s300, %s301
      %p313 = scmp.eq.s32.totalorder %s34, 1
      %p314 = por %p312, %p313
      %p316 = scmp.ne.s32.totalorder %s301, %s315
      %p317 = scmp.eq.s32.totalorder %s34, 0
      %p318 = por %p316, %p317
      %s320 = sadd.s32 %s319, 1
      %p323 = scmp.eq.s32.totalorder %s28, 1
      %p324 = scmp.ne.s32.totalorder %s319, %s321
      %p325 = scmp.eq.s32.totalorder %s28, 0
      %p326 = por %p324, %p325
      %p327 = scmp.ne.s32.totalorder %s319, %s321
      %p328 = scmp.eq.s32.totalorder %s33, 1
      %p329 = por %p327, %p328
      %p330 = scmp.ne.s32.totalorder %s321, %s322
      %p331 = scmp.eq.s32.totalorder %s33, 0
      %p332 = por %p330, %p331
      %p333 = scmp.ne.s32.totalorder %s321, %s322
      %p334 = scmp.eq.s32.totalorder %s34, 1
      %p335 = por %p333, %p334
      %p337 = scmp.ne.s32.totalorder %s322, %s336
      %p338 = scmp.eq.s32.totalorder %s34, 0
      %p339 = por %p337, %p338
      %s341 = sadd.s32 %s340, 1
      %p344 = scmp.eq.s32.totalorder %s28, 1
      %p345 = scmp.ne.s32.totalorder %s340, %s342
      %p346 = scmp.eq.s32.totalorder %s28, 0
      %p347 = por %p345, %p346
      %p348 = scmp.ne.s32.totalorder %s340, %s342
      %p349 = scmp.eq.s32.totalorder %s33, 1
      %p350 = por %p348, %p349
      %p351 = scmp.ne.s32.totalorder %s342, %s343
      %p352 = scmp.eq.s32.totalorder %s33, 0
      %p353 = por %p351, %p352
      %p354 = scmp.ne.s32.totalorder %s342, %s343
      %p355 = scmp.eq.s32.totalorder %s34, 1
      %p356 = por %p354, %p355
      %p358 = scmp.ne.s32.totalorder %s343, %s357
      %p359 = scmp.eq.s32.totalorder %s34, 0
      %p360 = por %p358, %p359
      %s362 = sadd.s32 %s361, 1
      %p365 = scmp.eq.s32.totalorder %s28, 1
      %p366 = scmp.ne.s32.totalorder %s361, %s363
      %p367 = scmp.eq.s32.totalorder %s28, 0
      %p368 = por %p366, %p367
      %p369 = scmp.ne.s32.totalorder %s361, %s363
      %p370 = scmp.eq.s32.totalorder %s33, 1
      %p371 = por %p369, %p370
      %p372 = scmp.ne.s32.totalorder %s363, %s364
      %p373 = scmp.eq.s32.totalorder %s33, 0
      %p374 = por %p372, %p373
      %p375 = scmp.ne.s32.totalorder %s363, %s364
      %p376 = scmp.eq.s32.totalorder %s34, 1
      %p377 = por %p375, %p376
      %p379 = scmp.ne.s32.totalorder %s364, %s378
      %p380 = scmp.eq.s32.totalorder %s34, 0
      %p381 = por %p379, %p380
      %s383 = sadd.s32 %s382, 1
      %p386 = scmp.eq.s32.totalorder %s28, 1
      %p387 = scmp.ne.s32.totalorder %s382, %s384
      %p388 = scmp.eq.s32.totalorder %s28, 0
      %p389 = por %p387, %p388
      %p390 = scmp.ne.s32.totalorder %s382, %s384
      %p391 = scmp.eq.s32.totalorder %s33, 1
      %p392 = por %p390, %p391
      %p393 = scmp.ne.s32.totalorder %s384, %s385
      %p394 = scmp.eq.s32.totalorder %s33, 0
      %p395 = por %p393, %p394
      %p396 = scmp.ne.s32.totalorder %s384, %s385
      %p397 = scmp.eq.s32.totalorder %s34, 1
      %p398 = por %p396, %p397
      %p400 = scmp.ne.s32.totalorder %s385, %s399
      %p401 = scmp.eq.s32.totalorder %s34, 0
      %p402 = por %p400, %p401
      %s404 = sadd.s32 %s403, 1
      %p407 = scmp.eq.s32.totalorder %s28, 1
      %p408 = scmp.ne.s32.totalorder %s403, %s405
      %p409 = scmp.eq.s32.totalorder %s28, 0
      %p410 = por %p408, %p409
      %p411 = scmp.ne.s32.totalorder %s403, %s405
      %p412 = scmp.eq.s32.totalorder %s33, 1
      %p413 = por %p411, %p412
      %p414 = scmp.ne.s32.totalorder %s405, %s406
      %p415 = scmp.eq.s32.totalorder %s33, 0
      %p416 = por %p414, %p415
      %p417 = scmp.ne.s32.totalorder %s405, %s406
      %p418 = scmp.eq.s32.totalorder %s34, 1
      %p419 = por %p417, %p418
      %p421 = scmp.ne.s32.totalorder %s406, %s420
      %p422 = scmp.eq.s32.totalorder %s34, 0
      %p423 = por %p421, %p422
      %s425 = sadd.s32 %s424, 1
      %p428 = scmp.eq.s32.totalorder %s28, 1
      %p429 = scmp.ne.s32.totalorder %s424, %s426
      %p430 = scmp.eq.s32.totalorder %s28, 0
      %p431 = por %p429, %p430
      %p432 = scmp.ne.s32.totalorder %s424, %s426
      %p433 = scmp.eq.s32.totalorder %s33, 1
      %p434 = por %p432, %p433
      %p435 = scmp.ne.s32.totalorder %s426, %s427
      %p436 = scmp.eq.s32.totalorder %s33, 0
      %p437 = por %p435, %p436
      %p438 = scmp.ne.s32.totalorder %s426, %s427
      %p439 = scmp.eq.s32.totalorder %s34, 1
      %p440 = por %p438, %p439
      %p442 = scmp.ne.s32.totalorder %s427, %s441
      %p443 = scmp.eq.s32.totalorder %s34, 0
      %p444 = por %p442, %p443
      %s446 = sadd.s32 %s445, 1
      %p449 = scmp.eq.s32.totalorder %s28, 1
      %p450 = scmp.ne.s32.totalorder %s445, %s447
      %p451 = scmp.eq.s32.totalorder %s28, 0
      %p452 = por %p450, %p451
      %p453 = scmp.ne.s32.totalorder %s445, %s447
      %p454 = scmp.eq.s32.totalorder %s33, 1
      %p455 = por %p453, %p454
      %p456 = scmp.ne.s32.totalorder %s447, %s448
      %p457 = scmp.eq.s32.totalorder %s33, 0
      %p458 = por %p456, %p457
      %p459 = scmp.ne.s32.totalorder %s447, %s448
      %p460 = scmp.eq.s32.totalorder %s34, 1
      %p461 = por %p459, %p460
      %p463 = scmp.ne.s32.totalorder %s448, %s462
      %p464 = scmp.eq.s32.totalorder %s34, 0
      %p465 = por %p463, %p464
      %s467 = sadd.s32 %s466, 1
      %p470 = scmp.eq.s32.totalorder %s28, 1
      %p471 = scmp.ne.s32.totalorder %s466, %s468
      %p472 = scmp.eq.s32.totalorder %s28, 0
      %p473 = por %p471, %p472
      %p474 = scmp.ne.s32.totalorder %s466, %s468
      %p475 = scmp.eq.s32.totalorder %s33, 1
      %p476 = por %p474, %p475
      %p477 = scmp.ne.s32.totalorder %s468, %s469
      %p478 = scmp.eq.s32.totalorder %s33, 0
      %p479 = por %p477, %p478
      %p480 = scmp.ne.s32.totalorder %s468, %s469
      %p481 = scmp.eq.s32.totalorder %s34, 1
      %p482 = por %p480, %p481
      %p484 = scmp.ne.s32.totalorder %s469, %s483
      %p485 = scmp.eq.s32.totalorder %s34, 0
      %p486 = por %p484, %p485
      %s487 = ssub.s32 %s28, %s35
      %p488 = scmp.eq.s32.totalorder %s487, 0
      %s490 = sadd.s32 %s489, 1
      %s491 = scalar_select %p488, %s489, %s490
      %p494 = pneg %p488
      %p495 = scmp.eq.s32.totalorder %s28, 1
      %p496 = por %p494, %p495
      %p497 = scmp.ne.s32.totalorder %s489, %s492
      %p498 = scmp.eq.s32.totalorder %s28, 0
      %p499 = por %p497, %p498
      %p500 = scmp.ne.s32.totalorder %s489, %s492
      %p501 = scmp.eq.s32.totalorder %s33, 1
      %p502 = por %p500, %p501
      %p503 = scmp.ne.s32.totalorder %s492, %s493
      %p504 = scmp.eq.s32.totalorder %s33, 0
      %p505 = por %p503, %p504
      %p506 = scmp.ne.s32.totalorder %s492, %s493
      %p507 = scmp.eq.s32.totalorder %s34, 1
      %p508 = por %p506, %p507
      %p510 = scmp.ne.s32.totalorder %s493, %s509
      %p511 = scmp.eq.s32.totalorder %s34, 0
      %p512 = por %p510, %p511
      %p513 = scmp.le.s32.totalorder 1, %s28
      %p514 = scmp.lt.s32.totalorder %s28, 3
      %p515 = pnand %p513, %p514
      %p516 = pneg %p515
      // Predicated region
      $region9: #{attentive_forward.1} parent=5 // pred_check
        _
      $region10: #{attentive_forward.1} parent=5 // pred_check_branch
        %518 = sbr.rel (%p515) target = $region12
      $region11: #{attentive_forward.1} parent=5 // pred_region
        %s519 = ssub.s32 %s28, 1
        // Predicated region
        $region13: #{attentive_forward.1} parent=11 // pred_check
          %p520 = pneg %p101
        $region14: #{attentive_forward.1} parent=11 // pred_check_branch
          %522 = sbr.rel (%p520) target = $region16
        $region15: #{attentive_forward.1} parent=11 // pred_region
          %524 = vsyncadd [#allocation3], 0
          %s525 = sshll.u32 %s2, 4
          %s526 = int_to_ptr.hbm [resolvable:$true] %s525
          %s527 = sshll.u32 [#allocation2], 4
          %s528 = int_to_ptr.vmem [resolvable:$true] %s527
          %533 = dma.hbm_to_vmem [thread:$0]  %s526, 18432, %s528, [#allocation3], 256, 256, 16
        $region16: #{attentive_forward.1} parent=11 // pred_fallthru
          _
        // Predicated region
        $region17: #{attentive_forward.1} parent=11 // pred_check
          %p534 = pneg %p122
        $region18: #{attentive_forward.1} parent=11 // pred_check_branch
          %536 = sbr.rel (%p534) target = $region20
        $region19: #{attentive_forward.1} parent=11 // pred_region
          _
        $region20: #{attentive_forward.1} parent=11 // pred_fallthru
          _
        // Predicated region
        $region21: #{attentive_forward.1} parent=11 // pred_check
          %p537 = pneg %p143
        $region22: #{attentive_forward.1} parent=11 // pred_check_branch
          %539 = sbr.rel (%p537) target = $region24
        $region23: #{attentive_forward.1} parent=11 // pred_region
          _
        $region24: #{attentive_forward.1} parent=11 // pred_fallthru
          _
        // Predicated region
        $region25: #{attentive_forward.1} parent=11 // pred_check
          %p540 = pneg %p164
        $region26: #{attentive_forward.1} parent=11 // pred_check_branch
          %542 = sbr.rel (%p540) target = $region28
        $region27: #{attentive_forward.1} parent=11 // pred_region
          _
        $region28: #{attentive_forward.1} parent=11 // pred_fallthru
          _
        // Predicated region
        $region29: #{attentive_forward.1} parent=11 // pred_check
          %p543 = pneg %p185
        $region30: #{attentive_forward.1} parent=11 // pred_check_branch
          %545 = sbr.rel (%p543) target = $region32
        $region31: #{attentive_forward.1} parent=11 // pred_region
          _
        $region32: #{attentive_forward.1} parent=11 // pred_fallthru
          _
        // Predicated region
        $region33: #{attentive_forward.1} parent=11 // pred_check
          %p546 = pneg %p206
        $region34: #{attentive_forward.1} parent=11 // pred_check_branch
          %548 = sbr.rel (%p546) target = $region36
        $region35: #{attentive_forward.1} parent=11 // pred_region
          _
        $region36: #{attentive_forward.1} parent=11 // pred_fallthru
          _
        // Predicated region
        $region37: #{attentive_forward.1} parent=11 // pred_check
          %p549 = pneg %p227
        $region38: #{attentive_forward.1} parent=11 // pred_check_branch
          %551 = sbr.rel (%p549) target = $region40
        $region39: #{attentive_forward.1} parent=11 // pred_region
          _
        $region40: #{attentive_forward.1} parent=11 // pred_fallthru
          _
        // Predicated region
        $region41: #{attentive_forward.1} parent=11 // pred_check
          %p552 = pneg %p248
        $region42: #{attentive_forward.1} parent=11 // pred_check_branch
          %554 = sbr.rel (%p552) target = $region44
        $region43: #{attentive_forward.1} parent=11 // pred_region
          _
        $region44: #{attentive_forward.1} parent=11 // pred_fallthru
          _
        // Predicated region
        $region45: #{attentive_forward.1} parent=11 // pred_check
          %p555 = pneg %p269
        $region46: #{attentive_forward.1} parent=11 // pred_check_branch
          %557 = sbr.rel (%p555) target = $region48
        $region47: #{attentive_forward.1} parent=11 // pred_region
          _
        $region48: #{attentive_forward.1} parent=11 // pred_fallthru
          _
        // Predicated region
        $region49: #{attentive_forward.1} parent=11 // pred_check
          %p558 = pneg %p290
        $region50: #{attentive_forward.1} parent=11 // pred_check_branch
          %560 = sbr.rel (%p558) target = $region52
        $region51: #{attentive_forward.1} parent=11 // pred_region
          _
        $region52: #{attentive_forward.1} parent=11 // pred_fallthru
          _
        // Predicated region
        $region53: #{attentive_forward.1} parent=11 // pred_check
          %p561 = pneg %p311
        $region54: #{attentive_forward.1} parent=11 // pred_check_branch
          %563 = sbr.rel (%p561) target = $region56
        $region55: #{attentive_forward.1} parent=11 // pred_region
          _
        $region56: #{attentive_forward.1} parent=11 // pred_fallthru
          _
        // Predicated region
        $region57: #{attentive_forward.1} parent=11 // pred_check
          %p564 = pneg %p332
        $region58: #{attentive_forward.1} parent=11 // pred_check_branch
          %566 = sbr.rel (%p564) target = $region60
        $region59: #{attentive_forward.1} parent=11 // pred_region
          _
        $region60: #{attentive_forward.1} parent=11 // pred_fallthru
          _
        // Predicated region
        $region61: #{attentive_forward.1} parent=11 // pred_check
          %p567 = pneg %p353
        $region62: #{attentive_forward.1} parent=11 // pred_check_branch
          %569 = sbr.rel (%p567) target = $region64
        $region63: #{attentive_forward.1} parent=11 // pred_region
          _
        $region64: #{attentive_forward.1} parent=11 // pred_fallthru
          _
        // Predicated region
        $region65: #{attentive_forward.1} parent=11 // pred_check
          %p570 = pneg %p374
        $region66: #{attentive_forward.1} parent=11 // pred_check_branch
          %572 = sbr.rel (%p570) target = $region68
        $region67: #{attentive_forward.1} parent=11 // pred_region
          _
        $region68: #{attentive_forward.1} parent=11 // pred_fallthru
          _
        // Predicated region
        $region69: #{attentive_forward.1} parent=11 // pred_check
          %p573 = pneg %p395
        $region70: #{attentive_forward.1} parent=11 // pred_check_branch
          %575 = sbr.rel (%p573) target = $region72
        $region71: #{attentive_forward.1} parent=11 // pred_region
          _
        $region72: #{attentive_forward.1} parent=11 // pred_fallthru
          _
        // Predicated region
        $region73: #{attentive_forward.1} parent=11 // pred_check
          %p576 = pneg %p416
        $region74: #{attentive_forward.1} parent=11 // pred_check_branch
          %578 = sbr.rel (%p576) target = $region76
        $region75: #{attentive_forward.1} parent=11 // pred_region
          _
        $region76: #{attentive_forward.1} parent=11 // pred_fallthru
          _
        // Predicated region
        $region77: #{attentive_forward.1} parent=11 // pred_check
          %p579 = pneg %p437
        $region78: #{attentive_forward.1} parent=11 // pred_check_branch
          %581 = sbr.rel (%p579) target = $region80
        $region79: #{attentive_forward.1} parent=11 // pred_region
          _
        $region80: #{attentive_forward.1} parent=11 // pred_fallthru
          _
        // Predicated region
        $region81: #{attentive_forward.1} parent=11 // pred_check
          %p582 = pneg %p458
        $region82: #{attentive_forward.1} parent=11 // pred_check_branch
          %584 = sbr.rel (%p582) target = $region84
        $region83: #{attentive_forward.1} parent=11 // pred_region
          _
        $region84: #{attentive_forward.1} parent=11 // pred_fallthru
          _
        // Predicated region
        $region85: #{attentive_forward.1} parent=11 // pred_check
          %p585 = pneg %p479
        $region86: #{attentive_forward.1} parent=11 // pred_check_branch
          %587 = sbr.rel (%p585) target = $region88
        $region87: #{attentive_forward.1} parent=11 // pred_region
          _
        $region88: #{attentive_forward.1} parent=11 // pred_fallthru
          _
      $region12: #{attentive_forward.1} parent=5 // pred_fallthru
        _
      %p588 = scmp.lt.s32.totalorder %s28, 2
      // Predicated region
      $region89: #{attentive_forward.1} parent=5 // pred_check
        %p589 = pneg %p588
      $region90: #{attentive_forward.1} parent=5 // pred_check_branch
        %591 = sbr.rel (%p589) target = $region92
      $region91: #{attentive_forward.1} parent=5 // pred_region
        // Predicated region
        $region93: #{attentive_forward.1} parent=91 // pred_check
          %p592 = pneg %p48
        $region94: #{attentive_forward.1} parent=91 // pred_check_branch
          %594 = sbr.rel (%p592) target = $region96
        $region95: #{attentive_forward.1} parent=91 // pred_region
          %p595 = scmp.lt.s32.totalorder %s28, 1
          %s596 = scalar_select %p595, %s28, 1
          %s597 = smul.addr %s596, 32
          %s598 = smul.addr %s597, 8
          %s599 = scalar_lea.vmem %s0, %s598
        $region96: #{attentive_forward.1} parent=91 // pred_fallthru
          _
        // Predicated region
        $region97: #{attentive_forward.1} parent=91 // pred_check
          %p600 = pneg %p74
        $region98: #{attentive_forward.1} parent=91 // pred_check_branch
          %602 = sbr.rel (%p600) target = $region100
        $region99: #{attentive_forward.1} parent=91 // pred_region
          %p603 = scmp.lt.s32.totalorder %s28, 1
          %s604 = scalar_select %p603, %s28, 1
          %s605 = smul.addr %s604, 32
          %s606 = smul.addr %s605, 8
          %s607 = scalar_lea.vmem %s1, %s606
        $region100: #{attentive_forward.1} parent=91 // pred_fallthru
          _
      $region92: #{attentive_forward.1} parent=5 // pred_fallthru
        _
      %p608 = scmp.le.s32.totalorder 1, %s28
      %p609 = scmp.lt.s32.totalorder %s28, 3
      %p610 = pnand %p608, %p609
      %p611 = pneg %p610
      // Predicated region
      $region101: #{attentive_forward.1} parent=5 // pred_check
        _
      $region102: #{attentive_forward.1} parent=5 // pred_check_branch
        %613 = sbr.rel (%p610) target = $region104
      $region103: #{attentive_forward.1} parent=5 // pred_region
        %s614 = ssub.s32 %s28, 1
        // Predicated region
        $region105: #{attentive_forward.1} parent=103 // pred_check
          %p615 = pneg %p101
        $region106: #{attentive_forward.1} parent=103 // pred_check_branch
          %617 = sbr.rel (%p615) target = $region108
        $region107: #{attentive_forward.1} parent=103 // pred_region
          %619 = dma.done [#allocation3], 18432
        $region108: #{attentive_forward.1} parent=103 // pred_fallthru
          _
        %p620 = scmp.lt.s32.totalorder %s33, 1
        %s621 = scalar_select %p620, %s33, 1
        %s622 = smul.addr %s621, 32
        %s623 = smul.addr %s622, 8
        %s624 = scalar_lea.vmem %s0, %s623
        %p625 = pneg %p54
        %p626 = pneg %p51
        %p627 = scmp.lt.s32.totalorder %s33, 1
        %s628 = scalar_select %p627, %s33, 1
        %s629 = smul.addr %s628, 32
        %s630 = smul.addr %s629, 8
        %s631 = scalar_lea.vmem %s1, %s630
        %p632 = pneg %p80
        %p633 = pneg %p77
        %p634 = pneg %p101
        %p635 = pneg %p98
        %p636 = pneg %p122
        %p637 = pneg %p119
        %p638 = pneg %p143
        %p639 = pneg %p140
        %p640 = pneg %p164
        %p641 = pneg %p161
        %p642 = pneg %p185
        %p643 = pneg %p182
        %p644 = pneg %p206
        %p645 = pneg %p203
        %p646 = pneg %p227
        %p647 = pneg %p224
        %p648 = pneg %p248
        %p649 = pneg %p245
        %p650 = pneg %p269
        %p651 = pneg %p266
        %p652 = pneg %p290
        %p653 = pneg %p287
        %p654 = pneg %p311
        %p655 = pneg %p308
        %p656 = pneg %p332
        %p657 = pneg %p329
        %p658 = pneg %p353
        %p659 = pneg %p350
        %p660 = pneg %p374
        %p661 = pneg %p371
        %p662 = pneg %p395
        %p663 = pneg %p392
        %p664 = pneg %p416
        %p665 = pneg %p413
        %p666 = pneg %p437
        %p667 = pneg %p434
        %p668 = pneg %p458
        %p669 = pneg %p455
        %p670 = pneg %p479
        %p671 = pneg %p476
        %p672 = pneg %p505
        %p673 = pneg %p502
        %p674 = scmp.lt.s32.totalorder %s33, 1
        %s675 = scalar_select %p674, %s33, 1
        %s676 = smul.addr %s675, 8
        %s677 = scalar_lea.vmem %s21, %s676
        %p678 = scmp.lt.s32.totalorder %s33, 1
        %s679 = scalar_select %p678, %s33, 1
        %s680 = smul.addr %s679, 32
        %s681 = smul.addr %s680, 8
        %s682 = scalar_lea.vmem %s0, %s681
        %p683 = scmp.lt.s32.totalorder %s33, 1
        %s684 = scalar_select %p683, %s33, 1
        %s685 = smul.addr %s684, 32
        %s686 = smul.addr %s685, 8
        %s687 = scalar_lea.vmem %s1, %s686
        %p688 = scmp.lt.s32.totalorder %s33, 1
        %s689 = scalar_select %p688, %s33, 1
        %s690 = smul.addr %s689, 8
        %s691 = scalar_lea.vmem %s21, %s690
        %v692 = vld [vmem:[%s682] sm:$0xff]
        %v693 = vld [vmem:[%s682 + $0x8] sm:$0xff]
        %v694 = vld [vmem:[%s682 + $0x10] sm:$0xff]
        %v695 = vld [vmem:[%s682 + $0x18] sm:$0xff]
        %v696 = vld [vmem:[%s682 + $0x20] sm:$0xff]
        %v697 = vld [vmem:[%s682 + $0x28] sm:$0xff]
        %v698 = vld [vmem:[%s682 + $0x30] sm:$0xff]
        %v699 = vld [vmem:[%s682 + $0x38] sm:$0xff]
        %v700 = vld [vmem:[%s682 + $0x40] sm:$0xff]
        %v701 = vld [vmem:[%s682 + $0x48] sm:$0xff]
        %v702 = vld [vmem:[%s682 + $0x50] sm:$0xff]
        %v703 = vld [vmem:[%s682 + $0x58] sm:$0xff]
        %v704 = vld [vmem:[%s682 + $0x60] sm:$0xff]
        %v705 = vld [vmem:[%s682 + $0x68] sm:$0xff]
        %v706 = vld [vmem:[%s682 + $0x70] sm:$0xff]
        %v707 = vld [vmem:[%s682 + $0x78] sm:$0xff]
        %v708 = vld [vmem:[%s682 + $0x80] sm:$0xff]
        %v709 = vld [vmem:[%s682 + $0x88] sm:$0xff]
        %v710 = vld [vmem:[%s682 + $0x90] sm:$0xff]
        %v711 = vld [vmem:[%s682 + $0x98] sm:$0xff]
        %v712 = vld [vmem:[%s682 + $0xa0] sm:$0xff]
        %v713 = vld [vmem:[%s682 + $0xa8] sm:$0xff]
        %v714 = vld [vmem:[%s682 + $0xb0] sm:$0xff]
        %v715 = vld [vmem:[%s682 + $0xb8] sm:$0xff]
        %v716 = vld [vmem:[%s682 + $0xc0] sm:$0xff]
        %v717 = vld [vmem:[%s682 + $0xc8] sm:$0xff]
        %v718 = vld [vmem:[%s682 + $0xd0] sm:$0xff]
        %v719 = vld [vmem:[%s682 + $0xd8] sm:$0xff]
        %v720 = vld [vmem:[%s682 + $0xe0] sm:$0xff]
        %v721 = vld [vmem:[%s682 + $0xe8] sm:$0xff]
        %v722 = vld [vmem:[%s682 + $0xf0] sm:$0xff]
        %v723 = vld [vmem:[%s682 + $0xf8] sm:$0xff]
        %v724 = vld [vmem:[%s687] sm:$0xff]
        %v725 = vld [vmem:[%s687 + $0x8] sm:$0xff]
        %v726 = vld [vmem:[%s687 + $0x10] sm:$0xff]
        %v727 = vld [vmem:[%s687 + $0x18] sm:$0xff]
        %v728 = vld [vmem:[%s687 + $0x20] sm:$0xff]
        %v729 = vld [vmem:[%s687 + $0x28] sm:$0xff]
        %v730 = vld [vmem:[%s687 + $0x30] sm:$0xff]
        %v731 = vld [vmem:[%s687 + $0x38] sm:$0xff]
        %v732 = vld [vmem:[%s687 + $0x40] sm:$0xff]
        %v733 = vld [vmem:[%s687 + $0x48] sm:$0xff]
        %v734 = vld [vmem:[%s687 + $0x50] sm:$0xff]
        %v735 = vld [vmem:[%s687 + $0x58] sm:$0xff]
        %v736 = vld [vmem:[%s687 + $0x60] sm:$0xff]
        %v737 = vld [vmem:[%s687 + $0x68] sm:$0xff]
        %v738 = vld [vmem:[%s687 + $0x70] sm:$0xff]
        %v739 = vld [vmem:[%s687 + $0x78] sm:$0xff]
        %v740 = vld [vmem:[%s687 + $0x80] sm:$0xff]
        %v741 = vld [vmem:[%s687 + $0x88] sm:$0xff]
        %v742 = vld [vmem:[%s687 + $0x90] sm:$0xff]
        %v743 = vld [vmem:[%s687 + $0x98] sm:$0xff]
        %v744 = vld [vmem:[%s687 + $0xa0] sm:$0xff]
        %v745 = vld [vmem:[%s687 + $0xa8] sm:$0xff]
        %v746 = vld [vmem:[%s687 + $0xb0] sm:$0xff]
        %v747 = vld [vmem:[%s687 + $0xb8] sm:$0xff]
        %v748 = vld [vmem:[%s687 + $0xc0] sm:$0xff]
        %v749 = vld [vmem:[%s687 + $0xc8] sm:$0xff]
        %v750 = vld [vmem:[%s687 + $0xd0] sm:$0xff]
        %v751 = vld [vmem:[%s687 + $0xd8] sm:$0xff]
        %v752 = vld [vmem:[%s687 + $0xe0] sm:$0xff]
        %v753 = vld [vmem:[%s687 + $0xe8] sm:$0xff]
        %v754 = vld [vmem:[%s687 + $0xf0] sm:$0xff]
        %v755 = vld [vmem:[%s687 + $0xf8] sm:$0xff]
        %v756 = vld [vmem:[#allocation2] sm:$0xff]
        %v757 = vld [vmem:[#allocation2 + $0x8] sm:$0xff]
        %v758 = vld [vmem:[#allocation2 + $0x10] sm:$0xff]
        %v759 = vld [vmem:[#allocation2 + $0x18] sm:$0xff]
        %v760 = vld [vmem:[#allocation2 + $0x20] sm:$0xff]
        %v761 = vld [vmem:[#allocation2 + $0x28] sm:$0xff]
        %v762 = vld [vmem:[#allocation2 + $0x30] sm:$0xff]
        %v763 = vld [vmem:[#allocation2 + $0x38] sm:$0xff]
        %v764 = vld [vmem:[#allocation2 + $0x40] sm:$0xff]
        %v765 = vld [vmem:[#allocation2 + $0x48] sm:$0xff]
        %v766 = vld [vmem:[#allocation2 + $0x50] sm:$0xff]
        %v767 = vld [vmem:[#allocation2 + $0x58] sm:$0xff]
        %v768 = vld [vmem:[#allocation2 + $0x60] sm:$0xff]
        %v769 = vld [vmem:[#allocation2 + $0x68] sm:$0xff]
        %v770 = vld [vmem:[#allocation2 + $0x70] sm:$0xff]
        %v771 = vld [vmem:[#allocation2 + $0x78] sm:$0xff]
        %772 = vmatpush.msra.mxu0 %v739
        %773 = vmatpush.msra.mxu0 %v738
        %774 = vmatpush.msra.mxu0 %v737
        %775 = vmatpush.msra.mxu0 %v736
        %776 = vmatpush.msra.mxu0 %v735
        %777 = vmatpush.msra.mxu0 %v734
        %778 = vmatpush.msra.mxu0 %v733
        %779 = vmatpush.msra.mxu0 %v732
        %780 = vmatpush.msra.mxu0 %v731
        %781 = vmatpush.msra.mxu0 %v730
        %782 = vmatpush.msra.mxu0 %v729
        %783 = vmatpush.msra.mxu0 %v728
        %784 = vmatpush.msra.mxu0 %v727
        %785 = vmatpush.msra.mxu0 %v726
        %786 = vmatpush.msra.mxu0 %v725
        %787 = vmatpush.msra.mxu0 %v724
        %788 = vmatmul.f32.gmra.mxu0 %v756
        %v789 = vpop.f32.mrf.mxu0
        %v790 = vadd.f32 0.0, %v789
        %791 = vmatmul.f32.gmra.mxu0 %v758
        %v792 = vpop.f32.mrf.mxu0
        %v793 = vadd.f32 0.0, %v792
        %794 = vmatmul.f32.gmra.mxu0 %v760
        %v795 = vpop.f32.mrf.mxu0
        %v796 = vadd.f32 0.0, %v795
        %797 = vmatmul.f32.gmra.mxu0 %v762
        %v798 = vpop.f32.mrf.mxu0
        %v799 = vadd.f32 0.0, %v798
        %800 = vmatmul.f32.gmra.mxu0 %v764
        %v801 = vpop.f32.mrf.mxu0
        %v802 = vadd.f32 0.0, %v801
        %803 = vmatmul.f32.gmra.mxu0 %v766
        %v804 = vpop.f32.mrf.mxu0
        %v805 = vadd.f32 0.0, %v804
        %806 = vmatmul.f32.gmra.mxu0 %v768
        %v807 = vpop.f32.mrf.mxu0
        %v808 = vadd.f32 0.0, %v807
        %809 = vmatmul.f32.gmra.mxu0 %v770
        %v810 = vpop.f32.mrf.mxu0
        %v811 = vadd.f32 0.0, %v810
        %812 = vdwg.mxu0
        %813 = vmatpush.msra.mxu0 %v755
        %814 = vmatpush.msra.mxu0 %v754
        %815 = vmatpush.msra.mxu0 %v753
        %816 = vmatpush.msra.mxu0 %v752
        %817 = vmatpush.msra.mxu0 %v751
        %818 = vmatpush.msra.mxu0 %v750
        %819 = vmatpush.msra.mxu0 %v749
        %820 = vmatpush.msra.mxu0 %v748
        %821 = vmatpush.msra.mxu0 %v747
        %822 = vmatpush.msra.mxu0 %v746
        %823 = vmatpush.msra.mxu0 %v745
        %824 = vmatpush.msra.mxu0 %v744
        %825 = vmatpush.msra.mxu0 %v743
        %826 = vmatpush.msra.mxu0 %v742
        %827 = vmatpush.msra.mxu0 %v741
        %828 = vmatpush.msra.mxu0 %v740
        %829 = vmatmul.f32.gmra.mxu0 %v757
        %v830 = vpop.f32.mrf.mxu0
        %v831 = vadd.f32 %v790, %v830
        %832 = vmatmul.f32.gmra.mxu0 %v759
        %v833 = vpop.f32.mrf.mxu0
        %v834 = vadd.f32 %v793, %v833
        %835 = vmatmul.f32.gmra.mxu0 %v761
        %v836 = vpop.f32.mrf.mxu0
        %v837 = vadd.f32 %v796, %v836
        %838 = vmatmul.f32.gmra.mxu0 %v763
        %v839 = vpop.f32.mrf.mxu0
        %v840 = vadd.f32 %v799, %v839
        %841 = vmatmul.f32.gmra.mxu0 %v765
        %v842 = vpop.f32.mrf.mxu0
        %v843 = vadd.f32 %v802, %v842
        %844 = vmatmul.f32.gmra.mxu0 %v767
        %v845 = vpop.f32.mrf.mxu0
        %v846 = vadd.f32 %v805, %v845
        %847 = vmatmul.f32.gmra.mxu0 %v769
        %v848 = vpop.f32.mrf.mxu0
        %v849 = vadd.f32 %v808, %v848
        %850 = vmatmul.f32.gmra.mxu0 %v771
        %v851 = vpop.f32.mrf.mxu0
        %v852 = vadd.f32 %v811, %v851
        %853 = vdwg.mxu0
        %v854 = vld [vmem:[%s10] sm:$0x7]
        %s855 = scalar_lea.vmem [#allocation2], 128
        %v856 = vld [vmem:[%s855] sm:$0xff]
        %v857 = vld [vmem:[%s855 + $0x8] sm:$0xff]
        %v858 = vld [vmem:[%s855 + $0x10] sm:$0xff]
        %v859 = vld [vmem:[%s855 + $0x18] sm:$0xff]
        %v860 = vld [vmem:[%s855 + $0x20] sm:$0xff]
        %v861 = vld [vmem:[%s855 + $0x28] sm:$0xff]
        %v862 = vld [vmem:[%s855 + $0x30] sm:$0xff]
        %v863 = vld [vmem:[%s855 + $0x38] sm:$0xff]
        %v864 = vld [vmem:[%s855 + $0x40] sm:$0xff]
        %v865 = vld [vmem:[%s855 + $0x48] sm:$0xff]
        %v866 = vld [vmem:[%s855 + $0x50] sm:$0xff]
        %v867 = vld [vmem:[%s855 + $0x58] sm:$0xff]
        %v868 = vld [vmem:[%s855 + $0x60] sm:$0xff]
        %v869 = vld [vmem:[%s855 + $0x68] sm:$0xff]
        %v870 = vld [vmem:[%s855 + $0x70] sm:$0xff]
        %v871 = vld [vmem:[%s855 + $0x78] sm:$0xff]
        %872 = vmatpush.msra.mxu0 %v739
        %873 = vmatpush.msra.mxu0 %v738
        %874 = vmatpush.msra.mxu0 %v737
        %875 = vmatpush.msra.mxu0 %v736
        %876 = vmatpush.msra.mxu0 %v735
        %877 = vmatpush.msra.mxu0 %v734
        %878 = vmatpush.msra.mxu0 %v733
        %879 = vmatpush.msra.mxu0 %v732
        %880 = vmatpush.msra.mxu0 %v731
        %881 = vmatpush.msra.mxu0 %v730
        %882 = vmatpush.msra.mxu0 %v729
        %883 = vmatpush.msra.mxu0 %v728
        %884 = vmatpush.msra.mxu0 %v727
        %885 = vmatpush.msra.mxu0 %v726
        %886 = vmatpush.msra.mxu0 %v725
        %887 = vmatpush.msra.mxu0 %v724
        %888 = vmatmul.f32.gmra.mxu0 %v856
        %v889 = vpop.f32.mrf.mxu0
        %v890 = vadd.f32 0.0, %v889
        %891 = vmatmul.f32.gmra.mxu0 %v858
        %v892 = vpop.f32.mrf.mxu0
        %v893 = vadd.f32 0.0, %v892
        %894 = vmatmul.f32.gmra.mxu0 %v860
        %v895 = vpop.f32.mrf.mxu0
        %v896 = vadd.f32 0.0, %v895
        %897 = vmatmul.f32.gmra.mxu0 %v862
        %v898 = vpop.f32.mrf.mxu0
        %v899 = vadd.f32 0.0, %v898
        %900 = vmatmul.f32.gmra.mxu0 %v864
        %v901 = vpop.f32.mrf.mxu0
        %v902 = vadd.f32 0.0, %v901
        %903 = vmatmul.f32.gmra.mxu0 %v866
        %v904 = vpop.f32.mrf.mxu0
        %v905 = vadd.f32 0.0, %v904
        %906 = vmatmul.f32.gmra.mxu0 %v868
        %v907 = vpop.f32.mrf.mxu0
        %v908 = vadd.f32 0.0, %v907
        %909 = vmatmul.f32.gmra.mxu0 %v870
        %v910 = vpop.f32.mrf.mxu0
        %v911 = vadd.f32 0.0, %v910
        %912 = vdwg.mxu0
        %913 = vmatpush.msra.mxu0 %v755
        %914 = vmatpush.msra.mxu0 %v754
        %915 = vmatpush.msra.mxu0 %v753
        %916 = vmatpush.msra.mxu0 %v752
        %917 = vmatpush.msra.mxu0 %v751
        %918 = vmatpush.msra.mxu0 %v750
        %919 = vmatpush.msra.mxu0 %v749
        %920 = vmatpush.msra.mxu0 %v748
        %921 = vmatpush.msra.mxu0 %v747
        %922 = vmatpush.msra.mxu0 %v746
        %923 = vmatpush.msra.mxu0 %v745
        %924 = vmatpush.msra.mxu0 %v744
        %925 = vmatpush.msra.mxu0 %v743
        %926 = vmatpush.msra.mxu0 %v742
        %927 = vmatpush.msra.mxu0 %v741
        %928 = vmatpush.msra.mxu0 %v740
        %929 = vmatmul.f32.gmra.mxu0 %v857
        %v930 = vpop.f32.mrf.mxu0
        %v931 = vadd.f32 %v890, %v930
        %932 = vmatmul.f32.gmra.mxu0 %v859
        %v933 = vpop.f32.mrf.mxu0
        %v934 = vadd.f32 %v893, %v933
        %935 = vmatmul.f32.gmra.mxu0 %v861
        %v936 = vpop.f32.mrf.mxu0
        %v937 = vadd.f32 %v896, %v936
        %938 = vmatmul.f32.gmra.mxu0 %v863
        %v939 = vpop.f32.mrf.mxu0
        %v940 = vadd.f32 %v899, %v939
        %941 = vmatmul.f32.gmra.mxu0 %v865
        %v942 = vpop.f32.mrf.mxu0
        %v943 = vadd.f32 %v902, %v942
        %944 = vmatmul.f32.gmra.mxu0 %v867
        %v945 = vpop.f32.mrf.mxu0
        %v946 = vadd.f32 %v905, %v945
        %947 = vmatmul.f32.gmra.mxu0 %v869
        %v948 = vpop.f32.mrf.mxu0
        %v949 = vadd.f32 %v908, %v948
        %950 = vmatmul.f32.gmra.mxu0 %v871
        %v951 = vpop.f32.mrf.mxu0
        %v952 = vadd.f32 %v911, %v951
        %953 = vdwg.mxu0
        %s954 = scalar_lea.vmem %s10, 4
        %v955 = vld [vmem:[%s954] sm:$0x7]
        %vm956 = vcmask 23552
        %v958 = vsel %vm956, %v931, 0
        %v961 = vsel %vm956, %v934, 0
        %v964 = vsel %vm956, %v937, 0
        %v967 = vsel %vm956, %v940, 0
        %v970 = vsel %vm956, %v943, 0
        %v973 = vsel %vm956, %v946, 0
        %v976 = vsel %vm956, %v949, 0
        %v979 = vsel %vm956, %v952, 0
        %vm981 = vcmask 1042432
        %v983 = vsel %vm981, %v955, 0
        %985 = vmatpush.msra.mxu0 0.0
        %986 = vmatpush.msra.mxu0 0.0
        %987 = vmatpush.msra.mxu0 0.0
        %988 = vmatpush.msra.mxu0 0.0
        %989 = vmatpush.msra.mxu0 0.0
        %990 = vmatpush.msra.mxu0 0.0
        %991 = vmatpush.msra.mxu0 0.0
        %992 = vmatpush.msra.mxu0 0.0
        %993 = vmatpush.msra.mxu0 0.0
        %994 = vmatpush.msra.mxu0 0.0
        %995 = vmatpush.msra.mxu0 0.0
        %996 = vmatpush.msra.mxu0 0.0
        %997 = vmatpush.msra.mxu0 0.0
        %998 = vmatpush.msra.mxu0 0.0
        %999 = vmatpush.msra.mxu0 0.0
        %1000 = vmatpush.msra.mxu0 %v983
        %1001 = vmatmul.f32.gmra.mxu0 %v958
        %v1002 = vpop.f32.mrf.mxu0
        %v1003 = vadd.f32 0.0, %v1002
        %1004 = vmatmul.f32.gmra.mxu0 %v961
        %v1005 = vpop.f32.mrf.mxu0
        %v1006 = vadd.f32 0.0, %v1005
        %1007 = vmatmul.f32.gmra.mxu0 %v964
        %v1008 = vpop.f32.mrf.mxu0
        %v1009 = vadd.f32 0.0, %v1008
        %1010 = vmatmul.f32.gmra.mxu0 %v967
        %v1011 = vpop.f32.mrf.mxu0
        %v1012 = vadd.f32 0.0, %v1011
        %1013 = vmatmul.f32.gmra.mxu0 %v970
        %v1014 = vpop.f32.mrf.mxu0
        %v1015 = vadd.f32 0.0, %v1014
        %1016 = vmatmul.f32.gmra.mxu0 %v973
        %v1017 = vpop.f32.mrf.mxu0
        %v1018 = vadd.f32 0.0, %v1017
        %1019 = vmatmul.f32.gmra.mxu0 %v976
        %v1020 = vpop.f32.mrf.mxu0
        %v1021 = vadd.f32 0.0, %v1020
        %1022 = vmatmul.f32.gmra.mxu0 %v979
        %v1023 = vpop.f32.mrf.mxu0
        %v1024 = vadd.f32 0.0, %v1023
        %1025 = vdwg.mxu0
        %v1027 = vsel %vm956, %v831, 0
        %v1030 = vsel %vm956, %v834, 0
        %v1033 = vsel %vm956, %v837, 0
        %v1036 = vsel %vm956, %v840, 0
        %v1039 = vsel %vm956, %v843, 0
        %v1042 = vsel %vm956, %v846, 0
        %v1045 = vsel %vm956, %v849, 0
        %v1048 = vsel %vm956, %v852, 0
        %v1051 = vsel %vm981, %v854, 0
        %1053 = vmatpush.msra.mxu0 0.0
        %1054 = vmatpush.msra.mxu0 0.0
        %1055 = vmatpush.msra.mxu0 0.0
        %1056 = vmatpush.msra.mxu0 0.0
        %1057 = vmatpush.msra.mxu0 0.0
        %1058 = vmatpush.msra.mxu0 0.0
        %1059 = vmatpush.msra.mxu0 0.0
        %1060 = vmatpush.msra.mxu0 0.0
        %1061 = vmatpush.msra.mxu0 0.0
        %1062 = vmatpush.msra.mxu0 0.0
        %1063 = vmatpush.msra.mxu0 0.0
        %1064 = vmatpush.msra.mxu0 0.0
        %1065 = vmatpush.msra.mxu0 0.0
        %1066 = vmatpush.msra.mxu0 0.0
        %1067 = vmatpush.msra.mxu0 0.0
        %1068 = vmatpush.msra.mxu0 %v1051
        %1069 = vmatmul.f32.gmra.mxu0 %v1027
        %v1070 = vpop.f32.mrf.mxu0
        %v1071 = vadd.f32 %v1003, %v1070
        %1072 = vmatmul.f32.gmra.mxu0 %v1030
        %v1073 = vpop.f32.mrf.mxu0
        %v1074 = vadd.f32 %v1006, %v1073
        %1075 = vmatmul.f32.gmra.mxu0 %v1033
        %v1076 = vpop.f32.mrf.mxu0
        %v1077 = vadd.f32 %v1009, %v1076
        %1078 = vmatmul.f32.gmra.mxu0 %v1036
        %v1079 = vpop.f32.mrf.mxu0
        %v1080 = vadd.f32 %v1012, %v1079
        %1081 = vmatmul.f32.gmra.mxu0 %v1039
        %v1082 = vpop.f32.mrf.mxu0
        %v1083 = vadd.f32 %v1015, %v1082
        %1084 = vmatmul.f32.gmra.mxu0 %v1042
        %v1085 = vpop.f32.mrf.mxu0
        %v1086 = vadd.f32 %v1018, %v1085
        %1087 = vmatmul.f32.gmra.mxu0 %v1045
        %v1088 = vpop.f32.mrf.mxu0
        %v1089 = vadd.f32 %v1021, %v1088
        %1090 = vmatmul.f32.gmra.mxu0 %v1048
        %v1091 = vpop.f32.mrf.mxu0
        %v1092 = vadd.f32 %v1024, %v1091
        %1093 = vdwg.mxu0
        %s1094 = scalar_lea.vmem [#allocation2], 256
        %v1095 = vld [vmem:[%s1094] sm:$0xff]
        %v1096 = vld [vmem:[%s1094 + $0x8] sm:$0xff]
        %v1097 = vld [vmem:[%s1094 + $0x10] sm:$0xff]
        %v1098 = vld [vmem:[%s1094 + $0x18] sm:$0xff]
        %v1099 = vld [vmem:[%s1094 + $0x20] sm:$0xff]
        %v1100 = vld [vmem:[%s1094 + $0x28] sm:$0xff]
        %v1101 = vld [vmem:[%s1094 + $0x30] sm:$0xff]
        %v1102 = vld [vmem:[%s1094 + $0x38] sm:$0xff]
        %v1103 = vld [vmem:[%s1094 + $0x40] sm:$0xff]
        %v1104 = vld [vmem:[%s1094 + $0x48] sm:$0xff]
        %v1105 = vld [vmem:[%s1094 + $0x50] sm:$0xff]
        %v1106 = vld [vmem:[%s1094 + $0x58] sm:$0xff]
        %v1107 = vld [vmem:[%s1094 + $0x60] sm:$0xff]
        %v1108 = vld [vmem:[%s1094 + $0x68] sm:$0xff]
        %v1109 = vld [vmem:[%s1094 + $0x70] sm:$0xff]
        %v1110 = vld [vmem:[%s1094 + $0x78] sm:$0xff]
        %1111 = vmatpush.msra.mxu0 %v739
        %1112 = vmatpush.msra.mxu0 %v738
        %1113 = vmatpush.msra.mxu0 %v737
        %1114 = vmatpush.msra.mxu0 %v736
        %1115 = vmatpush.msra.mxu0 %v735
        %1116 = vmatpush.msra.mxu0 %v734
        %1117 = vmatpush.msra.mxu0 %v733
        %1118 = vmatpush.msra.mxu0 %v732
        %1119 = vmatpush.msra.mxu0 %v731
        %1120 = vmatpush.msra.mxu0 %v730
        %1121 = vmatpush.msra.mxu0 %v729
        %1122 = vmatpush.msra.mxu0 %v728
        %1123 = vmatpush.msra.mxu0 %v727
        %1124 = vmatpush.msra.mxu0 %v726
        %1125 = vmatpush.msra.mxu0 %v725
        %1126 = vmatpush.msra.mxu0 %v724
        %1127 = vmatmul.f32.gmra.mxu0 %v1095
        %v1128 = vpop.f32.mrf.mxu0
        %v1129 = vadd.f32 0.0, %v1128
        %1130 = vmatmul.f32.gmra.mxu0 %v1097
        %v1131 = vpop.f32.mrf.mxu0
        %v1132 = vadd.f32 0.0, %v1131
        %1133 = vmatmul.f32.gmra.mxu0 %v1099
        %v1134 = vpop.f32.mrf.mxu0
        %v1135 = vadd.f32 0.0, %v1134
        %1136 = vmatmul.f32.gmra.mxu0 %v1101
        %v1137 = vpop.f32.mrf.mxu0
        %v1138 = vadd.f32 0.0, %v1137
        %1139 = vmatmul.f32.gmra.mxu0 %v1103
        %v1140 = vpop.f32.mrf.mxu0
        %v1141 = vadd.f32 0.0, %v1140
        %1142 = vmatmul.f32.gmra.mxu0 %v1105
        %v1143 = vpop.f32.mrf.mxu0
        %v1144 = vadd.f32 0.0, %v1143
        %1145 = vmatmul.f32.gmra.mxu0 %v1107
        %v1146 = vpop.f32.mrf.mxu0
        %v1147 = vadd.f32 0.0, %v1146
        %1148 = vmatmul.f32.gmra.mxu0 %v1109
        %v1149 = vpop.f32.mrf.mxu0
        %v1150 = vadd.f32 0.0, %v1149
        %1151 = vdwg.mxu0
        %1152 = vmatpush.msra.mxu0 %v755
        %1153 = vmatpush.msra.mxu0 %v754
        %1154 = vmatpush.msra.mxu0 %v753
        %1155 = vmatpush.msra.mxu0 %v752
        %1156 = vmatpush.msra.mxu0 %v751
        %1157 = vmatpush.msra.mxu0 %v750
        %1158 = vmatpush.msra.mxu0 %v749
        %1159 = vmatpush.msra.mxu0 %v748
        %1160 = vmatpush.msra.mxu0 %v747
        %1161 = vmatpush.msra.mxu0 %v746
        %1162 = vmatpush.msra.mxu0 %v745
        %1163 = vmatpush.msra.mxu0 %v744
        %1164 = vmatpush.msra.mxu0 %v743
        %1165 = vmatpush.msra.mxu0 %v742
        %1166 = vmatpush.msra.mxu0 %v741
        %1167 = vmatpush.msra.mxu0 %v740
        %1168 = vmatmul.f32.gmra.mxu0 %v1096
        %v1169 = vpop.f32.mrf.mxu0
        %v1170 = vadd.f32 %v1129, %v1169
        %1171 = vmatmul.f32.gmra.mxu0 %v1098
        %v1172 = vpop.f32.mrf.mxu0
        %v1173 = vadd.f32 %v1132, %v1172
        %1174 = vmatmul.f32.gmra.mxu0 %v1100
        %v1175 = vpop.f32.mrf.mxu0
        %v1176 = vadd.f32 %v1135, %v1175
        %1177 = vmatmul.f32.gmra.mxu0 %v1102
        %v1178 = vpop.f32.mrf.mxu0
        %v1179 = vadd.f32 %v1138, %v1178
        %1180 = vmatmul.f32.gmra.mxu0 %v1104
        %v1181 = vpop.f32.mrf.mxu0
        %v1182 = vadd.f32 %v1141, %v1181
        %1183 = vmatmul.f32.gmra.mxu0 %v1106
        %v1184 = vpop.f32.mrf.mxu0
        %v1185 = vadd.f32 %v1144, %v1184
        %1186 = vmatmul.f32.gmra.mxu0 %v1108
        %v1187 = vpop.f32.mrf.mxu0
        %v1188 = vadd.f32 %v1147, %v1187
        %1189 = vmatmul.f32.gmra.mxu0 %v1110
        %v1190 = vpop.f32.mrf.mxu0
        %v1191 = vadd.f32 %v1150, %v1190
        %1192 = vdwg.mxu0
        %s1193 = scalar_lea.vmem %s10, 8
        %v1194 = vld [vmem:[%s1193] sm:$0x7]
        %v1196 = vsel %vm956, %v1170, 0
        %v1199 = vsel %vm956, %v1173, 0
        %v1202 = vsel %vm956, %v1176, 0
        %v1205 = vsel %vm956, %v1179, 0
        %v1208 = vsel %vm956, %v1182, 0
        %v1211 = vsel %vm956, %v1185, 0
        %v1214 = vsel %vm956, %v1188, 0
        %v1217 = vsel %vm956, %v1191, 0
        %v1220 = vsel %vm981, %v1194, 0
        %1222 = vmatpush.msra.mxu0 0.0
        %1223 = vmatpush.msra.mxu0 0.0
        %1224 = vmatpush.msra.mxu0 0.0
        %1225 = vmatpush.msra.mxu0 0.0
        %1226 = vmatpush.msra.mxu0 0.0
        %1227 = vmatpush.msra.mxu0 0.0
        %1228 = vmatpush.msra.mxu0 0.0
        %1229 = vmatpush.msra.mxu0 0.0
        %1230 = vmatpush.msra.mxu0 0.0
        %1231 = vmatpush.msra.mxu0 0.0
        %1232 = vmatpush.msra.mxu0 0.0
        %1233 = vmatpush.msra.mxu0 0.0
        %1234 = vmatpush.msra.mxu0 0.0
        %1235 = vmatpush.msra.mxu0 0.0
        %1236 = vmatpush.msra.mxu0 0.0
        %1237 = vmatpush.msra.mxu0 %v1220
        %1238 = vmatmul.f32.gmra.mxu0 %v1196
        %v1239 = vpop.f32.mrf.mxu0
        %v1240 = vadd.f32 0.0, %v1239
        %1241 = vmatmul.f32.gmra.mxu0 %v1199
        %v1242 = vpop.f32.mrf.mxu0
        %v1243 = vadd.f32 0.0, %v1242
        %1244 = vmatmul.f32.gmra.mxu0 %v1202
        %v1245 = vpop.f32.mrf.mxu0
        %v1246 = vadd.f32 0.0, %v1245
        %1247 = vmatmul.f32.gmra.mxu0 %v1205
        %v1248 = vpop.f32.mrf.mxu0
        %v1249 = vadd.f32 0.0, %v1248
        %1250 = vmatmul.f32.gmra.mxu0 %v1208
        %v1251 = vpop.f32.mrf.mxu0
        %v1252 = vadd.f32 0.0, %v1251
        %1253 = vmatmul.f32.gmra.mxu0 %v1211
        %v1254 = vpop.f32.mrf.mxu0
        %v1255 = vadd.f32 0.0, %v1254
        %1256 = vmatmul.f32.gmra.mxu0 %v1214
        %v1257 = vpop.f32.mrf.mxu0
        %v1258 = vadd.f32 0.0, %v1257
        %1259 = vmatmul.f32.gmra.mxu0 %v1217
        %v1260 = vpop.f32.mrf.mxu0
        %v1261 = vadd.f32 0.0, %v1260
        %1262 = vdwg.mxu0
        %v1263 = vadd.f32 %v1071, %v1240
        %v1264 = vadd.f32 %v1074, %v1243
        %v1265 = vadd.f32 %v1077, %v1246
        %v1266 = vadd.f32 %v1080, %v1249
        %v1267 = vadd.f32 %v1083, %v1252
        %v1268 = vadd.f32 %v1086, %v1255
        %v1269 = vadd.f32 %v1089, %v1258
        %v1270 = vadd.f32 %v1092, %v1261
        %s1271 = scalar_lea.vmem [#allocation2], 384
        %v1272 = vld [vmem:[%s1271] sm:$0xff]
        %v1273 = vld [vmem:[%s1271 + $0x8] sm:$0xff]
        %v1274 = vld [vmem:[%s1271 + $0x10] sm:$0xff]
        %v1275 = vld [vmem:[%s1271 + $0x18] sm:$0xff]
        %v1276 = vld [vmem:[%s1271 + $0x20] sm:$0xff]
        %v1277 = vld [vmem:[%s1271 + $0x28] sm:$0xff]
        %v1278 = vld [vmem:[%s1271 + $0x30] sm:$0xff]
        %v1279 = vld [vmem:[%s1271 + $0x38] sm:$0xff]
        %v1280 = vld [vmem:[%s1271 + $0x40] sm:$0xff]
        %v1281 = vld [vmem:[%s1271 + $0x48] sm:$0xff]
        %v1282 = vld [vmem:[%s1271 + $0x50] sm:$0xff]
        %v1283 = vld [vmem:[%s1271 + $0x58] sm:$0xff]
        %v1284 = vld [vmem:[%s1271 + $0x60] sm:$0xff]
        %v1285 = vld [vmem:[%s1271 + $0x68] sm:$0xff]
        %v1286 = vld [vmem:[%s1271 + $0x70] sm:$0xff]
        %v1287 = vld [vmem:[%s1271 + $0x78] sm:$0xff]
        %1288 = vmatpush.msra.mxu0 %v739
        %1289 = vmatpush.msra.mxu0 %v738
        %1290 = vmatpush.msra.mxu0 %v737
        %1291 = vmatpush.msra.mxu0 %v736
        %1292 = vmatpush.msra.mxu0 %v735
        %1293 = vmatpush.msra.mxu0 %v734
        %1294 = vmatpush.msra.mxu0 %v733
        %1295 = vmatpush.msra.mxu0 %v732
        %1296 = vmatpush.msra.mxu0 %v731
        %1297 = vmatpush.msra.mxu0 %v730
        %1298 = vmatpush.msra.mxu0 %v729
        %1299 = vmatpush.msra.mxu0 %v728
        %1300 = vmatpush.msra.mxu0 %v727
        %1301 = vmatpush.msra.mxu0 %v726
        %1302 = vmatpush.msra.mxu0 %v725
        %1303 = vmatpush.msra.mxu0 %v724
        %1304 = vmatmul.f32.gmra.mxu0 %v1272
        %v1305 = vpop.f32.mrf.mxu0
        %v1306 = vadd.f32 0.0, %v1305
        %1307 = vmatmul.f32.gmra.mxu0 %v1274
        %v1308 = vpop.f32.mrf.mxu0
        %v1309 = vadd.f32 0.0, %v1308
        %1310 = vmatmul.f32.gmra.mxu0 %v1276
        %v1311 = vpop.f32.mrf.mxu0
        %v1312 = vadd.f32 0.0, %v1311
        %1313 = vmatmul.f32.gmra.mxu0 %v1278
        %v1314 = vpop.f32.mrf.mxu0
        %v1315 = vadd.f32 0.0, %v1314
        %1316 = vmatmul.f32.gmra.mxu0 %v1280
        %v1317 = vpop.f32.mrf.mxu0
        %v1318 = vadd.f32 0.0, %v1317
        %1319 = vmatmul.f32.gmra.mxu0 %v1282
        %v1320 = vpop.f32.mrf.mxu0
        %v1321 = vadd.f32 0.0, %v1320
        %1322 = vmatmul.f32.gmra.mxu0 %v1284
        %v1323 = vpop.f32.mrf.mxu0
        %v1324 = vadd.f32 0.0, %v1323
        %1325 = vmatmul.f32.gmra.mxu0 %v1286
        %v1326 = vpop.f32.mrf.mxu0
        %v1327 = vadd.f32 0.0, %v1326
        %1328 = vdwg.mxu0
        %1329 = vmatpush.msra.mxu0 %v755
        %1330 = vmatpush.msra.mxu0 %v754
        %1331 = vmatpush.msra.mxu0 %v753
        %1332 = vmatpush.msra.mxu0 %v752
        %1333 = vmatpush.msra.mxu0 %v751
        %1334 = vmatpush.msra.mxu0 %v750
        %1335 = vmatpush.msra.mxu0 %v749
        %1336 = vmatpush.msra.mxu0 %v748
        %1337 = vmatpush.msra.mxu0 %v747
        %1338 = vmatpush.msra.mxu0 %v746
        %1339 = vmatpush.msra.mxu0 %v745
        %1340 = vmatpush.msra.mxu0 %v744
        %1341 = vmatpush.msra.mxu0 %v743
        %1342 = vmatpush.msra.mxu0 %v742
        %1343 = vmatpush.msra.mxu0 %v741
        %1344 = vmatpush.msra.mxu0 %v740
        %1345 = vmatmul.f32.gmra.mxu0 %v1273
        %v1346 = vpop.f32.mrf.mxu0
        %v1347 = vadd.f32 %v1306, %v1346
        %1348 = vmatmul.f32.gmra.mxu0 %v1275
        %v1349 = vpop.f32.mrf.mxu0
        %v1350 = vadd.f32 %v1309, %v1349
        %1351 = vmatmul.f32.gmra.mxu0 %v1277
        %v1352 = vpop.f32.mrf.mxu0
        %v1353 = vadd.f32 %v1312, %v1352
        %1354 = vmatmul.f32.gmra.mxu0 %v1279
        %v1355 = vpop.f32.mrf.mxu0
        %v1356 = vadd.f32 %v1315, %v1355
        %1357 = vmatmul.f32.gmra.mxu0 %v1281
        %v1358 = vpop.f32.mrf.mxu0
        %v1359 = vadd.f32 %v1318, %v1358
        %1360 = vmatmul.f32.gmra.mxu0 %v1283
        %v1361 = vpop.f32.mrf.mxu0
        %v1362 = vadd.f32 %v1321, %v1361
        %1363 = vmatmul.f32.gmra.mxu0 %v1285
        %v1364 = vpop.f32.mrf.mxu0
        %v1365 = vadd.f32 %v1324, %v1364
        %1366 = vmatmul.f32.gmra.mxu0 %v1287
        %v1367 = vpop.f32.mrf.mxu0
        %v1368 = vadd.f32 %v1327, %v1367
        %1369 = vdwg.mxu0
        %s1370 = scalar_lea.vmem %s10, 12
        %v1371 = vld [vmem:[%s1370] sm:$0x7]
        %v1373 = vsel %vm956, %v1347, 0
        %v1376 = vsel %vm956, %v1350, 0
        %v1379 = vsel %vm956, %v1353, 0
        %v1382 = vsel %vm956, %v1356, 0
        %v1385 = vsel %vm956, %v1359, 0
        %v1388 = vsel %vm956, %v1362, 0
        %v1391 = vsel %vm956, %v1365, 0
        %v1394 = vsel %vm956, %v1368, 0
        %v1397 = vsel %vm981, %v1371, 0
        %1399 = vmatpush.msra.mxu0 0.0
        %1400 = vmatpush.msra.mxu0 0.0
        %1401 = vmatpush.msra.mxu0 0.0
        %1402 = vmatpush.msra.mxu0 0.0
        %1403 = vmatpush.msra.mxu0 0.0
        %1404 = vmatpush.msra.mxu0 0.0
        %1405 = vmatpush.msra.mxu0 0.0
        %1406 = vmatpush.msra.mxu0 0.0
        %1407 = vmatpush.msra.mxu0 0.0
        %1408 = vmatpush.msra.mxu0 0.0
        %1409 = vmatpush.msra.mxu0 0.0
        %1410 = vmatpush.msra.mxu0 0.0
        %1411 = vmatpush.msra.mxu0 0.0
        %1412 = vmatpush.msra.mxu0 0.0
        %1413 = vmatpush.msra.mxu0 0.0
        %1414 = vmatpush.msra.mxu0 %v1397
        %1415 = vmatmul.f32.gmra.mxu0 %v1373
        %v1416 = vpop.f32.mrf.mxu0
        %v1417 = vadd.f32 0.0, %v1416
        %1418 = vmatmul.f32.gmra.mxu0 %v1376
        %v1419 = vpop.f32.mrf.mxu0
        %v1420 = vadd.f32 0.0, %v1419
        %1421 = vmatmul.f32.gmra.mxu0 %v1379
        %v1422 = vpop.f32.mrf.mxu0
        %v1423 = vadd.f32 0.0, %v1422
        %1424 = vmatmul.f32.gmra.mxu0 %v1382
        %v1425 = vpop.f32.mrf.mxu0
        %v1426 = vadd.f32 0.0, %v1425
        %1427 = vmatmul.f32.gmra.mxu0 %v1385
        %v1428 = vpop.f32.mrf.mxu0
        %v1429 = vadd.f32 0.0, %v1428
        %1430 = vmatmul.f32.gmra.mxu0 %v1388
        %v1431 = vpop.f32.mrf.mxu0
        %v1432 = vadd.f32 0.0, %v1431
        %1433 = vmatmul.f32.gmra.mxu0 %v1391
        %v1434 = vpop.f32.mrf.mxu0
        %v1435 = vadd.f32 0.0, %v1434
        %1436 = vmatmul.f32.gmra.mxu0 %v1394
        %v1437 = vpop.f32.mrf.mxu0
        %v1438 = vadd.f32 0.0, %v1437
        %1439 = vdwg.mxu0
        %v1440 = vadd.f32 %v1263, %v1417
        %v1441 = vadd.f32 %v1264, %v1420
        %v1442 = vadd.f32 %v1265, %v1423
        %v1443 = vadd.f32 %v1266, %v1426
        %v1444 = vadd.f32 %v1267, %v1429
        %v1445 = vadd.f32 %v1268, %v1432
        %v1446 = vadd.f32 %v1269, %v1435
        %v1447 = vadd.f32 %v1270, %v1438
        %s1448 = scalar_lea.vmem [#allocation2], 512
        %v1449 = vld [vmem:[%s1448] sm:$0xff]
        %v1450 = vld [vmem:[%s1448 + $0x8] sm:$0xff]
        %v1451 = vld [vmem:[%s1448 + $0x10] sm:$0xff]
        %v1452 = vld [vmem:[%s1448 + $0x18] sm:$0xff]
        %v1453 = vld [vmem:[%s1448 + $0x20] sm:$0xff]
        %v1454 = vld [vmem:[%s1448 + $0x28] sm:$0xff]
        %v1455 = vld [vmem:[%s1448 + $0x30] sm:$0xff]
        %v1456 = vld [vmem:[%s1448 + $0x38] sm:$0xff]
        %v1457 = vld [vmem:[%s1448 + $0x40] sm:$0xff]
        %v1458 = vld [vmem:[%s1448 + $0x48] sm:$0xff]
        %v1459 = vld [vmem:[%s1448 + $0x50] sm:$0xff]
        %v1460 = vld [vmem:[%s1448 + $0x58] sm:$0xff]
        %v1461 = vld [vmem:[%s1448 + $0x60] sm:$0xff]
        %v1462 = vld [vmem:[%s1448 + $0x68] sm:$0xff]
        %v1463 = vld [vmem:[%s1448 + $0x70] sm:$0xff]
        %v1464 = vld [vmem:[%s1448 + $0x78] sm:$0xff]
        %1465 = vmatpush.msra.mxu0 %v739
        %1466 = vmatpush.msra.mxu0 %v738
        %1467 = vmatpush.msra.mxu0 %v737
        %1468 = vmatpush.msra.mxu0 %v736
        %1469 = vmatpush.msra.mxu0 %v735
        %1470 = vmatpush.msra.mxu0 %v734
        %1471 = vmatpush.msra.mxu0 %v733
        %1472 = vmatpush.msra.mxu0 %v732
        %1473 = vmatpush.msra.mxu0 %v731
        %1474 = vmatpush.msra.mxu0 %v730
        %1475 = vmatpush.msra.mxu0 %v729
        %1476 = vmatpush.msra.mxu0 %v728
        %1477 = vmatpush.msra.mxu0 %v727
        %1478 = vmatpush.msra.mxu0 %v726
        %1479 = vmatpush.msra.mxu0 %v725
        %1480 = vmatpush.msra.mxu0 %v724
        %1481 = vmatmul.f32.gmra.mxu0 %v1449
        %v1482 = vpop.f32.mrf.mxu0
        %v1483 = vadd.f32 0.0, %v1482
        %1484 = vmatmul.f32.gmra.mxu0 %v1451
        %v1485 = vpop.f32.mrf.mxu0
        %v1486 = vadd.f32 0.0, %v1485
        %1487 = vmatmul.f32.gmra.mxu0 %v1453
        %v1488 = vpop.f32.mrf.mxu0
        %v1489 = vadd.f32 0.0, %v1488
        %1490 = vmatmul.f32.gmra.mxu0 %v1455
        %v1491 = vpop.f32.mrf.mxu0
        %v1492 = vadd.f32 0.0, %v1491
        %1493 = vmatmul.f32.gmra.mxu0 %v1457
        %v1494 = vpop.f32.mrf.mxu0
        %v1495 = vadd.f32 0.0, %v1494
        %1496 = vmatmul.f32.gmra.mxu0 %v1459
        %v1497 = vpop.f32.mrf.mxu0
        %v1498 = vadd.f32 0.0, %v1497
        %1499 = vmatmul.f32.gmra.mxu0 %v1461
        %v1500 = vpop.f32.mrf.mxu0
        %v1501 = vadd.f32 0.0, %v1500
        %1502 = vmatmul.f32.gmra.mxu0 %v1463
        %v1503 = vpop.f32.mrf.mxu0
        %v1504 = vadd.f32 0.0, %v1503
        %1505 = vdwg.mxu0
        %1506 = vmatpush.msra.mxu0 %v755
        %1507 = vmatpush.msra.mxu0 %v754
        %1508 = vmatpush.msra.mxu0 %v753
        %1509 = vmatpush.msra.mxu0 %v752
        %1510 = vmatpush.msra.mxu0 %v751
        %1511 = vmatpush.msra.mxu0 %v750
        %1512 = vmatpush.msra.mxu0 %v749
        %1513 = vmatpush.msra.mxu0 %v748
        %1514 = vmatpush.msra.mxu0 %v747
        %1515 = vmatpush.msra.mxu0 %v746
        %1516 = vmatpush.msra.mxu0 %v745
        %1517 = vmatpush.msra.mxu0 %v744
        %1518 = vmatpush.msra.mxu0 %v743
        %1519 = vmatpush.msra.mxu0 %v742
        %1520 = vmatpush.msra.mxu0 %v741
        %1521 = vmatpush.msra.mxu0 %v740
        %1522 = vmatmul.f32.gmra.mxu0 %v1450
        %v1523 = vpop.f32.mrf.mxu0
        %v1524 = vadd.f32 %v1483, %v1523
        %1525 = vmatmul.f32.gmra.mxu0 %v1452
        %v1526 = vpop.f32.mrf.mxu0
        %v1527 = vadd.f32 %v1486, %v1526
        %1528 = vmatmul.f32.gmra.mxu0 %v1454
        %v1529 = vpop.f32.mrf.mxu0
        %v1530 = vadd.f32 %v1489, %v1529
        %1531 = vmatmul.f32.gmra.mxu0 %v1456
        %v1532 = vpop.f32.mrf.mxu0
        %v1533 = vadd.f32 %v1492, %v1532
        %1534 = vmatmul.f32.gmra.mxu0 %v1458
        %v1535 = vpop.f32.mrf.mxu0
        %v1536 = vadd.f32 %v1495, %v1535
        %1537 = vmatmul.f32.gmra.mxu0 %v1460
        %v1538 = vpop.f32.mrf.mxu0
        %v1539 = vadd.f32 %v1498, %v1538
        %1540 = vmatmul.f32.gmra.mxu0 %v1462
        %v1541 = vpop.f32.mrf.mxu0
        %v1542 = vadd.f32 %v1501, %v1541
        %1543 = vmatmul.f32.gmra.mxu0 %v1464
        %v1544 = vpop.f32.mrf.mxu0
        %v1545 = vadd.f32 %v1504, %v1544
        %1546 = vdwg.mxu0
        %s1547 = scalar_lea.vmem %s10, 16
        %v1548 = vld [vmem:[%s1547] sm:$0x7]
        %v1550 = vsel %vm956, %v1524, 0
        %v1553 = vsel %vm956, %v1527, 0
        %v1556 = vsel %vm956, %v1530, 0
        %v1559 = vsel %vm956, %v1533, 0
        %v1562 = vsel %vm956, %v1536, 0
        %v1565 = vsel %vm956, %v1539, 0
        %v1568 = vsel %vm956, %v1542, 0
        %v1571 = vsel %vm956, %v1545, 0
        %v1574 = vsel %vm981, %v1548, 0
        %1576 = vmatpush.msra.mxu0 0.0
        %1577 = vmatpush.msra.mxu0 0.0
        %1578 = vmatpush.msra.mxu0 0.0
        %1579 = vmatpush.msra.mxu0 0.0
        %1580 = vmatpush.msra.mxu0 0.0
        %1581 = vmatpush.msra.mxu0 0.0
        %1582 = vmatpush.msra.mxu0 0.0
        %1583 = vmatpush.msra.mxu0 0.0
        %1584 = vmatpush.msra.mxu0 0.0
        %1585 = vmatpush.msra.mxu0 0.0
        %1586 = vmatpush.msra.mxu0 0.0
        %1587 = vmatpush.msra.mxu0 0.0
        %1588 = vmatpush.msra.mxu0 0.0
        %1589 = vmatpush.msra.mxu0 0.0
        %1590 = vmatpush.msra.mxu0 0.0
        %1591 = vmatpush.msra.mxu0 %v1574
        %1592 = vmatmul.f32.gmra.mxu0 %v1550
        %v1593 = vpop.f32.mrf.mxu0
        %v1594 = vadd.f32 0.0, %v1593
        %1595 = vmatmul.f32.gmra.mxu0 %v1553
        %v1596 = vpop.f32.mrf.mxu0
        %v1597 = vadd.f32 0.0, %v1596
        %1598 = vmatmul.f32.gmra.mxu0 %v1556
        %v1599 = vpop.f32.mrf.mxu0
        %v1600 = vadd.f32 0.0, %v1599
        %1601 = vmatmul.f32.gmra.mxu0 %v1559
        %v1602 = vpop.f32.mrf.mxu0
        %v1603 = vadd.f32 0.0, %v1602
        %1604 = vmatmul.f32.gmra.mxu0 %v1562
        %v1605 = vpop.f32.mrf.mxu0
        %v1606 = vadd.f32 0.0, %v1605
        %1607 = vmatmul.f32.gmra.mxu0 %v1565
        %v1608 = vpop.f32.mrf.mxu0
        %v1609 = vadd.f32 0.0, %v1608
        %1610 = vmatmul.f32.gmra.mxu0 %v1568
        %v1611 = vpop.f32.mrf.mxu0
        %v1612 = vadd.f32 0.0, %v1611
        %1613 = vmatmul.f32.gmra.mxu0 %v1571
        %v1614 = vpop.f32.mrf.mxu0
        %v1615 = vadd.f32 0.0, %v1614
        %1616 = vdwg.mxu0
        %v1617 = vadd.f32 %v1440, %v1594
        %v1618 = vadd.f32 %v1441, %v1597
        %v1619 = vadd.f32 %v1442, %v1600
        %v1620 = vadd.f32 %v1443, %v1603
        %v1621 = vadd.f32 %v1444, %v1606
        %v1622 = vadd.f32 %v1445, %v1609
        %v1623 = vadd.f32 %v1446, %v1612
        %v1624 = vadd.f32 %v1447, %v1615
        %s1625 = scalar_lea.vmem [#allocation2], 640
        %v1626 = vld [vmem:[%s1625] sm:$0xff]
        %v1627 = vld [vmem:[%s1625 + $0x8] sm:$0xff]
        %v1628 = vld [vmem:[%s1625 + $0x10] sm:$0xff]
        %v1629 = vld [vmem:[%s1625 + $0x18] sm:$0xff]
        %v1630 = vld [vmem:[%s1625 + $0x20] sm:$0xff]
        %v1631 = vld [vmem:[%s1625 + $0x28] sm:$0xff]
        %v1632 = vld [vmem:[%s1625 + $0x30] sm:$0xff]
        %v1633 = vld [vmem:[%s1625 + $0x38] sm:$0xff]
        %v1634 = vld [vmem:[%s1625 + $0x40] sm:$0xff]
        %v1635 = vld [vmem:[%s1625 + $0x48] sm:$0xff]
        %v1636 = vld [vmem:[%s1625 + $0x50] sm:$0xff]
        %v1637 = vld [vmem:[%s1625 + $0x58] sm:$0xff]
        %v1638 = vld [vmem:[%s1625 + $0x60] sm:$0xff]
        %v1639 = vld [vmem:[%s1625 + $0x68] sm:$0xff]
        %v1640 = vld [vmem:[%s1625 + $0x70] sm:$0xff]
        %v1641 = vld [vmem:[%s1625 + $0x78] sm:$0xff]
        %1642 = vmatpush.msra.mxu0 %v739
        %1643 = vmatpush.msra.mxu0 %v738
        %1644 = vmatpush.msra.mxu0 %v737
        %1645 = vmatpush.msra.mxu0 %v736
        %1646 = vmatpush.msra.mxu0 %v735
        %1647 = vmatpush.msra.mxu0 %v734
        %1648 = vmatpush.msra.mxu0 %v733
        %1649 = vmatpush.msra.mxu0 %v732
        %1650 = vmatpush.msra.mxu0 %v731
        %1651 = vmatpush.msra.mxu0 %v730
        %1652 = vmatpush.msra.mxu0 %v729
        %1653 = vmatpush.msra.mxu0 %v728
        %1654 = vmatpush.msra.mxu0 %v727
        %1655 = vmatpush.msra.mxu0 %v726
        %1656 = vmatpush.msra.mxu0 %v725
        %1657 = vmatpush.msra.mxu0 %v724
        %1658 = vmatmul.f32.gmra.mxu0 %v1626
        %v1659 = vpop.f32.mrf.mxu0
        %v1660 = vadd.f32 0.0, %v1659
        %1661 = vmatmul.f32.gmra.mxu0 %v1628
        %v1662 = vpop.f32.mrf.mxu0
        %v1663 = vadd.f32 0.0, %v1662
        %1664 = vmatmul.f32.gmra.mxu0 %v1630
        %v1665 = vpop.f32.mrf.mxu0
        %v1666 = vadd.f32 0.0, %v1665
        %1667 = vmatmul.f32.gmra.mxu0 %v1632
        %v1668 = vpop.f32.mrf.mxu0
        %v1669 = vadd.f32 0.0, %v1668
        %1670 = vmatmul.f32.gmra.mxu0 %v1634
        %v1671 = vpop.f32.mrf.mxu0
        %v1672 = vadd.f32 0.0, %v1671
        %1673 = vmatmul.f32.gmra.mxu0 %v1636
        %v1674 = vpop.f32.mrf.mxu0
        %v1675 = vadd.f32 0.0, %v1674
        %1676 = vmatmul.f32.gmra.mxu0 %v1638
        %v1677 = vpop.f32.mrf.mxu0
        %v1678 = vadd.f32 0.0, %v1677
        %1679 = vmatmul.f32.gmra.mxu0 %v1640
        %v1680 = vpop.f32.mrf.mxu0
        %v1681 = vadd.f32 0.0, %v1680
        %1682 = vdwg.mxu0
        %1683 = vmatpush.msra.mxu0 %v755
        %1684 = vmatpush.msra.mxu0 %v754
        %1685 = vmatpush.msra.mxu0 %v753
        %1686 = vmatpush.msra.mxu0 %v752
        %1687 = vmatpush.msra.mxu0 %v751
        %1688 = vmatpush.msra.mxu0 %v750
        %1689 = vmatpush.msra.mxu0 %v749
        %1690 = vmatpush.msra.mxu0 %v748
        %1691 = vmatpush.msra.mxu0 %v747
        %1692 = vmatpush.msra.mxu0 %v746
        %1693 = vmatpush.msra.mxu0 %v745
        %1694 = vmatpush.msra.mxu0 %v744
        %1695 = vmatpush.msra.mxu0 %v743
        %1696 = vmatpush.msra.mxu0 %v742
        %1697 = vmatpush.msra.mxu0 %v741
        %1698 = vmatpush.msra.mxu0 %v740
        %1699 = vmatmul.f32.gmra.mxu0 %v1627
        %v1700 = vpop.f32.mrf.mxu0
        %v1701 = vadd.f32 %v1660, %v1700
        %1702 = vmatmul.f32.gmra.mxu0 %v1629
        %v1703 = vpop.f32.mrf.mxu0
        %v1704 = vadd.f32 %v1663, %v1703
        %1705 = vmatmul.f32.gmra.mxu0 %v1631
        %v1706 = vpop.f32.mrf.mxu0
        %v1707 = vadd.f32 %v1666, %v1706
        %1708 = vmatmul.f32.gmra.mxu0 %v1633
        %v1709 = vpop.f32.mrf.mxu0
        %v1710 = vadd.f32 %v1669, %v1709
        %1711 = vmatmul.f32.gmra.mxu0 %v1635
        %v1712 = vpop.f32.mrf.mxu0
        %v1713 = vadd.f32 %v1672, %v1712
        %1714 = vmatmul.f32.gmra.mxu0 %v1637
        %v1715 = vpop.f32.mrf.mxu0
        %v1716 = vadd.f32 %v1675, %v1715
        %1717 = vmatmul.f32.gmra.mxu0 %v1639
        %v1718 = vpop.f32.mrf.mxu0
        %v1719 = vadd.f32 %v1678, %v1718
        %1720 = vmatmul.f32.gmra.mxu0 %v1641
        %v1721 = vpop.f32.mrf.mxu0
        %v1722 = vadd.f32 %v1681, %v1721
        %1723 = vdwg.mxu0
        %s1724 = scalar_lea.vmem %s10, 20
        %v1725 = vld [vmem:[%s1724] sm:$0x7]
        %v1727 = vsel %vm956, %v1701, 0
        %v1730 = vsel %vm956, %v1704, 0
        %v1733 = vsel %vm956, %v1707, 0
        %v1736 = vsel %vm956, %v1710, 0
        %v1739 = vsel %vm956, %v1713, 0
        %v1742 = vsel %vm956, %v1716, 0
        %v1745 = vsel %vm956, %v1719, 0
        %v1748 = vsel %vm956, %v1722, 0
        %v1751 = vsel %vm981, %v1725, 0
        %1753 = vmatpush.msra.mxu0 0.0
        %1754 = vmatpush.msra.mxu0 0.0
        %1755 = vmatpush.msra.mxu0 0.0
        %1756 = vmatpush.msra.mxu0 0.0
        %1757 = vmatpush.msra.mxu0 0.0
        %1758 = vmatpush.msra.mxu0 0.0
        %1759 = vmatpush.msra.mxu0 0.0
        %1760 = vmatpush.msra.mxu0 0.0
        %1761 = vmatpush.msra.mxu0 0.0
        %1762 = vmatpush.msra.mxu0 0.0
        %1763 = vmatpush.msra.mxu0 0.0
        %1764 = vmatpush.msra.mxu0 0.0
        %1765 = vmatpush.msra.mxu0 0.0
        %1766 = vmatpush.msra.mxu0 0.0
        %1767 = vmatpush.msra.mxu0 0.0
        %1768 = vmatpush.msra.mxu0 %v1751
        %1769 = vmatmul.f32.gmra.mxu0 %v1727
        %v1770 = vpop.f32.mrf.mxu0
        %v1771 = vadd.f32 0.0, %v1770
        %1772 = vmatmul.f32.gmra.mxu0 %v1730
        %v1773 = vpop.f32.mrf.mxu0
        %v1774 = vadd.f32 0.0, %v1773
        %1775 = vmatmul.f32.gmra.mxu0 %v1733
        %v1776 = vpop.f32.mrf.mxu0
        %v1777 = vadd.f32 0.0, %v1776
        %1778 = vmatmul.f32.gmra.mxu0 %v1736
        %v1779 = vpop.f32.mrf.mxu0
        %v1780 = vadd.f32 0.0, %v1779
        %1781 = vmatmul.f32.gmra.mxu0 %v1739
        %v1782 = vpop.f32.mrf.mxu0
        %v1783 = vadd.f32 0.0, %v1782
        %1784 = vmatmul.f32.gmra.mxu0 %v1742
        %v1785 = vpop.f32.mrf.mxu0
        %v1786 = vadd.f32 0.0, %v1785
        %1787 = vmatmul.f32.gmra.mxu0 %v1745
        %v1788 = vpop.f32.mrf.mxu0
        %v1789 = vadd.f32 0.0, %v1788
        %1790 = vmatmul.f32.gmra.mxu0 %v1748
        %v1791 = vpop.f32.mrf.mxu0
        %v1792 = vadd.f32 0.0, %v1791
        %1793 = vdwg.mxu0
        %v1794 = vadd.f32 %v1617, %v1771
        %v1795 = vadd.f32 %v1618, %v1774
        %v1796 = vadd.f32 %v1619, %v1777
        %v1797 = vadd.f32 %v1620, %v1780
        %v1798 = vadd.f32 %v1621, %v1783
        %v1799 = vadd.f32 %v1622, %v1786
        %v1800 = vadd.f32 %v1623, %v1789
        %v1801 = vadd.f32 %v1624, %v1792
        %s1802 = scalar_lea.vmem [#allocation2], 768
        %v1803 = vld [vmem:[%s1802] sm:$0xff]
        %v1804 = vld [vmem:[%s1802 + $0x8] sm:$0xff]
        %v1805 = vld [vmem:[%s1802 + $0x10] sm:$0xff]
        %v1806 = vld [vmem:[%s1802 + $0x18] sm:$0xff]
        %v1807 = vld [vmem:[%s1802 + $0x20] sm:$0xff]
        %v1808 = vld [vmem:[%s1802 + $0x28] sm:$0xff]
        %v1809 = vld [vmem:[%s1802 + $0x30] sm:$0xff]
        %v1810 = vld [vmem:[%s1802 + $0x38] sm:$0xff]
        %v1811 = vld [vmem:[%s1802 + $0x40] sm:$0xff]
        %v1812 = vld [vmem:[%s1802 + $0x48] sm:$0xff]
        %v1813 = vld [vmem:[%s1802 + $0x50] sm:$0xff]
        %v1814 = vld [vmem:[%s1802 + $0x58] sm:$0xff]
        %v1815 = vld [vmem:[%s1802 + $0x60] sm:$0xff]
        %v1816 = vld [vmem:[%s1802 + $0x68] sm:$0xff]
        %v1817 = vld [vmem:[%s1802 + $0x70] sm:$0xff]
        %v1818 = vld [vmem:[%s1802 + $0x78] sm:$0xff]
        %1819 = vmatpush.msra.mxu0 %v739
        %1820 = vmatpush.msra.mxu0 %v738
        %1821 = vmatpush.msra.mxu0 %v737
        %1822 = vmatpush.msra.mxu0 %v736
        %1823 = vmatpush.msra.mxu0 %v735
        %1824 = vmatpush.msra.mxu0 %v734
        %1825 = vmatpush.msra.mxu0 %v733
        %1826 = vmatpush.msra.mxu0 %v732
        %1827 = vmatpush.msra.mxu0 %v731
        %1828 = vmatpush.msra.mxu0 %v730
        %1829 = vmatpush.msra.mxu0 %v729
        %1830 = vmatpush.msra.mxu0 %v728
        %1831 = vmatpush.msra.mxu0 %v727
        %1832 = vmatpush.msra.mxu0 %v726
        %1833 = vmatpush.msra.mxu0 %v725
        %1834 = vmatpush.msra.mxu0 %v724
        %1835 = vmatmul.f32.gmra.mxu0 %v1803
        %v1836 = vpop.f32.mrf.mxu0
        %v1837 = vadd.f32 0.0, %v1836
        %1838 = vmatmul.f32.gmra.mxu0 %v1805
        %v1839 = vpop.f32.mrf.mxu0
        %v1840 = vadd.f32 0.0, %v1839
        %1841 = vmatmul.f32.gmra.mxu0 %v1807
        %v1842 = vpop.f32.mrf.mxu0
        %v1843 = vadd.f32 0.0, %v1842
        %1844 = vmatmul.f32.gmra.mxu0 %v1809
        %v1845 = vpop.f32.mrf.mxu0
        %v1846 = vadd.f32 0.0, %v1845
        %1847 = vmatmul.f32.gmra.mxu0 %v1811
        %v1848 = vpop.f32.mrf.mxu0
        %v1849 = vadd.f32 0.0, %v1848
        %1850 = vmatmul.f32.gmra.mxu0 %v1813
        %v1851 = vpop.f32.mrf.mxu0
        %v1852 = vadd.f32 0.0, %v1851
        %1853 = vmatmul.f32.gmra.mxu0 %v1815
        %v1854 = vpop.f32.mrf.mxu0
        %v1855 = vadd.f32 0.0, %v1854
        %1856 = vmatmul.f32.gmra.mxu0 %v1817
        %v1857 = vpop.f32.mrf.mxu0
        %v1858 = vadd.f32 0.0, %v1857
        %1859 = vdwg.mxu0
        %1860 = vmatpush.msra.mxu0 %v755
        %1861 = vmatpush.msra.mxu0 %v754
        %1862 = vmatpush.msra.mxu0 %v753
        %1863 = vmatpush.msra.mxu0 %v752
        %1864 = vmatpush.msra.mxu0 %v751
        %1865 = vmatpush.msra.mxu0 %v750
        %1866 = vmatpush.msra.mxu0 %v749
        %1867 = vmatpush.msra.mxu0 %v748
        %1868 = vmatpush.msra.mxu0 %v747
        %1869 = vmatpush.msra.mxu0 %v746
        %1870 = vmatpush.msra.mxu0 %v745
        %1871 = vmatpush.msra.mxu0 %v744
        %1872 = vmatpush.msra.mxu0 %v743
        %1873 = vmatpush.msra.mxu0 %v742
        %1874 = vmatpush.msra.mxu0 %v741
        %1875 = vmatpush.msra.mxu0 %v740
        %1876 = vmatmul.f32.gmra.mxu0 %v1804
        %v1877 = vpop.f32.mrf.mxu0
        %v1878 = vadd.f32 %v1837, %v1877
        %1879 = vmatmul.f32.gmra.mxu0 %v1806
        %v1880 = vpop.f32.mrf.mxu0
        %v1881 = vadd.f32 %v1840, %v1880
        %1882 = vmatmul.f32.gmra.mxu0 %v1808
        %v1883 = vpop.f32.mrf.mxu0
        %v1884 = vadd.f32 %v1843, %v1883
        %1885 = vmatmul.f32.gmra.mxu0 %v1810
        %v1886 = vpop.f32.mrf.mxu0
        %v1887 = vadd.f32 %v1846, %v1886
        %1888 = vmatmul.f32.gmra.mxu0 %v1812
        %v1889 = vpop.f32.mrf.mxu0
        %v1890 = vadd.f32 %v1849, %v1889
        %1891 = vmatmul.f32.gmra.mxu0 %v1814
        %v1892 = vpop.f32.mrf.mxu0
        %v1893 = vadd.f32 %v1852, %v1892
        %1894 = vmatmul.f32.gmra.mxu0 %v1816
        %v1895 = vpop.f32.mrf.mxu0
        %v1896 = vadd.f32 %v1855, %v1895
        %1897 = vmatmul.f32.gmra.mxu0 %v1818
        %v1898 = vpop.f32.mrf.mxu0
        %v1899 = vadd.f32 %v1858, %v1898
        %1900 = vdwg.mxu0
        %s1901 = scalar_lea.vmem %s10, 24
        %v1902 = vld [vmem:[%s1901] sm:$0x7]
        %v1904 = vsel %vm956, %v1878, 0
        %v1907 = vsel %vm956, %v1881, 0
        %v1910 = vsel %vm956, %v1884, 0
        %v1913 = vsel %vm956, %v1887, 0
        %v1916 = vsel %vm956, %v1890, 0
        %v1919 = vsel %vm956, %v1893, 0
        %v1922 = vsel %vm956, %v1896, 0
        %v1925 = vsel %vm956, %v1899, 0
        %v1928 = vsel %vm981, %v1902, 0
        %1930 = vmatpush.msra.mxu0 0.0
        %1931 = vmatpush.msra.mxu0 0.0
        %1932 = vmatpush.msra.mxu0 0.0
        %1933 = vmatpush.msra.mxu0 0.0
        %1934 = vmatpush.msra.mxu0 0.0
        %1935 = vmatpush.msra.mxu0 0.0
        %1936 = vmatpush.msra.mxu0 0.0
        %1937 = vmatpush.msra.mxu0 0.0
        %1938 = vmatpush.msra.mxu0 0.0
        %1939 = vmatpush.msra.mxu0 0.0
        %1940 = vmatpush.msra.mxu0 0.0
        %1941 = vmatpush.msra.mxu0 0.0
        %1942 = vmatpush.msra.mxu0 0.0
        %1943 = vmatpush.msra.mxu0 0.0
        %1944 = vmatpush.msra.mxu0 0.0
        %1945 = vmatpush.msra.mxu0 %v1928
        %1946 = vmatmul.f32.gmra.mxu0 %v1904
        %v1947 = vpop.f32.mrf.mxu0
        %v1948 = vadd.f32 0.0, %v1947
        %1949 = vmatmul.f32.gmra.mxu0 %v1907
        %v1950 = vpop.f32.mrf.mxu0
        %v1951 = vadd.f32 0.0, %v1950
        %1952 = vmatmul.f32.gmra.mxu0 %v1910
        %v1953 = vpop.f32.mrf.mxu0
        %v1954 = vadd.f32 0.0, %v1953
        %1955 = vmatmul.f32.gmra.mxu0 %v1913
        %v1956 = vpop.f32.mrf.mxu0
        %v1957 = vadd.f32 0.0, %v1956
        %1958 = vmatmul.f32.gmra.mxu0 %v1916
        %v1959 = vpop.f32.mrf.mxu0
        %v1960 = vadd.f32 0.0, %v1959
        %1961 = vmatmul.f32.gmra.mxu0 %v1919
        %v1962 = vpop.f32.mrf.mxu0
        %v1963 = vadd.f32 0.0, %v1962
        %1964 = vmatmul.f32.gmra.mxu0 %v1922
        %v1965 = vpop.f32.mrf.mxu0
        %v1966 = vadd.f32 0.0, %v1965
        %1967 = vmatmul.f32.gmra.mxu0 %v1925
        %v1968 = vpop.f32.mrf.mxu0
        %v1969 = vadd.f32 0.0, %v1968
        %1970 = vdwg.mxu0
        %v1971 = vadd.f32 %v1794, %v1948
        %v1972 = vadd.f32 %v1795, %v1951
        %v1973 = vadd.f32 %v1796, %v1954
        %v1974 = vadd.f32 %v1797, %v1957
        %v1975 = vadd.f32 %v1798, %v1960
        %v1976 = vadd.f32 %v1799, %v1963
        %v1977 = vadd.f32 %v1800, %v1966
        %v1978 = vadd.f32 %v1801, %v1969
        %s1979 = scalar_lea.vmem [#allocation2], 896
        %v1980 = vld [vmem:[%s1979] sm:$0xff]
        %v1981 = vld [vmem:[%s1979 + $0x8] sm:$0xff]
        %v1982 = vld [vmem:[%s1979 + $0x10] sm:$0xff]
        %v1983 = vld [vmem:[%s1979 + $0x18] sm:$0xff]
        %v1984 = vld [vmem:[%s1979 + $0x20] sm:$0xff]
        %v1985 = vld [vmem:[%s1979 + $0x28] sm:$0xff]
        %v1986 = vld [vmem:[%s1979 + $0x30] sm:$0xff]
        %v1987 = vld [vmem:[%s1979 + $0x38] sm:$0xff]
        %v1988 = vld [vmem:[%s1979 + $0x40] sm:$0xff]
        %v1989 = vld [vmem:[%s1979 + $0x48] sm:$0xff]
        %v1990 = vld [vmem:[%s1979 + $0x50] sm:$0xff]
        %v1991 = vld [vmem:[%s1979 + $0x58] sm:$0xff]
        %v1992 = vld [vmem:[%s1979 + $0x60] sm:$0xff]
        %v1993 = vld [vmem:[%s1979 + $0x68] sm:$0xff]
        %v1994 = vld [vmem:[%s1979 + $0x70] sm:$0xff]
        %v1995 = vld [vmem:[%s1979 + $0x78] sm:$0xff]
        %1996 = vmatpush.msra.mxu0 %v739
        %1997 = vmatpush.msra.mxu0 %v738
        %1998 = vmatpush.msra.mxu0 %v737
        %1999 = vmatpush.msra.mxu0 %v736
        %2000 = vmatpush.msra.mxu0 %v735
        %2001 = vmatpush.msra.mxu0 %v734
        %2002 = vmatpush.msra.mxu0 %v733
        %2003 = vmatpush.msra.mxu0 %v732
        %2004 = vmatpush.msra.mxu0 %v731
        %2005 = vmatpush.msra.mxu0 %v730
        %2006 = vmatpush.msra.mxu0 %v729
        %2007 = vmatpush.msra.mxu0 %v728
        %2008 = vmatpush.msra.mxu0 %v727
        %2009 = vmatpush.msra.mxu0 %v726
        %2010 = vmatpush.msra.mxu0 %v725
        %2011 = vmatpush.msra.mxu0 %v724
        %2012 = vmatmul.f32.gmra.mxu0 %v1980
        %v2013 = vpop.f32.mrf.mxu0
        %v2014 = vadd.f32 0.0, %v2013
        %2015 = vmatmul.f32.gmra.mxu0 %v1982
        %v2016 = vpop.f32.mrf.mxu0
        %v2017 = vadd.f32 0.0, %v2016
        %2018 = vmatmul.f32.gmra.mxu0 %v1984
        %v2019 = vpop.f32.mrf.mxu0
        %v2020 = vadd.f32 0.0, %v2019
        %2021 = vmatmul.f32.gmra.mxu0 %v1986
        %v2022 = vpop.f32.mrf.mxu0
        %v2023 = vadd.f32 0.0, %v2022
        %2024 = vmatmul.f32.gmra.mxu0 %v1988
        %v2025 = vpop.f32.mrf.mxu0
        %v2026 = vadd.f32 0.0, %v2025
        %2027 = vmatmul.f32.gmra.mxu0 %v1990
        %v2028 = vpop.f32.mrf.mxu0
        %v2029 = vadd.f32 0.0, %v2028
        %2030 = vmatmul.f32.gmra.mxu0 %v1992
        %v2031 = vpop.f32.mrf.mxu0
        %v2032 = vadd.f32 0.0, %v2031
        %2033 = vmatmul.f32.gmra.mxu0 %v1994
        %v2034 = vpop.f32.mrf.mxu0
        %v2035 = vadd.f32 0.0, %v2034
        %2036 = vdwg.mxu0
        %2037 = vmatpush.msra.mxu0 %v755
        %2038 = vmatpush.msra.mxu0 %v754
        %2039 = vmatpush.msra.mxu0 %v753
        %2040 = vmatpush.msra.mxu0 %v752
        %2041 = vmatpush.msra.mxu0 %v751
        %2042 = vmatpush.msra.mxu0 %v750
        %2043 = vmatpush.msra.mxu0 %v749
        %2044 = vmatpush.msra.mxu0 %v748
        %2045 = vmatpush.msra.mxu0 %v747
        %2046 = vmatpush.msra.mxu0 %v746
        %2047 = vmatpush.msra.mxu0 %v745
        %2048 = vmatpush.msra.mxu0 %v744
        %2049 = vmatpush.msra.mxu0 %v743
        %2050 = vmatpush.msra.mxu0 %v742
        %2051 = vmatpush.msra.mxu0 %v741
        %2052 = vmatpush.msra.mxu0 %v740
        %2053 = vmatmul.f32.gmra.mxu0 %v1981
        %v2054 = vpop.f32.mrf.mxu0
        %v2055 = vadd.f32 %v2014, %v2054
        %2056 = vmatmul.f32.gmra.mxu0 %v1983
        %v2057 = vpop.f32.mrf.mxu0
        %v2058 = vadd.f32 %v2017, %v2057
        %2059 = vmatmul.f32.gmra.mxu0 %v1985
        %v2060 = vpop.f32.mrf.mxu0
        %v2061 = vadd.f32 %v2020, %v2060
        %2062 = vmatmul.f32.gmra.mxu0 %v1987
        %v2063 = vpop.f32.mrf.mxu0
        %v2064 = vadd.f32 %v2023, %v2063
        %2065 = vmatmul.f32.gmra.mxu0 %v1989
        %v2066 = vpop.f32.mrf.mxu0
        %v2067 = vadd.f32 %v2026, %v2066
        %2068 = vmatmul.f32.gmra.mxu0 %v1991
        %v2069 = vpop.f32.mrf.mxu0
        %v2070 = vadd.f32 %v2029, %v2069
        %2071 = vmatmul.f32.gmra.mxu0 %v1993
        %v2072 = vpop.f32.mrf.mxu0
        %v2073 = vadd.f32 %v2032, %v2072
        %2074 = vmatmul.f32.gmra.mxu0 %v1995
        %v2075 = vpop.f32.mrf.mxu0
        %v2076 = vadd.f32 %v2035, %v2075
        %2077 = vdwg.mxu0
        %s2078 = scalar_lea.vmem %s10, 28
        %v2079 = vld [vmem:[%s2078] sm:$0x7]
        %v2081 = vsel %vm956, %v2055, 0
        %v2084 = vsel %vm956, %v2058, 0
        %v2087 = vsel %vm956, %v2061, 0
        %v2090 = vsel %vm956, %v2064, 0
        %v2093 = vsel %vm956, %v2067, 0
        %v2096 = vsel %vm956, %v2070, 0
        %v2099 = vsel %vm956, %v2073, 0
        %v2102 = vsel %vm956, %v2076, 0
        %v2105 = vsel %vm981, %v2079, 0
        %2107 = vmatpush.msra.mxu0 0.0
        %2108 = vmatpush.msra.mxu0 0.0
        %2109 = vmatpush.msra.mxu0 0.0
        %2110 = vmatpush.msra.mxu0 0.0
        %2111 = vmatpush.msra.mxu0 0.0
        %2112 = vmatpush.msra.mxu0 0.0
        %2113 = vmatpush.msra.mxu0 0.0
        %2114 = vmatpush.msra.mxu0 0.0
        %2115 = vmatpush.msra.mxu0 0.0
        %2116 = vmatpush.msra.mxu0 0.0
        %2117 = vmatpush.msra.mxu0 0.0
        %2118 = vmatpush.msra.mxu0 0.0
        %2119 = vmatpush.msra.mxu0 0.0
        %2120 = vmatpush.msra.mxu0 0.0
        %2121 = vmatpush.msra.mxu0 0.0
        %2122 = vmatpush.msra.mxu0 %v2105
        %2123 = vmatmul.f32.gmra.mxu0 %v2081
        %v2124 = vpop.f32.mrf.mxu0
        %v2125 = vadd.f32 0.0, %v2124
        %2126 = vmatmul.f32.gmra.mxu0 %v2084
        %v2127 = vpop.f32.mrf.mxu0
        %v2128 = vadd.f32 0.0, %v2127
        %2129 = vmatmul.f32.gmra.mxu0 %v2087
        %v2130 = vpop.f32.mrf.mxu0
        %v2131 = vadd.f32 0.0, %v2130
        %2132 = vmatmul.f32.gmra.mxu0 %v2090
        %v2133 = vpop.f32.mrf.mxu0
        %v2134 = vadd.f32 0.0, %v2133
        %2135 = vmatmul.f32.gmra.mxu0 %v2093
        %v2136 = vpop.f32.mrf.mxu0
        %v2137 = vadd.f32 0.0, %v2136
        %2138 = vmatmul.f32.gmra.mxu0 %v2096
        %v2139 = vpop.f32.mrf.mxu0
        %v2140 = vadd.f32 0.0, %v2139
        %2141 = vmatmul.f32.gmra.mxu0 %v2099
        %v2142 = vpop.f32.mrf.mxu0
        %v2143 = vadd.f32 0.0, %v2142
        %2144 = vmatmul.f32.gmra.mxu0 %v2102
        %v2145 = vpop.f32.mrf.mxu0
        %v2146 = vadd.f32 0.0, %v2145
        %2147 = vdwg.mxu0
        %v2148 = vadd.f32 %v1971, %v2125
        %v2149 = vadd.f32 %v1972, %v2128
        %v2150 = vadd.f32 %v1973, %v2131
        %v2151 = vadd.f32 %v1974, %v2134
        %v2152 = vadd.f32 %v1975, %v2137
        %v2153 = vadd.f32 %v1976, %v2140
        %v2154 = vadd.f32 %v1977, %v2143
        %v2155 = vadd.f32 %v1978, %v2146
        %s2156 = scalar_lea.vmem [#allocation2], 1024
        %v2157 = vld [vmem:[%s2156] sm:$0xff]
        %v2158 = vld [vmem:[%s2156 + $0x8] sm:$0xff]
        %v2159 = vld [vmem:[%s2156 + $0x10] sm:$0xff]
        %v2160 = vld [vmem:[%s2156 + $0x18] sm:$0xff]
        %v2161 = vld [vmem:[%s2156 + $0x20] sm:$0xff]
        %v2162 = vld [vmem:[%s2156 + $0x28] sm:$0xff]
        %v2163 = vld [vmem:[%s2156 + $0x30] sm:$0xff]
        %v2164 = vld [vmem:[%s2156 + $0x38] sm:$0xff]
        %v2165 = vld [vmem:[%s2156 + $0x40] sm:$0xff]
        %v2166 = vld [vmem:[%s2156 + $0x48] sm:$0xff]
        %v2167 = vld [vmem:[%s2156 + $0x50] sm:$0xff]
        %v2168 = vld [vmem:[%s2156 + $0x58] sm:$0xff]
        %v2169 = vld [vmem:[%s2156 + $0x60] sm:$0xff]
        %v2170 = vld [vmem:[%s2156 + $0x68] sm:$0xff]
        %v2171 = vld [vmem:[%s2156 + $0x70] sm:$0xff]
        %v2172 = vld [vmem:[%s2156 + $0x78] sm:$0xff]
        %2173 = vmatpush.msra.mxu0 %v739
        %2174 = vmatpush.msra.mxu0 %v738
        %2175 = vmatpush.msra.mxu0 %v737
        %2176 = vmatpush.msra.mxu0 %v736
        %2177 = vmatpush.msra.mxu0 %v735
        %2178 = vmatpush.msra.mxu0 %v734
        %2179 = vmatpush.msra.mxu0 %v733
        %2180 = vmatpush.msra.mxu0 %v732
        %2181 = vmatpush.msra.mxu0 %v731
        %2182 = vmatpush.msra.mxu0 %v730
        %2183 = vmatpush.msra.mxu0 %v729
        %2184 = vmatpush.msra.mxu0 %v728
        %2185 = vmatpush.msra.mxu0 %v727
        %2186 = vmatpush.msra.mxu0 %v726
        %2187 = vmatpush.msra.mxu0 %v725
        %2188 = vmatpush.msra.mxu0 %v724
        %2189 = vmatmul.f32.gmra.mxu0 %v2157
        %v2190 = vpop.f32.mrf.mxu0
        %v2191 = vadd.f32 0.0, %v2190
        %2192 = vmatmul.f32.gmra.mxu0 %v2159
        %v2193 = vpop.f32.mrf.mxu0
        %v2194 = vadd.f32 0.0, %v2193
        %2195 = vmatmul.f32.gmra.mxu0 %v2161
        %v2196 = vpop.f32.mrf.mxu0
        %v2197 = vadd.f32 0.0, %v2196
        %2198 = vmatmul.f32.gmra.mxu0 %v2163
        %v2199 = vpop.f32.mrf.mxu0
        %v2200 = vadd.f32 0.0, %v2199
        %2201 = vmatmul.f32.gmra.mxu0 %v2165
        %v2202 = vpop.f32.mrf.mxu0
        %v2203 = vadd.f32 0.0, %v2202
        %2204 = vmatmul.f32.gmra.mxu0 %v2167
        %v2205 = vpop.f32.mrf.mxu0
        %v2206 = vadd.f32 0.0, %v2205
        %2207 = vmatmul.f32.gmra.mxu0 %v2169
        %v2208 = vpop.f32.mrf.mxu0
        %v2209 = vadd.f32 0.0, %v2208
        %2210 = vmatmul.f32.gmra.mxu0 %v2171
        %v2211 = vpop.f32.mrf.mxu0
        %v2212 = vadd.f32 0.0, %v2211
        %2213 = vdwg.mxu0
        %2214 = vmatpush.msra.mxu0 %v755
        %2215 = vmatpush.msra.mxu0 %v754
        %2216 = vmatpush.msra.mxu0 %v753
        %2217 = vmatpush.msra.mxu0 %v752
        %2218 = vmatpush.msra.mxu0 %v751
        %2219 = vmatpush.msra.mxu0 %v750
        %2220 = vmatpush.msra.mxu0 %v749
        %2221 = vmatpush.msra.mxu0 %v748
        %2222 = vmatpush.msra.mxu0 %v747
        %2223 = vmatpush.msra.mxu0 %v746
        %2224 = vmatpush.msra.mxu0 %v745
        %2225 = vmatpush.msra.mxu0 %v744
        %2226 = vmatpush.msra.mxu0 %v743
        %2227 = vmatpush.msra.mxu0 %v742
        %2228 = vmatpush.msra.mxu0 %v741
        %2229 = vmatpush.msra.mxu0 %v740
        %2230 = vmatmul.f32.gmra.mxu0 %v2158
        %v2231 = vpop.f32.mrf.mxu0
        %v2232 = vadd.f32 %v2191, %v2231
        %2233 = vmatmul.f32.gmra.mxu0 %v2160
        %v2234 = vpop.f32.mrf.mxu0
        %v2235 = vadd.f32 %v2194, %v2234
        %2236 = vmatmul.f32.gmra.mxu0 %v2162
        %v2237 = vpop.f32.mrf.mxu0
        %v2238 = vadd.f32 %v2197, %v2237
        %2239 = vmatmul.f32.gmra.mxu0 %v2164
        %v2240 = vpop.f32.mrf.mxu0
        %v2241 = vadd.f32 %v2200, %v2240
        %2242 = vmatmul.f32.gmra.mxu0 %v2166
        %v2243 = vpop.f32.mrf.mxu0
        %v2244 = vadd.f32 %v2203, %v2243
        %2245 = vmatmul.f32.gmra.mxu0 %v2168
        %v2246 = vpop.f32.mrf.mxu0
        %v2247 = vadd.f32 %v2206, %v2246
        %2248 = vmatmul.f32.gmra.mxu0 %v2170
        %v2249 = vpop.f32.mrf.mxu0
        %v2250 = vadd.f32 %v2209, %v2249
        %2251 = vmatmul.f32.gmra.mxu0 %v2172
        %v2252 = vpop.f32.mrf.mxu0
        %v2253 = vadd.f32 %v2212, %v2252
        %2254 = vdwg.mxu0
        %s2255 = scalar_lea.vmem %s10, 32
        %v2256 = vld [vmem:[%s2255] sm:$0x7]
        %v2258 = vsel %vm956, %v2232, 0
        %v2261 = vsel %vm956, %v2235, 0
        %v2264 = vsel %vm956, %v2238, 0
        %v2267 = vsel %vm956, %v2241, 0
        %v2270 = vsel %vm956, %v2244, 0
        %v2273 = vsel %vm956, %v2247, 0
        %v2276 = vsel %vm956, %v2250, 0
        %v2279 = vsel %vm956, %v2253, 0
        %v2282 = vsel %vm981, %v2256, 0
        %2284 = vmatpush.msra.mxu0 0.0
        %2285 = vmatpush.msra.mxu0 0.0
        %2286 = vmatpush.msra.mxu0 0.0
        %2287 = vmatpush.msra.mxu0 0.0
        %2288 = vmatpush.msra.mxu0 0.0
        %2289 = vmatpush.msra.mxu0 0.0
        %2290 = vmatpush.msra.mxu0 0.0
        %2291 = vmatpush.msra.mxu0 0.0
        %2292 = vmatpush.msra.mxu0 0.0
        %2293 = vmatpush.msra.mxu0 0.0
        %2294 = vmatpush.msra.mxu0 0.0
        %2295 = vmatpush.msra.mxu0 0.0
        %2296 = vmatpush.msra.mxu0 0.0
        %2297 = vmatpush.msra.mxu0 0.0
        %2298 = vmatpush.msra.mxu0 0.0
        %2299 = vmatpush.msra.mxu0 %v2282
        %2300 = vmatmul.f32.gmra.mxu0 %v2258
        %v2301 = vpop.f32.mrf.mxu0
        %v2302 = vadd.f32 0.0, %v2301
        %2303 = vmatmul.f32.gmra.mxu0 %v2261
        %v2304 = vpop.f32.mrf.mxu0
        %v2305 = vadd.f32 0.0, %v2304
        %2306 = vmatmul.f32.gmra.mxu0 %v2264
        %v2307 = vpop.f32.mrf.mxu0
        %v2308 = vadd.f32 0.0, %v2307
        %2309 = vmatmul.f32.gmra.mxu0 %v2267
        %v2310 = vpop.f32.mrf.mxu0
        %v2311 = vadd.f32 0.0, %v2310
        %2312 = vmatmul.f32.gmra.mxu0 %v2270
        %v2313 = vpop.f32.mrf.mxu0
        %v2314 = vadd.f32 0.0, %v2313
        %2315 = vmatmul.f32.gmra.mxu0 %v2273
        %v2316 = vpop.f32.mrf.mxu0
        %v2317 = vadd.f32 0.0, %v2316
        %2318 = vmatmul.f32.gmra.mxu0 %v2276
        %v2319 = vpop.f32.mrf.mxu0
        %v2320 = vadd.f32 0.0, %v2319
        %2321 = vmatmul.f32.gmra.mxu0 %v2279
        %v2322 = vpop.f32.mrf.mxu0
        %v2323 = vadd.f32 0.0, %v2322
        %2324 = vdwg.mxu0
        %v2325 = vadd.f32 %v2148, %v2302
        %v2326 = vadd.f32 %v2149, %v2305
        %v2327 = vadd.f32 %v2150, %v2308
        %v2328 = vadd.f32 %v2151, %v2311
        %v2329 = vadd.f32 %v2152, %v2314
        %v2330 = vadd.f32 %v2153, %v2317
        %v2331 = vadd.f32 %v2154, %v2320
        %v2332 = vadd.f32 %v2155, %v2323
        %s2333 = scalar_lea.vmem %s10, 36
        %v2334 = vld [vmem:[%s2333] sm:$0x1]
        %v2335 = vperm.slane %v2334, 0
        %v2336 = vadd.f32 %v2325, %v2335
        %v2337 = vadd.f32 %v2326, %v2335
        %v2338 = vadd.f32 %v2327, %v2335
        %v2339 = vadd.f32 %v2328, %v2335
        %v2340 = vadd.f32 %v2329, %v2335
        %v2341 = vadd.f32 %v2330, %v2335
        %v2342 = vadd.f32 %v2331, %v2335
        %v2343 = vadd.f32 %v2332, %v2335
        %v2344 = vxor.u32 %v2336, 2147483648
        %v2345 = vxor.u32 %v2337, 2147483648
        %v2346 = vxor.u32 %v2338, 2147483648
        %v2347 = vxor.u32 %v2339, 2147483648
        %v2348 = vxor.u32 %v2340, 2147483648
        %v2349 = vxor.u32 %v2341, 2147483648
        %v2350 = vxor.u32 %v2342, 2147483648
        %v2351 = vxor.u32 %v2343, 2147483648
        %v2352 = vmul.f32 %v2344, 1.442695
        %v2353 = vpow.pop %v2352
        %v2354 = vmul.f32 %v2345, 1.442695
        %v2355 = vpow.pop %v2354
        %v2356 = vmul.f32 %v2346, 1.442695
        %v2357 = vpow.pop %v2356
        %v2358 = vmul.f32 %v2347, 1.442695
        %v2359 = vpow.pop %v2358
        %v2360 = vmul.f32 %v2348, 1.442695
        %v2361 = vpow.pop %v2360
        %v2362 = vmul.f32 %v2349, 1.442695
        %v2363 = vpow.pop %v2362
        %v2364 = vmul.f32 %v2350, 1.442695
        %v2365 = vpow.pop %v2364
        %v2366 = vmul.f32 %v2351, 1.442695
        %v2367 = vpow.pop %v2366
        %v2368 = vadd.f32 %v2353, 1.0
        %v2369 = vadd.f32 %v2355, 1.0
        %v2370 = vadd.f32 %v2357, 1.0
        %v2371 = vadd.f32 %v2359, 1.0
        %v2372 = vadd.f32 %v2361, 1.0
        %v2373 = vadd.f32 %v2363, 1.0
        %v2374 = vadd.f32 %v2365, 1.0
        %v2375 = vadd.f32 %v2367, 1.0
        %v2376 = vrcp.pop %v2368
        %v2377 = vmul.f32 %v2368, %v2376
        %v2378 = vsub.f32 1.0, %v2377
        %v2379 = vmul.f32 %v2376, %v2378
        %v2380 = vadd.f32 %v2376, %v2379
        %vm2381 = vweird.f32 %v2368
        %vm2382 = vweird.f32 %v2376
        %vm2383 = vmor %vm2381, %vm2382
        %v2384 = vsel %vm2383, %v2376, %v2380
        %v2385 = vand.u32 2147483647, %v2368
        %vm2386 = vcmp.eq.f32.partialorder %v2385, 8.507059e+37
        %v2387 = vand.u32 %v2368, 2147483648
        %v2388 = vor.u32 1.1754944e-38, %v2387
        %v2389 = vsel %vm2386, %v2388, %v2384
        %v2390 = vmul.f32 1.0, %v2389
        %v2391 = vrcp.pop %v2369
        %v2392 = vmul.f32 %v2369, %v2391
        %v2393 = vsub.f32 1.0, %v2392
        %v2394 = vmul.f32 %v2391, %v2393
        %v2395 = vadd.f32 %v2391, %v2394
        %vm2396 = vweird.f32 %v2369
        %vm2397 = vweird.f32 %v2391
        %vm2398 = vmor %vm2396, %vm2397
        %v2399 = vsel %vm2398, %v2391, %v2395
        %v2400 = vand.u32 2147483647, %v2369
        %vm2401 = vcmp.eq.f32.partialorder %v2400, 8.507059e+37
        %v2402 = vand.u32 %v2369, 2147483648
        %v2403 = vor.u32 1.1754944e-38, %v2402
        %v2404 = vsel %vm2401, %v2403, %v2399
        %v2405 = vmul.f32 1.0, %v2404
        %v2406 = vrcp.pop %v2370
        %v2407 = vmul.f32 %v2370, %v2406
        %v2408 = vsub.f32 1.0, %v2407
        %v2409 = vmul.f32 %v2406, %v2408
        %v2410 = vadd.f32 %v2406, %v2409
        %vm2411 = vweird.f32 %v2370
        %vm2412 = vweird.f32 %v2406
        %vm2413 = vmor %vm2411, %vm2412
        %v2414 = vsel %vm2413, %v2406, %v2410
        %v2415 = vand.u32 2147483647, %v2370
        %vm2416 = vcmp.eq.f32.partialorder %v2415, 8.507059e+37
        %v2417 = vand.u32 %v2370, 2147483648
        %v2418 = vor.u32 1.1754944e-38, %v2417
        %v2419 = vsel %vm2416, %v2418, %v2414
        %v2420 = vmul.f32 1.0, %v2419
        %v2421 = vrcp.pop %v2371
        %v2422 = vmul.f32 %v2371, %v2421
        %v2423 = vsub.f32 1.0, %v2422
        %v2424 = vmul.f32 %v2421, %v2423
        %v2425 = vadd.f32 %v2421, %v2424
        %vm2426 = vweird.f32 %v2371
        %vm2427 = vweird.f32 %v2421
        %vm2428 = vmor %vm2426, %vm2427
        %v2429 = vsel %vm2428, %v2421, %v2425
        %v2430 = vand.u32 2147483647, %v2371
        %vm2431 = vcmp.eq.f32.partialorder %v2430, 8.507059e+37
        %v2432 = vand.u32 %v2371, 2147483648
        %v2433 = vor.u32 1.1754944e-38, %v2432
        %v2434 = vsel %vm2431, %v2433, %v2429
        %v2435 = vmul.f32 1.0, %v2434
        %v2436 = vrcp.pop %v2372
        %v2437 = vmul.f32 %v2372, %v2436
        %v2438 = vsub.f32 1.0, %v2437
        %v2439 = vmul.f32 %v2436, %v2438
        %v2440 = vadd.f32 %v2436, %v2439
        %vm2441 = vweird.f32 %v2372
        %vm2442 = vweird.f32 %v2436
        %vm2443 = vmor %vm2441, %vm2442
        %v2444 = vsel %vm2443, %v2436, %v2440
        %v2445 = vand.u32 2147483647, %v2372
        %vm2446 = vcmp.eq.f32.partialorder %v2445, 8.507059e+37
        %v2447 = vand.u32 %v2372, 2147483648
        %v2448 = vor.u32 1.1754944e-38, %v2447
        %v2449 = vsel %vm2446, %v2448, %v2444
        %v2450 = vmul.f32 1.0, %v2449
        %v2451 = vrcp.pop %v2373
        %v2452 = vmul.f32 %v2373, %v2451
        %v2453 = vsub.f32 1.0, %v2452
        %v2454 = vmul.f32 %v2451, %v2453
        %v2455 = vadd.f32 %v2451, %v2454
        %vm2456 = vweird.f32 %v2373
        %vm2457 = vweird.f32 %v2451
        %vm2458 = vmor %vm2456, %vm2457
        %v2459 = vsel %vm2458, %v2451, %v2455
        %v2460 = vand.u32 2147483647, %v2373
        %vm2461 = vcmp.eq.f32.partialorder %v2460, 8.507059e+37
        %v2462 = vand.u32 %v2373, 2147483648
        %v2463 = vor.u32 1.1754944e-38, %v2462
        %v2464 = vsel %vm2461, %v2463, %v2459
        %v2465 = vmul.f32 1.0, %v2464
        %v2466 = vrcp.pop %v2374
        %v2467 = vmul.f32 %v2374, %v2466
        %v2468 = vsub.f32 1.0, %v2467
        %v2469 = vmul.f32 %v2466, %v2468
        %v2470 = vadd.f32 %v2466, %v2469
        %vm2471 = vweird.f32 %v2374
        %vm2472 = vweird.f32 %v2466
        %vm2473 = vmor %vm2471, %vm2472
        %v2474 = vsel %vm2473, %v2466, %v2470
        %v2475 = vand.u32 2147483647, %v2374
        %vm2476 = vcmp.eq.f32.partialorder %v2475, 8.507059e+37
        %v2477 = vand.u32 %v2374, 2147483648
        %v2478 = vor.u32 1.1754944e-38, %v2477
        %v2479 = vsel %vm2476, %v2478, %v2474
        %v2480 = vmul.f32 1.0, %v2479
        %v2481 = vrcp.pop %v2375
        %v2482 = vmul.f32 %v2375, %v2481
        %v2483 = vsub.f32 1.0, %v2482
        %v2484 = vmul.f32 %v2481, %v2483
        %v2485 = vadd.f32 %v2481, %v2484
        %vm2486 = vweird.f32 %v2375
        %vm2487 = vweird.f32 %v2481
        %vm2488 = vmor %vm2486, %vm2487
        %v2489 = vsel %vm2488, %v2481, %v2485
        %v2490 = vand.u32 2147483647, %v2375
        %vm2491 = vcmp.eq.f32.partialorder %v2490, 8.507059e+37
        %v2492 = vand.u32 %v2375, 2147483648
        %v2493 = vor.u32 1.1754944e-38, %v2492
        %v2494 = vsel %vm2491, %v2493, %v2489
        %v2495 = vmul.f32 1.0, %v2494
        %v2496 = vmul.f32 %v2336, %v2390
        %v2497 = vmul.f32 %v2337, %v2405
        %v2498 = vmul.f32 %v2338, %v2420
        %v2499 = vmul.f32 %v2339, %v2435
        %v2500 = vmul.f32 %v2340, %v2450
        %v2501 = vmul.f32 %v2341, %v2465
        %v2502 = vmul.f32 %v2342, %v2480
        %v2503 = vmul.f32 %v2343, %v2495
        %2504 = vmatpush.msra.mxu0 %v707
        %2505 = vmatpush.msra.mxu0 %v706
        %2506 = vmatpush.msra.mxu0 %v705
        %2507 = vmatpush.msra.mxu0 %v704
        %2508 = vmatpush.msra.mxu0 %v703
        %2509 = vmatpush.msra.mxu0 %v702
        %2510 = vmatpush.msra.mxu0 %v701
        %2511 = vmatpush.msra.mxu0 %v700
        %2512 = vmatpush.msra.mxu0 %v699
        %2513 = vmatpush.msra.mxu0 %v698
        %2514 = vmatpush.msra.mxu0 %v697
        %2515 = vmatpush.msra.mxu0 %v696
        %2516 = vmatpush.msra.mxu0 %v695
        %2517 = vmatpush.msra.mxu0 %v694
        %2518 = vmatpush.msra.mxu0 %v693
        %2519 = vmatpush.msra.mxu0 %v692
        %2520 = vmatmul.f32.gmra.mxu0 %v756
        %v2521 = vpop.f32.mrf.mxu0
        %v2522 = vadd.f32 0.0, %v2521
        %2523 = vmatmul.f32.gmra.mxu0 %v758
        %v2524 = vpop.f32.mrf.mxu0
        %v2525 = vadd.f32 0.0, %v2524
        %2526 = vmatmul.f32.gmra.mxu0 %v760
        %v2527 = vpop.f32.mrf.mxu0
        %v2528 = vadd.f32 0.0, %v2527
        %2529 = vmatmul.f32.gmra.mxu0 %v762
        %v2530 = vpop.f32.mrf.mxu0
        %v2531 = vadd.f32 0.0, %v2530
        %2532 = vmatmul.f32.gmra.mxu0 %v764
        %v2533 = vpop.f32.mrf.mxu0
        %v2534 = vadd.f32 0.0, %v2533
        %2535 = vmatmul.f32.gmra.mxu0 %v766
        %v2536 = vpop.f32.mrf.mxu0
        %v2537 = vadd.f32 0.0, %v2536
        %2538 = vmatmul.f32.gmra.mxu0 %v768
        %v2539 = vpop.f32.mrf.mxu0
        %v2540 = vadd.f32 0.0, %v2539
        %2541 = vmatmul.f32.gmra.mxu0 %v770
        %v2542 = vpop.f32.mrf.mxu0
        %v2543 = vadd.f32 0.0, %v2542
        %2544 = vdwg.mxu0
        %2545 = vmatpush.msra.mxu0 %v723
        %2546 = vmatpush.msra.mxu0 %v722
        %2547 = vmatpush.msra.mxu0 %v721
        %2548 = vmatpush.msra.mxu0 %v720
        %2549 = vmatpush.msra.mxu0 %v719
        %2550 = vmatpush.msra.mxu0 %v718
        %2551 = vmatpush.msra.mxu0 %v717
        %2552 = vmatpush.msra.mxu0 %v716
        %2553 = vmatpush.msra.mxu0 %v715
        %2554 = vmatpush.msra.mxu0 %v714
        %2555 = vmatpush.msra.mxu0 %v713
        %2556 = vmatpush.msra.mxu0 %v712
        %2557 = vmatpush.msra.mxu0 %v711
        %2558 = vmatpush.msra.mxu0 %v710
        %2559 = vmatpush.msra.mxu0 %v709
        %2560 = vmatpush.msra.mxu0 %v708
        %2561 = vmatmul.f32.gmra.mxu0 %v757
        %v2562 = vpop.f32.mrf.mxu0
        %v2563 = vadd.f32 %v2522, %v2562
        %2564 = vmatmul.f32.gmra.mxu0 %v759
        %v2565 = vpop.f32.mrf.mxu0
        %v2566 = vadd.f32 %v2525, %v2565
        %2567 = vmatmul.f32.gmra.mxu0 %v761
        %v2568 = vpop.f32.mrf.mxu0
        %v2569 = vadd.f32 %v2528, %v2568
        %2570 = vmatmul.f32.gmra.mxu0 %v763
        %v2571 = vpop.f32.mrf.mxu0
        %v2572 = vadd.f32 %v2531, %v2571
        %2573 = vmatmul.f32.gmra.mxu0 %v765
        %v2574 = vpop.f32.mrf.mxu0
        %v2575 = vadd.f32 %v2534, %v2574
        %2576 = vmatmul.f32.gmra.mxu0 %v767
        %v2577 = vpop.f32.mrf.mxu0
        %v2578 = vadd.f32 %v2537, %v2577
        %2579 = vmatmul.f32.gmra.mxu0 %v769
        %v2580 = vpop.f32.mrf.mxu0
        %v2581 = vadd.f32 %v2540, %v2580
        %2582 = vmatmul.f32.gmra.mxu0 %v771
        %v2583 = vpop.f32.mrf.mxu0
        %v2584 = vadd.f32 %v2543, %v2583
        %2585 = vdwg.mxu0
        %v2586 = vld [vmem:[%s6] sm:$0x7]
        %2587 = vmatpush.msra.mxu0 %v707
        %2588 = vmatpush.msra.mxu0 %v706
        %2589 = vmatpush.msra.mxu0 %v705
        %2590 = vmatpush.msra.mxu0 %v704
        %2591 = vmatpush.msra.mxu0 %v703
        %2592 = vmatpush.msra.mxu0 %v702
        %2593 = vmatpush.msra.mxu0 %v701
        %2594 = vmatpush.msra.mxu0 %v700
        %2595 = vmatpush.msra.mxu0 %v699
        %2596 = vmatpush.msra.mxu0 %v698
        %2597 = vmatpush.msra.mxu0 %v697
        %2598 = vmatpush.msra.mxu0 %v696
        %2599 = vmatpush.msra.mxu0 %v695
        %2600 = vmatpush.msra.mxu0 %v694
        %2601 = vmatpush.msra.mxu0 %v693
        %2602 = vmatpush.msra.mxu0 %v692
        %2603 = vmatmul.f32.gmra.mxu0 %v856
        %v2604 = vpop.f32.mrf.mxu0
        %v2605 = vadd.f32 0.0, %v2604
        %2606 = vmatmul.f32.gmra.mxu0 %v858
        %v2607 = vpop.f32.mrf.mxu0
        %v2608 = vadd.f32 0.0, %v2607
        %2609 = vmatmul.f32.gmra.mxu0 %v860
        %v2610 = vpop.f32.mrf.mxu0
        %v2611 = vadd.f32 0.0, %v2610
        %2612 = vmatmul.f32.gmra.mxu0 %v862
        %v2613 = vpop.f32.mrf.mxu0
        %v2614 = vadd.f32 0.0, %v2613
        %2615 = vmatmul.f32.gmra.mxu0 %v864
        %v2616 = vpop.f32.mrf.mxu0
        %v2617 = vadd.f32 0.0, %v2616
        %2618 = vmatmul.f32.gmra.mxu0 %v866
        %v2619 = vpop.f32.mrf.mxu0
        %v2620 = vadd.f32 0.0, %v2619
        %2621 = vmatmul.f32.gmra.mxu0 %v868
        %v2622 = vpop.f32.mrf.mxu0
        %v2623 = vadd.f32 0.0, %v2622
        %2624 = vmatmul.f32.gmra.mxu0 %v870
        %v2625 = vpop.f32.mrf.mxu0
        %v2626 = vadd.f32 0.0, %v2625
        %2627 = vdwg.mxu0
        %2628 = vmatpush.msra.mxu0 %v723
        %2629 = vmatpush.msra.mxu0 %v722
        %2630 = vmatpush.msra.mxu0 %v721
        %2631 = vmatpush.msra.mxu0 %v720
        %2632 = vmatpush.msra.mxu0 %v719
        %2633 = vmatpush.msra.mxu0 %v718
        %2634 = vmatpush.msra.mxu0 %v717
        %2635 = vmatpush.msra.mxu0 %v716
        %2636 = vmatpush.msra.mxu0 %v715
        %2637 = vmatpush.msra.mxu0 %v714
        %2638 = vmatpush.msra.mxu0 %v713
        %2639 = vmatpush.msra.mxu0 %v712
        %2640 = vmatpush.msra.mxu0 %v711
        %2641 = vmatpush.msra.mxu0 %v710
        %2642 = vmatpush.msra.mxu0 %v709
        %2643 = vmatpush.msra.mxu0 %v708
        %2644 = vmatmul.f32.gmra.mxu0 %v857
        %v2645 = vpop.f32.mrf.mxu0
        %v2646 = vadd.f32 %v2605, %v2645
        %2647 = vmatmul.f32.gmra.mxu0 %v859
        %v2648 = vpop.f32.mrf.mxu0
        %v2649 = vadd.f32 %v2608, %v2648
        %2650 = vmatmul.f32.gmra.mxu0 %v861
        %v2651 = vpop.f32.mrf.mxu0
        %v2652 = vadd.f32 %v2611, %v2651
        %2653 = vmatmul.f32.gmra.mxu0 %v863
        %v2654 = vpop.f32.mrf.mxu0
        %v2655 = vadd.f32 %v2614, %v2654
        %2656 = vmatmul.f32.gmra.mxu0 %v865
        %v2657 = vpop.f32.mrf.mxu0
        %v2658 = vadd.f32 %v2617, %v2657
        %2659 = vmatmul.f32.gmra.mxu0 %v867
        %v2660 = vpop.f32.mrf.mxu0
        %v2661 = vadd.f32 %v2620, %v2660
        %2662 = vmatmul.f32.gmra.mxu0 %v869
        %v2663 = vpop.f32.mrf.mxu0
        %v2664 = vadd.f32 %v2623, %v2663
        %2665 = vmatmul.f32.gmra.mxu0 %v871
        %v2666 = vpop.f32.mrf.mxu0
        %v2667 = vadd.f32 %v2626, %v2666
        %2668 = vdwg.mxu0
        %s2669 = scalar_lea.vmem %s6, 4
        %v2670 = vld [vmem:[%s2669] sm:$0x7]
        %v2672 = vsel %vm956, %v2646, 0
        %v2675 = vsel %vm956, %v2649, 0
        %v2678 = vsel %vm956, %v2652, 0
        %v2681 = vsel %vm956, %v2655, 0
        %v2684 = vsel %vm956, %v2658, 0
        %v2687 = vsel %vm956, %v2661, 0
        %v2690 = vsel %vm956, %v2664, 0
        %v2693 = vsel %vm956, %v2667, 0
        %v2696 = vsel %vm981, %v2670, 0
        %2698 = vmatpush.msra.mxu0 0.0
        %2699 = vmatpush.msra.mxu0 0.0
        %2700 = vmatpush.msra.mxu0 0.0
        %2701 = vmatpush.msra.mxu0 0.0
        %2702 = vmatpush.msra.mxu0 0.0
        %2703 = vmatpush.msra.mxu0 0.0
        %2704 = vmatpush.msra.mxu0 0.0
        %2705 = vmatpush.msra.mxu0 0.0
        %2706 = vmatpush.msra.mxu0 0.0
        %2707 = vmatpush.msra.mxu0 0.0
        %2708 = vmatpush.msra.mxu0 0.0
        %2709 = vmatpush.msra.mxu0 0.0
        %2710 = vmatpush.msra.mxu0 0.0
        %2711 = vmatpush.msra.mxu0 0.0
        %2712 = vmatpush.msra.mxu0 0.0
        %2713 = vmatpush.msra.mxu0 %v2696
        %2714 = vmatmul.f32.gmra.mxu0 %v2672
        %v2715 = vpop.f32.mrf.mxu0
        %v2716 = vadd.f32 0.0, %v2715
        %2717 = vmatmul.f32.gmra.mxu0 %v2675
        %v2718 = vpop.f32.mrf.mxu0
        %v2719 = vadd.f32 0.0, %v2718
        %2720 = vmatmul.f32.gmra.mxu0 %v2678
        %v2721 = vpop.f32.mrf.mxu0
        %v2722 = vadd.f32 0.0, %v2721
        %2723 = vmatmul.f32.gmra.mxu0 %v2681
        %v2724 = vpop.f32.mrf.mxu0
        %v2725 = vadd.f32 0.0, %v2724
        %2726 = vmatmul.f32.gmra.mxu0 %v2684
        %v2727 = vpop.f32.mrf.mxu0
        %v2728 = vadd.f32 0.0, %v2727
        %2729 = vmatmul.f32.gmra.mxu0 %v2687
        %v2730 = vpop.f32.mrf.mxu0
        %v2731 = vadd.f32 0.0, %v2730
        %2732 = vmatmul.f32.gmra.mxu0 %v2690
        %v2733 = vpop.f32.mrf.mxu0
        %v2734 = vadd.f32 0.0, %v2733
        %2735 = vmatmul.f32.gmra.mxu0 %v2693
        %v2736 = vpop.f32.mrf.mxu0
        %v2737 = vadd.f32 0.0, %v2736
        %2738 = vdwg.mxu0
        %v2740 = vsel %vm956, %v2563, 0
        %v2743 = vsel %vm956, %v2566, 0
        %v2746 = vsel %vm956, %v2569, 0
        %v2749 = vsel %vm956, %v2572, 0
        %v2752 = vsel %vm956, %v2575, 0
        %v2755 = vsel %vm956, %v2578, 0
        %v2758 = vsel %vm956, %v2581, 0
        %v2761 = vsel %vm956, %v2584, 0
        %v2764 = vsel %vm981, %v2586, 0
        %2766 = vmatpush.msra.mxu0 0.0
        %2767 = vmatpush.msra.mxu0 0.0
        %2768 = vmatpush.msra.mxu0 0.0
        %2769 = vmatpush.msra.mxu0 0.0
        %2770 = vmatpush.msra.mxu0 0.0
        %2771 = vmatpush.msra.mxu0 0.0
        %2772 = vmatpush.msra.mxu0 0.0
        %2773 = vmatpush.msra.mxu0 0.0
        %2774 = vmatpush.msra.mxu0 0.0
        %2775 = vmatpush.msra.mxu0 0.0
        %2776 = vmatpush.msra.mxu0 0.0
        %2777 = vmatpush.msra.mxu0 0.0
        %2778 = vmatpush.msra.mxu0 0.0
        %2779 = vmatpush.msra.mxu0 0.0
        %2780 = vmatpush.msra.mxu0 0.0
        %2781 = vmatpush.msra.mxu0 %v2764
        %2782 = vmatmul.f32.gmra.mxu0 %v2740
        %v2783 = vpop.f32.mrf.mxu0
        %v2784 = vadd.f32 %v2716, %v2783
        %2785 = vmatmul.f32.gmra.mxu0 %v2743
        %v2786 = vpop.f32.mrf.mxu0
        %v2787 = vadd.f32 %v2719, %v2786
        %2788 = vmatmul.f32.gmra.mxu0 %v2746
        %v2789 = vpop.f32.mrf.mxu0
        %v2790 = vadd.f32 %v2722, %v2789
        %2791 = vmatmul.f32.gmra.mxu0 %v2749
        %v2792 = vpop.f32.mrf.mxu0
        %v2793 = vadd.f32 %v2725, %v2792
        %2794 = vmatmul.f32.gmra.mxu0 %v2752
        %v2795 = vpop.f32.mrf.mxu0
        %v2796 = vadd.f32 %v2728, %v2795
        %2797 = vmatmul.f32.gmra.mxu0 %v2755
        %v2798 = vpop.f32.mrf.mxu0
        %v2799 = vadd.f32 %v2731, %v2798
        %2800 = vmatmul.f32.gmra.mxu0 %v2758
        %v2801 = vpop.f32.mrf.mxu0
        %v2802 = vadd.f32 %v2734, %v2801
        %2803 = vmatmul.f32.gmra.mxu0 %v2761
        %v2804 = vpop.f32.mrf.mxu0
        %v2805 = vadd.f32 %v2737, %v2804
        %2806 = vdwg.mxu0
        %2807 = vmatpush.msra.mxu0 %v707
        %2808 = vmatpush.msra.mxu0 %v706
        %2809 = vmatpush.msra.mxu0 %v705
        %2810 = vmatpush.msra.mxu0 %v704
        %2811 = vmatpush.msra.mxu0 %v703
        %2812 = vmatpush.msra.mxu0 %v702
        %2813 = vmatpush.msra.mxu0 %v701
        %2814 = vmatpush.msra.mxu0 %v700
        %2815 = vmatpush.msra.mxu0 %v699
        %2816 = vmatpush.msra.mxu0 %v698
        %2817 = vmatpush.msra.mxu0 %v697
        %2818 = vmatpush.msra.mxu0 %v696
        %2819 = vmatpush.msra.mxu0 %v695
        %2820 = vmatpush.msra.mxu0 %v694
        %2821 = vmatpush.msra.mxu0 %v693
        %2822 = vmatpush.msra.mxu0 %v692
        %2823 = vmatmul.f32.gmra.mxu0 %v1095
        %v2824 = vpop.f32.mrf.mxu0
        %v2825 = vadd.f32 0.0, %v2824
        %2826 = vmatmul.f32.gmra.mxu0 %v1097
        %v2827 = vpop.f32.mrf.mxu0
        %v2828 = vadd.f32 0.0, %v2827
        %2829 = vmatmul.f32.gmra.mxu0 %v1099
        %v2830 = vpop.f32.mrf.mxu0
        %v2831 = vadd.f32 0.0, %v2830
        %2832 = vmatmul.f32.gmra.mxu0 %v1101
        %v2833 = vpop.f32.mrf.mxu0
        %v2834 = vadd.f32 0.0, %v2833
        %2835 = vmatmul.f32.gmra.mxu0 %v1103
        %v2836 = vpop.f32.mrf.mxu0
        %v2837 = vadd.f32 0.0, %v2836
        %2838 = vmatmul.f32.gmra.mxu0 %v1105
        %v2839 = vpop.f32.mrf.mxu0
        %v2840 = vadd.f32 0.0, %v2839
        %2841 = vmatmul.f32.gmra.mxu0 %v1107
        %v2842 = vpop.f32.mrf.mxu0
        %v2843 = vadd.f32 0.0, %v2842
        %2844 = vmatmul.f32.gmra.mxu0 %v1109
        %v2845 = vpop.f32.mrf.mxu0
        %v2846 = vadd.f32 0.0, %v2845
        %2847 = vdwg.mxu0
        %2848 = vmatpush.msra.mxu0 %v723
        %2849 = vmatpush.msra.mxu0 %v722
        %2850 = vmatpush.msra.mxu0 %v721
        %2851 = vmatpush.msra.mxu0 %v720
        %2852 = vmatpush.msra.mxu0 %v719
        %2853 = vmatpush.msra.mxu0 %v718
        %2854 = vmatpush.msra.mxu0 %v717
        %2855 = vmatpush.msra.mxu0 %v716
        %2856 = vmatpush.msra.mxu0 %v715
        %2857 = vmatpush.msra.mxu0 %v714
        %2858 = vmatpush.msra.mxu0 %v713
        %2859 = vmatpush.msra.mxu0 %v712
        %2860 = vmatpush.msra.mxu0 %v711
        %2861 = vmatpush.msra.mxu0 %v710
        %2862 = vmatpush.msra.mxu0 %v709
        %2863 = vmatpush.msra.mxu0 %v708
        %2864 = vmatmul.f32.gmra.mxu0 %v1096
        %v2865 = vpop.f32.mrf.mxu0
        %v2866 = vadd.f32 %v2825, %v2865
        %2867 = vmatmul.f32.gmra.mxu0 %v1098
        %v2868 = vpop.f32.mrf.mxu0
        %v2869 = vadd.f32 %v2828, %v2868
        %2870 = vmatmul.f32.gmra.mxu0 %v1100
        %v2871 = vpop.f32.mrf.mxu0
        %v2872 = vadd.f32 %v2831, %v2871
        %2873 = vmatmul.f32.gmra.mxu0 %v1102
        %v2874 = vpop.f32.mrf.mxu0
        %v2875 = vadd.f32 %v2834, %v2874
        %2876 = vmatmul.f32.gmra.mxu0 %v1104
        %v2877 = vpop.f32.mrf.mxu0
        %v2878 = vadd.f32 %v2837, %v2877
        %2879 = vmatmul.f32.gmra.mxu0 %v1106
        %v2880 = vpop.f32.mrf.mxu0
        %v2881 = vadd.f32 %v2840, %v2880
        %2882 = vmatmul.f32.gmra.mxu0 %v1108
        %v2883 = vpop.f32.mrf.mxu0
        %v2884 = vadd.f32 %v2843, %v2883
        %2885 = vmatmul.f32.gmra.mxu0 %v1110
        %v2886 = vpop.f32.mrf.mxu0
        %v2887 = vadd.f32 %v2846, %v2886
        %2888 = vdwg.mxu0
        %s2889 = scalar_lea.vmem %s6, 8
        %v2890 = vld [vmem:[%s2889] sm:$0x7]
        %v2892 = vsel %vm956, %v2866, 0
        %v2895 = vsel %vm956, %v2869, 0
        %v2898 = vsel %vm956, %v2872, 0
        %v2901 = vsel %vm956, %v2875, 0
        %v2904 = vsel %vm956, %v2878, 0
        %v2907 = vsel %vm956, %v2881, 0
        %v2910 = vsel %vm956, %v2884, 0
        %v2913 = vsel %vm956, %v2887, 0
        %v2916 = vsel %vm981, %v2890, 0
        %2918 = vmatpush.msra.mxu0 0.0
        %2919 = vmatpush.msra.mxu0 0.0
        %2920 = vmatpush.msra.mxu0 0.0
        %2921 = vmatpush.msra.mxu0 0.0
        %2922 = vmatpush.msra.mxu0 0.0
        %2923 = vmatpush.msra.mxu0 0.0
        %2924 = vmatpush.msra.mxu0 0.0
        %2925 = vmatpush.msra.mxu0 0.0
        %2926 = vmatpush.msra.mxu0 0.0
        %2927 = vmatpush.msra.mxu0 0.0
        %2928 = vmatpush.msra.mxu0 0.0
        %2929 = vmatpush.msra.mxu0 0.0
        %2930 = vmatpush.msra.mxu0 0.0
        %2931 = vmatpush.msra.mxu0 0.0
        %2932 = vmatpush.msra.mxu0 0.0
        %2933 = vmatpush.msra.mxu0 %v2916
        %2934 = vmatmul.f32.gmra.mxu0 %v2892
        %v2935 = vpop.f32.mrf.mxu0
        %v2936 = vadd.f32 0.0, %v2935
        %2937 = vmatmul.f32.gmra.mxu0 %v2895
        %v2938 = vpop.f32.mrf.mxu0
        %v2939 = vadd.f32 0.0, %v2938
        %2940 = vmatmul.f32.gmra.mxu0 %v2898
        %v2941 = vpop.f32.mrf.mxu0
        %v2942 = vadd.f32 0.0, %v2941
        %2943 = vmatmul.f32.gmra.mxu0 %v2901
        %v2944 = vpop.f32.mrf.mxu0
        %v2945 = vadd.f32 0.0, %v2944
        %2946 = vmatmul.f32.gmra.mxu0 %v2904
        %v2947 = vpop.f32.mrf.mxu0
        %v2948 = vadd.f32 0.0, %v2947
        %2949 = vmatmul.f32.gmra.mxu0 %v2907
        %v2950 = vpop.f32.mrf.mxu0
        %v2951 = vadd.f32 0.0, %v2950
        %2952 = vmatmul.f32.gmra.mxu0 %v2910
        %v2953 = vpop.f32.mrf.mxu0
        %v2954 = vadd.f32 0.0, %v2953
        %2955 = vmatmul.f32.gmra.mxu0 %v2913
        %v2956 = vpop.f32.mrf.mxu0
        %v2957 = vadd.f32 0.0, %v2956
        %2958 = vdwg.mxu0
        %v2959 = vadd.f32 %v2784, %v2936
        %v2960 = vadd.f32 %v2787, %v2939
        %v2961 = vadd.f32 %v2790, %v2942
        %v2962 = vadd.f32 %v2793, %v2945
        %v2963 = vadd.f32 %v2796, %v2948
        %v2964 = vadd.f32 %v2799, %v2951
        %v2965 = vadd.f32 %v2802, %v2954
        %v2966 = vadd.f32 %v2805, %v2957
        %2967 = vmatpush.msra.mxu0 %v707
        %2968 = vmatpush.msra.mxu0 %v706
        %2969 = vmatpush.msra.mxu0 %v705
        %2970 = vmatpush.msra.mxu0 %v704
        %2971 = vmatpush.msra.mxu0 %v703
        %2972 = vmatpush.msra.mxu0 %v702
        %2973 = vmatpush.msra.mxu0 %v701
        %2974 = vmatpush.msra.mxu0 %v700
        %2975 = vmatpush.msra.mxu0 %v699
        %2976 = vmatpush.msra.mxu0 %v698
        %2977 = vmatpush.msra.mxu0 %v697
        %2978 = vmatpush.msra.mxu0 %v696
        %2979 = vmatpush.msra.mxu0 %v695
        %2980 = vmatpush.msra.mxu0 %v694
        %2981 = vmatpush.msra.mxu0 %v693
        %2982 = vmatpush.msra.mxu0 %v692
        %2983 = vmatmul.f32.gmra.mxu0 %v1272
        %v2984 = vpop.f32.mrf.mxu0
        %v2985 = vadd.f32 0.0, %v2984
        %2986 = vmatmul.f32.gmra.mxu0 %v1274
        %v2987 = vpop.f32.mrf.mxu0
        %v2988 = vadd.f32 0.0, %v2987
        %2989 = vmatmul.f32.gmra.mxu0 %v1276
        %v2990 = vpop.f32.mrf.mxu0
        %v2991 = vadd.f32 0.0, %v2990
        %2992 = vmatmul.f32.gmra.mxu0 %v1278
        %v2993 = vpop.f32.mrf.mxu0
        %v2994 = vadd.f32 0.0, %v2993
        %2995 = vmatmul.f32.gmra.mxu0 %v1280
        %v2996 = vpop.f32.mrf.mxu0
        %v2997 = vadd.f32 0.0, %v2996
        %2998 = vmatmul.f32.gmra.mxu0 %v1282
        %v2999 = vpop.f32.mrf.mxu0
        %v3000 = vadd.f32 0.0, %v2999
        %3001 = vmatmul.f32.gmra.mxu0 %v1284
        %v3002 = vpop.f32.mrf.mxu0
        %v3003 = vadd.f32 0.0, %v3002
        %3004 = vmatmul.f32.gmra.mxu0 %v1286
        %v3005 = vpop.f32.mrf.mxu0
        %v3006 = vadd.f32 0.0, %v3005
        %3007 = vdwg.mxu0
        %3008 = vmatpush.msra.mxu0 %v723
        %3009 = vmatpush.msra.mxu0 %v722
        %3010 = vmatpush.msra.mxu0 %v721
        %3011 = vmatpush.msra.mxu0 %v720
        %3012 = vmatpush.msra.mxu0 %v719
        %3013 = vmatpush.msra.mxu0 %v718
        %3014 = vmatpush.msra.mxu0 %v717
        %3015 = vmatpush.msra.mxu0 %v716
        %3016 = vmatpush.msra.mxu0 %v715
        %3017 = vmatpush.msra.mxu0 %v714
        %3018 = vmatpush.msra.mxu0 %v713
        %3019 = vmatpush.msra.mxu0 %v712
        %3020 = vmatpush.msra.mxu0 %v711
        %3021 = vmatpush.msra.mxu0 %v710
        %3022 = vmatpush.msra.mxu0 %v709
        %3023 = vmatpush.msra.mxu0 %v708
        %3024 = vmatmul.f32.gmra.mxu0 %v1273
        %v3025 = vpop.f32.mrf.mxu0
        %v3026 = vadd.f32 %v2985, %v3025
        %3027 = vmatmul.f32.gmra.mxu0 %v1275
        %v3028 = vpop.f32.mrf.mxu0
        %v3029 = vadd.f32 %v2988, %v3028
        %3030 = vmatmul.f32.gmra.mxu0 %v1277
        %v3031 = vpop.f32.mrf.mxu0
        %v3032 = vadd.f32 %v2991, %v3031
        %3033 = vmatmul.f32.gmra.mxu0 %v1279
        %v3034 = vpop.f32.mrf.mxu0
        %v3035 = vadd.f32 %v2994, %v3034
        %3036 = vmatmul.f32.gmra.mxu0 %v1281
        %v3037 = vpop.f32.mrf.mxu0
        %v3038 = vadd.f32 %v2997, %v3037
        %3039 = vmatmul.f32.gmra.mxu0 %v1283
        %v3040 = vpop.f32.mrf.mxu0
        %v3041 = vadd.f32 %v3000, %v3040
        %3042 = vmatmul.f32.gmra.mxu0 %v1285
        %v3043 = vpop.f32.mrf.mxu0
        %v3044 = vadd.f32 %v3003, %v3043
        %3045 = vmatmul.f32.gmra.mxu0 %v1287
        %v3046 = vpop.f32.mrf.mxu0
        %v3047 = vadd.f32 %v3006, %v3046
        %3048 = vdwg.mxu0
        %s3049 = scalar_lea.vmem %s6, 12
        %v3050 = vld [vmem:[%s3049] sm:$0x7]
        %v3052 = vsel %vm956, %v3026, 0
        %v3055 = vsel %vm956, %v3029, 0
        %v3058 = vsel %vm956, %v3032, 0
        %v3061 = vsel %vm956, %v3035, 0
        %v3064 = vsel %vm956, %v3038, 0
        %v3067 = vsel %vm956, %v3041, 0
        %v3070 = vsel %vm956, %v3044, 0
        %v3073 = vsel %vm956, %v3047, 0
        %v3076 = vsel %vm981, %v3050, 0
        %3078 = vmatpush.msra.mxu0 0.0
        %3079 = vmatpush.msra.mxu0 0.0
        %3080 = vmatpush.msra.mxu0 0.0
        %3081 = vmatpush.msra.mxu0 0.0
        %3082 = vmatpush.msra.mxu0 0.0
        %3083 = vmatpush.msra.mxu0 0.0
        %3084 = vmatpush.msra.mxu0 0.0
        %3085 = vmatpush.msra.mxu0 0.0
        %3086 = vmatpush.msra.mxu0 0.0
        %3087 = vmatpush.msra.mxu0 0.0
        %3088 = vmatpush.msra.mxu0 0.0
        %3089 = vmatpush.msra.mxu0 0.0
        %3090 = vmatpush.msra.mxu0 0.0
        %3091 = vmatpush.msra.mxu0 0.0
        %3092 = vmatpush.msra.mxu0 0.0
        %3093 = vmatpush.msra.mxu0 %v3076
        %3094 = vmatmul.f32.gmra.mxu0 %v3052
        %v3095 = vpop.f32.mrf.mxu0
        %v3096 = vadd.f32 0.0, %v3095
        %3097 = vmatmul.f32.gmra.mxu0 %v3055
        %v3098 = vpop.f32.mrf.mxu0
        %v3099 = vadd.f32 0.0, %v3098
        %3100 = vmatmul.f32.gmra.mxu0 %v3058
        %v3101 = vpop.f32.mrf.mxu0
        %v3102 = vadd.f32 0.0, %v3101
        %3103 = vmatmul.f32.gmra.mxu0 %v3061
        %v3104 = vpop.f32.mrf.mxu0
        %v3105 = vadd.f32 0.0, %v3104
        %3106 = vmatmul.f32.gmra.mxu0 %v3064
        %v3107 = vpop.f32.mrf.mxu0
        %v3108 = vadd.f32 0.0, %v3107
        %3109 = vmatmul.f32.gmra.mxu0 %v3067
        %v3110 = vpop.f32.mrf.mxu0
        %v3111 = vadd.f32 0.0, %v3110
        %3112 = vmatmul.f32.gmra.mxu0 %v3070
        %v3113 = vpop.f32.mrf.mxu0
        %v3114 = vadd.f32 0.0, %v3113
        %3115 = vmatmul.f32.gmra.mxu0 %v3073
        %v3116 = vpop.f32.mrf.mxu0
        %v3117 = vadd.f32 0.0, %v3116
        %3118 = vdwg.mxu0
        %v3119 = vadd.f32 %v2959, %v3096
        %v3120 = vadd.f32 %v2960, %v3099
        %v3121 = vadd.f32 %v2961, %v3102
        %v3122 = vadd.f32 %v2962, %v3105
        %v3123 = vadd.f32 %v2963, %v3108
        %v3124 = vadd.f32 %v2964, %v3111
        %v3125 = vadd.f32 %v2965, %v3114
        %v3126 = vadd.f32 %v2966, %v3117
        %3127 = vmatpush.msra.mxu0 %v707
        %3128 = vmatpush.msra.mxu0 %v706
        %3129 = vmatpush.msra.mxu0 %v705
        %3130 = vmatpush.msra.mxu0 %v704
        %3131 = vmatpush.msra.mxu0 %v703
        %3132 = vmatpush.msra.mxu0 %v702
        %3133 = vmatpush.msra.mxu0 %v701
        %3134 = vmatpush.msra.mxu0 %v700
        %3135 = vmatpush.msra.mxu0 %v699
        %3136 = vmatpush.msra.mxu0 %v698
        %3137 = vmatpush.msra.mxu0 %v697
        %3138 = vmatpush.msra.mxu0 %v696
        %3139 = vmatpush.msra.mxu0 %v695
        %3140 = vmatpush.msra.mxu0 %v694
        %3141 = vmatpush.msra.mxu0 %v693
        %3142 = vmatpush.msra.mxu0 %v692
        %3143 = vmatmul.f32.gmra.mxu0 %v1449
        %v3144 = vpop.f32.mrf.mxu0
        %v3145 = vadd.f32 0.0, %v3144
        %3146 = vmatmul.f32.gmra.mxu0 %v1451
        %v3147 = vpop.f32.mrf.mxu0
        %v3148 = vadd.f32 0.0, %v3147
        %3149 = vmatmul.f32.gmra.mxu0 %v1453
        %v3150 = vpop.f32.mrf.mxu0
        %v3151 = vadd.f32 0.0, %v3150
        %3152 = vmatmul.f32.gmra.mxu0 %v1455
        %v3153 = vpop.f32.mrf.mxu0
        %v3154 = vadd.f32 0.0, %v3153
        %3155 = vmatmul.f32.gmra.mxu0 %v1457
        %v3156 = vpop.f32.mrf.mxu0
        %v3157 = vadd.f32 0.0, %v3156
        %3158 = vmatmul.f32.gmra.mxu0 %v1459
        %v3159 = vpop.f32.mrf.mxu0
        %v3160 = vadd.f32 0.0, %v3159
        %3161 = vmatmul.f32.gmra.mxu0 %v1461
        %v3162 = vpop.f32.mrf.mxu0
        %v3163 = vadd.f32 0.0, %v3162
        %3164 = vmatmul.f32.gmra.mxu0 %v1463
        %v3165 = vpop.f32.mrf.mxu0
        %v3166 = vadd.f32 0.0, %v3165
        %3167 = vdwg.mxu0
        %3168 = vmatpush.msra.mxu0 %v723
        %3169 = vmatpush.msra.mxu0 %v722
        %3170 = vmatpush.msra.mxu0 %v721
        %3171 = vmatpush.msra.mxu0 %v720
        %3172 = vmatpush.msra.mxu0 %v719
        %3173 = vmatpush.msra.mxu0 %v718
        %3174 = vmatpush.msra.mxu0 %v717
        %3175 = vmatpush.msra.mxu0 %v716
        %3176 = vmatpush.msra.mxu0 %v715
        %3177 = vmatpush.msra.mxu0 %v714
        %3178 = vmatpush.msra.mxu0 %v713
        %3179 = vmatpush.msra.mxu0 %v712
        %3180 = vmatpush.msra.mxu0 %v711
        %3181 = vmatpush.msra.mxu0 %v710
        %3182 = vmatpush.msra.mxu0 %v709
        %3183 = vmatpush.msra.mxu0 %v708
        %3184 = vmatmul.f32.gmra.mxu0 %v1450
        %v3185 = vpop.f32.mrf.mxu0
        %v3186 = vadd.f32 %v3145, %v3185
        %3187 = vmatmul.f32.gmra.mxu0 %v1452
        %v3188 = vpop.f32.mrf.mxu0
        %v3189 = vadd.f32 %v3148, %v3188
        %3190 = vmatmul.f32.gmra.mxu0 %v1454
        %v3191 = vpop.f32.mrf.mxu0
        %v3192 = vadd.f32 %v3151, %v3191
        %3193 = vmatmul.f32.gmra.mxu0 %v1456
        %v3194 = vpop.f32.mrf.mxu0
        %v3195 = vadd.f32 %v3154, %v3194
        %3196 = vmatmul.f32.gmra.mxu0 %v1458
        %v3197 = vpop.f32.mrf.mxu0
        %v3198 = vadd.f32 %v3157, %v3197
        %3199 = vmatmul.f32.gmra.mxu0 %v1460
        %v3200 = vpop.f32.mrf.mxu0
        %v3201 = vadd.f32 %v3160, %v3200
        %3202 = vmatmul.f32.gmra.mxu0 %v1462
        %v3203 = vpop.f32.mrf.mxu0
        %v3204 = vadd.f32 %v3163, %v3203
        %3205 = vmatmul.f32.gmra.mxu0 %v1464
        %v3206 = vpop.f32.mrf.mxu0
        %v3207 = vadd.f32 %v3166, %v3206
        %3208 = vdwg.mxu0
        %s3209 = scalar_lea.vmem %s6, 16
        %v3210 = vld [vmem:[%s3209] sm:$0x7]
        %v3212 = vsel %vm956, %v3186, 0
        %v3215 = vsel %vm956, %v3189, 0
        %v3218 = vsel %vm956, %v3192, 0
        %v3221 = vsel %vm956, %v3195, 0
        %v3224 = vsel %vm956, %v3198, 0
        %v3227 = vsel %vm956, %v3201, 0
        %v3230 = vsel %vm956, %v3204, 0
        %v3233 = vsel %vm956, %v3207, 0
        %v3236 = vsel %vm981, %v3210, 0
        %3238 = vmatpush.msra.mxu0 0.0
        %3239 = vmatpush.msra.mxu0 0.0
        %3240 = vmatpush.msra.mxu0 0.0
        %3241 = vmatpush.msra.mxu0 0.0
        %3242 = vmatpush.msra.mxu0 0.0
        %3243 = vmatpush.msra.mxu0 0.0
        %3244 = vmatpush.msra.mxu0 0.0
        %3245 = vmatpush.msra.mxu0 0.0
        %3246 = vmatpush.msra.mxu0 0.0
        %3247 = vmatpush.msra.mxu0 0.0
        %3248 = vmatpush.msra.mxu0 0.0
        %3249 = vmatpush.msra.mxu0 0.0
        %3250 = vmatpush.msra.mxu0 0.0
        %3251 = vmatpush.msra.mxu0 0.0
        %3252 = vmatpush.msra.mxu0 0.0
        %3253 = vmatpush.msra.mxu0 %v3236
        %3254 = vmatmul.f32.gmra.mxu0 %v3212
        %v3255 = vpop.f32.mrf.mxu0
        %v3256 = vadd.f32 0.0, %v3255
        %3257 = vmatmul.f32.gmra.mxu0 %v3215
        %v3258 = vpop.f32.mrf.mxu0
        %v3259 = vadd.f32 0.0, %v3258
        %3260 = vmatmul.f32.gmra.mxu0 %v3218
        %v3261 = vpop.f32.mrf.mxu0
        %v3262 = vadd.f32 0.0, %v3261
        %3263 = vmatmul.f32.gmra.mxu0 %v3221
        %v3264 = vpop.f32.mrf.mxu0
        %v3265 = vadd.f32 0.0, %v3264
        %3266 = vmatmul.f32.gmra.mxu0 %v3224
        %v3267 = vpop.f32.mrf.mxu0
        %v3268 = vadd.f32 0.0, %v3267
        %3269 = vmatmul.f32.gmra.mxu0 %v3227
        %v3270 = vpop.f32.mrf.mxu0
        %v3271 = vadd.f32 0.0, %v3270
        %3272 = vmatmul.f32.gmra.mxu0 %v3230
        %v3273 = vpop.f32.mrf.mxu0
        %v3274 = vadd.f32 0.0, %v3273
        %3275 = vmatmul.f32.gmra.mxu0 %v3233
        %v3276 = vpop.f32.mrf.mxu0
        %v3277 = vadd.f32 0.0, %v3276
        %3278 = vdwg.mxu0
        %v3279 = vadd.f32 %v3119, %v3256
        %v3280 = vadd.f32 %v3120, %v3259
        %v3281 = vadd.f32 %v3121, %v3262
        %v3282 = vadd.f32 %v3122, %v3265
        %v3283 = vadd.f32 %v3123, %v3268
        %v3284 = vadd.f32 %v3124, %v3271
        %v3285 = vadd.f32 %v3125, %v3274
        %v3286 = vadd.f32 %v3126, %v3277
        %3287 = vmatpush.msra.mxu0 %v707
        %3288 = vmatpush.msra.mxu0 %v706
        %3289 = vmatpush.msra.mxu0 %v705
        %3290 = vmatpush.msra.mxu0 %v704
        %3291 = vmatpush.msra.mxu0 %v703
        %3292 = vmatpush.msra.mxu0 %v702
        %3293 = vmatpush.msra.mxu0 %v701
        %3294 = vmatpush.msra.mxu0 %v700
        %3295 = vmatpush.msra.mxu0 %v699
        %3296 = vmatpush.msra.mxu0 %v698
        %3297 = vmatpush.msra.mxu0 %v697
        %3298 = vmatpush.msra.mxu0 %v696
        %3299 = vmatpush.msra.mxu0 %v695
        %3300 = vmatpush.msra.mxu0 %v694
        %3301 = vmatpush.msra.mxu0 %v693
        %3302 = vmatpush.msra.mxu0 %v692
        %3303 = vmatmul.f32.gmra.mxu0 %v1626
        %v3304 = vpop.f32.mrf.mxu0
        %v3305 = vadd.f32 0.0, %v3304
        %3306 = vmatmul.f32.gmra.mxu0 %v1628
        %v3307 = vpop.f32.mrf.mxu0
        %v3308 = vadd.f32 0.0, %v3307
        %3309 = vmatmul.f32.gmra.mxu0 %v1630
        %v3310 = vpop.f32.mrf.mxu0
        %v3311 = vadd.f32 0.0, %v3310
        %3312 = vmatmul.f32.gmra.mxu0 %v1632
        %v3313 = vpop.f32.mrf.mxu0
        %v3314 = vadd.f32 0.0, %v3313
        %3315 = vmatmul.f32.gmra.mxu0 %v1634
        %v3316 = vpop.f32.mrf.mxu0
        %v3317 = vadd.f32 0.0, %v3316
        %3318 = vmatmul.f32.gmra.mxu0 %v1636
        %v3319 = vpop.f32.mrf.mxu0
        %v3320 = vadd.f32 0.0, %v3319
        %3321 = vmatmul.f32.gmra.mxu0 %v1638
        %v3322 = vpop.f32.mrf.mxu0
        %v3323 = vadd.f32 0.0, %v3322
        %3324 = vmatmul.f32.gmra.mxu0 %v1640
        %v3325 = vpop.f32.mrf.mxu0
        %v3326 = vadd.f32 0.0, %v3325
        %3327 = vdwg.mxu0
        %3328 = vmatpush.msra.mxu0 %v723
        %3329 = vmatpush.msra.mxu0 %v722
        %3330 = vmatpush.msra.mxu0 %v721
        %3331 = vmatpush.msra.mxu0 %v720
        %3332 = vmatpush.msra.mxu0 %v719
        %3333 = vmatpush.msra.mxu0 %v718
        %3334 = vmatpush.msra.mxu0 %v717
        %3335 = vmatpush.msra.mxu0 %v716
        %3336 = vmatpush.msra.mxu0 %v715
        %3337 = vmatpush.msra.mxu0 %v714
        %3338 = vmatpush.msra.mxu0 %v713
        %3339 = vmatpush.msra.mxu0 %v712
        %3340 = vmatpush.msra.mxu0 %v711
        %3341 = vmatpush.msra.mxu0 %v710
        %3342 = vmatpush.msra.mxu0 %v709
        %3343 = vmatpush.msra.mxu0 %v708
        %3344 = vmatmul.f32.gmra.mxu0 %v1627
        %v3345 = vpop.f32.mrf.mxu0
        %v3346 = vadd.f32 %v3305, %v3345
        %3347 = vmatmul.f32.gmra.mxu0 %v1629
        %v3348 = vpop.f32.mrf.mxu0
        %v3349 = vadd.f32 %v3308, %v3348
        %3350 = vmatmul.f32.gmra.mxu0 %v1631
        %v3351 = vpop.f32.mrf.mxu0
        %v3352 = vadd.f32 %v3311, %v3351
        %3353 = vmatmul.f32.gmra.mxu0 %v1633
        %v3354 = vpop.f32.mrf.mxu0
        %v3355 = vadd.f32 %v3314, %v3354
        %3356 = vmatmul.f32.gmra.mxu0 %v1635
        %v3357 = vpop.f32.mrf.mxu0
        %v3358 = vadd.f32 %v3317, %v3357
        %3359 = vmatmul.f32.gmra.mxu0 %v1637
        %v3360 = vpop.f32.mrf.mxu0
        %v3361 = vadd.f32 %v3320, %v3360
        %3362 = vmatmul.f32.gmra.mxu0 %v1639
        %v3363 = vpop.f32.mrf.mxu0
        %v3364 = vadd.f32 %v3323, %v3363
        %3365 = vmatmul.f32.gmra.mxu0 %v1641
        %v3366 = vpop.f32.mrf.mxu0
        %v3367 = vadd.f32 %v3326, %v3366
        %3368 = vdwg.mxu0
        %s3369 = scalar_lea.vmem %s6, 20
        %v3370 = vld [vmem:[%s3369] sm:$0x7]
        %v3372 = vsel %vm956, %v3346, 0
        %v3375 = vsel %vm956, %v3349, 0
        %v3378 = vsel %vm956, %v3352, 0
        %v3381 = vsel %vm956, %v3355, 0
        %v3384 = vsel %vm956, %v3358, 0
        %v3387 = vsel %vm956, %v3361, 0
        %v3390 = vsel %vm956, %v3364, 0
        %v3393 = vsel %vm956, %v3367, 0
        %v3396 = vsel %vm981, %v3370, 0
        %3398 = vmatpush.msra.mxu0 0.0
        %3399 = vmatpush.msra.mxu0 0.0
        %3400 = vmatpush.msra.mxu0 0.0
        %3401 = vmatpush.msra.mxu0 0.0
        %3402 = vmatpush.msra.mxu0 0.0
        %3403 = vmatpush.msra.mxu0 0.0
        %3404 = vmatpush.msra.mxu0 0.0
        %3405 = vmatpush.msra.mxu0 0.0
        %3406 = vmatpush.msra.mxu0 0.0
        %3407 = vmatpush.msra.mxu0 0.0
        %3408 = vmatpush.msra.mxu0 0.0
        %3409 = vmatpush.msra.mxu0 0.0
        %3410 = vmatpush.msra.mxu0 0.0
        %3411 = vmatpush.msra.mxu0 0.0
        %3412 = vmatpush.msra.mxu0 0.0
        %3413 = vmatpush.msra.mxu0 %v3396
        %3414 = vmatmul.f32.gmra.mxu0 %v3372
        %v3415 = vpop.f32.mrf.mxu0
        %v3416 = vadd.f32 0.0, %v3415
        %3417 = vmatmul.f32.gmra.mxu0 %v3375
        %v3418 = vpop.f32.mrf.mxu0
        %v3419 = vadd.f32 0.0, %v3418
        %3420 = vmatmul.f32.gmra.mxu0 %v3378
        %v3421 = vpop.f32.mrf.mxu0
        %v3422 = vadd.f32 0.0, %v3421
        %3423 = vmatmul.f32.gmra.mxu0 %v3381
        %v3424 = vpop.f32.mrf.mxu0
        %v3425 = vadd.f32 0.0, %v3424
        %3426 = vmatmul.f32.gmra.mxu0 %v3384
        %v3427 = vpop.f32.mrf.mxu0
        %v3428 = vadd.f32 0.0, %v3427
        %3429 = vmatmul.f32.gmra.mxu0 %v3387
        %v3430 = vpop.f32.mrf.mxu0
        %v3431 = vadd.f32 0.0, %v3430
        %3432 = vmatmul.f32.gmra.mxu0 %v3390
        %v3433 = vpop.f32.mrf.mxu0
        %v3434 = vadd.f32 0.0, %v3433
        %3435 = vmatmul.f32.gmra.mxu0 %v3393
        %v3436 = vpop.f32.mrf.mxu0
        %v3437 = vadd.f32 0.0, %v3436
        %3438 = vdwg.mxu0
        %v3439 = vadd.f32 %v3279, %v3416
        %v3440 = vadd.f32 %v3280, %v3419
        %v3441 = vadd.f32 %v3281, %v3422
        %v3442 = vadd.f32 %v3282, %v3425
        %v3443 = vadd.f32 %v3283, %v3428
        %v3444 = vadd.f32 %v3284, %v3431
        %v3445 = vadd.f32 %v3285, %v3434
        %v3446 = vadd.f32 %v3286, %v3437
        %3447 = vmatpush.msra.mxu0 %v707
        %3448 = vmatpush.msra.mxu0 %v706
        %3449 = vmatpush.msra.mxu0 %v705
        %3450 = vmatpush.msra.mxu0 %v704
        %3451 = vmatpush.msra.mxu0 %v703
        %3452 = vmatpush.msra.mxu0 %v702
        %3453 = vmatpush.msra.mxu0 %v701
        %3454 = vmatpush.msra.mxu0 %v700
        %3455 = vmatpush.msra.mxu0 %v699
        %3456 = vmatpush.msra.mxu0 %v698
        %3457 = vmatpush.msra.mxu0 %v697
        %3458 = vmatpush.msra.mxu0 %v696
        %3459 = vmatpush.msra.mxu0 %v695
        %3460 = vmatpush.msra.mxu0 %v694
        %3461 = vmatpush.msra.mxu0 %v693
        %3462 = vmatpush.msra.mxu0 %v692
        %3463 = vmatmul.f32.gmra.mxu0 %v1803
        %v3464 = vpop.f32.mrf.mxu0
        %v3465 = vadd.f32 0.0, %v3464
        %3466 = vmatmul.f32.gmra.mxu0 %v1805
        %v3467 = vpop.f32.mrf.mxu0
        %v3468 = vadd.f32 0.0, %v3467
        %3469 = vmatmul.f32.gmra.mxu0 %v1807
        %v3470 = vpop.f32.mrf.mxu0
        %v3471 = vadd.f32 0.0, %v3470
        %3472 = vmatmul.f32.gmra.mxu0 %v1809
        %v3473 = vpop.f32.mrf.mxu0
        %v3474 = vadd.f32 0.0, %v3473
        %3475 = vmatmul.f32.gmra.mxu0 %v1811
        %v3476 = vpop.f32.mrf.mxu0
        %v3477 = vadd.f32 0.0, %v3476
        %3478 = vmatmul.f32.gmra.mxu0 %v1813
        %v3479 = vpop.f32.mrf.mxu0
        %v3480 = vadd.f32 0.0, %v3479
        %3481 = vmatmul.f32.gmra.mxu0 %v1815
        %v3482 = vpop.f32.mrf.mxu0
        %v3483 = vadd.f32 0.0, %v3482
        %3484 = vmatmul.f32.gmra.mxu0 %v1817
        %v3485 = vpop.f32.mrf.mxu0
        %v3486 = vadd.f32 0.0, %v3485
        %3487 = vdwg.mxu0
        %3488 = vmatpush.msra.mxu0 %v723
        %3489 = vmatpush.msra.mxu0 %v722
        %3490 = vmatpush.msra.mxu0 %v721
        %3491 = vmatpush.msra.mxu0 %v720
        %3492 = vmatpush.msra.mxu0 %v719
        %3493 = vmatpush.msra.mxu0 %v718
        %3494 = vmatpush.msra.mxu0 %v717
        %3495 = vmatpush.msra.mxu0 %v716
        %3496 = vmatpush.msra.mxu0 %v715
        %3497 = vmatpush.msra.mxu0 %v714
        %3498 = vmatpush.msra.mxu0 %v713
        %3499 = vmatpush.msra.mxu0 %v712
        %3500 = vmatpush.msra.mxu0 %v711
        %3501 = vmatpush.msra.mxu0 %v710
        %3502 = vmatpush.msra.mxu0 %v709
        %3503 = vmatpush.msra.mxu0 %v708
        %3504 = vmatmul.f32.gmra.mxu0 %v1804
        %v3505 = vpop.f32.mrf.mxu0
        %v3506 = vadd.f32 %v3465, %v3505
        %3507 = vmatmul.f32.gmra.mxu0 %v1806
        %v3508 = vpop.f32.mrf.mxu0
        %v3509 = vadd.f32 %v3468, %v3508
        %3510 = vmatmul.f32.gmra.mxu0 %v1808
        %v3511 = vpop.f32.mrf.mxu0
        %v3512 = vadd.f32 %v3471, %v3511
        %3513 = vmatmul.f32.gmra.mxu0 %v1810
        %v3514 = vpop.f32.mrf.mxu0
        %v3515 = vadd.f32 %v3474, %v3514
        %3516 = vmatmul.f32.gmra.mxu0 %v1812
        %v3517 = vpop.f32.mrf.mxu0
        %v3518 = vadd.f32 %v3477, %v3517
        %3519 = vmatmul.f32.gmra.mxu0 %v1814
        %v3520 = vpop.f32.mrf.mxu0
        %v3521 = vadd.f32 %v3480, %v3520
        %3522 = vmatmul.f32.gmra.mxu0 %v1816
        %v3523 = vpop.f32.mrf.mxu0
        %v3524 = vadd.f32 %v3483, %v3523
        %3525 = vmatmul.f32.gmra.mxu0 %v1818
        %v3526 = vpop.f32.mrf.mxu0
        %v3527 = vadd.f32 %v3486, %v3526
        %3528 = vdwg.mxu0
        %s3529 = scalar_lea.vmem %s6, 24
        %v3530 = vld [vmem:[%s3529] sm:$0x7]
        %v3532 = vsel %vm956, %v3506, 0
        %v3535 = vsel %vm956, %v3509, 0
        %v3538 = vsel %vm956, %v3512, 0
        %v3541 = vsel %vm956, %v3515, 0
        %v3544 = vsel %vm956, %v3518, 0
        %v3547 = vsel %vm956, %v3521, 0
        %v3550 = vsel %vm956, %v3524, 0
        %v3553 = vsel %vm956, %v3527, 0
        %v3556 = vsel %vm981, %v3530, 0
        %3558 = vmatpush.msra.mxu0 0.0
        %3559 = vmatpush.msra.mxu0 0.0
        %3560 = vmatpush.msra.mxu0 0.0
        %3561 = vmatpush.msra.mxu0 0.0
        %3562 = vmatpush.msra.mxu0 0.0
        %3563 = vmatpush.msra.mxu0 0.0
        %3564 = vmatpush.msra.mxu0 0.0
        %3565 = vmatpush.msra.mxu0 0.0
        %3566 = vmatpush.msra.mxu0 0.0
        %3567 = vmatpush.msra.mxu0 0.0
        %3568 = vmatpush.msra.mxu0 0.0
        %3569 = vmatpush.msra.mxu0 0.0
        %3570 = vmatpush.msra.mxu0 0.0
        %3571 = vmatpush.msra.mxu0 0.0
        %3572 = vmatpush.msra.mxu0 0.0
        %3573 = vmatpush.msra.mxu0 %v3556
        %3574 = vmatmul.f32.gmra.mxu0 %v3532
        %v3575 = vpop.f32.mrf.mxu0
        %v3576 = vadd.f32 0.0, %v3575
        %3577 = vmatmul.f32.gmra.mxu0 %v3535
        %v3578 = vpop.f32.mrf.mxu0
        %v3579 = vadd.f32 0.0, %v3578
        %3580 = vmatmul.f32.gmra.mxu0 %v3538
        %v3581 = vpop.f32.mrf.mxu0
        %v3582 = vadd.f32 0.0, %v3581
        %3583 = vmatmul.f32.gmra.mxu0 %v3541
        %v3584 = vpop.f32.mrf.mxu0
        %v3585 = vadd.f32 0.0, %v3584
        %3586 = vmatmul.f32.gmra.mxu0 %v3544
        %v3587 = vpop.f32.mrf.mxu0
        %v3588 = vadd.f32 0.0, %v3587
        %3589 = vmatmul.f32.gmra.mxu0 %v3547
        %v3590 = vpop.f32.mrf.mxu0
        %v3591 = vadd.f32 0.0, %v3590
        %3592 = vmatmul.f32.gmra.mxu0 %v3550
        %v3593 = vpop.f32.mrf.mxu0
        %v3594 = vadd.f32 0.0, %v3593
        %3595 = vmatmul.f32.gmra.mxu0 %v3553
        %v3596 = vpop.f32.mrf.mxu0
        %v3597 = vadd.f32 0.0, %v3596
        %3598 = vdwg.mxu0
        %v3599 = vadd.f32 %v3439, %v3576
        %v3600 = vadd.f32 %v3440, %v3579
        %v3601 = vadd.f32 %v3441, %v3582
        %v3602 = vadd.f32 %v3442, %v3585
        %v3603 = vadd.f32 %v3443, %v3588
        %v3604 = vadd.f32 %v3444, %v3591
        %v3605 = vadd.f32 %v3445, %v3594
        %v3606 = vadd.f32 %v3446, %v3597
        %3607 = vmatpush.msra.mxu0 %v707
        %3608 = vmatpush.msra.mxu0 %v706
        %3609 = vmatpush.msra.mxu0 %v705
        %3610 = vmatpush.msra.mxu0 %v704
        %3611 = vmatpush.msra.mxu0 %v703
        %3612 = vmatpush.msra.mxu0 %v702
        %3613 = vmatpush.msra.mxu0 %v701
        %3614 = vmatpush.msra.mxu0 %v700
        %3615 = vmatpush.msra.mxu0 %v699
        %3616 = vmatpush.msra.mxu0 %v698
        %3617 = vmatpush.msra.mxu0 %v697
        %3618 = vmatpush.msra.mxu0 %v696
        %3619 = vmatpush.msra.mxu0 %v695
        %3620 = vmatpush.msra.mxu0 %v694
        %3621 = vmatpush.msra.mxu0 %v693
        %3622 = vmatpush.msra.mxu0 %v692
        %3623 = vmatmul.f32.gmra.mxu0 %v1980
        %v3624 = vpop.f32.mrf.mxu0
        %v3625 = vadd.f32 0.0, %v3624
        %3626 = vmatmul.f32.gmra.mxu0 %v1982
        %v3627 = vpop.f32.mrf.mxu0
        %v3628 = vadd.f32 0.0, %v3627
        %3629 = vmatmul.f32.gmra.mxu0 %v1984
        %v3630 = vpop.f32.mrf.mxu0
        %v3631 = vadd.f32 0.0, %v3630
        %3632 = vmatmul.f32.gmra.mxu0 %v1986
        %v3633 = vpop.f32.mrf.mxu0
        %v3634 = vadd.f32 0.0, %v3633
        %3635 = vmatmul.f32.gmra.mxu0 %v1988
        %v3636 = vpop.f32.mrf.mxu0
        %v3637 = vadd.f32 0.0, %v3636
        %3638 = vmatmul.f32.gmra.mxu0 %v1990
        %v3639 = vpop.f32.mrf.mxu0
        %v3640 = vadd.f32 0.0, %v3639
        %3641 = vmatmul.f32.gmra.mxu0 %v1992
        %v3642 = vpop.f32.mrf.mxu0
        %v3643 = vadd.f32 0.0, %v3642
        %3644 = vmatmul.f32.gmra.mxu0 %v1994
        %v3645 = vpop.f32.mrf.mxu0
        %v3646 = vadd.f32 0.0, %v3645
        %3647 = vdwg.mxu0
        %3648 = vmatpush.msra.mxu0 %v723
        %3649 = vmatpush.msra.mxu0 %v722
        %3650 = vmatpush.msra.mxu0 %v721
        %3651 = vmatpush.msra.mxu0 %v720
        %3652 = vmatpush.msra.mxu0 %v719
        %3653 = vmatpush.msra.mxu0 %v718
        %3654 = vmatpush.msra.mxu0 %v717
        %3655 = vmatpush.msra.mxu0 %v716
        %3656 = vmatpush.msra.mxu0 %v715
        %3657 = vmatpush.msra.mxu0 %v714
        %3658 = vmatpush.msra.mxu0 %v713
        %3659 = vmatpush.msra.mxu0 %v712
        %3660 = vmatpush.msra.mxu0 %v711
        %3661 = vmatpush.msra.mxu0 %v710
        %3662 = vmatpush.msra.mxu0 %v709
        %3663 = vmatpush.msra.mxu0 %v708
        %3664 = vmatmul.f32.gmra.mxu0 %v1981
        %v3665 = vpop.f32.mrf.mxu0
        %v3666 = vadd.f32 %v3625, %v3665
        %3667 = vmatmul.f32.gmra.mxu0 %v1983
        %v3668 = vpop.f32.mrf.mxu0
        %v3669 = vadd.f32 %v3628, %v3668
        %3670 = vmatmul.f32.gmra.mxu0 %v1985
        %v3671 = vpop.f32.mrf.mxu0
        %v3672 = vadd.f32 %v3631, %v3671
        %3673 = vmatmul.f32.gmra.mxu0 %v1987
        %v3674 = vpop.f32.mrf.mxu0
        %v3675 = vadd.f32 %v3634, %v3674
        %3676 = vmatmul.f32.gmra.mxu0 %v1989
        %v3677 = vpop.f32.mrf.mxu0
        %v3678 = vadd.f32 %v3637, %v3677
        %3679 = vmatmul.f32.gmra.mxu0 %v1991
        %v3680 = vpop.f32.mrf.mxu0
        %v3681 = vadd.f32 %v3640, %v3680
        %3682 = vmatmul.f32.gmra.mxu0 %v1993
        %v3683 = vpop.f32.mrf.mxu0
        %v3684 = vadd.f32 %v3643, %v3683
        %3685 = vmatmul.f32.gmra.mxu0 %v1995
        %v3686 = vpop.f32.mrf.mxu0
        %v3687 = vadd.f32 %v3646, %v3686
        %3688 = vdwg.mxu0
        %s3689 = scalar_lea.vmem %s6, 28
        %v3690 = vld [vmem:[%s3689] sm:$0x7]
        %v3692 = vsel %vm956, %v3666, 0
        %v3695 = vsel %vm956, %v3669, 0
        %v3698 = vsel %vm956, %v3672, 0
        %v3701 = vsel %vm956, %v3675, 0
        %v3704 = vsel %vm956, %v3678, 0
        %v3707 = vsel %vm956, %v3681, 0
        %v3710 = vsel %vm956, %v3684, 0
        %v3713 = vsel %vm956, %v3687, 0
        %v3716 = vsel %vm981, %v3690, 0
        %3718 = vmatpush.msra.mxu0 0.0
        %3719 = vmatpush.msra.mxu0 0.0
        %3720 = vmatpush.msra.mxu0 0.0
        %3721 = vmatpush.msra.mxu0 0.0
        %3722 = vmatpush.msra.mxu0 0.0
        %3723 = vmatpush.msra.mxu0 0.0
        %3724 = vmatpush.msra.mxu0 0.0
        %3725 = vmatpush.msra.mxu0 0.0
        %3726 = vmatpush.msra.mxu0 0.0
        %3727 = vmatpush.msra.mxu0 0.0
        %3728 = vmatpush.msra.mxu0 0.0
        %3729 = vmatpush.msra.mxu0 0.0
        %3730 = vmatpush.msra.mxu0 0.0
        %3731 = vmatpush.msra.mxu0 0.0
        %3732 = vmatpush.msra.mxu0 0.0
        %3733 = vmatpush.msra.mxu0 %v3716
        %3734 = vmatmul.f32.gmra.mxu0 %v3692
        %v3735 = vpop.f32.mrf.mxu0
        %v3736 = vadd.f32 0.0, %v3735
        %3737 = vmatmul.f32.gmra.mxu0 %v3695
        %v3738 = vpop.f32.mrf.mxu0
        %v3739 = vadd.f32 0.0, %v3738
        %3740 = vmatmul.f32.gmra.mxu0 %v3698
        %v3741 = vpop.f32.mrf.mxu0
        %v3742 = vadd.f32 0.0, %v3741
        %3743 = vmatmul.f32.gmra.mxu0 %v3701
        %v3744 = vpop.f32.mrf.mxu0
        %v3745 = vadd.f32 0.0, %v3744
        %3746 = vmatmul.f32.gmra.mxu0 %v3704
        %v3747 = vpop.f32.mrf.mxu0
        %v3748 = vadd.f32 0.0, %v3747
        %3749 = vmatmul.f32.gmra.mxu0 %v3707
        %v3750 = vpop.f32.mrf.mxu0
        %v3751 = vadd.f32 0.0, %v3750
        %3752 = vmatmul.f32.gmra.mxu0 %v3710
        %v3753 = vpop.f32.mrf.mxu0
        %v3754 = vadd.f32 0.0, %v3753
        %3755 = vmatmul.f32.gmra.mxu0 %v3713
        %v3756 = vpop.f32.mrf.mxu0
        %v3757 = vadd.f32 0.0, %v3756
        %3758 = vdwg.mxu0
        %v3759 = vadd.f32 %v3599, %v3736
        %v3760 = vadd.f32 %v3600, %v3739
        %v3761 = vadd.f32 %v3601, %v3742
        %v3762 = vadd.f32 %v3602, %v3745
        %v3763 = vadd.f32 %v3603, %v3748
        %v3764 = vadd.f32 %v3604, %v3751
        %v3765 = vadd.f32 %v3605, %v3754
        %v3766 = vadd.f32 %v3606, %v3757
        %3767 = vmatpush.msra.mxu0 %v707
        %3768 = vmatpush.msra.mxu0 %v706
        %3769 = vmatpush.msra.mxu0 %v705
        %3770 = vmatpush.msra.mxu0 %v704
        %3771 = vmatpush.msra.mxu0 %v703
        %3772 = vmatpush.msra.mxu0 %v702
        %3773 = vmatpush.msra.mxu0 %v701
        %3774 = vmatpush.msra.mxu0 %v700
        %3775 = vmatpush.msra.mxu0 %v699
        %3776 = vmatpush.msra.mxu0 %v698
        %3777 = vmatpush.msra.mxu0 %v697
        %3778 = vmatpush.msra.mxu0 %v696
        %3779 = vmatpush.msra.mxu0 %v695
        %3780 = vmatpush.msra.mxu0 %v694
        %3781 = vmatpush.msra.mxu0 %v693
        %3782 = vmatpush.msra.mxu0 %v692
        %3783 = vmatmul.f32.gmra.mxu0 %v2157
        %v3784 = vpop.f32.mrf.mxu0
        %v3785 = vadd.f32 0.0, %v3784
        %3786 = vmatmul.f32.gmra.mxu0 %v2159
        %v3787 = vpop.f32.mrf.mxu0
        %v3788 = vadd.f32 0.0, %v3787
        %3789 = vmatmul.f32.gmra.mxu0 %v2161
        %v3790 = vpop.f32.mrf.mxu0
        %v3791 = vadd.f32 0.0, %v3790
        %3792 = vmatmul.f32.gmra.mxu0 %v2163
        %v3793 = vpop.f32.mrf.mxu0
        %v3794 = vadd.f32 0.0, %v3793
        %3795 = vmatmul.f32.gmra.mxu0 %v2165
        %v3796 = vpop.f32.mrf.mxu0
        %v3797 = vadd.f32 0.0, %v3796
        %3798 = vmatmul.f32.gmra.mxu0 %v2167
        %v3799 = vpop.f32.mrf.mxu0
        %v3800 = vadd.f32 0.0, %v3799
        %3801 = vmatmul.f32.gmra.mxu0 %v2169
        %v3802 = vpop.f32.mrf.mxu0
        %v3803 = vadd.f32 0.0, %v3802
        %3804 = vmatmul.f32.gmra.mxu0 %v2171
        %v3805 = vpop.f32.mrf.mxu0
        %v3806 = vadd.f32 0.0, %v3805
        %3807 = vdwg.mxu0
        %3808 = vmatpush.msra.mxu0 %v723
        %3809 = vmatpush.msra.mxu0 %v722
        %3810 = vmatpush.msra.mxu0 %v721
        %3811 = vmatpush.msra.mxu0 %v720
        %3812 = vmatpush.msra.mxu0 %v719
        %3813 = vmatpush.msra.mxu0 %v718
        %3814 = vmatpush.msra.mxu0 %v717
        %3815 = vmatpush.msra.mxu0 %v716
        %3816 = vmatpush.msra.mxu0 %v715
        %3817 = vmatpush.msra.mxu0 %v714
        %3818 = vmatpush.msra.mxu0 %v713
        %3819 = vmatpush.msra.mxu0 %v712
        %3820 = vmatpush.msra.mxu0 %v711
        %3821 = vmatpush.msra.mxu0 %v710
        %3822 = vmatpush.msra.mxu0 %v709
        %3823 = vmatpush.msra.mxu0 %v708
        %3824 = vmatmul.f32.gmra.mxu0 %v2158
        %v3825 = vpop.f32.mrf.mxu0
        %v3826 = vadd.f32 %v3785, %v3825
        %3827 = vmatmul.f32.gmra.mxu0 %v2160
        %v3828 = vpop.f32.mrf.mxu0
        %v3829 = vadd.f32 %v3788, %v3828
        %3830 = vmatmul.f32.gmra.mxu0 %v2162
        %v3831 = vpop.f32.mrf.mxu0
        %v3832 = vadd.f32 %v3791, %v3831
        %3833 = vmatmul.f32.gmra.mxu0 %v2164
        %v3834 = vpop.f32.mrf.mxu0
        %v3835 = vadd.f32 %v3794, %v3834
        %3836 = vmatmul.f32.gmra.mxu0 %v2166
        %v3837 = vpop.f32.mrf.mxu0
        %v3838 = vadd.f32 %v3797, %v3837
        %3839 = vmatmul.f32.gmra.mxu0 %v2168
        %v3840 = vpop.f32.mrf.mxu0
        %v3841 = vadd.f32 %v3800, %v3840
        %3842 = vmatmul.f32.gmra.mxu0 %v2170
        %v3843 = vpop.f32.mrf.mxu0
        %v3844 = vadd.f32 %v3803, %v3843
        %3845 = vmatmul.f32.gmra.mxu0 %v2172
        %v3846 = vpop.f32.mrf.mxu0
        %v3847 = vadd.f32 %v3806, %v3846
        %3848 = vdwg.mxu0
        %s3849 = scalar_lea.vmem %s6, 32
        %v3850 = vld [vmem:[%s3849] sm:$0x7]
        %v3852 = vsel %vm956, %v3826, 0
        %v3855 = vsel %vm956, %v3829, 0
        %v3858 = vsel %vm956, %v3832, 0
        %v3861 = vsel %vm956, %v3835, 0
        %v3864 = vsel %vm956, %v3838, 0
        %v3867 = vsel %vm956, %v3841, 0
        %v3870 = vsel %vm956, %v3844, 0
        %v3873 = vsel %vm956, %v3847, 0
        %v3876 = vsel %vm981, %v3850, 0
        %3878 = vmatpush.msra.mxu0 0.0
        %3879 = vmatpush.msra.mxu0 0.0
        %3880 = vmatpush.msra.mxu0 0.0
        %3881 = vmatpush.msra.mxu0 0.0
        %3882 = vmatpush.msra.mxu0 0.0
        %3883 = vmatpush.msra.mxu0 0.0
        %3884 = vmatpush.msra.mxu0 0.0
        %3885 = vmatpush.msra.mxu0 0.0
        %3886 = vmatpush.msra.mxu0 0.0
        %3887 = vmatpush.msra.mxu0 0.0
        %3888 = vmatpush.msra.mxu0 0.0
        %3889 = vmatpush.msra.mxu0 0.0
        %3890 = vmatpush.msra.mxu0 0.0
        %3891 = vmatpush.msra.mxu0 0.0
        %3892 = vmatpush.msra.mxu0 0.0
        %3893 = vmatpush.msra.mxu0 %v3876
        %3894 = vmatmul.f32.gmra.mxu0 %v3852
        %v3895 = vpop.f32.mrf.mxu0
        %v3896 = vadd.f32 0.0, %v3895
        %3897 = vmatmul.f32.gmra.mxu0 %v3855
        %v3898 = vpop.f32.mrf.mxu0
        %v3899 = vadd.f32 0.0, %v3898
        %3900 = vmatmul.f32.gmra.mxu0 %v3858
        %v3901 = vpop.f32.mrf.mxu0
        %v3902 = vadd.f32 0.0, %v3901
        %3903 = vmatmul.f32.gmra.mxu0 %v3861
        %v3904 = vpop.f32.mrf.mxu0
        %v3905 = vadd.f32 0.0, %v3904
        %3906 = vmatmul.f32.gmra.mxu0 %v3864
        %v3907 = vpop.f32.mrf.mxu0
        %v3908 = vadd.f32 0.0, %v3907
        %3909 = vmatmul.f32.gmra.mxu0 %v3867
        %v3910 = vpop.f32.mrf.mxu0
        %v3911 = vadd.f32 0.0, %v3910
        %3912 = vmatmul.f32.gmra.mxu0 %v3870
        %v3913 = vpop.f32.mrf.mxu0
        %v3914 = vadd.f32 0.0, %v3913
        %3915 = vmatmul.f32.gmra.mxu0 %v3873
        %v3916 = vpop.f32.mrf.mxu0
        %v3917 = vadd.f32 0.0, %v3916
        %3918 = vdwg.mxu0
        %v3919 = vadd.f32 %v3759, %v3896
        %v3920 = vadd.f32 %v3760, %v3899
        %v3921 = vadd.f32 %v3761, %v3902
        %v3922 = vadd.f32 %v3762, %v3905
        %v3923 = vadd.f32 %v3763, %v3908
        %v3924 = vadd.f32 %v3764, %v3911
        %v3925 = vadd.f32 %v3765, %v3914
        %v3926 = vadd.f32 %v3766, %v3917
        %s3927 = scalar_lea.vmem %s6, 36
        %v3928 = vld [vmem:[%s3927] sm:$0x1]
        %v3929 = vperm.slane %v3928, 0
        %v3930 = vadd.f32 %v3919, %v3929
        %v3931 = vadd.f32 %v3920, %v3929
        %v3932 = vadd.f32 %v3921, %v3929
        %v3933 = vadd.f32 %v3922, %v3929
        %v3934 = vadd.f32 %v3923, %v3929
        %v3935 = vadd.f32 %v3924, %v3929
        %v3936 = vadd.f32 %v3925, %v3929
        %v3937 = vadd.f32 %v3926, %v3929
        %v3938 = vxor.u32 %v3930, 2147483648
        %v3939 = vxor.u32 %v3931, 2147483648
        %v3940 = vxor.u32 %v3932, 2147483648
        %v3941 = vxor.u32 %v3933, 2147483648
        %v3942 = vxor.u32 %v3934, 2147483648
        %v3943 = vxor.u32 %v3935, 2147483648
        %v3944 = vxor.u32 %v3936, 2147483648
        %v3945 = vxor.u32 %v3937, 2147483648
        %v3946 = vmul.f32 %v3938, 1.442695
        %v3947 = vpow.pop %v3946
        %v3948 = vmul.f32 %v3939, 1.442695
        %v3949 = vpow.pop %v3948
        %v3950 = vmul.f32 %v3940, 1.442695
        %v3951 = vpow.pop %v3950
        %v3952 = vmul.f32 %v3941, 1.442695
        %v3953 = vpow.pop %v3952
        %v3954 = vmul.f32 %v3942, 1.442695
        %v3955 = vpow.pop %v3954
        %v3956 = vmul.f32 %v3943, 1.442695
        %v3957 = vpow.pop %v3956
        %v3958 = vmul.f32 %v3944, 1.442695
        %v3959 = vpow.pop %v3958
        %v3960 = vmul.f32 %v3945, 1.442695
        %v3961 = vpow.pop %v3960
        %v3962 = vadd.f32 %v3947, 1.0
        %v3963 = vadd.f32 %v3949, 1.0
        %v3964 = vadd.f32 %v3951, 1.0
        %v3965 = vadd.f32 %v3953, 1.0
        %v3966 = vadd.f32 %v3955, 1.0
        %v3967 = vadd.f32 %v3957, 1.0
        %v3968 = vadd.f32 %v3959, 1.0
        %v3969 = vadd.f32 %v3961, 1.0
        %v3970 = vrcp.pop %v3962
        %v3971 = vmul.f32 %v3962, %v3970
        %v3972 = vsub.f32 1.0, %v3971
        %v3973 = vmul.f32 %v3970, %v3972
        %v3974 = vadd.f32 %v3970, %v3973
        %vm3975 = vweird.f32 %v3962
        %vm3976 = vweird.f32 %v3970
        %vm3977 = vmor %vm3975, %vm3976
        %v3978 = vsel %vm3977, %v3970, %v3974
        %v3979 = vand.u32 2147483647, %v3962
        %vm3980 = vcmp.eq.f32.partialorder %v3979, 8.507059e+37
        %v3981 = vand.u32 %v3962, 2147483648
        %v3982 = vor.u32 1.1754944e-38, %v3981
        %v3983 = vsel %vm3980, %v3982, %v3978
        %v3984 = vmul.f32 1.0, %v3983
        %v3985 = vrcp.pop %v3963
        %v3986 = vmul.f32 %v3963, %v3985
        %v3987 = vsub.f32 1.0, %v3986
        %v3988 = vmul.f32 %v3985, %v3987
        %v3989 = vadd.f32 %v3985, %v3988
        %vm3990 = vweird.f32 %v3963
        %vm3991 = vweird.f32 %v3985
        %vm3992 = vmor %vm3990, %vm3991
        %v3993 = vsel %vm3992, %v3985, %v3989
        %v3994 = vand.u32 2147483647, %v3963
        %vm3995 = vcmp.eq.f32.partialorder %v3994, 8.507059e+37
        %v3996 = vand.u32 %v3963, 2147483648
        %v3997 = vor.u32 1.1754944e-38, %v3996
        %v3998 = vsel %vm3995, %v3997, %v3993
        %v3999 = vmul.f32 1.0, %v3998
        %v4000 = vrcp.pop %v3964
        %v4001 = vmul.f32 %v3964, %v4000
        %v4002 = vsub.f32 1.0, %v4001
        %v4003 = vmul.f32 %v4000, %v4002
        %v4004 = vadd.f32 %v4000, %v4003
        %vm4005 = vweird.f32 %v3964
        %vm4006 = vweird.f32 %v4000
        %vm4007 = vmor %vm4005, %vm4006
        %v4008 = vsel %vm4007, %v4000, %v4004
        %v4009 = vand.u32 2147483647, %v3964
        %vm4010 = vcmp.eq.f32.partialorder %v4009, 8.507059e+37
        %v4011 = vand.u32 %v3964, 2147483648
        %v4012 = vor.u32 1.1754944e-38, %v4011
        %v4013 = vsel %vm4010, %v4012, %v4008
        %v4014 = vmul.f32 1.0, %v4013
        %v4015 = vrcp.pop %v3965
        %v4016 = vmul.f32 %v3965, %v4015
        %v4017 = vsub.f32 1.0, %v4016
        %v4018 = vmul.f32 %v4015, %v4017
        %v4019 = vadd.f32 %v4015, %v4018
        %vm4020 = vweird.f32 %v3965
        %vm4021 = vweird.f32 %v4015
        %vm4022 = vmor %vm4020, %vm4021
        %v4023 = vsel %vm4022, %v4015, %v4019
        %v4024 = vand.u32 2147483647, %v3965
        %vm4025 = vcmp.eq.f32.partialorder %v4024, 8.507059e+37
        %v4026 = vand.u32 %v3965, 2147483648
        %v4027 = vor.u32 1.1754944e-38, %v4026
        %v4028 = vsel %vm4025, %v4027, %v4023
        %v4029 = vmul.f32 1.0, %v4028
        %v4030 = vrcp.pop %v3966
        %v4031 = vmul.f32 %v3966, %v4030
        %v4032 = vsub.f32 1.0, %v4031
        %v4033 = vmul.f32 %v4030, %v4032
        %v4034 = vadd.f32 %v4030, %v4033
        %vm4035 = vweird.f32 %v3966
        %vm4036 = vweird.f32 %v4030
        %vm4037 = vmor %vm4035, %vm4036
        %v4038 = vsel %vm4037, %v4030, %v4034
        %v4039 = vand.u32 2147483647, %v3966
        %vm4040 = vcmp.eq.f32.partialorder %v4039, 8.507059e+37
        %v4041 = vand.u32 %v3966, 2147483648
        %v4042 = vor.u32 1.1754944e-38, %v4041
        %v4043 = vsel %vm4040, %v4042, %v4038
        %v4044 = vmul.f32 1.0, %v4043
        %v4045 = vrcp.pop %v3967
        %v4046 = vmul.f32 %v3967, %v4045
        %v4047 = vsub.f32 1.0, %v4046
        %v4048 = vmul.f32 %v4045, %v4047
        %v4049 = vadd.f32 %v4045, %v4048
        %vm4050 = vweird.f32 %v3967
        %vm4051 = vweird.f32 %v4045
        %vm4052 = vmor %vm4050, %vm4051
        %v4053 = vsel %vm4052, %v4045, %v4049
        %v4054 = vand.u32 2147483647, %v3967
        %vm4055 = vcmp.eq.f32.partialorder %v4054, 8.507059e+37
        %v4056 = vand.u32 %v3967, 2147483648
        %v4057 = vor.u32 1.1754944e-38, %v4056
        %v4058 = vsel %vm4055, %v4057, %v4053
        %v4059 = vmul.f32 1.0, %v4058
        %v4060 = vrcp.pop %v3968
        %v4061 = vmul.f32 %v3968, %v4060
        %v4062 = vsub.f32 1.0, %v4061
        %v4063 = vmul.f32 %v4060, %v4062
        %v4064 = vadd.f32 %v4060, %v4063
        %vm4065 = vweird.f32 %v3968
        %vm4066 = vweird.f32 %v4060
        %vm4067 = vmor %vm4065, %vm4066
        %v4068 = vsel %vm4067, %v4060, %v4064
        %v4069 = vand.u32 2147483647, %v3968
        %vm4070 = vcmp.eq.f32.partialorder %v4069, 8.507059e+37
        %v4071 = vand.u32 %v3968, 2147483648
        %v4072 = vor.u32 1.1754944e-38, %v4071
        %v4073 = vsel %vm4070, %v4072, %v4068
        %v4074 = vmul.f32 1.0, %v4073
        %v4075 = vrcp.pop %v3969
        %v4076 = vmul.f32 %v3969, %v4075
        %v4077 = vsub.f32 1.0, %v4076
        %v4078 = vmul.f32 %v4075, %v4077
        %v4079 = vadd.f32 %v4075, %v4078
        %vm4080 = vweird.f32 %v3969
        %vm4081 = vweird.f32 %v4075
        %vm4082 = vmor %vm4080, %vm4081
        %v4083 = vsel %vm4082, %v4075, %v4079
        %v4084 = vand.u32 2147483647, %v3969
        %vm4085 = vcmp.eq.f32.partialorder %v4084, 8.507059e+37
        %v4086 = vand.u32 %v3969, 2147483648
        %v4087 = vor.u32 1.1754944e-38, %v4086
        %v4088 = vsel %vm4085, %v4087, %v4083
        %v4089 = vmul.f32 1.0, %v4088
        %v4090 = vmul.f32 %v3930, %v3984
        %v4091 = vmul.f32 %v3931, %v3999
        %v4092 = vmul.f32 %v3932, %v4014
        %v4093 = vmul.f32 %v3933, %v4029
        %v4094 = vmul.f32 %v3934, %v4044
        %v4095 = vmul.f32 %v3935, %v4059
        %v4096 = vmul.f32 %v3936, %v4074
        %v4097 = vmul.f32 %v3937, %v4089
        %v4098 = vld [vmem:[%s3] sm:$0xff]
        %v4099 = vld [vmem:[%s3 + $0x8] sm:$0xff]
        %v4100 = vld [vmem:[%s3 + $0x10] sm:$0xff]
        %v4101 = vld [vmem:[%s3 + $0x18] sm:$0xff]
        %v4102 = vld [vmem:[%s3 + $0x20] sm:$0xff]
        %v4103 = vld [vmem:[%s3 + $0x28] sm:$0xff]
        %v4104 = vld [vmem:[%s3 + $0x30] sm:$0xff]
        %v4105 = vld [vmem:[%s3 + $0x38] sm:$0xff]
        %vm4106 = vcmask 523264
        %v4108 = vsel %vm4106, %v4098, 0
        %v4111 = vsel %vm4106, %v4099, 0
        %v4114 = vsel %vm4106, %v4100, 0
        %v4117 = vsel %vm4106, %v4101, 0
        %v4120 = vsel %vm4106, %v4102, 0
        %v4123 = vsel %vm4106, %v4103, 0
        %v4126 = vsel %vm4106, %v4104, 0
        %v4129 = vsel %vm4106, %v4105, 0
        %4131 = vmatpush.msra.mxu0 0.0
        %4132 = vmatpush.msra.mxu0 0.0
        %4133 = vmatpush.msra.mxu0 0.0
        %4134 = vmatpush.msra.mxu0 0.0
        %4135 = vmatpush.msra.mxu0 0.0
        %4136 = vmatpush.msra.mxu0 0.0
        %4137 = vmatpush.msra.mxu0 0.0
        %4138 = vmatpush.msra.mxu0 0.0
        %4139 = vmatpush.msra.mxu0 %v2503
        %4140 = vmatpush.msra.mxu0 %v2502
        %4141 = vmatpush.msra.mxu0 %v2501
        %4142 = vmatpush.msra.mxu0 %v2500
        %4143 = vmatpush.msra.mxu0 %v2499
        %4144 = vmatpush.msra.mxu0 %v2498
        %4145 = vmatpush.msra.mxu0 %v2497
        %4146 = vmatpush.msra.mxu0 %v2496
        %4147 = vmatmul.f32.gmra.mxu0 %v4108
        %v4148 = vpop.f32.mrf.mxu0
        %v4149 = vadd.f32 0.0, %v4148
        %4150 = vmatmul.f32.gmra.mxu0 %v4111
        %v4151 = vpop.f32.mrf.mxu0
        %v4152 = vadd.f32 0.0, %v4151
        %4153 = vmatmul.f32.gmra.mxu0 %v4114
        %v4154 = vpop.f32.mrf.mxu0
        %v4155 = vadd.f32 0.0, %v4154
        %4156 = vmatmul.f32.gmra.mxu0 %v4117
        %v4157 = vpop.f32.mrf.mxu0
        %v4158 = vadd.f32 0.0, %v4157
        %4159 = vmatmul.f32.gmra.mxu0 %v4120
        %v4160 = vpop.f32.mrf.mxu0
        %v4161 = vadd.f32 0.0, %v4160
        %4162 = vmatmul.f32.gmra.mxu0 %v4123
        %v4163 = vpop.f32.mrf.mxu0
        %v4164 = vadd.f32 0.0, %v4163
        %4165 = vmatmul.f32.gmra.mxu0 %v4126
        %v4166 = vpop.f32.mrf.mxu0
        %v4167 = vadd.f32 0.0, %v4166
        %4168 = vmatmul.f32.gmra.mxu0 %v4129
        %v4169 = vpop.f32.mrf.mxu0
        %v4170 = vadd.f32 0.0, %v4169
        %4171 = vdwg.mxu0
        %v4172 = vld [vmem:[%s11] sm:$0xff]
        %v4173 = vld [vmem:[%s11 + $0x8] sm:$0xff]
        %v4174 = vld [vmem:[%s11 + $0x10] sm:$0xff]
        %v4175 = vld [vmem:[%s11 + $0x18] sm:$0xff]
        %s4176 = scalar_lea.vmem %s3, 64
        %v4177 = vld [vmem:[%s4176] sm:$0xff]
        %v4178 = vld [vmem:[%s4176 + $0x8] sm:$0xff]
        %v4179 = vld [vmem:[%s4176 + $0x10] sm:$0xff]
        %v4180 = vld [vmem:[%s4176 + $0x18] sm:$0xff]
        %v4181 = vld [vmem:[%s4176 + $0x20] sm:$0xff]
        %v4182 = vld [vmem:[%s4176 + $0x28] sm:$0xff]
        %v4183 = vld [vmem:[%s4176 + $0x30] sm:$0xff]
        %v4184 = vld [vmem:[%s4176 + $0x38] sm:$0xff]
        %v4186 = vsel %vm4106, %v4177, 0
        %v4189 = vsel %vm4106, %v4178, 0
        %v4192 = vsel %vm4106, %v4179, 0
        %v4195 = vsel %vm4106, %v4180, 0
        %v4198 = vsel %vm4106, %v4181, 0
        %v4201 = vsel %vm4106, %v4182, 0
        %v4204 = vsel %vm4106, %v4183, 0
        %v4207 = vsel %vm4106, %v4184, 0
        %4209 = vmatpush.msra.mxu0 0.0
        %4210 = vmatpush.msra.mxu0 0.0
        %4211 = vmatpush.msra.mxu0 0.0
        %4212 = vmatpush.msra.mxu0 0.0
        %4213 = vmatpush.msra.mxu0 0.0
        %4214 = vmatpush.msra.mxu0 0.0
        %4215 = vmatpush.msra.mxu0 0.0
        %4216 = vmatpush.msra.mxu0 0.0
        %4217 = vmatpush.msra.mxu0 %v2503
        %4218 = vmatpush.msra.mxu0 %v2502
        %4219 = vmatpush.msra.mxu0 %v2501
        %4220 = vmatpush.msra.mxu0 %v2500
        %4221 = vmatpush.msra.mxu0 %v2499
        %4222 = vmatpush.msra.mxu0 %v2498
        %4223 = vmatpush.msra.mxu0 %v2497
        %4224 = vmatpush.msra.mxu0 %v2496
        %4225 = vmatmul.f32.gmra.mxu0 %v4186
        %v4226 = vpop.f32.mrf.mxu0
        %v4227 = vadd.f32 0.0, %v4226
        %4228 = vmatmul.f32.gmra.mxu0 %v4189
        %v4229 = vpop.f32.mrf.mxu0
        %v4230 = vadd.f32 0.0, %v4229
        %4231 = vmatmul.f32.gmra.mxu0 %v4192
        %v4232 = vpop.f32.mrf.mxu0
        %v4233 = vadd.f32 0.0, %v4232
        %4234 = vmatmul.f32.gmra.mxu0 %v4195
        %v4235 = vpop.f32.mrf.mxu0
        %v4236 = vadd.f32 0.0, %v4235
        %4237 = vmatmul.f32.gmra.mxu0 %v4198
        %v4238 = vpop.f32.mrf.mxu0
        %v4239 = vadd.f32 0.0, %v4238
        %4240 = vmatmul.f32.gmra.mxu0 %v4201
        %v4241 = vpop.f32.mrf.mxu0
        %v4242 = vadd.f32 0.0, %v4241
        %4243 = vmatmul.f32.gmra.mxu0 %v4204
        %v4244 = vpop.f32.mrf.mxu0
        %v4245 = vadd.f32 0.0, %v4244
        %4246 = vmatmul.f32.gmra.mxu0 %v4207
        %v4247 = vpop.f32.mrf.mxu0
        %v4248 = vadd.f32 0.0, %v4247
        %4249 = vdwg.mxu0
        %s4250 = scalar_lea.vmem %s11, 32
        %v4251 = vld [vmem:[%s4250] sm:$0xff]
        %v4252 = vld [vmem:[%s4250 + $0x8] sm:$0xff]
        %v4253 = vld [vmem:[%s4250 + $0x10] sm:$0xff]
        %v4254 = vld [vmem:[%s4250 + $0x18] sm:$0xff]
        %vm4255 = vcmask 261120
        %v4257 = vsel %vm4255, %v4227, 0
        %v4260 = vsel %vm4255, %v4230, 0
        %v4263 = vsel %vm4255, %v4233, 0
        %v4266 = vsel %vm4255, %v4236, 0
        %v4269 = vsel %vm4255, %v4239, 0
        %v4272 = vsel %vm4255, %v4242, 0
        %v4275 = vsel %vm4255, %v4245, 0
        %v4278 = vsel %vm4255, %v4248, 0
        %4280 = vmatpush.msra.mxu0 0.0
        %4281 = vmatpush.msra.mxu0 0.0
        %4282 = vmatpush.msra.mxu0 0.0
        %4283 = vmatpush.msra.mxu0 0.0
        %4284 = vmatpush.msra.mxu0 0.0
        %4285 = vmatpush.msra.mxu0 0.0
        %4286 = vmatpush.msra.mxu0 0.0
        %4287 = vmatpush.msra.mxu0 0.0
        %4288 = vmatpush.msra.mxu0 0.0
        %4289 = vmatpush.msra.mxu0 0.0
        %4290 = vmatpush.msra.mxu0 0.0
        %4291 = vmatpush.msra.mxu0 0.0
        %4292 = vmatpush.msra.mxu0 %v4254
        %4293 = vmatpush.msra.mxu0 %v4253
        %4294 = vmatpush.msra.mxu0 %v4252
        %4295 = vmatpush.msra.mxu0 %v4251
        %4296 = vmatmul.f32.gmra.mxu0 %v4257
        %v4297 = vpop.f32.mrf.mxu0
        %v4298 = vadd.f32 0.0, %v4297
        %4299 = vmatmul.f32.gmra.mxu0 %v4260
        %v4300 = vpop.f32.mrf.mxu0
        %v4301 = vadd.f32 0.0, %v4300
        %4302 = vmatmul.f32.gmra.mxu0 %v4263
        %v4303 = vpop.f32.mrf.mxu0
        %v4304 = vadd.f32 0.0, %v4303
        %4305 = vmatmul.f32.gmra.mxu0 %v4266
        %v4306 = vpop.f32.mrf.mxu0
        %v4307 = vadd.f32 0.0, %v4306
        %4308 = vmatmul.f32.gmra.mxu0 %v4269
        %v4309 = vpop.f32.mrf.mxu0
        %v4310 = vadd.f32 0.0, %v4309
        %4311 = vmatmul.f32.gmra.mxu0 %v4272
        %v4312 = vpop.f32.mrf.mxu0
        %v4313 = vadd.f32 0.0, %v4312
        %4314 = vmatmul.f32.gmra.mxu0 %v4275
        %v4315 = vpop.f32.mrf.mxu0
        %v4316 = vadd.f32 0.0, %v4315
        %4317 = vmatmul.f32.gmra.mxu0 %v4278
        %v4318 = vpop.f32.mrf.mxu0
        %v4319 = vadd.f32 0.0, %v4318
        %4320 = vdwg.mxu0
        %v4322 = vsel %vm4255, %v4149, 0
        %v4325 = vsel %vm4255, %v4152, 0
        %v4328 = vsel %vm4255, %v4155, 0
        %v4331 = vsel %vm4255, %v4158, 0
        %v4334 = vsel %vm4255, %v4161, 0
        %v4337 = vsel %vm4255, %v4164, 0
        %v4340 = vsel %vm4255, %v4167, 0
        %v4343 = vsel %vm4255, %v4170, 0
        %4345 = vmatpush.msra.mxu0 0.0
        %4346 = vmatpush.msra.mxu0 0.0
        %4347 = vmatpush.msra.mxu0 0.0
        %4348 = vmatpush.msra.mxu0 0.0
        %4349 = vmatpush.msra.mxu0 0.0
        %4350 = vmatpush.msra.mxu0 0.0
        %4351 = vmatpush.msra.mxu0 0.0
        %4352 = vmatpush.msra.mxu0 0.0
        %4353 = vmatpush.msra.mxu0 0.0
        %4354 = vmatpush.msra.mxu0 0.0
        %4355 = vmatpush.msra.mxu0 0.0
        %4356 = vmatpush.msra.mxu0 0.0
        %4357 = vmatpush.msra.mxu0 %v4175
        %4358 = vmatpush.msra.mxu0 %v4174
        %4359 = vmatpush.msra.mxu0 %v4173
        %4360 = vmatpush.msra.mxu0 %v4172
        %4361 = vmatmul.f32.gmra.mxu0 %v4322
        %v4362 = vpop.f32.mrf.mxu0
        %v4363 = vadd.f32 %v4298, %v4362
        %4364 = vmatmul.f32.gmra.mxu0 %v4325
        %v4365 = vpop.f32.mrf.mxu0
        %v4366 = vadd.f32 %v4301, %v4365
        %4367 = vmatmul.f32.gmra.mxu0 %v4328
        %v4368 = vpop.f32.mrf.mxu0
        %v4369 = vadd.f32 %v4304, %v4368
        %4370 = vmatmul.f32.gmra.mxu0 %v4331
        %v4371 = vpop.f32.mrf.mxu0
        %v4372 = vadd.f32 %v4307, %v4371
        %4373 = vmatmul.f32.gmra.mxu0 %v4334
        %v4374 = vpop.f32.mrf.mxu0
        %v4375 = vadd.f32 %v4310, %v4374
        %4376 = vmatmul.f32.gmra.mxu0 %v4337
        %v4377 = vpop.f32.mrf.mxu0
        %v4378 = vadd.f32 %v4313, %v4377
        %4379 = vmatmul.f32.gmra.mxu0 %v4340
        %v4380 = vpop.f32.mrf.mxu0
        %v4381 = vadd.f32 %v4316, %v4380
        %4382 = vmatmul.f32.gmra.mxu0 %v4343
        %v4383 = vpop.f32.mrf.mxu0
        %v4384 = vadd.f32 %v4319, %v4383
        %4385 = vdwg.mxu0
        %s4386 = scalar_lea.vmem %s3, 128
        %v4387 = vld [vmem:[%s4386] sm:$0xff]
        %v4388 = vld [vmem:[%s4386 + $0x8] sm:$0xff]
        %v4389 = vld [vmem:[%s4386 + $0x10] sm:$0xff]
        %v4390 = vld [vmem:[%s4386 + $0x18] sm:$0xff]
        %v4391 = vld [vmem:[%s4386 + $0x20] sm:$0xff]
        %v4392 = vld [vmem:[%s4386 + $0x28] sm:$0xff]
        %v4393 = vld [vmem:[%s4386 + $0x30] sm:$0xff]
        %v4394 = vld [vmem:[%s4386 + $0x38] sm:$0xff]
        %v4396 = vsel %vm4106, %v4387, 0
        %v4399 = vsel %vm4106, %v4388, 0
        %v4402 = vsel %vm4106, %v4389, 0
        %v4405 = vsel %vm4106, %v4390, 0
        %v4408 = vsel %vm4106, %v4391, 0
        %v4411 = vsel %vm4106, %v4392, 0
        %v4414 = vsel %vm4106, %v4393, 0
        %v4417 = vsel %vm4106, %v4394, 0
        %4419 = vmatpush.msra.mxu0 0.0
        %4420 = vmatpush.msra.mxu0 0.0
        %4421 = vmatpush.msra.mxu0 0.0
        %4422 = vmatpush.msra.mxu0 0.0
        %4423 = vmatpush.msra.mxu0 0.0
        %4424 = vmatpush.msra.mxu0 0.0
        %4425 = vmatpush.msra.mxu0 0.0
        %4426 = vmatpush.msra.mxu0 0.0
        %4427 = vmatpush.msra.mxu0 %v2503
        %4428 = vmatpush.msra.mxu0 %v2502
        %4429 = vmatpush.msra.mxu0 %v2501
        %4430 = vmatpush.msra.mxu0 %v2500
        %4431 = vmatpush.msra.mxu0 %v2499
        %4432 = vmatpush.msra.mxu0 %v2498
        %4433 = vmatpush.msra.mxu0 %v2497
        %4434 = vmatpush.msra.mxu0 %v2496
        %4435 = vmatmul.f32.gmra.mxu0 %v4396
        %v4436 = vpop.f32.mrf.mxu0
        %v4437 = vadd.f32 0.0, %v4436
        %4438 = vmatmul.f32.gmra.mxu0 %v4399
        %v4439 = vpop.f32.mrf.mxu0
        %v4440 = vadd.f32 0.0, %v4439
        %4441 = vmatmul.f32.gmra.mxu0 %v4402
        %v4442 = vpop.f32.mrf.mxu0
        %v4443 = vadd.f32 0.0, %v4442
        %4444 = vmatmul.f32.gmra.mxu0 %v4405
        %v4445 = vpop.f32.mrf.mxu0
        %v4446 = vadd.f32 0.0, %v4445
        %4447 = vmatmul.f32.gmra.mxu0 %v4408
        %v4448 = vpop.f32.mrf.mxu0
        %v4449 = vadd.f32 0.0, %v4448
        %4450 = vmatmul.f32.gmra.mxu0 %v4411
        %v4451 = vpop.f32.mrf.mxu0
        %v4452 = vadd.f32 0.0, %v4451
        %4453 = vmatmul.f32.gmra.mxu0 %v4414
        %v4454 = vpop.f32.mrf.mxu0
        %v4455 = vadd.f32 0.0, %v4454
        %4456 = vmatmul.f32.gmra.mxu0 %v4417
        %v4457 = vpop.f32.mrf.mxu0
        %v4458 = vadd.f32 0.0, %v4457
        %4459 = vdwg.mxu0
        %s4460 = scalar_lea.vmem %s11, 64
        %v4461 = vld [vmem:[%s4460] sm:$0xff]
        %v4462 = vld [vmem:[%s4460 + $0x8] sm:$0xff]
        %v4463 = vld [vmem:[%s4460 + $0x10] sm:$0xff]
        %v4464 = vld [vmem:[%s4460 + $0x18] sm:$0xff]
        %v4466 = vsel %vm4255, %v4437, 0
        %v4469 = vsel %vm4255, %v4440, 0
        %v4472 = vsel %vm4255, %v4443, 0
        %v4475 = vsel %vm4255, %v4446, 0
        %v4478 = vsel %vm4255, %v4449, 0
        %v4481 = vsel %vm4255, %v4452, 0
        %v4484 = vsel %vm4255, %v4455, 0
        %v4487 = vsel %vm4255, %v4458, 0
        %4489 = vmatpush.msra.mxu0 0.0
        %4490 = vmatpush.msra.mxu0 0.0
        %4491 = vmatpush.msra.mxu0 0.0
        %4492 = vmatpush.msra.mxu0 0.0
        %4493 = vmatpush.msra.mxu0 0.0
        %4494 = vmatpush.msra.mxu0 0.0
        %4495 = vmatpush.msra.mxu0 0.0
        %4496 = vmatpush.msra.mxu0 0.0
        %4497 = vmatpush.msra.mxu0 0.0
        %4498 = vmatpush.msra.mxu0 0.0
        %4499 = vmatpush.msra.mxu0 0.0
        %4500 = vmatpush.msra.mxu0 0.0
        %4501 = vmatpush.msra.mxu0 %v4464
        %4502 = vmatpush.msra.mxu0 %v4463
        %4503 = vmatpush.msra.mxu0 %v4462
        %4504 = vmatpush.msra.mxu0 %v4461
        %4505 = vmatmul.f32.gmra.mxu0 %v4466
        %v4506 = vpop.f32.mrf.mxu0
        %v4507 = vadd.f32 0.0, %v4506
        %4508 = vmatmul.f32.gmra.mxu0 %v4469
        %v4509 = vpop.f32.mrf.mxu0
        %v4510 = vadd.f32 0.0, %v4509
        %4511 = vmatmul.f32.gmra.mxu0 %v4472
        %v4512 = vpop.f32.mrf.mxu0
        %v4513 = vadd.f32 0.0, %v4512
        %4514 = vmatmul.f32.gmra.mxu0 %v4475
        %v4515 = vpop.f32.mrf.mxu0
        %v4516 = vadd.f32 0.0, %v4515
        %4517 = vmatmul.f32.gmra.mxu0 %v4478
        %v4518 = vpop.f32.mrf.mxu0
        %v4519 = vadd.f32 0.0, %v4518
        %4520 = vmatmul.f32.gmra.mxu0 %v4481
        %v4521 = vpop.f32.mrf.mxu0
        %v4522 = vadd.f32 0.0, %v4521
        %4523 = vmatmul.f32.gmra.mxu0 %v4484
        %v4524 = vpop.f32.mrf.mxu0
        %v4525 = vadd.f32 0.0, %v4524
        %4526 = vmatmul.f32.gmra.mxu0 %v4487
        %v4527 = vpop.f32.mrf.mxu0
        %v4528 = vadd.f32 0.0, %v4527
        %4529 = vdwg.mxu0
        %v4530 = vadd.f32 %v4363, %v4507
        %v4531 = vadd.f32 %v4366, %v4510
        %v4532 = vadd.f32 %v4369, %v4513
        %v4533 = vadd.f32 %v4372, %v4516
        %v4534 = vadd.f32 %v4375, %v4519
        %v4535 = vadd.f32 %v4378, %v4522
        %v4536 = vadd.f32 %v4381, %v4525
        %v4537 = vadd.f32 %v4384, %v4528
        %s4538 = scalar_lea.vmem %s3, 192
        %v4539 = vld [vmem:[%s4538] sm:$0xff]
        %v4540 = vld [vmem:[%s4538 + $0x8] sm:$0xff]
        %v4541 = vld [vmem:[%s4538 + $0x10] sm:$0xff]
        %v4542 = vld [vmem:[%s4538 + $0x18] sm:$0xff]
        %v4543 = vld [vmem:[%s4538 + $0x20] sm:$0xff]
        %v4544 = vld [vmem:[%s4538 + $0x28] sm:$0xff]
        %v4545 = vld [vmem:[%s4538 + $0x30] sm:$0xff]
        %v4546 = vld [vmem:[%s4538 + $0x38] sm:$0xff]
        %v4548 = vsel %vm4106, %v4539, 0
        %v4551 = vsel %vm4106, %v4540, 0
        %v4554 = vsel %vm4106, %v4541, 0
        %v4557 = vsel %vm4106, %v4542, 0
        %v4560 = vsel %vm4106, %v4543, 0
        %v4563 = vsel %vm4106, %v4544, 0
        %v4566 = vsel %vm4106, %v4545, 0
        %v4569 = vsel %vm4106, %v4546, 0
        %4571 = vmatpush.msra.mxu0 0.0
        %4572 = vmatpush.msra.mxu0 0.0
        %4573 = vmatpush.msra.mxu0 0.0
        %4574 = vmatpush.msra.mxu0 0.0
        %4575 = vmatpush.msra.mxu0 0.0
        %4576 = vmatpush.msra.mxu0 0.0
        %4577 = vmatpush.msra.mxu0 0.0
        %4578 = vmatpush.msra.mxu0 0.0
        %4579 = vmatpush.msra.mxu0 %v2503
        %4580 = vmatpush.msra.mxu0 %v2502
        %4581 = vmatpush.msra.mxu0 %v2501
        %4582 = vmatpush.msra.mxu0 %v2500
        %4583 = vmatpush.msra.mxu0 %v2499
        %4584 = vmatpush.msra.mxu0 %v2498
        %4585 = vmatpush.msra.mxu0 %v2497
        %4586 = vmatpush.msra.mxu0 %v2496
        %4587 = vmatmul.f32.gmra.mxu0 %v4548
        %v4588 = vpop.f32.mrf.mxu0
        %v4589 = vadd.f32 0.0, %v4588
        %4590 = vmatmul.f32.gmra.mxu0 %v4551
        %v4591 = vpop.f32.mrf.mxu0
        %v4592 = vadd.f32 0.0, %v4591
        %4593 = vmatmul.f32.gmra.mxu0 %v4554
        %v4594 = vpop.f32.mrf.mxu0
        %v4595 = vadd.f32 0.0, %v4594
        %4596 = vmatmul.f32.gmra.mxu0 %v4557
        %v4597 = vpop.f32.mrf.mxu0
        %v4598 = vadd.f32 0.0, %v4597
        %4599 = vmatmul.f32.gmra.mxu0 %v4560
        %v4600 = vpop.f32.mrf.mxu0
        %v4601 = vadd.f32 0.0, %v4600
        %4602 = vmatmul.f32.gmra.mxu0 %v4563
        %v4603 = vpop.f32.mrf.mxu0
        %v4604 = vadd.f32 0.0, %v4603
        %4605 = vmatmul.f32.gmra.mxu0 %v4566
        %v4606 = vpop.f32.mrf.mxu0
        %v4607 = vadd.f32 0.0, %v4606
        %4608 = vmatmul.f32.gmra.mxu0 %v4569
        %v4609 = vpop.f32.mrf.mxu0
        %v4610 = vadd.f32 0.0, %v4609
        %4611 = vdwg.mxu0
        %s4612 = scalar_lea.vmem %s11, 96
        %v4613 = vld [vmem:[%s4612] sm:$0xff]
        %v4614 = vld [vmem:[%s4612 + $0x8] sm:$0xff]
        %v4615 = vld [vmem:[%s4612 + $0x10] sm:$0xff]
        %v4616 = vld [vmem:[%s4612 + $0x18] sm:$0xff]
        %v4618 = vsel %vm4255, %v4589, 0
        %v4621 = vsel %vm4255, %v4592, 0
        %v4624 = vsel %vm4255, %v4595, 0
        %v4627 = vsel %vm4255, %v4598, 0
        %v4630 = vsel %vm4255, %v4601, 0
        %v4633 = vsel %vm4255, %v4604, 0
        %v4636 = vsel %vm4255, %v4607, 0
        %v4639 = vsel %vm4255, %v4610, 0
        %4641 = vmatpush.msra.mxu0 0.0
        %4642 = vmatpush.msra.mxu0 0.0
        %4643 = vmatpush.msra.mxu0 0.0
        %4644 = vmatpush.msra.mxu0 0.0
        %4645 = vmatpush.msra.mxu0 0.0
        %4646 = vmatpush.msra.mxu0 0.0
        %4647 = vmatpush.msra.mxu0 0.0
        %4648 = vmatpush.msra.mxu0 0.0
        %4649 = vmatpush.msra.mxu0 0.0
        %4650 = vmatpush.msra.mxu0 0.0
        %4651 = vmatpush.msra.mxu0 0.0
        %4652 = vmatpush.msra.mxu0 0.0
        %4653 = vmatpush.msra.mxu0 %v4616
        %4654 = vmatpush.msra.mxu0 %v4615
        %4655 = vmatpush.msra.mxu0 %v4614
        %4656 = vmatpush.msra.mxu0 %v4613
        %4657 = vmatmul.f32.gmra.mxu0 %v4618
        %v4658 = vpop.f32.mrf.mxu0
        %v4659 = vadd.f32 0.0, %v4658
        %4660 = vmatmul.f32.gmra.mxu0 %v4621
        %v4661 = vpop.f32.mrf.mxu0
        %v4662 = vadd.f32 0.0, %v4661
        %4663 = vmatmul.f32.gmra.mxu0 %v4624
        %v4664 = vpop.f32.mrf.mxu0
        %v4665 = vadd.f32 0.0, %v4664
        %4666 = vmatmul.f32.gmra.mxu0 %v4627
        %v4667 = vpop.f32.mrf.mxu0
        %v4668 = vadd.f32 0.0, %v4667
        %4669 = vmatmul.f32.gmra.mxu0 %v4630
        %v4670 = vpop.f32.mrf.mxu0
        %v4671 = vadd.f32 0.0, %v4670
        %4672 = vmatmul.f32.gmra.mxu0 %v4633
        %v4673 = vpop.f32.mrf.mxu0
        %v4674 = vadd.f32 0.0, %v4673
        %4675 = vmatmul.f32.gmra.mxu0 %v4636
        %v4676 = vpop.f32.mrf.mxu0
        %v4677 = vadd.f32 0.0, %v4676
        %4678 = vmatmul.f32.gmra.mxu0 %v4639
        %v4679 = vpop.f32.mrf.mxu0
        %v4680 = vadd.f32 0.0, %v4679
        %4681 = vdwg.mxu0
        %v4682 = vadd.f32 %v4530, %v4659
        %v4683 = vadd.f32 %v4531, %v4662
        %v4684 = vadd.f32 %v4532, %v4665
        %v4685 = vadd.f32 %v4533, %v4668
        %v4686 = vadd.f32 %v4534, %v4671
        %v4687 = vadd.f32 %v4535, %v4674
        %v4688 = vadd.f32 %v4536, %v4677
        %v4689 = vadd.f32 %v4537, %v4680
        %s4690 = scalar_lea.vmem %s3, 256
        %v4691 = vld [vmem:[%s4690] sm:$0xff]
        %v4692 = vld [vmem:[%s4690 + $0x8] sm:$0xff]
        %v4693 = vld [vmem:[%s4690 + $0x10] sm:$0xff]
        %v4694 = vld [vmem:[%s4690 + $0x18] sm:$0xff]
        %v4695 = vld [vmem:[%s4690 + $0x20] sm:$0xff]
        %v4696 = vld [vmem:[%s4690 + $0x28] sm:$0xff]
        %v4697 = vld [vmem:[%s4690 + $0x30] sm:$0xff]
        %v4698 = vld [vmem:[%s4690 + $0x38] sm:$0xff]
        %v4700 = vsel %vm4106, %v4691, 0
        %v4703 = vsel %vm4106, %v4692, 0
        %v4706 = vsel %vm4106, %v4693, 0
        %v4709 = vsel %vm4106, %v4694, 0
        %v4712 = vsel %vm4106, %v4695, 0
        %v4715 = vsel %vm4106, %v4696, 0
        %v4718 = vsel %vm4106, %v4697, 0
        %v4721 = vsel %vm4106, %v4698, 0
        %4723 = vmatpush.msra.mxu0 0.0
        %4724 = vmatpush.msra.mxu0 0.0
        %4725 = vmatpush.msra.mxu0 0.0
        %4726 = vmatpush.msra.mxu0 0.0
        %4727 = vmatpush.msra.mxu0 0.0
        %4728 = vmatpush.msra.mxu0 0.0
        %4729 = vmatpush.msra.mxu0 0.0
        %4730 = vmatpush.msra.mxu0 0.0
        %4731 = vmatpush.msra.mxu0 %v2503
        %4732 = vmatpush.msra.mxu0 %v2502
        %4733 = vmatpush.msra.mxu0 %v2501
        %4734 = vmatpush.msra.mxu0 %v2500
        %4735 = vmatpush.msra.mxu0 %v2499
        %4736 = vmatpush.msra.mxu0 %v2498
        %4737 = vmatpush.msra.mxu0 %v2497
        %4738 = vmatpush.msra.mxu0 %v2496
        %4739 = vmatmul.f32.gmra.mxu0 %v4700
        %v4740 = vpop.f32.mrf.mxu0
        %v4741 = vadd.f32 0.0, %v4740
        %4742 = vmatmul.f32.gmra.mxu0 %v4703
        %v4743 = vpop.f32.mrf.mxu0
        %v4744 = vadd.f32 0.0, %v4743
        %4745 = vmatmul.f32.gmra.mxu0 %v4706
        %v4746 = vpop.f32.mrf.mxu0
        %v4747 = vadd.f32 0.0, %v4746
        %4748 = vmatmul.f32.gmra.mxu0 %v4709
        %v4749 = vpop.f32.mrf.mxu0
        %v4750 = vadd.f32 0.0, %v4749
        %4751 = vmatmul.f32.gmra.mxu0 %v4712
        %v4752 = vpop.f32.mrf.mxu0
        %v4753 = vadd.f32 0.0, %v4752
        %4754 = vmatmul.f32.gmra.mxu0 %v4715
        %v4755 = vpop.f32.mrf.mxu0
        %v4756 = vadd.f32 0.0, %v4755
        %4757 = vmatmul.f32.gmra.mxu0 %v4718
        %v4758 = vpop.f32.mrf.mxu0
        %v4759 = vadd.f32 0.0, %v4758
        %4760 = vmatmul.f32.gmra.mxu0 %v4721
        %v4761 = vpop.f32.mrf.mxu0
        %v4762 = vadd.f32 0.0, %v4761
        %4763 = vdwg.mxu0
        %s4764 = scalar_lea.vmem %s11, 128
        %v4765 = vld [vmem:[%s4764] sm:$0xff]
        %v4766 = vld [vmem:[%s4764 + $0x8] sm:$0xff]
        %v4767 = vld [vmem:[%s4764 + $0x10] sm:$0xff]
        %v4768 = vld [vmem:[%s4764 + $0x18] sm:$0xff]
        %v4770 = vsel %vm4255, %v4741, 0
        %v4773 = vsel %vm4255, %v4744, 0
        %v4776 = vsel %vm4255, %v4747, 0
        %v4779 = vsel %vm4255, %v4750, 0
        %v4782 = vsel %vm4255, %v4753, 0
        %v4785 = vsel %vm4255, %v4756, 0
        %v4788 = vsel %vm4255, %v4759, 0
        %v4791 = vsel %vm4255, %v4762, 0
        %4793 = vmatpush.msra.mxu0 0.0
        %4794 = vmatpush.msra.mxu0 0.0
        %4795 = vmatpush.msra.mxu0 0.0
        %4796 = vmatpush.msra.mxu0 0.0
        %4797 = vmatpush.msra.mxu0 0.0
        %4798 = vmatpush.msra.mxu0 0.0
        %4799 = vmatpush.msra.mxu0 0.0
        %4800 = vmatpush.msra.mxu0 0.0
        %4801 = vmatpush.msra.mxu0 0.0
        %4802 = vmatpush.msra.mxu0 0.0
        %4803 = vmatpush.msra.mxu0 0.0
        %4804 = vmatpush.msra.mxu0 0.0
        %4805 = vmatpush.msra.mxu0 %v4768
        %4806 = vmatpush.msra.mxu0 %v4767
        %4807 = vmatpush.msra.mxu0 %v4766
        %4808 = vmatpush.msra.mxu0 %v4765
        %4809 = vmatmul.f32.gmra.mxu0 %v4770
        %v4810 = vpop.f32.mrf.mxu0
        %v4811 = vadd.f32 0.0, %v4810
        %4812 = vmatmul.f32.gmra.mxu0 %v4773
        %v4813 = vpop.f32.mrf.mxu0
        %v4814 = vadd.f32 0.0, %v4813
        %4815 = vmatmul.f32.gmra.mxu0 %v4776
        %v4816 = vpop.f32.mrf.mxu0
        %v4817 = vadd.f32 0.0, %v4816
        %4818 = vmatmul.f32.gmra.mxu0 %v4779
        %v4819 = vpop.f32.mrf.mxu0
        %v4820 = vadd.f32 0.0, %v4819
        %4821 = vmatmul.f32.gmra.mxu0 %v4782
        %v4822 = vpop.f32.mrf.mxu0
        %v4823 = vadd.f32 0.0, %v4822
        %4824 = vmatmul.f32.gmra.mxu0 %v4785
        %v4825 = vpop.f32.mrf.mxu0
        %v4826 = vadd.f32 0.0, %v4825
        %4827 = vmatmul.f32.gmra.mxu0 %v4788
        %v4828 = vpop.f32.mrf.mxu0
        %v4829 = vadd.f32 0.0, %v4828
        %4830 = vmatmul.f32.gmra.mxu0 %v4791
        %v4831 = vpop.f32.mrf.mxu0
        %v4832 = vadd.f32 0.0, %v4831
        %4833 = vdwg.mxu0
        %v4834 = vadd.f32 %v4682, %v4811
        %v4835 = vadd.f32 %v4683, %v4814
        %v4836 = vadd.f32 %v4684, %v4817
        %v4837 = vadd.f32 %v4685, %v4820
        %v4838 = vadd.f32 %v4686, %v4823
        %v4839 = vadd.f32 %v4687, %v4826
        %v4840 = vadd.f32 %v4688, %v4829
        %v4841 = vadd.f32 %v4689, %v4832
        %s4842 = scalar_lea.vmem %s3, 320
        %v4843 = vld [vmem:[%s4842] sm:$0xff]
        %v4844 = vld [vmem:[%s4842 + $0x8] sm:$0xff]
        %v4845 = vld [vmem:[%s4842 + $0x10] sm:$0xff]
        %v4846 = vld [vmem:[%s4842 + $0x18] sm:$0xff]
        %v4847 = vld [vmem:[%s4842 + $0x20] sm:$0xff]
        %v4848 = vld [vmem:[%s4842 + $0x28] sm:$0xff]
        %v4849 = vld [vmem:[%s4842 + $0x30] sm:$0xff]
        %v4850 = vld [vmem:[%s4842 + $0x38] sm:$0xff]
        %v4852 = vsel %vm4106, %v4843, 0
        %v4855 = vsel %vm4106, %v4844, 0
        %v4858 = vsel %vm4106, %v4845, 0
        %v4861 = vsel %vm4106, %v4846, 0
        %v4864 = vsel %vm4106, %v4847, 0
        %v4867 = vsel %vm4106, %v4848, 0
        %v4870 = vsel %vm4106, %v4849, 0
        %v4873 = vsel %vm4106, %v4850, 0
        %4875 = vmatpush.msra.mxu0 0.0
        %4876 = vmatpush.msra.mxu0 0.0
        %4877 = vmatpush.msra.mxu0 0.0
        %4878 = vmatpush.msra.mxu0 0.0
        %4879 = vmatpush.msra.mxu0 0.0
        %4880 = vmatpush.msra.mxu0 0.0
        %4881 = vmatpush.msra.mxu0 0.0
        %4882 = vmatpush.msra.mxu0 0.0
        %4883 = vmatpush.msra.mxu0 %v2503
        %4884 = vmatpush.msra.mxu0 %v2502
        %4885 = vmatpush.msra.mxu0 %v2501
        %4886 = vmatpush.msra.mxu0 %v2500
        %4887 = vmatpush.msra.mxu0 %v2499
        %4888 = vmatpush.msra.mxu0 %v2498
        %4889 = vmatpush.msra.mxu0 %v2497
        %4890 = vmatpush.msra.mxu0 %v2496
        %4891 = vmatmul.f32.gmra.mxu0 %v4852
        %v4892 = vpop.f32.mrf.mxu0
        %v4893 = vadd.f32 0.0, %v4892
        %4894 = vmatmul.f32.gmra.mxu0 %v4855
        %v4895 = vpop.f32.mrf.mxu0
        %v4896 = vadd.f32 0.0, %v4895
        %4897 = vmatmul.f32.gmra.mxu0 %v4858
        %v4898 = vpop.f32.mrf.mxu0
        %v4899 = vadd.f32 0.0, %v4898
        %4900 = vmatmul.f32.gmra.mxu0 %v4861
        %v4901 = vpop.f32.mrf.mxu0
        %v4902 = vadd.f32 0.0, %v4901
        %4903 = vmatmul.f32.gmra.mxu0 %v4864
        %v4904 = vpop.f32.mrf.mxu0
        %v4905 = vadd.f32 0.0, %v4904
        %4906 = vmatmul.f32.gmra.mxu0 %v4867
        %v4907 = vpop.f32.mrf.mxu0
        %v4908 = vadd.f32 0.0, %v4907
        %4909 = vmatmul.f32.gmra.mxu0 %v4870
        %v4910 = vpop.f32.mrf.mxu0
        %v4911 = vadd.f32 0.0, %v4910
        %4912 = vmatmul.f32.gmra.mxu0 %v4873
        %v4913 = vpop.f32.mrf.mxu0
        %v4914 = vadd.f32 0.0, %v4913
        %4915 = vdwg.mxu0
        %s4916 = scalar_lea.vmem %s11, 160
        %v4917 = vld [vmem:[%s4916] sm:$0xff]
        %v4918 = vld [vmem:[%s4916 + $0x8] sm:$0xff]
        %v4919 = vld [vmem:[%s4916 + $0x10] sm:$0xff]
        %v4920 = vld [vmem:[%s4916 + $0x18] sm:$0xff]
        %v4922 = vsel %vm4255, %v4893, 0
        %v4925 = vsel %vm4255, %v4896, 0
        %v4928 = vsel %vm4255, %v4899, 0
        %v4931 = vsel %vm4255, %v4902, 0
        %v4934 = vsel %vm4255, %v4905, 0
        %v4937 = vsel %vm4255, %v4908, 0
        %v4940 = vsel %vm4255, %v4911, 0
        %v4943 = vsel %vm4255, %v4914, 0
        %4945 = vmatpush.msra.mxu0 0.0
        %4946 = vmatpush.msra.mxu0 0.0
        %4947 = vmatpush.msra.mxu0 0.0
        %4948 = vmatpush.msra.mxu0 0.0
        %4949 = vmatpush.msra.mxu0 0.0
        %4950 = vmatpush.msra.mxu0 0.0
        %4951 = vmatpush.msra.mxu0 0.0
        %4952 = vmatpush.msra.mxu0 0.0
        %4953 = vmatpush.msra.mxu0 0.0
        %4954 = vmatpush.msra.mxu0 0.0
        %4955 = vmatpush.msra.mxu0 0.0
        %4956 = vmatpush.msra.mxu0 0.0
        %4957 = vmatpush.msra.mxu0 %v4920
        %4958 = vmatpush.msra.mxu0 %v4919
        %4959 = vmatpush.msra.mxu0 %v4918
        %4960 = vmatpush.msra.mxu0 %v4917
        %4961 = vmatmul.f32.gmra.mxu0 %v4922
        %v4962 = vpop.f32.mrf.mxu0
        %v4963 = vadd.f32 0.0, %v4962
        %4964 = vmatmul.f32.gmra.mxu0 %v4925
        %v4965 = vpop.f32.mrf.mxu0
        %v4966 = vadd.f32 0.0, %v4965
        %4967 = vmatmul.f32.gmra.mxu0 %v4928
        %v4968 = vpop.f32.mrf.mxu0
        %v4969 = vadd.f32 0.0, %v4968
        %4970 = vmatmul.f32.gmra.mxu0 %v4931
        %v4971 = vpop.f32.mrf.mxu0
        %v4972 = vadd.f32 0.0, %v4971
        %4973 = vmatmul.f32.gmra.mxu0 %v4934
        %v4974 = vpop.f32.mrf.mxu0
        %v4975 = vadd.f32 0.0, %v4974
        %4976 = vmatmul.f32.gmra.mxu0 %v4937
        %v4977 = vpop.f32.mrf.mxu0
        %v4978 = vadd.f32 0.0, %v4977
        %4979 = vmatmul.f32.gmra.mxu0 %v4940
        %v4980 = vpop.f32.mrf.mxu0
        %v4981 = vadd.f32 0.0, %v4980
        %4982 = vmatmul.f32.gmra.mxu0 %v4943
        %v4983 = vpop.f32.mrf.mxu0
        %v4984 = vadd.f32 0.0, %v4983
        %4985 = vdwg.mxu0
        %v4986 = vadd.f32 %v4834, %v4963
        %v4987 = vadd.f32 %v4835, %v4966
        %v4988 = vadd.f32 %v4836, %v4969
        %v4989 = vadd.f32 %v4837, %v4972
        %v4990 = vadd.f32 %v4838, %v4975
        %v4991 = vadd.f32 %v4839, %v4978
        %v4992 = vadd.f32 %v4840, %v4981
        %v4993 = vadd.f32 %v4841, %v4984
        %s4994 = scalar_lea.vmem %s3, 384
        %v4995 = vld [vmem:[%s4994] sm:$0xff]
        %v4996 = vld [vmem:[%s4994 + $0x8] sm:$0xff]
        %v4997 = vld [vmem:[%s4994 + $0x10] sm:$0xff]
        %v4998 = vld [vmem:[%s4994 + $0x18] sm:$0xff]
        %v4999 = vld [vmem:[%s4994 + $0x20] sm:$0xff]
        %v5000 = vld [vmem:[%s4994 + $0x28] sm:$0xff]
        %v5001 = vld [vmem:[%s4994 + $0x30] sm:$0xff]
        %v5002 = vld [vmem:[%s4994 + $0x38] sm:$0xff]
        %v5004 = vsel %vm4106, %v4995, 0
        %v5007 = vsel %vm4106, %v4996, 0
        %v5010 = vsel %vm4106, %v4997, 0
        %v5013 = vsel %vm4106, %v4998, 0
        %v5016 = vsel %vm4106, %v4999, 0
        %v5019 = vsel %vm4106, %v5000, 0
        %v5022 = vsel %vm4106, %v5001, 0
        %v5025 = vsel %vm4106, %v5002, 0
        %5027 = vmatpush.msra.mxu0 0.0
        %5028 = vmatpush.msra.mxu0 0.0
        %5029 = vmatpush.msra.mxu0 0.0
        %5030 = vmatpush.msra.mxu0 0.0
        %5031 = vmatpush.msra.mxu0 0.0
        %5032 = vmatpush.msra.mxu0 0.0
        %5033 = vmatpush.msra.mxu0 0.0
        %5034 = vmatpush.msra.mxu0 0.0
        %5035 = vmatpush.msra.mxu0 %v2503
        %5036 = vmatpush.msra.mxu0 %v2502
        %5037 = vmatpush.msra.mxu0 %v2501
        %5038 = vmatpush.msra.mxu0 %v2500
        %5039 = vmatpush.msra.mxu0 %v2499
        %5040 = vmatpush.msra.mxu0 %v2498
        %5041 = vmatpush.msra.mxu0 %v2497
        %5042 = vmatpush.msra.mxu0 %v2496
        %5043 = vmatmul.f32.gmra.mxu0 %v5004
        %v5044 = vpop.f32.mrf.mxu0
        %v5045 = vadd.f32 0.0, %v5044
        %5046 = vmatmul.f32.gmra.mxu0 %v5007
        %v5047 = vpop.f32.mrf.mxu0
        %v5048 = vadd.f32 0.0, %v5047
        %5049 = vmatmul.f32.gmra.mxu0 %v5010
        %v5050 = vpop.f32.mrf.mxu0
        %v5051 = vadd.f32 0.0, %v5050
        %5052 = vmatmul.f32.gmra.mxu0 %v5013
        %v5053 = vpop.f32.mrf.mxu0
        %v5054 = vadd.f32 0.0, %v5053
        %5055 = vmatmul.f32.gmra.mxu0 %v5016
        %v5056 = vpop.f32.mrf.mxu0
        %v5057 = vadd.f32 0.0, %v5056
        %5058 = vmatmul.f32.gmra.mxu0 %v5019
        %v5059 = vpop.f32.mrf.mxu0
        %v5060 = vadd.f32 0.0, %v5059
        %5061 = vmatmul.f32.gmra.mxu0 %v5022
        %v5062 = vpop.f32.mrf.mxu0
        %v5063 = vadd.f32 0.0, %v5062
        %5064 = vmatmul.f32.gmra.mxu0 %v5025
        %v5065 = vpop.f32.mrf.mxu0
        %v5066 = vadd.f32 0.0, %v5065
        %5067 = vdwg.mxu0
        %s5068 = scalar_lea.vmem %s11, 192
        %v5069 = vld [vmem:[%s5068] sm:$0xff]
        %v5070 = vld [vmem:[%s5068 + $0x8] sm:$0xff]
        %v5071 = vld [vmem:[%s5068 + $0x10] sm:$0xff]
        %v5072 = vld [vmem:[%s5068 + $0x18] sm:$0xff]
        %v5074 = vsel %vm4255, %v5045, 0
        %v5077 = vsel %vm4255, %v5048, 0
        %v5080 = vsel %vm4255, %v5051, 0
        %v5083 = vsel %vm4255, %v5054, 0
        %v5086 = vsel %vm4255, %v5057, 0
        %v5089 = vsel %vm4255, %v5060, 0
        %v5092 = vsel %vm4255, %v5063, 0
        %v5095 = vsel %vm4255, %v5066, 0
        %5097 = vmatpush.msra.mxu0 0.0
        %5098 = vmatpush.msra.mxu0 0.0
        %5099 = vmatpush.msra.mxu0 0.0
        %5100 = vmatpush.msra.mxu0 0.0
        %5101 = vmatpush.msra.mxu0 0.0
        %5102 = vmatpush.msra.mxu0 0.0
        %5103 = vmatpush.msra.mxu0 0.0
        %5104 = vmatpush.msra.mxu0 0.0
        %5105 = vmatpush.msra.mxu0 0.0
        %5106 = vmatpush.msra.mxu0 0.0
        %5107 = vmatpush.msra.mxu0 0.0
        %5108 = vmatpush.msra.mxu0 0.0
        %5109 = vmatpush.msra.mxu0 %v5072
        %5110 = vmatpush.msra.mxu0 %v5071
        %5111 = vmatpush.msra.mxu0 %v5070
        %5112 = vmatpush.msra.mxu0 %v5069
        %5113 = vmatmul.f32.gmra.mxu0 %v5074
        %v5114 = vpop.f32.mrf.mxu0
        %v5115 = vadd.f32 0.0, %v5114
        %5116 = vmatmul.f32.gmra.mxu0 %v5077
        %v5117 = vpop.f32.mrf.mxu0
        %v5118 = vadd.f32 0.0, %v5117
        %5119 = vmatmul.f32.gmra.mxu0 %v5080
        %v5120 = vpop.f32.mrf.mxu0
        %v5121 = vadd.f32 0.0, %v5120
        %5122 = vmatmul.f32.gmra.mxu0 %v5083
        %v5123 = vpop.f32.mrf.mxu0
        %v5124 = vadd.f32 0.0, %v5123
        %5125 = vmatmul.f32.gmra.mxu0 %v5086
        %v5126 = vpop.f32.mrf.mxu0
        %v5127 = vadd.f32 0.0, %v5126
        %5128 = vmatmul.f32.gmra.mxu0 %v5089
        %v5129 = vpop.f32.mrf.mxu0
        %v5130 = vadd.f32 0.0, %v5129
        %5131 = vmatmul.f32.gmra.mxu0 %v5092
        %v5132 = vpop.f32.mrf.mxu0
        %v5133 = vadd.f32 0.0, %v5132
        %5134 = vmatmul.f32.gmra.mxu0 %v5095
        %v5135 = vpop.f32.mrf.mxu0
        %v5136 = vadd.f32 0.0, %v5135
        %5137 = vdwg.mxu0
        %v5138 = vadd.f32 %v4986, %v5115
        %v5139 = vadd.f32 %v4987, %v5118
        %v5140 = vadd.f32 %v4988, %v5121
        %v5141 = vadd.f32 %v4989, %v5124
        %v5142 = vadd.f32 %v4990, %v5127
        %v5143 = vadd.f32 %v4991, %v5130
        %v5144 = vadd.f32 %v4992, %v5133
        %v5145 = vadd.f32 %v4993, %v5136
        %s5146 = scalar_lea.vmem %s3, 448
        %v5147 = vld [vmem:[%s5146] sm:$0xff]
        %v5148 = vld [vmem:[%s5146 + $0x8] sm:$0xff]
        %v5149 = vld [vmem:[%s5146 + $0x10] sm:$0xff]
        %v5150 = vld [vmem:[%s5146 + $0x18] sm:$0xff]
        %v5151 = vld [vmem:[%s5146 + $0x20] sm:$0xff]
        %v5152 = vld [vmem:[%s5146 + $0x28] sm:$0xff]
        %v5153 = vld [vmem:[%s5146 + $0x30] sm:$0xff]
        %v5154 = vld [vmem:[%s5146 + $0x38] sm:$0xff]
        %v5156 = vsel %vm4106, %v5147, 0
        %v5159 = vsel %vm4106, %v5148, 0
        %v5162 = vsel %vm4106, %v5149, 0
        %v5165 = vsel %vm4106, %v5150, 0
        %v5168 = vsel %vm4106, %v5151, 0
        %v5171 = vsel %vm4106, %v5152, 0
        %v5174 = vsel %vm4106, %v5153, 0
        %v5177 = vsel %vm4106, %v5154, 0
        %5179 = vmatpush.msra.mxu0 0.0
        %5180 = vmatpush.msra.mxu0 0.0
        %5181 = vmatpush.msra.mxu0 0.0
        %5182 = vmatpush.msra.mxu0 0.0
        %5183 = vmatpush.msra.mxu0 0.0
        %5184 = vmatpush.msra.mxu0 0.0
        %5185 = vmatpush.msra.mxu0 0.0
        %5186 = vmatpush.msra.mxu0 0.0
        %5187 = vmatpush.msra.mxu0 %v2503
        %5188 = vmatpush.msra.mxu0 %v2502
        %5189 = vmatpush.msra.mxu0 %v2501
        %5190 = vmatpush.msra.mxu0 %v2500
        %5191 = vmatpush.msra.mxu0 %v2499
        %5192 = vmatpush.msra.mxu0 %v2498
        %5193 = vmatpush.msra.mxu0 %v2497
        %5194 = vmatpush.msra.mxu0 %v2496
        %5195 = vmatmul.f32.gmra.mxu0 %v5156
        %v5196 = vpop.f32.mrf.mxu0
        %v5197 = vadd.f32 0.0, %v5196
        %5198 = vmatmul.f32.gmra.mxu0 %v5159
        %v5199 = vpop.f32.mrf.mxu0
        %v5200 = vadd.f32 0.0, %v5199
        %5201 = vmatmul.f32.gmra.mxu0 %v5162
        %v5202 = vpop.f32.mrf.mxu0
        %v5203 = vadd.f32 0.0, %v5202
        %5204 = vmatmul.f32.gmra.mxu0 %v5165
        %v5205 = vpop.f32.mrf.mxu0
        %v5206 = vadd.f32 0.0, %v5205
        %5207 = vmatmul.f32.gmra.mxu0 %v5168
        %v5208 = vpop.f32.mrf.mxu0
        %v5209 = vadd.f32 0.0, %v5208
        %5210 = vmatmul.f32.gmra.mxu0 %v5171
        %v5211 = vpop.f32.mrf.mxu0
        %v5212 = vadd.f32 0.0, %v5211
        %5213 = vmatmul.f32.gmra.mxu0 %v5174
        %v5214 = vpop.f32.mrf.mxu0
        %v5215 = vadd.f32 0.0, %v5214
        %5216 = vmatmul.f32.gmra.mxu0 %v5177
        %v5217 = vpop.f32.mrf.mxu0
        %v5218 = vadd.f32 0.0, %v5217
        %5219 = vdwg.mxu0
        %s5220 = scalar_lea.vmem %s11, 224
        %v5221 = vld [vmem:[%s5220] sm:$0xff]
        %v5222 = vld [vmem:[%s5220 + $0x8] sm:$0xff]
        %v5223 = vld [vmem:[%s5220 + $0x10] sm:$0xff]
        %v5224 = vld [vmem:[%s5220 + $0x18] sm:$0xff]
        %v5226 = vsel %vm4255, %v5197, 0
        %v5229 = vsel %vm4255, %v5200, 0
        %v5232 = vsel %vm4255, %v5203, 0
        %v5235 = vsel %vm4255, %v5206, 0
        %v5238 = vsel %vm4255, %v5209, 0
        %v5241 = vsel %vm4255, %v5212, 0
        %v5244 = vsel %vm4255, %v5215, 0
        %v5247 = vsel %vm4255, %v5218, 0
        %5249 = vmatpush.msra.mxu0 0.0
        %5250 = vmatpush.msra.mxu0 0.0
        %5251 = vmatpush.msra.mxu0 0.0
        %5252 = vmatpush.msra.mxu0 0.0
        %5253 = vmatpush.msra.mxu0 0.0
        %5254 = vmatpush.msra.mxu0 0.0
        %5255 = vmatpush.msra.mxu0 0.0
        %5256 = vmatpush.msra.mxu0 0.0
        %5257 = vmatpush.msra.mxu0 0.0
        %5258 = vmatpush.msra.mxu0 0.0
        %5259 = vmatpush.msra.mxu0 0.0
        %5260 = vmatpush.msra.mxu0 0.0
        %5261 = vmatpush.msra.mxu0 %v5224
        %5262 = vmatpush.msra.mxu0 %v5223
        %5263 = vmatpush.msra.mxu0 %v5222
        %5264 = vmatpush.msra.mxu0 %v5221
        %5265 = vmatmul.f32.gmra.mxu0 %v5226
        %v5266 = vpop.f32.mrf.mxu0
        %v5267 = vadd.f32 0.0, %v5266
        %5268 = vmatmul.f32.gmra.mxu0 %v5229
        %v5269 = vpop.f32.mrf.mxu0
        %v5270 = vadd.f32 0.0, %v5269
        %5271 = vmatmul.f32.gmra.mxu0 %v5232
        %v5272 = vpop.f32.mrf.mxu0
        %v5273 = vadd.f32 0.0, %v5272
        %5274 = vmatmul.f32.gmra.mxu0 %v5235
        %v5275 = vpop.f32.mrf.mxu0
        %v5276 = vadd.f32 0.0, %v5275
        %5277 = vmatmul.f32.gmra.mxu0 %v5238
        %v5278 = vpop.f32.mrf.mxu0
        %v5279 = vadd.f32 0.0, %v5278
        %5280 = vmatmul.f32.gmra.mxu0 %v5241
        %v5281 = vpop.f32.mrf.mxu0
        %v5282 = vadd.f32 0.0, %v5281
        %5283 = vmatmul.f32.gmra.mxu0 %v5244
        %v5284 = vpop.f32.mrf.mxu0
        %v5285 = vadd.f32 0.0, %v5284
        %5286 = vmatmul.f32.gmra.mxu0 %v5247
        %v5287 = vpop.f32.mrf.mxu0
        %v5288 = vadd.f32 0.0, %v5287
        %5289 = vdwg.mxu0
        %v5290 = vadd.f32 %v5138, %v5267
        %v5291 = vadd.f32 %v5139, %v5270
        %v5292 = vadd.f32 %v5140, %v5273
        %v5293 = vadd.f32 %v5141, %v5276
        %v5294 = vadd.f32 %v5142, %v5279
        %v5295 = vadd.f32 %v5143, %v5282
        %v5296 = vadd.f32 %v5144, %v5285
        %v5297 = vadd.f32 %v5145, %v5288
        %s5298 = scalar_lea.vmem %s3, 512
        %v5299 = vld [vmem:[%s5298] sm:$0xff]
        %v5300 = vld [vmem:[%s5298 + $0x8] sm:$0xff]
        %v5301 = vld [vmem:[%s5298 + $0x10] sm:$0xff]
        %v5302 = vld [vmem:[%s5298 + $0x18] sm:$0xff]
        %v5303 = vld [vmem:[%s5298 + $0x20] sm:$0xff]
        %v5304 = vld [vmem:[%s5298 + $0x28] sm:$0xff]
        %v5305 = vld [vmem:[%s5298 + $0x30] sm:$0xff]
        %v5306 = vld [vmem:[%s5298 + $0x38] sm:$0xff]
        %v5308 = vsel %vm4106, %v5299, 0
        %v5311 = vsel %vm4106, %v5300, 0
        %v5314 = vsel %vm4106, %v5301, 0
        %v5317 = vsel %vm4106, %v5302, 0
        %v5320 = vsel %vm4106, %v5303, 0
        %v5323 = vsel %vm4106, %v5304, 0
        %v5326 = vsel %vm4106, %v5305, 0
        %v5329 = vsel %vm4106, %v5306, 0
        %5331 = vmatpush.msra.mxu0 0.0
        %5332 = vmatpush.msra.mxu0 0.0
        %5333 = vmatpush.msra.mxu0 0.0
        %5334 = vmatpush.msra.mxu0 0.0
        %5335 = vmatpush.msra.mxu0 0.0
        %5336 = vmatpush.msra.mxu0 0.0
        %5337 = vmatpush.msra.mxu0 0.0
        %5338 = vmatpush.msra.mxu0 0.0
        %5339 = vmatpush.msra.mxu0 %v2503
        %5340 = vmatpush.msra.mxu0 %v2502
        %5341 = vmatpush.msra.mxu0 %v2501
        %5342 = vmatpush.msra.mxu0 %v2500
        %5343 = vmatpush.msra.mxu0 %v2499
        %5344 = vmatpush.msra.mxu0 %v2498
        %5345 = vmatpush.msra.mxu0 %v2497
        %5346 = vmatpush.msra.mxu0 %v2496
        %5347 = vmatmul.f32.gmra.mxu0 %v5308
        %v5348 = vpop.f32.mrf.mxu0
        %v5349 = vadd.f32 0.0, %v5348
        %5350 = vmatmul.f32.gmra.mxu0 %v5311
        %v5351 = vpop.f32.mrf.mxu0
        %v5352 = vadd.f32 0.0, %v5351
        %5353 = vmatmul.f32.gmra.mxu0 %v5314
        %v5354 = vpop.f32.mrf.mxu0
        %v5355 = vadd.f32 0.0, %v5354
        %5356 = vmatmul.f32.gmra.mxu0 %v5317
        %v5357 = vpop.f32.mrf.mxu0
        %v5358 = vadd.f32 0.0, %v5357
        %5359 = vmatmul.f32.gmra.mxu0 %v5320
        %v5360 = vpop.f32.mrf.mxu0
        %v5361 = vadd.f32 0.0, %v5360
        %5362 = vmatmul.f32.gmra.mxu0 %v5323
        %v5363 = vpop.f32.mrf.mxu0
        %v5364 = vadd.f32 0.0, %v5363
        %5365 = vmatmul.f32.gmra.mxu0 %v5326
        %v5366 = vpop.f32.mrf.mxu0
        %v5367 = vadd.f32 0.0, %v5366
        %5368 = vmatmul.f32.gmra.mxu0 %v5329
        %v5369 = vpop.f32.mrf.mxu0
        %v5370 = vadd.f32 0.0, %v5369
        %5371 = vdwg.mxu0
        %s5372 = scalar_lea.vmem %s11, 256
        %v5373 = vld [vmem:[%s5372] sm:$0xff]
        %v5374 = vld [vmem:[%s5372 + $0x8] sm:$0xff]
        %v5375 = vld [vmem:[%s5372 + $0x10] sm:$0xff]
        %v5376 = vld [vmem:[%s5372 + $0x18] sm:$0xff]
        %v5378 = vsel %vm4255, %v5349, 0
        %v5381 = vsel %vm4255, %v5352, 0
        %v5384 = vsel %vm4255, %v5355, 0
        %v5387 = vsel %vm4255, %v5358, 0
        %v5390 = vsel %vm4255, %v5361, 0
        %v5393 = vsel %vm4255, %v5364, 0
        %v5396 = vsel %vm4255, %v5367, 0
        %v5399 = vsel %vm4255, %v5370, 0
        %5401 = vmatpush.msra.mxu0 0.0
        %5402 = vmatpush.msra.mxu0 0.0
        %5403 = vmatpush.msra.mxu0 0.0
        %5404 = vmatpush.msra.mxu0 0.0
        %5405 = vmatpush.msra.mxu0 0.0
        %5406 = vmatpush.msra.mxu0 0.0
        %5407 = vmatpush.msra.mxu0 0.0
        %5408 = vmatpush.msra.mxu0 0.0
        %5409 = vmatpush.msra.mxu0 0.0
        %5410 = vmatpush.msra.mxu0 0.0
        %5411 = vmatpush.msra.mxu0 0.0
        %5412 = vmatpush.msra.mxu0 0.0
        %5413 = vmatpush.msra.mxu0 %v5376
        %5414 = vmatpush.msra.mxu0 %v5375
        %5415 = vmatpush.msra.mxu0 %v5374
        %5416 = vmatpush.msra.mxu0 %v5373
        %5417 = vmatmul.f32.gmra.mxu0 %v5378
        %v5418 = vpop.f32.mrf.mxu0
        %v5419 = vadd.f32 0.0, %v5418
        %5420 = vmatmul.f32.gmra.mxu0 %v5381
        %v5421 = vpop.f32.mrf.mxu0
        %v5422 = vadd.f32 0.0, %v5421
        %5423 = vmatmul.f32.gmra.mxu0 %v5384
        %v5424 = vpop.f32.mrf.mxu0
        %v5425 = vadd.f32 0.0, %v5424
        %5426 = vmatmul.f32.gmra.mxu0 %v5387
        %v5427 = vpop.f32.mrf.mxu0
        %v5428 = vadd.f32 0.0, %v5427
        %5429 = vmatmul.f32.gmra.mxu0 %v5390
        %v5430 = vpop.f32.mrf.mxu0
        %v5431 = vadd.f32 0.0, %v5430
        %5432 = vmatmul.f32.gmra.mxu0 %v5393
        %v5433 = vpop.f32.mrf.mxu0
        %v5434 = vadd.f32 0.0, %v5433
        %5435 = vmatmul.f32.gmra.mxu0 %v5396
        %v5436 = vpop.f32.mrf.mxu0
        %v5437 = vadd.f32 0.0, %v5436
        %5438 = vmatmul.f32.gmra.mxu0 %v5399
        %v5439 = vpop.f32.mrf.mxu0
        %v5440 = vadd.f32 0.0, %v5439
        %5441 = vdwg.mxu0
        %v5442 = vadd.f32 %v5290, %v5419
        %v5443 = vadd.f32 %v5291, %v5422
        %v5444 = vadd.f32 %v5292, %v5425
        %v5445 = vadd.f32 %v5293, %v5428
        %v5446 = vadd.f32 %v5294, %v5431
        %v5447 = vadd.f32 %v5295, %v5434
        %v5448 = vadd.f32 %v5296, %v5437
        %v5449 = vadd.f32 %v5297, %v5440
        %s5450 = scalar_lea.vmem %s11, 288
        %v5451 = vld [vmem:[%s5450] sm:$0x1]
        %v5452 = vperm.slane %v5451, 0
        %v5453 = vadd.f32 %v5442, %v5452
        %v5454 = vadd.f32 %v5443, %v5452
        %v5455 = vadd.f32 %v5444, %v5452
        %v5456 = vadd.f32 %v5445, %v5452
        %v5457 = vadd.f32 %v5446, %v5452
        %v5458 = vadd.f32 %v5447, %v5452
        %v5459 = vadd.f32 %v5448, %v5452
        %v5460 = vadd.f32 %v5449, %v5452
        %v5461 = vxor.u32 %v5453, 2147483648
        %v5462 = vxor.u32 %v5454, 2147483648
        %v5463 = vxor.u32 %v5455, 2147483648
        %v5464 = vxor.u32 %v5456, 2147483648
        %v5465 = vxor.u32 %v5457, 2147483648
        %v5466 = vxor.u32 %v5458, 2147483648
        %v5467 = vxor.u32 %v5459, 2147483648
        %v5468 = vxor.u32 %v5460, 2147483648
        %v5469 = vmul.f32 %v5461, 1.442695
        %v5470 = vpow.pop %v5469
        %v5471 = vmul.f32 %v5462, 1.442695
        %v5472 = vpow.pop %v5471
        %v5473 = vmul.f32 %v5463, 1.442695
        %v5474 = vpow.pop %v5473
        %v5475 = vmul.f32 %v5464, 1.442695
        %v5476 = vpow.pop %v5475
        %v5477 = vmul.f32 %v5465, 1.442695
        %v5478 = vpow.pop %v5477
        %v5479 = vmul.f32 %v5466, 1.442695
        %v5480 = vpow.pop %v5479
        %v5481 = vmul.f32 %v5467, 1.442695
        %v5482 = vpow.pop %v5481
        %v5483 = vmul.f32 %v5468, 1.442695
        %v5484 = vpow.pop %v5483
        %v5485 = vadd.f32 %v5470, 1.0
        %v5486 = vadd.f32 %v5472, 1.0
        %v5487 = vadd.f32 %v5474, 1.0
        %v5488 = vadd.f32 %v5476, 1.0
        %v5489 = vadd.f32 %v5478, 1.0
        %v5490 = vadd.f32 %v5480, 1.0
        %v5491 = vadd.f32 %v5482, 1.0
        %v5492 = vadd.f32 %v5484, 1.0
        %v5493 = vrcp.pop %v5485
        %v5494 = vmul.f32 %v5485, %v5493
        %v5495 = vsub.f32 1.0, %v5494
        %v5496 = vmul.f32 %v5493, %v5495
        %v5497 = vadd.f32 %v5493, %v5496
        %vm5498 = vweird.f32 %v5485
        %vm5499 = vweird.f32 %v5493
        %vm5500 = vmor %vm5498, %vm5499
        %v5501 = vsel %vm5500, %v5493, %v5497
        %v5502 = vand.u32 2147483647, %v5485
        %vm5503 = vcmp.eq.f32.partialorder %v5502, 8.507059e+37
        %v5504 = vand.u32 %v5485, 2147483648
        %v5505 = vor.u32 1.1754944e-38, %v5504
        %v5506 = vsel %vm5503, %v5505, %v5501
        %v5507 = vmul.f32 1.0, %v5506
        %v5508 = vrcp.pop %v5486
        %v5509 = vmul.f32 %v5486, %v5508
        %v5510 = vsub.f32 1.0, %v5509
        %v5511 = vmul.f32 %v5508, %v5510
        %v5512 = vadd.f32 %v5508, %v5511
        %vm5513 = vweird.f32 %v5486
        %vm5514 = vweird.f32 %v5508
        %vm5515 = vmor %vm5513, %vm5514
        %v5516 = vsel %vm5515, %v5508, %v5512
        %v5517 = vand.u32 2147483647, %v5486
        %vm5518 = vcmp.eq.f32.partialorder %v5517, 8.507059e+37
        %v5519 = vand.u32 %v5486, 2147483648
        %v5520 = vor.u32 1.1754944e-38, %v5519
        %v5521 = vsel %vm5518, %v5520, %v5516
        %v5522 = vmul.f32 1.0, %v5521
        %v5523 = vrcp.pop %v5487
        %v5524 = vmul.f32 %v5487, %v5523
        %v5525 = vsub.f32 1.0, %v5524
        %v5526 = vmul.f32 %v5523, %v5525
        %v5527 = vadd.f32 %v5523, %v5526
        %vm5528 = vweird.f32 %v5487
        %vm5529 = vweird.f32 %v5523
        %vm5530 = vmor %vm5528, %vm5529
        %v5531 = vsel %vm5530, %v5523, %v5527
        %v5532 = vand.u32 2147483647, %v5487
        %vm5533 = vcmp.eq.f32.partialorder %v5532, 8.507059e+37
        %v5534 = vand.u32 %v5487, 2147483648
        %v5535 = vor.u32 1.1754944e-38, %v5534
        %v5536 = vsel %vm5533, %v5535, %v5531
        %v5537 = vmul.f32 1.0, %v5536
        %v5538 = vrcp.pop %v5488
        %v5539 = vmul.f32 %v5488, %v5538
        %v5540 = vsub.f32 1.0, %v5539
        %v5541 = vmul.f32 %v5538, %v5540
        %v5542 = vadd.f32 %v5538, %v5541
        %vm5543 = vweird.f32 %v5488
        %vm5544 = vweird.f32 %v5538
        %vm5545 = vmor %vm5543, %vm5544
        %v5546 = vsel %vm5545, %v5538, %v5542
        %v5547 = vand.u32 2147483647, %v5488
        %vm5548 = vcmp.eq.f32.partialorder %v5547, 8.507059e+37
        %v5549 = vand.u32 %v5488, 2147483648
        %v5550 = vor.u32 1.1754944e-38, %v5549
        %v5551 = vsel %vm5548, %v5550, %v5546
        %v5552 = vmul.f32 1.0, %v5551
        %v5553 = vrcp.pop %v5489
        %v5554 = vmul.f32 %v5489, %v5553
        %v5555 = vsub.f32 1.0, %v5554
        %v5556 = vmul.f32 %v5553, %v5555
        %v5557 = vadd.f32 %v5553, %v5556
        %vm5558 = vweird.f32 %v5489
        %vm5559 = vweird.f32 %v5553
        %vm5560 = vmor %vm5558, %vm5559
        %v5561 = vsel %vm5560, %v5553, %v5557
        %v5562 = vand.u32 2147483647, %v5489
        %vm5563 = vcmp.eq.f32.partialorder %v5562, 8.507059e+37
        %v5564 = vand.u32 %v5489, 2147483648
        %v5565 = vor.u32 1.1754944e-38, %v5564
        %v5566 = vsel %vm5563, %v5565, %v5561
        %v5567 = vmul.f32 1.0, %v5566
        %v5568 = vrcp.pop %v5490
        %v5569 = vmul.f32 %v5490, %v5568
        %v5570 = vsub.f32 1.0, %v5569
        %v5571 = vmul.f32 %v5568, %v5570
        %v5572 = vadd.f32 %v5568, %v5571
        %vm5573 = vweird.f32 %v5490
        %vm5574 = vweird.f32 %v5568
        %vm5575 = vmor %vm5573, %vm5574
        %v5576 = vsel %vm5575, %v5568, %v5572
        %v5577 = vand.u32 2147483647, %v5490
        %vm5578 = vcmp.eq.f32.partialorder %v5577, 8.507059e+37
        %v5579 = vand.u32 %v5490, 2147483648
        %v5580 = vor.u32 1.1754944e-38, %v5579
        %v5581 = vsel %vm5578, %v5580, %v5576
        %v5582 = vmul.f32 1.0, %v5581
        %v5583 = vrcp.pop %v5491
        %v5584 = vmul.f32 %v5491, %v5583
        %v5585 = vsub.f32 1.0, %v5584
        %v5586 = vmul.f32 %v5583, %v5585
        %v5587 = vadd.f32 %v5583, %v5586
        %vm5588 = vweird.f32 %v5491
        %vm5589 = vweird.f32 %v5583
        %vm5590 = vmor %vm5588, %vm5589
        %v5591 = vsel %vm5590, %v5583, %v5587
        %v5592 = vand.u32 2147483647, %v5491
        %vm5593 = vcmp.eq.f32.partialorder %v5592, 8.507059e+37
        %v5594 = vand.u32 %v5491, 2147483648
        %v5595 = vor.u32 1.1754944e-38, %v5594
        %v5596 = vsel %vm5593, %v5595, %v5591
        %v5597 = vmul.f32 1.0, %v5596
        %v5598 = vrcp.pop %v5492
        %v5599 = vmul.f32 %v5492, %v5598
        %v5600 = vsub.f32 1.0, %v5599
        %v5601 = vmul.f32 %v5598, %v5600
        %v5602 = vadd.f32 %v5598, %v5601
        %vm5603 = vweird.f32 %v5492
        %vm5604 = vweird.f32 %v5598
        %vm5605 = vmor %vm5603, %vm5604
        %v5606 = vsel %vm5605, %v5598, %v5602
        %v5607 = vand.u32 2147483647, %v5492
        %vm5608 = vcmp.eq.f32.partialorder %v5607, 8.507059e+37
        %v5609 = vand.u32 %v5492, 2147483648
        %v5610 = vor.u32 1.1754944e-38, %v5609
        %v5611 = vsel %vm5608, %v5610, %v5606
        %v5612 = vmul.f32 1.0, %v5611
        %v5613 = vmul.f32 %v5453, %v5507
        %v5614 = vmul.f32 %v5454, %v5522
        %v5615 = vmul.f32 %v5455, %v5537
        %v5616 = vmul.f32 %v5456, %v5552
        %v5617 = vmul.f32 %v5457, %v5567
        %v5618 = vmul.f32 %v5458, %v5582
        %v5619 = vmul.f32 %v5459, %v5597
        %v5620 = vmul.f32 %v5460, %v5612
        %5621 = vmatpush.msra.mxu0 0.0
        %5622 = vmatpush.msra.mxu0 0.0
        %5623 = vmatpush.msra.mxu0 0.0
        %5624 = vmatpush.msra.mxu0 0.0
        %5625 = vmatpush.msra.mxu0 0.0
        %5626 = vmatpush.msra.mxu0 0.0
        %5627 = vmatpush.msra.mxu0 0.0
        %5628 = vmatpush.msra.mxu0 0.0
        %5629 = vmatpush.msra.mxu0 %v4097
        %5630 = vmatpush.msra.mxu0 %v4096
        %5631 = vmatpush.msra.mxu0 %v4095
        %5632 = vmatpush.msra.mxu0 %v4094
        %5633 = vmatpush.msra.mxu0 %v4093
        %5634 = vmatpush.msra.mxu0 %v4092
        %5635 = vmatpush.msra.mxu0 %v4091
        %5636 = vmatpush.msra.mxu0 %v4090
        %5637 = vmatmul.f32.gmra.mxu0 %v4108
        %v5638 = vpop.f32.mrf.mxu0
        %v5639 = vadd.f32 0.0, %v5638
        %5640 = vmatmul.f32.gmra.mxu0 %v4111
        %v5641 = vpop.f32.mrf.mxu0
        %v5642 = vadd.f32 0.0, %v5641
        %5643 = vmatmul.f32.gmra.mxu0 %v4114
        %v5644 = vpop.f32.mrf.mxu0
        %v5645 = vadd.f32 0.0, %v5644
        %5646 = vmatmul.f32.gmra.mxu0 %v4117
        %v5647 = vpop.f32.mrf.mxu0
        %v5648 = vadd.f32 0.0, %v5647
        %5649 = vmatmul.f32.gmra.mxu0 %v4120
        %v5650 = vpop.f32.mrf.mxu0
        %v5651 = vadd.f32 0.0, %v5650
        %5652 = vmatmul.f32.gmra.mxu0 %v4123
        %v5653 = vpop.f32.mrf.mxu0
        %v5654 = vadd.f32 0.0, %v5653
        %5655 = vmatmul.f32.gmra.mxu0 %v4126
        %v5656 = vpop.f32.mrf.mxu0
        %v5657 = vadd.f32 0.0, %v5656
        %5658 = vmatmul.f32.gmra.mxu0 %v4129
        %v5659 = vpop.f32.mrf.mxu0
        %v5660 = vadd.f32 0.0, %v5659
        %5661 = vdwg.mxu0
        %v5662 = vld [vmem:[%s7] sm:$0xff]
        %v5663 = vld [vmem:[%s7 + $0x8] sm:$0xff]
        %v5664 = vld [vmem:[%s7 + $0x10] sm:$0xff]
        %v5665 = vld [vmem:[%s7 + $0x18] sm:$0xff]
        %5666 = vmatpush.msra.mxu0 0.0
        %5667 = vmatpush.msra.mxu0 0.0
        %5668 = vmatpush.msra.mxu0 0.0
        %5669 = vmatpush.msra.mxu0 0.0
        %5670 = vmatpush.msra.mxu0 0.0
        %5671 = vmatpush.msra.mxu0 0.0
        %5672 = vmatpush.msra.mxu0 0.0
        %5673 = vmatpush.msra.mxu0 0.0
        %5674 = vmatpush.msra.mxu0 %v4097
        %5675 = vmatpush.msra.mxu0 %v4096
        %5676 = vmatpush.msra.mxu0 %v4095
        %5677 = vmatpush.msra.mxu0 %v4094
        %5678 = vmatpush.msra.mxu0 %v4093
        %5679 = vmatpush.msra.mxu0 %v4092
        %5680 = vmatpush.msra.mxu0 %v4091
        %5681 = vmatpush.msra.mxu0 %v4090
        %5682 = vmatmul.f32.gmra.mxu0 %v4186
        %v5683 = vpop.f32.mrf.mxu0
        %v5684 = vadd.f32 0.0, %v5683
        %5685 = vmatmul.f32.gmra.mxu0 %v4189
        %v5686 = vpop.f32.mrf.mxu0
        %v5687 = vadd.f32 0.0, %v5686
        %5688 = vmatmul.f32.gmra.mxu0 %v4192
        %v5689 = vpop.f32.mrf.mxu0
        %v5690 = vadd.f32 0.0, %v5689
        %5691 = vmatmul.f32.gmra.mxu0 %v4195
        %v5692 = vpop.f32.mrf.mxu0
        %v5693 = vadd.f32 0.0, %v5692
        %5694 = vmatmul.f32.gmra.mxu0 %v4198
        %v5695 = vpop.f32.mrf.mxu0
        %v5696 = vadd.f32 0.0, %v5695
        %5697 = vmatmul.f32.gmra.mxu0 %v4201
        %v5698 = vpop.f32.mrf.mxu0
        %v5699 = vadd.f32 0.0, %v5698
        %5700 = vmatmul.f32.gmra.mxu0 %v4204
        %v5701 = vpop.f32.mrf.mxu0
        %v5702 = vadd.f32 0.0, %v5701
        %5703 = vmatmul.f32.gmra.mxu0 %v4207
        %v5704 = vpop.f32.mrf.mxu0
        %v5705 = vadd.f32 0.0, %v5704
        %5706 = vdwg.mxu0
        %s5707 = scalar_lea.vmem %s7, 32
        %v5708 = vld [vmem:[%s5707] sm:$0xff]
        %v5709 = vld [vmem:[%s5707 + $0x8] sm:$0xff]
        %v5710 = vld [vmem:[%s5707 + $0x10] sm:$0xff]
        %v5711 = vld [vmem:[%s5707 + $0x18] sm:$0xff]
        %v5713 = vsel %vm4255, %v5684, 0
        %v5716 = vsel %vm4255, %v5687, 0
        %v5719 = vsel %vm4255, %v5690, 0
        %v5722 = vsel %vm4255, %v5693, 0
        %v5725 = vsel %vm4255, %v5696, 0
        %v5728 = vsel %vm4255, %v5699, 0
        %v5731 = vsel %vm4255, %v5702, 0
        %v5734 = vsel %vm4255, %v5705, 0
        %5736 = vmatpush.msra.mxu0 0.0
        %5737 = vmatpush.msra.mxu0 0.0
        %5738 = vmatpush.msra.mxu0 0.0
        %5739 = vmatpush.msra.mxu0 0.0
        %5740 = vmatpush.msra.mxu0 0.0
        %5741 = vmatpush.msra.mxu0 0.0
        %5742 = vmatpush.msra.mxu0 0.0
        %5743 = vmatpush.msra.mxu0 0.0
        %5744 = vmatpush.msra.mxu0 0.0
        %5745 = vmatpush.msra.mxu0 0.0
        %5746 = vmatpush.msra.mxu0 0.0
        %5747 = vmatpush.msra.mxu0 0.0
        %5748 = vmatpush.msra.mxu0 %v5711
        %5749 = vmatpush.msra.mxu0 %v5710
        %5750 = vmatpush.msra.mxu0 %v5709
        %5751 = vmatpush.msra.mxu0 %v5708
        %5752 = vmatmul.f32.gmra.mxu0 %v5713
        %v5753 = vpop.f32.mrf.mxu0
        %v5754 = vadd.f32 0.0, %v5753
        %5755 = vmatmul.f32.gmra.mxu0 %v5716
        %v5756 = vpop.f32.mrf.mxu0
        %v5757 = vadd.f32 0.0, %v5756
        %5758 = vmatmul.f32.gmra.mxu0 %v5719
        %v5759 = vpop.f32.mrf.mxu0
        %v5760 = vadd.f32 0.0, %v5759
        %5761 = vmatmul.f32.gmra.mxu0 %v5722
        %v5762 = vpop.f32.mrf.mxu0
        %v5763 = vadd.f32 0.0, %v5762
        %5764 = vmatmul.f32.gmra.mxu0 %v5725
        %v5765 = vpop.f32.mrf.mxu0
        %v5766 = vadd.f32 0.0, %v5765
        %5767 = vmatmul.f32.gmra.mxu0 %v5728
        %v5768 = vpop.f32.mrf.mxu0
        %v5769 = vadd.f32 0.0, %v5768
        %5770 = vmatmul.f32.gmra.mxu0 %v5731
        %v5771 = vpop.f32.mrf.mxu0
        %v5772 = vadd.f32 0.0, %v5771
        %5773 = vmatmul.f32.gmra.mxu0 %v5734
        %v5774 = vpop.f32.mrf.mxu0
        %v5775 = vadd.f32 0.0, %v5774
        %5776 = vdwg.mxu0
        %v5778 = vsel %vm4255, %v5639, 0
        %v5781 = vsel %vm4255, %v5642, 0
        %v5784 = vsel %vm4255, %v5645, 0
        %v5787 = vsel %vm4255, %v5648, 0
        %v5790 = vsel %vm4255, %v5651, 0
        %v5793 = vsel %vm4255, %v5654, 0
        %v5796 = vsel %vm4255, %v5657, 0
        %v5799 = vsel %vm4255, %v5660, 0
        %5801 = vmatpush.msra.mxu0 0.0
        %5802 = vmatpush.msra.mxu0 0.0
        %5803 = vmatpush.msra.mxu0 0.0
        %5804 = vmatpush.msra.mxu0 0.0
        %5805 = vmatpush.msra.mxu0 0.0
        %5806 = vmatpush.msra.mxu0 0.0
        %5807 = vmatpush.msra.mxu0 0.0
        %5808 = vmatpush.msra.mxu0 0.0
        %5809 = vmatpush.msra.mxu0 0.0
        %5810 = vmatpush.msra.mxu0 0.0
        %5811 = vmatpush.msra.mxu0 0.0
        %5812 = vmatpush.msra.mxu0 0.0
        %5813 = vmatpush.msra.mxu0 %v5665
        %5814 = vmatpush.msra.mxu0 %v5664
        %5815 = vmatpush.msra.mxu0 %v5663
        %5816 = vmatpush.msra.mxu0 %v5662
        %5817 = vmatmul.f32.gmra.mxu0 %v5778
        %v5818 = vpop.f32.mrf.mxu0
        %v5819 = vadd.f32 %v5754, %v5818
        %5820 = vmatmul.f32.gmra.mxu0 %v5781
        %v5821 = vpop.f32.mrf.mxu0
        %v5822 = vadd.f32 %v5757, %v5821
        %5823 = vmatmul.f32.gmra.mxu0 %v5784
        %v5824 = vpop.f32.mrf.mxu0
        %v5825 = vadd.f32 %v5760, %v5824
        %5826 = vmatmul.f32.gmra.mxu0 %v5787
        %v5827 = vpop.f32.mrf.mxu0
        %v5828 = vadd.f32 %v5763, %v5827
        %5829 = vmatmul.f32.gmra.mxu0 %v5790
        %v5830 = vpop.f32.mrf.mxu0
        %v5831 = vadd.f32 %v5766, %v5830
        %5832 = vmatmul.f32.gmra.mxu0 %v5793
        %v5833 = vpop.f32.mrf.mxu0
        %v5834 = vadd.f32 %v5769, %v5833
        %5835 = vmatmul.f32.gmra.mxu0 %v5796
        %v5836 = vpop.f32.mrf.mxu0
        %v5837 = vadd.f32 %v5772, %v5836
        %5838 = vmatmul.f32.gmra.mxu0 %v5799
        %v5839 = vpop.f32.mrf.mxu0
        %v5840 = vadd.f32 %v5775, %v5839
        %5841 = vdwg.mxu0
        %5842 = vmatpush.msra.mxu0 0.0
        %5843 = vmatpush.msra.mxu0 0.0
        %5844 = vmatpush.msra.mxu0 0.0
        %5845 = vmatpush.msra.mxu0 0.0
        %5846 = vmatpush.msra.mxu0 0.0
        %5847 = vmatpush.msra.mxu0 0.0
        %5848 = vmatpush.msra.mxu0 0.0
        %5849 = vmatpush.msra.mxu0 0.0
        %5850 = vmatpush.msra.mxu0 %v4097
        %5851 = vmatpush.msra.mxu0 %v4096
        %5852 = vmatpush.msra.mxu0 %v4095
        %5853 = vmatpush.msra.mxu0 %v4094
        %5854 = vmatpush.msra.mxu0 %v4093
        %5855 = vmatpush.msra.mxu0 %v4092
        %5856 = vmatpush.msra.mxu0 %v4091
        %5857 = vmatpush.msra.mxu0 %v4090
        %5858 = vmatmul.f32.gmra.mxu0 %v4396
        %v5859 = vpop.f32.mrf.mxu0
        %v5860 = vadd.f32 0.0, %v5859
        %5861 = vmatmul.f32.gmra.mxu0 %v4399
        %v5862 = vpop.f32.mrf.mxu0
        %v5863 = vadd.f32 0.0, %v5862
        %5864 = vmatmul.f32.gmra.mxu0 %v4402
        %v5865 = vpop.f32.mrf.mxu0
        %v5866 = vadd.f32 0.0, %v5865
        %5867 = vmatmul.f32.gmra.mxu0 %v4405
        %v5868 = vpop.f32.mrf.mxu0
        %v5869 = vadd.f32 0.0, %v5868
        %5870 = vmatmul.f32.gmra.mxu0 %v4408
        %v5871 = vpop.f32.mrf.mxu0
        %v5872 = vadd.f32 0.0, %v5871
        %5873 = vmatmul.f32.gmra.mxu0 %v4411
        %v5874 = vpop.f32.mrf.mxu0
        %v5875 = vadd.f32 0.0, %v5874
        %5876 = vmatmul.f32.gmra.mxu0 %v4414
        %v5877 = vpop.f32.mrf.mxu0
        %v5878 = vadd.f32 0.0, %v5877
        %5879 = vmatmul.f32.gmra.mxu0 %v4417
        %v5880 = vpop.f32.mrf.mxu0
        %v5881 = vadd.f32 0.0, %v5880
        %5882 = vdwg.mxu0
        %s5883 = scalar_lea.vmem %s7, 64
        %v5884 = vld [vmem:[%s5883] sm:$0xff]
        %v5885 = vld [vmem:[%s5883 + $0x8] sm:$0xff]
        %v5886 = vld [vmem:[%s5883 + $0x10] sm:$0xff]
        %v5887 = vld [vmem:[%s5883 + $0x18] sm:$0xff]
        %v5889 = vsel %vm4255, %v5860, 0
        %v5892 = vsel %vm4255, %v5863, 0
        %v5895 = vsel %vm4255, %v5866, 0
        %v5898 = vsel %vm4255, %v5869, 0
        %v5901 = vsel %vm4255, %v5872, 0
        %v5904 = vsel %vm4255, %v5875, 0
        %v5907 = vsel %vm4255, %v5878, 0
        %v5910 = vsel %vm4255, %v5881, 0
        %5912 = vmatpush.msra.mxu0 0.0
        %5913 = vmatpush.msra.mxu0 0.0
        %5914 = vmatpush.msra.mxu0 0.0
        %5915 = vmatpush.msra.mxu0 0.0
        %5916 = vmatpush.msra.mxu0 0.0
        %5917 = vmatpush.msra.mxu0 0.0
        %5918 = vmatpush.msra.mxu0 0.0
        %5919 = vmatpush.msra.mxu0 0.0
        %5920 = vmatpush.msra.mxu0 0.0
        %5921 = vmatpush.msra.mxu0 0.0
        %5922 = vmatpush.msra.mxu0 0.0
        %5923 = vmatpush.msra.mxu0 0.0
        %5924 = vmatpush.msra.mxu0 %v5887
        %5925 = vmatpush.msra.mxu0 %v5886
        %5926 = vmatpush.msra.mxu0 %v5885
        %5927 = vmatpush.msra.mxu0 %v5884
        %5928 = vmatmul.f32.gmra.mxu0 %v5889
        %v5929 = vpop.f32.mrf.mxu0
        %v5930 = vadd.f32 0.0, %v5929
        %5931 = vmatmul.f32.gmra.mxu0 %v5892
        %v5932 = vpop.f32.mrf.mxu0
        %v5933 = vadd.f32 0.0, %v5932
        %5934 = vmatmul.f32.gmra.mxu0 %v5895
        %v5935 = vpop.f32.mrf.mxu0
        %v5936 = vadd.f32 0.0, %v5935
        %5937 = vmatmul.f32.gmra.mxu0 %v5898
        %v5938 = vpop.f32.mrf.mxu0
        %v5939 = vadd.f32 0.0, %v5938
        %5940 = vmatmul.f32.gmra.mxu0 %v5901
        %v5941 = vpop.f32.mrf.mxu0
        %v5942 = vadd.f32 0.0, %v5941
        %5943 = vmatmul.f32.gmra.mxu0 %v5904
        %v5944 = vpop.f32.mrf.mxu0
        %v5945 = vadd.f32 0.0, %v5944
        %5946 = vmatmul.f32.gmra.mxu0 %v5907
        %v5947 = vpop.f32.mrf.mxu0
        %v5948 = vadd.f32 0.0, %v5947
        %5949 = vmatmul.f32.gmra.mxu0 %v5910
        %v5950 = vpop.f32.mrf.mxu0
        %v5951 = vadd.f32 0.0, %v5950
        %5952 = vdwg.mxu0
        %v5953 = vadd.f32 %v5819, %v5930
        %v5954 = vadd.f32 %v5822, %v5933
        %v5955 = vadd.f32 %v5825, %v5936
        %v5956 = vadd.f32 %v5828, %v5939
        %v5957 = vadd.f32 %v5831, %v5942
        %v5958 = vadd.f32 %v5834, %v5945
        %v5959 = vadd.f32 %v5837, %v5948
        %v5960 = vadd.f32 %v5840, %v5951
        %5961 = vmatpush.msra.mxu0 0.0
        %5962 = vmatpush.msra.mxu0 0.0
        %5963 = vmatpush.msra.mxu0 0.0
        %5964 = vmatpush.msra.mxu0 0.0
        %5965 = vmatpush.msra.mxu0 0.0
        %5966 = vmatpush.msra.mxu0 0.0
        %5967 = vmatpush.msra.mxu0 0.0
        %5968 = vmatpush.msra.mxu0 0.0
        %5969 = vmatpush.msra.mxu0 %v4097
        %5970 = vmatpush.msra.mxu0 %v4096
        %5971 = vmatpush.msra.mxu0 %v4095
        %5972 = vmatpush.msra.mxu0 %v4094
        %5973 = vmatpush.msra.mxu0 %v4093
        %5974 = vmatpush.msra.mxu0 %v4092
        %5975 = vmatpush.msra.mxu0 %v4091
        %5976 = vmatpush.msra.mxu0 %v4090
        %5977 = vmatmul.f32.gmra.mxu0 %v4548
        %v5978 = vpop.f32.mrf.mxu0
        %v5979 = vadd.f32 0.0, %v5978
        %5980 = vmatmul.f32.gmra.mxu0 %v4551
        %v5981 = vpop.f32.mrf.mxu0
        %v5982 = vadd.f32 0.0, %v5981
        %5983 = vmatmul.f32.gmra.mxu0 %v4554
        %v5984 = vpop.f32.mrf.mxu0
        %v5985 = vadd.f32 0.0, %v5984
        %5986 = vmatmul.f32.gmra.mxu0 %v4557
        %v5987 = vpop.f32.mrf.mxu0
        %v5988 = vadd.f32 0.0, %v5987
        %5989 = vmatmul.f32.gmra.mxu0 %v4560
        %v5990 = vpop.f32.mrf.mxu0
        %v5991 = vadd.f32 0.0, %v5990
        %5992 = vmatmul.f32.gmra.mxu0 %v4563
        %v5993 = vpop.f32.mrf.mxu0
        %v5994 = vadd.f32 0.0, %v5993
        %5995 = vmatmul.f32.gmra.mxu0 %v4566
        %v5996 = vpop.f32.mrf.mxu0
        %v5997 = vadd.f32 0.0, %v5996
        %5998 = vmatmul.f32.gmra.mxu0 %v4569
        %v5999 = vpop.f32.mrf.mxu0
        %v6000 = vadd.f32 0.0, %v5999
        %6001 = vdwg.mxu0
        %s6002 = scalar_lea.vmem %s7, 96
        %v6003 = vld [vmem:[%s6002] sm:$0xff]
        %v6004 = vld [vmem:[%s6002 + $0x8] sm:$0xff]
        %v6005 = vld [vmem:[%s6002 + $0x10] sm:$0xff]
        %v6006 = vld [vmem:[%s6002 + $0x18] sm:$0xff]
        %v6008 = vsel %vm4255, %v5979, 0
        %v6011 = vsel %vm4255, %v5982, 0
        %v6014 = vsel %vm4255, %v5985, 0
        %v6017 = vsel %vm4255, %v5988, 0
        %v6020 = vsel %vm4255, %v5991, 0
        %v6023 = vsel %vm4255, %v5994, 0
        %v6026 = vsel %vm4255, %v5997, 0
        %v6029 = vsel %vm4255, %v6000, 0
        %6031 = vmatpush.msra.mxu0 0.0
        %6032 = vmatpush.msra.mxu0 0.0
        %6033 = vmatpush.msra.mxu0 0.0
        %6034 = vmatpush.msra.mxu0 0.0
        %6035 = vmatpush.msra.mxu0 0.0
        %6036 = vmatpush.msra.mxu0 0.0
        %6037 = vmatpush.msra.mxu0 0.0
        %6038 = vmatpush.msra.mxu0 0.0
        %6039 = vmatpush.msra.mxu0 0.0
        %6040 = vmatpush.msra.mxu0 0.0
        %6041 = vmatpush.msra.mxu0 0.0
        %6042 = vmatpush.msra.mxu0 0.0
        %6043 = vmatpush.msra.mxu0 %v6006
        %6044 = vmatpush.msra.mxu0 %v6005
        %6045 = vmatpush.msra.mxu0 %v6004
        %6046 = vmatpush.msra.mxu0 %v6003
        %6047 = vmatmul.f32.gmra.mxu0 %v6008
        %v6048 = vpop.f32.mrf.mxu0
        %v6049 = vadd.f32 0.0, %v6048
        %6050 = vmatmul.f32.gmra.mxu0 %v6011
        %v6051 = vpop.f32.mrf.mxu0
        %v6052 = vadd.f32 0.0, %v6051
        %6053 = vmatmul.f32.gmra.mxu0 %v6014
        %v6054 = vpop.f32.mrf.mxu0
        %v6055 = vadd.f32 0.0, %v6054
        %6056 = vmatmul.f32.gmra.mxu0 %v6017
        %v6057 = vpop.f32.mrf.mxu0
        %v6058 = vadd.f32 0.0, %v6057
        %6059 = vmatmul.f32.gmra.mxu0 %v6020
        %v6060 = vpop.f32.mrf.mxu0
        %v6061 = vadd.f32 0.0, %v6060
        %6062 = vmatmul.f32.gmra.mxu0 %v6023
        %v6063 = vpop.f32.mrf.mxu0
        %v6064 = vadd.f32 0.0, %v6063
        %6065 = vmatmul.f32.gmra.mxu0 %v6026
        %v6066 = vpop.f32.mrf.mxu0
        %v6067 = vadd.f32 0.0, %v6066
        %6068 = vmatmul.f32.gmra.mxu0 %v6029
        %v6069 = vpop.f32.mrf.mxu0
        %v6070 = vadd.f32 0.0, %v6069
        %6071 = vdwg.mxu0
        %v6072 = vadd.f32 %v5953, %v6049
        %v6073 = vadd.f32 %v5954, %v6052
        %v6074 = vadd.f32 %v5955, %v6055
        %v6075 = vadd.f32 %v5956, %v6058
        %v6076 = vadd.f32 %v5957, %v6061
        %v6077 = vadd.f32 %v5958, %v6064
        %v6078 = vadd.f32 %v5959, %v6067
        %v6079 = vadd.f32 %v5960, %v6070
        %6080 = vmatpush.msra.mxu0 0.0
        %6081 = vmatpush.msra.mxu0 0.0
        %6082 = vmatpush.msra.mxu0 0.0
        %6083 = vmatpush.msra.mxu0 0.0
        %6084 = vmatpush.msra.mxu0 0.0
        %6085 = vmatpush.msra.mxu0 0.0
        %6086 = vmatpush.msra.mxu0 0.0
        %6087 = vmatpush.msra.mxu0 0.0
        %6088 = vmatpush.msra.mxu0 %v4097
        %6089 = vmatpush.msra.mxu0 %v4096
        %6090 = vmatpush.msra.mxu0 %v4095
        %6091 = vmatpush.msra.mxu0 %v4094
        %6092 = vmatpush.msra.mxu0 %v4093
        %6093 = vmatpush.msra.mxu0 %v4092
        %6094 = vmatpush.msra.mxu0 %v4091
        %6095 = vmatpush.msra.mxu0 %v4090
        %6096 = vmatmul.f32.gmra.mxu0 %v4700
        %v6097 = vpop.f32.mrf.mxu0
        %v6098 = vadd.f32 0.0, %v6097
        %6099 = vmatmul.f32.gmra.mxu0 %v4703
        %v6100 = vpop.f32.mrf.mxu0
        %v6101 = vadd.f32 0.0, %v6100
        %6102 = vmatmul.f32.gmra.mxu0 %v4706
        %v6103 = vpop.f32.mrf.mxu0
        %v6104 = vadd.f32 0.0, %v6103
        %6105 = vmatmul.f32.gmra.mxu0 %v4709
        %v6106 = vpop.f32.mrf.mxu0
        %v6107 = vadd.f32 0.0, %v6106
        %6108 = vmatmul.f32.gmra.mxu0 %v4712
        %v6109 = vpop.f32.mrf.mxu0
        %v6110 = vadd.f32 0.0, %v6109
        %6111 = vmatmul.f32.gmra.mxu0 %v4715
        %v6112 = vpop.f32.mrf.mxu0
        %v6113 = vadd.f32 0.0, %v6112
        %6114 = vmatmul.f32.gmra.mxu0 %v4718
        %v6115 = vpop.f32.mrf.mxu0
        %v6116 = vadd.f32 0.0, %v6115
        %6117 = vmatmul.f32.gmra.mxu0 %v4721
        %v6118 = vpop.f32.mrf.mxu0
        %v6119 = vadd.f32 0.0, %v6118
        %6120 = vdwg.mxu0
        %s6121 = scalar_lea.vmem %s7, 128
        %v6122 = vld [vmem:[%s6121] sm:$0xff]
        %v6123 = vld [vmem:[%s6121 + $0x8] sm:$0xff]
        %v6124 = vld [vmem:[%s6121 + $0x10] sm:$0xff]
        %v6125 = vld [vmem:[%s6121 + $0x18] sm:$0xff]
        %v6127 = vsel %vm4255, %v6098, 0
        %v6130 = vsel %vm4255, %v6101, 0
        %v6133 = vsel %vm4255, %v6104, 0
        %v6136 = vsel %vm4255, %v6107, 0
        %v6139 = vsel %vm4255, %v6110, 0
        %v6142 = vsel %vm4255, %v6113, 0
        %v6145 = vsel %vm4255, %v6116, 0
        %v6148 = vsel %vm4255, %v6119, 0
        %6150 = vmatpush.msra.mxu0 0.0
        %6151 = vmatpush.msra.mxu0 0.0
        %6152 = vmatpush.msra.mxu0 0.0
        %6153 = vmatpush.msra.mxu0 0.0
        %6154 = vmatpush.msra.mxu0 0.0
        %6155 = vmatpush.msra.mxu0 0.0
        %6156 = vmatpush.msra.mxu0 0.0
        %6157 = vmatpush.msra.mxu0 0.0
        %6158 = vmatpush.msra.mxu0 0.0
        %6159 = vmatpush.msra.mxu0 0.0
        %6160 = vmatpush.msra.mxu0 0.0
        %6161 = vmatpush.msra.mxu0 0.0
        %6162 = vmatpush.msra.mxu0 %v6125
        %6163 = vmatpush.msra.mxu0 %v6124
        %6164 = vmatpush.msra.mxu0 %v6123
        %6165 = vmatpush.msra.mxu0 %v6122
        %6166 = vmatmul.f32.gmra.mxu0 %v6127
        %v6167 = vpop.f32.mrf.mxu0
        %v6168 = vadd.f32 0.0, %v6167
        %6169 = vmatmul.f32.gmra.mxu0 %v6130
        %v6170 = vpop.f32.mrf.mxu0
        %v6171 = vadd.f32 0.0, %v6170
        %6172 = vmatmul.f32.gmra.mxu0 %v6133
        %v6173 = vpop.f32.mrf.mxu0
        %v6174 = vadd.f32 0.0, %v6173
        %6175 = vmatmul.f32.gmra.mxu0 %v6136
        %v6176 = vpop.f32.mrf.mxu0
        %v6177 = vadd.f32 0.0, %v6176
        %6178 = vmatmul.f32.gmra.mxu0 %v6139
        %v6179 = vpop.f32.mrf.mxu0
        %v6180 = vadd.f32 0.0, %v6179
        %6181 = vmatmul.f32.gmra.mxu0 %v6142
        %v6182 = vpop.f32.mrf.mxu0
        %v6183 = vadd.f32 0.0, %v6182
        %6184 = vmatmul.f32.gmra.mxu0 %v6145
        %v6185 = vpop.f32.mrf.mxu0
        %v6186 = vadd.f32 0.0, %v6185
        %6187 = vmatmul.f32.gmra.mxu0 %v6148
        %v6188 = vpop.f32.mrf.mxu0
        %v6189 = vadd.f32 0.0, %v6188
        %6190 = vdwg.mxu0
        %v6191 = vadd.f32 %v6072, %v6168
        %v6192 = vadd.f32 %v6073, %v6171
        %v6193 = vadd.f32 %v6074, %v6174
        %v6194 = vadd.f32 %v6075, %v6177
        %v6195 = vadd.f32 %v6076, %v6180
        %v6196 = vadd.f32 %v6077, %v6183
        %v6197 = vadd.f32 %v6078, %v6186
        %v6198 = vadd.f32 %v6079, %v6189
        %6199 = vmatpush.msra.mxu0 0.0
        %6200 = vmatpush.msra.mxu0 0.0
        %6201 = vmatpush.msra.mxu0 0.0
        %6202 = vmatpush.msra.mxu0 0.0
        %6203 = vmatpush.msra.mxu0 0.0
        %6204 = vmatpush.msra.mxu0 0.0
        %6205 = vmatpush.msra.mxu0 0.0
        %6206 = vmatpush.msra.mxu0 0.0
        %6207 = vmatpush.msra.mxu0 %v4097
        %6208 = vmatpush.msra.mxu0 %v4096
        %6209 = vmatpush.msra.mxu0 %v4095
        %6210 = vmatpush.msra.mxu0 %v4094
        %6211 = vmatpush.msra.mxu0 %v4093
        %6212 = vmatpush.msra.mxu0 %v4092
        %6213 = vmatpush.msra.mxu0 %v4091
        %6214 = vmatpush.msra.mxu0 %v4090
        %6215 = vmatmul.f32.gmra.mxu0 %v4852
        %v6216 = vpop.f32.mrf.mxu0
        %v6217 = vadd.f32 0.0, %v6216
        %6218 = vmatmul.f32.gmra.mxu0 %v4855
        %v6219 = vpop.f32.mrf.mxu0
        %v6220 = vadd.f32 0.0, %v6219
        %6221 = vmatmul.f32.gmra.mxu0 %v4858
        %v6222 = vpop.f32.mrf.mxu0
        %v6223 = vadd.f32 0.0, %v6222
        %6224 = vmatmul.f32.gmra.mxu0 %v4861
        %v6225 = vpop.f32.mrf.mxu0
        %v6226 = vadd.f32 0.0, %v6225
        %6227 = vmatmul.f32.gmra.mxu0 %v4864
        %v6228 = vpop.f32.mrf.mxu0
        %v6229 = vadd.f32 0.0, %v6228
        %6230 = vmatmul.f32.gmra.mxu0 %v4867
        %v6231 = vpop.f32.mrf.mxu0
        %v6232 = vadd.f32 0.0, %v6231
        %6233 = vmatmul.f32.gmra.mxu0 %v4870
        %v6234 = vpop.f32.mrf.mxu0
        %v6235 = vadd.f32 0.0, %v6234
        %6236 = vmatmul.f32.gmra.mxu0 %v4873
        %v6237 = vpop.f32.mrf.mxu0
        %v6238 = vadd.f32 0.0, %v6237
        %6239 = vdwg.mxu0
        %s6240 = scalar_lea.vmem %s7, 160
        %v6241 = vld [vmem:[%s6240] sm:$0xff]
        %v6242 = vld [vmem:[%s6240 + $0x8] sm:$0xff]
        %v6243 = vld [vmem:[%s6240 + $0x10] sm:$0xff]
        %v6244 = vld [vmem:[%s6240 + $0x18] sm:$0xff]
        %v6246 = vsel %vm4255, %v6217, 0
        %v6249 = vsel %vm4255, %v6220, 0
        %v6252 = vsel %vm4255, %v6223, 0
        %v6255 = vsel %vm4255, %v6226, 0
        %v6258 = vsel %vm4255, %v6229, 0
        %v6261 = vsel %vm4255, %v6232, 0
        %v6264 = vsel %vm4255, %v6235, 0
        %v6267 = vsel %vm4255, %v6238, 0
        %6269 = vmatpush.msra.mxu0 0.0
        %6270 = vmatpush.msra.mxu0 0.0
        %6271 = vmatpush.msra.mxu0 0.0
        %6272 = vmatpush.msra.mxu0 0.0
        %6273 = vmatpush.msra.mxu0 0.0
        %6274 = vmatpush.msra.mxu0 0.0
        %6275 = vmatpush.msra.mxu0 0.0
        %6276 = vmatpush.msra.mxu0 0.0
        %6277 = vmatpush.msra.mxu0 0.0
        %6278 = vmatpush.msra.mxu0 0.0
        %6279 = vmatpush.msra.mxu0 0.0
        %6280 = vmatpush.msra.mxu0 0.0
        %6281 = vmatpush.msra.mxu0 %v6244
        %6282 = vmatpush.msra.mxu0 %v6243
        %6283 = vmatpush.msra.mxu0 %v6242
        %6284 = vmatpush.msra.mxu0 %v6241
        %6285 = vmatmul.f32.gmra.mxu0 %v6246
        %v6286 = vpop.f32.mrf.mxu0
        %v6287 = vadd.f32 0.0, %v6286
        %6288 = vmatmul.f32.gmra.mxu0 %v6249
        %v6289 = vpop.f32.mrf.mxu0
        %v6290 = vadd.f32 0.0, %v6289
        %6291 = vmatmul.f32.gmra.mxu0 %v6252
        %v6292 = vpop.f32.mrf.mxu0
        %v6293 = vadd.f32 0.0, %v6292
        %6294 = vmatmul.f32.gmra.mxu0 %v6255
        %v6295 = vpop.f32.mrf.mxu0
        %v6296 = vadd.f32 0.0, %v6295
        %6297 = vmatmul.f32.gmra.mxu0 %v6258
        %v6298 = vpop.f32.mrf.mxu0
        %v6299 = vadd.f32 0.0, %v6298
        %6300 = vmatmul.f32.gmra.mxu0 %v6261
        %v6301 = vpop.f32.mrf.mxu0
        %v6302 = vadd.f32 0.0, %v6301
        %6303 = vmatmul.f32.gmra.mxu0 %v6264
        %v6304 = vpop.f32.mrf.mxu0
        %v6305 = vadd.f32 0.0, %v6304
        %6306 = vmatmul.f32.gmra.mxu0 %v6267
        %v6307 = vpop.f32.mrf.mxu0
        %v6308 = vadd.f32 0.0, %v6307
        %6309 = vdwg.mxu0
        %v6310 = vadd.f32 %v6191, %v6287
        %v6311 = vadd.f32 %v6192, %v6290
        %v6312 = vadd.f32 %v6193, %v6293
        %v6313 = vadd.f32 %v6194, %v6296
        %v6314 = vadd.f32 %v6195, %v6299
        %v6315 = vadd.f32 %v6196, %v6302
        %v6316 = vadd.f32 %v6197, %v6305
        %v6317 = vadd.f32 %v6198, %v6308
        %6318 = vmatpush.msra.mxu0 0.0
        %6319 = vmatpush.msra.mxu0 0.0
        %6320 = vmatpush.msra.mxu0 0.0
        %6321 = vmatpush.msra.mxu0 0.0
        %6322 = vmatpush.msra.mxu0 0.0
        %6323 = vmatpush.msra.mxu0 0.0
        %6324 = vmatpush.msra.mxu0 0.0
        %6325 = vmatpush.msra.mxu0 0.0
        %6326 = vmatpush.msra.mxu0 %v4097
        %6327 = vmatpush.msra.mxu0 %v4096
        %6328 = vmatpush.msra.mxu0 %v4095
        %6329 = vmatpush.msra.mxu0 %v4094
        %6330 = vmatpush.msra.mxu0 %v4093
        %6331 = vmatpush.msra.mxu0 %v4092
        %6332 = vmatpush.msra.mxu0 %v4091
        %6333 = vmatpush.msra.mxu0 %v4090
        %6334 = vmatmul.f32.gmra.mxu0 %v5004
        %v6335 = vpop.f32.mrf.mxu0
        %v6336 = vadd.f32 0.0, %v6335
        %6337 = vmatmul.f32.gmra.mxu0 %v5007
        %v6338 = vpop.f32.mrf.mxu0
        %v6339 = vadd.f32 0.0, %v6338
        %6340 = vmatmul.f32.gmra.mxu0 %v5010
        %v6341 = vpop.f32.mrf.mxu0
        %v6342 = vadd.f32 0.0, %v6341
        %6343 = vmatmul.f32.gmra.mxu0 %v5013
        %v6344 = vpop.f32.mrf.mxu0
        %v6345 = vadd.f32 0.0, %v6344
        %6346 = vmatmul.f32.gmra.mxu0 %v5016
        %v6347 = vpop.f32.mrf.mxu0
        %v6348 = vadd.f32 0.0, %v6347
        %6349 = vmatmul.f32.gmra.mxu0 %v5019
        %v6350 = vpop.f32.mrf.mxu0
        %v6351 = vadd.f32 0.0, %v6350
        %6352 = vmatmul.f32.gmra.mxu0 %v5022
        %v6353 = vpop.f32.mrf.mxu0
        %v6354 = vadd.f32 0.0, %v6353
        %6355 = vmatmul.f32.gmra.mxu0 %v5025
        %v6356 = vpop.f32.mrf.mxu0
        %v6357 = vadd.f32 0.0, %v6356
        %6358 = vdwg.mxu0
        %s6359 = scalar_lea.vmem %s7, 192
        %v6360 = vld [vmem:[%s6359] sm:$0xff]
        %v6361 = vld [vmem:[%s6359 + $0x8] sm:$0xff]
        %v6362 = vld [vmem:[%s6359 + $0x10] sm:$0xff]
        %v6363 = vld [vmem:[%s6359 + $0x18] sm:$0xff]
        %v6365 = vsel %vm4255, %v6336, 0
        %v6368 = vsel %vm4255, %v6339, 0
        %v6371 = vsel %vm4255, %v6342, 0
        %v6374 = vsel %vm4255, %v6345, 0
        %v6377 = vsel %vm4255, %v6348, 0
        %v6380 = vsel %vm4255, %v6351, 0
        %v6383 = vsel %vm4255, %v6354, 0
        %v6386 = vsel %vm4255, %v6357, 0
        %6388 = vmatpush.msra.mxu0 0.0
        %6389 = vmatpush.msra.mxu0 0.0
        %6390 = vmatpush.msra.mxu0 0.0
        %6391 = vmatpush.msra.mxu0 0.0
        %6392 = vmatpush.msra.mxu0 0.0
        %6393 = vmatpush.msra.mxu0 0.0
        %6394 = vmatpush.msra.mxu0 0.0
        %6395 = vmatpush.msra.mxu0 0.0
        %6396 = vmatpush.msra.mxu0 0.0
        %6397 = vmatpush.msra.mxu0 0.0
        %6398 = vmatpush.msra.mxu0 0.0
        %6399 = vmatpush.msra.mxu0 0.0
        %6400 = vmatpush.msra.mxu0 %v6363
        %6401 = vmatpush.msra.mxu0 %v6362
        %6402 = vmatpush.msra.mxu0 %v6361
        %6403 = vmatpush.msra.mxu0 %v6360
        %6404 = vmatmul.f32.gmra.mxu0 %v6365
        %v6405 = vpop.f32.mrf.mxu0
        %v6406 = vadd.f32 0.0, %v6405
        %6407 = vmatmul.f32.gmra.mxu0 %v6368
        %v6408 = vpop.f32.mrf.mxu0
        %v6409 = vadd.f32 0.0, %v6408
        %6410 = vmatmul.f32.gmra.mxu0 %v6371
        %v6411 = vpop.f32.mrf.mxu0
        %v6412 = vadd.f32 0.0, %v6411
        %6413 = vmatmul.f32.gmra.mxu0 %v6374
        %v6414 = vpop.f32.mrf.mxu0
        %v6415 = vadd.f32 0.0, %v6414
        %6416 = vmatmul.f32.gmra.mxu0 %v6377
        %v6417 = vpop.f32.mrf.mxu0
        %v6418 = vadd.f32 0.0, %v6417
        %6419 = vmatmul.f32.gmra.mxu0 %v6380
        %v6420 = vpop.f32.mrf.mxu0
        %v6421 = vadd.f32 0.0, %v6420
        %6422 = vmatmul.f32.gmra.mxu0 %v6383
        %v6423 = vpop.f32.mrf.mxu0
        %v6424 = vadd.f32 0.0, %v6423
        %6425 = vmatmul.f32.gmra.mxu0 %v6386
        %v6426 = vpop.f32.mrf.mxu0
        %v6427 = vadd.f32 0.0, %v6426
        %6428 = vdwg.mxu0
        %v6429 = vadd.f32 %v6310, %v6406
        %v6430 = vadd.f32 %v6311, %v6409
        %v6431 = vadd.f32 %v6312, %v6412
        %v6432 = vadd.f32 %v6313, %v6415
        %v6433 = vadd.f32 %v6314, %v6418
        %v6434 = vadd.f32 %v6315, %v6421
        %v6435 = vadd.f32 %v6316, %v6424
        %v6436 = vadd.f32 %v6317, %v6427
        %6437 = vmatpush.msra.mxu0 0.0
        %6438 = vmatpush.msra.mxu0 0.0
        %6439 = vmatpush.msra.mxu0 0.0
        %6440 = vmatpush.msra.mxu0 0.0
        %6441 = vmatpush.msra.mxu0 0.0
        %6442 = vmatpush.msra.mxu0 0.0
        %6443 = vmatpush.msra.mxu0 0.0
        %6444 = vmatpush.msra.mxu0 0.0
        %6445 = vmatpush.msra.mxu0 %v4097
        %6446 = vmatpush.msra.mxu0 %v4096
        %6447 = vmatpush.msra.mxu0 %v4095
        %6448 = vmatpush.msra.mxu0 %v4094
        %6449 = vmatpush.msra.mxu0 %v4093
        %6450 = vmatpush.msra.mxu0 %v4092
        %6451 = vmatpush.msra.mxu0 %v4091
        %6452 = vmatpush.msra.mxu0 %v4090
        %6453 = vmatmul.f32.gmra.mxu0 %v5156
        %v6454 = vpop.f32.mrf.mxu0
        %v6455 = vadd.f32 0.0, %v6454
        %6456 = vmatmul.f32.gmra.mxu0 %v5159
        %v6457 = vpop.f32.mrf.mxu0
        %v6458 = vadd.f32 0.0, %v6457
        %6459 = vmatmul.f32.gmra.mxu0 %v5162
        %v6460 = vpop.f32.mrf.mxu0
        %v6461 = vadd.f32 0.0, %v6460
        %6462 = vmatmul.f32.gmra.mxu0 %v5165
        %v6463 = vpop.f32.mrf.mxu0
        %v6464 = vadd.f32 0.0, %v6463
        %6465 = vmatmul.f32.gmra.mxu0 %v5168
        %v6466 = vpop.f32.mrf.mxu0
        %v6467 = vadd.f32 0.0, %v6466
        %6468 = vmatmul.f32.gmra.mxu0 %v5171
        %v6469 = vpop.f32.mrf.mxu0
        %v6470 = vadd.f32 0.0, %v6469
        %6471 = vmatmul.f32.gmra.mxu0 %v5174
        %v6472 = vpop.f32.mrf.mxu0
        %v6473 = vadd.f32 0.0, %v6472
        %6474 = vmatmul.f32.gmra.mxu0 %v5177
        %v6475 = vpop.f32.mrf.mxu0
        %v6476 = vadd.f32 0.0, %v6475
        %6477 = vdwg.mxu0
        %s6478 = scalar_lea.vmem %s7, 224
        %v6479 = vld [vmem:[%s6478] sm:$0xff]
        %v6480 = vld [vmem:[%s6478 + $0x8] sm:$0xff]
        %v6481 = vld [vmem:[%s6478 + $0x10] sm:$0xff]
        %v6482 = vld [vmem:[%s6478 + $0x18] sm:$0xff]
        %v6484 = vsel %vm4255, %v6455, 0
        %v6487 = vsel %vm4255, %v6458, 0
        %v6490 = vsel %vm4255, %v6461, 0
        %v6493 = vsel %vm4255, %v6464, 0
        %v6496 = vsel %vm4255, %v6467, 0
        %v6499 = vsel %vm4255, %v6470, 0
        %v6502 = vsel %vm4255, %v6473, 0
        %v6505 = vsel %vm4255, %v6476, 0
        %6507 = vmatpush.msra.mxu0 0.0
        %6508 = vmatpush.msra.mxu0 0.0
        %6509 = vmatpush.msra.mxu0 0.0
        %6510 = vmatpush.msra.mxu0 0.0
        %6511 = vmatpush.msra.mxu0 0.0
        %6512 = vmatpush.msra.mxu0 0.0
        %6513 = vmatpush.msra.mxu0 0.0
        %6514 = vmatpush.msra.mxu0 0.0
        %6515 = vmatpush.msra.mxu0 0.0
        %6516 = vmatpush.msra.mxu0 0.0
        %6517 = vmatpush.msra.mxu0 0.0
        %6518 = vmatpush.msra.mxu0 0.0
        %6519 = vmatpush.msra.mxu0 %v6482
        %6520 = vmatpush.msra.mxu0 %v6481
        %6521 = vmatpush.msra.mxu0 %v6480
        %6522 = vmatpush.msra.mxu0 %v6479
        %6523 = vmatmul.f32.gmra.mxu0 %v6484
        %v6524 = vpop.f32.mrf.mxu0
        %v6525 = vadd.f32 0.0, %v6524
        %6526 = vmatmul.f32.gmra.mxu0 %v6487
        %v6527 = vpop.f32.mrf.mxu0
        %v6528 = vadd.f32 0.0, %v6527
        %6529 = vmatmul.f32.gmra.mxu0 %v6490
        %v6530 = vpop.f32.mrf.mxu0
        %v6531 = vadd.f32 0.0, %v6530
        %6532 = vmatmul.f32.gmra.mxu0 %v6493
        %v6533 = vpop.f32.mrf.mxu0
        %v6534 = vadd.f32 0.0, %v6533
        %6535 = vmatmul.f32.gmra.mxu0 %v6496
        %v6536 = vpop.f32.mrf.mxu0
        %v6537 = vadd.f32 0.0, %v6536
        %6538 = vmatmul.f32.gmra.mxu0 %v6499
        %v6539 = vpop.f32.mrf.mxu0
        %v6540 = vadd.f32 0.0, %v6539
        %6541 = vmatmul.f32.gmra.mxu0 %v6502
        %v6542 = vpop.f32.mrf.mxu0
        %v6543 = vadd.f32 0.0, %v6542
        %6544 = vmatmul.f32.gmra.mxu0 %v6505
        %v6545 = vpop.f32.mrf.mxu0
        %v6546 = vadd.f32 0.0, %v6545
        %6547 = vdwg.mxu0
        %v6548 = vadd.f32 %v6429, %v6525
        %v6549 = vadd.f32 %v6430, %v6528
        %v6550 = vadd.f32 %v6431, %v6531
        %v6551 = vadd.f32 %v6432, %v6534
        %v6552 = vadd.f32 %v6433, %v6537
        %v6553 = vadd.f32 %v6434, %v6540
        %v6554 = vadd.f32 %v6435, %v6543
        %v6555 = vadd.f32 %v6436, %v6546
        %6556 = vmatpush.msra.mxu0 0.0
        %6557 = vmatpush.msra.mxu0 0.0
        %6558 = vmatpush.msra.mxu0 0.0
        %6559 = vmatpush.msra.mxu0 0.0
        %6560 = vmatpush.msra.mxu0 0.0
        %6561 = vmatpush.msra.mxu0 0.0
        %6562 = vmatpush.msra.mxu0 0.0
        %6563 = vmatpush.msra.mxu0 0.0
        %6564 = vmatpush.msra.mxu0 %v4097
        %6565 = vmatpush.msra.mxu0 %v4096
        %6566 = vmatpush.msra.mxu0 %v4095
        %6567 = vmatpush.msra.mxu0 %v4094
        %6568 = vmatpush.msra.mxu0 %v4093
        %6569 = vmatpush.msra.mxu0 %v4092
        %6570 = vmatpush.msra.mxu0 %v4091
        %6571 = vmatpush.msra.mxu0 %v4090
        %6572 = vmatmul.f32.gmra.mxu0 %v5308
        %v6573 = vpop.f32.mrf.mxu0
        %v6574 = vadd.f32 0.0, %v6573
        %6575 = vmatmul.f32.gmra.mxu0 %v5311
        %v6576 = vpop.f32.mrf.mxu0
        %v6577 = vadd.f32 0.0, %v6576
        %6578 = vmatmul.f32.gmra.mxu0 %v5314
        %v6579 = vpop.f32.mrf.mxu0
        %v6580 = vadd.f32 0.0, %v6579
        %6581 = vmatmul.f32.gmra.mxu0 %v5317
        %v6582 = vpop.f32.mrf.mxu0
        %v6583 = vadd.f32 0.0, %v6582
        %6584 = vmatmul.f32.gmra.mxu0 %v5320
        %v6585 = vpop.f32.mrf.mxu0
        %v6586 = vadd.f32 0.0, %v6585
        %6587 = vmatmul.f32.gmra.mxu0 %v5323
        %v6588 = vpop.f32.mrf.mxu0
        %v6589 = vadd.f32 0.0, %v6588
        %6590 = vmatmul.f32.gmra.mxu0 %v5326
        %v6591 = vpop.f32.mrf.mxu0
        %v6592 = vadd.f32 0.0, %v6591
        %6593 = vmatmul.f32.gmra.mxu0 %v5329
        %v6594 = vpop.f32.mrf.mxu0
        %v6595 = vadd.f32 0.0, %v6594
        %6596 = vdwg.mxu0
        %s6597 = scalar_lea.vmem %s7, 256
        %v6598 = vld [vmem:[%s6597] sm:$0xff]
        %v6599 = vld [vmem:[%s6597 + $0x8] sm:$0xff]
        %v6600 = vld [vmem:[%s6597 + $0x10] sm:$0xff]
        %v6601 = vld [vmem:[%s6597 + $0x18] sm:$0xff]
        %v6603 = vsel %vm4255, %v6574, 0
        %v6606 = vsel %vm4255, %v6577, 0
        %v6609 = vsel %vm4255, %v6580, 0
        %v6612 = vsel %vm4255, %v6583, 0
        %v6615 = vsel %vm4255, %v6586, 0
        %v6618 = vsel %vm4255, %v6589, 0
        %v6621 = vsel %vm4255, %v6592, 0
        %v6624 = vsel %vm4255, %v6595, 0
        %6626 = vmatpush.msra.mxu0 0.0
        %6627 = vmatpush.msra.mxu0 0.0
        %6628 = vmatpush.msra.mxu0 0.0
        %6629 = vmatpush.msra.mxu0 0.0
        %6630 = vmatpush.msra.mxu0 0.0
        %6631 = vmatpush.msra.mxu0 0.0
        %6632 = vmatpush.msra.mxu0 0.0
        %6633 = vmatpush.msra.mxu0 0.0
        %6634 = vmatpush.msra.mxu0 0.0
        %6635 = vmatpush.msra.mxu0 0.0
        %6636 = vmatpush.msra.mxu0 0.0
        %6637 = vmatpush.msra.mxu0 0.0
        %6638 = vmatpush.msra.mxu0 %v6601
        %6639 = vmatpush.msra.mxu0 %v6600
        %6640 = vmatpush.msra.mxu0 %v6599
        %6641 = vmatpush.msra.mxu0 %v6598
        %6642 = vmatmul.f32.gmra.mxu0 %v6603
        %v6643 = vpop.f32.mrf.mxu0
        %v6644 = vadd.f32 0.0, %v6643
        %6645 = vmatmul.f32.gmra.mxu0 %v6606
        %v6646 = vpop.f32.mrf.mxu0
        %v6647 = vadd.f32 0.0, %v6646
        %6648 = vmatmul.f32.gmra.mxu0 %v6609
        %v6649 = vpop.f32.mrf.mxu0
        %v6650 = vadd.f32 0.0, %v6649
        %6651 = vmatmul.f32.gmra.mxu0 %v6612
        %v6652 = vpop.f32.mrf.mxu0
        %v6653 = vadd.f32 0.0, %v6652
        %6654 = vmatmul.f32.gmra.mxu0 %v6615
        %v6655 = vpop.f32.mrf.mxu0
        %v6656 = vadd.f32 0.0, %v6655
        %6657 = vmatmul.f32.gmra.mxu0 %v6618
        %v6658 = vpop.f32.mrf.mxu0
        %v6659 = vadd.f32 0.0, %v6658
        %6660 = vmatmul.f32.gmra.mxu0 %v6621
        %v6661 = vpop.f32.mrf.mxu0
        %v6662 = vadd.f32 0.0, %v6661
        %6663 = vmatmul.f32.gmra.mxu0 %v6624
        %v6664 = vpop.f32.mrf.mxu0
        %v6665 = vadd.f32 0.0, %v6664
        %6666 = vdwg.mxu0
        %v6667 = vadd.f32 %v6548, %v6644
        %v6668 = vadd.f32 %v6549, %v6647
        %v6669 = vadd.f32 %v6550, %v6650
        %v6670 = vadd.f32 %v6551, %v6653
        %v6671 = vadd.f32 %v6552, %v6656
        %v6672 = vadd.f32 %v6553, %v6659
        %v6673 = vadd.f32 %v6554, %v6662
        %v6674 = vadd.f32 %v6555, %v6665
        %s6675 = scalar_lea.vmem %s7, 288
        %v6676 = vld [vmem:[%s6675] sm:$0x1]
        %v6677 = vperm.slane %v6676, 0
        %v6678 = vadd.f32 %v6667, %v6677
        %v6679 = vadd.f32 %v6668, %v6677
        %v6680 = vadd.f32 %v6669, %v6677
        %v6681 = vadd.f32 %v6670, %v6677
        %v6682 = vadd.f32 %v6671, %v6677
        %v6683 = vadd.f32 %v6672, %v6677
        %v6684 = vadd.f32 %v6673, %v6677
        %v6685 = vadd.f32 %v6674, %v6677
        %v6686 = vxor.u32 %v6678, 2147483648
        %v6687 = vxor.u32 %v6679, 2147483648
        %v6688 = vxor.u32 %v6680, 2147483648
        %v6689 = vxor.u32 %v6681, 2147483648
        %v6690 = vxor.u32 %v6682, 2147483648
        %v6691 = vxor.u32 %v6683, 2147483648
        %v6692 = vxor.u32 %v6684, 2147483648
        %v6693 = vxor.u32 %v6685, 2147483648
        %v6694 = vmul.f32 %v6686, 1.442695
        %v6695 = vpow.pop %v6694
        %v6696 = vmul.f32 %v6687, 1.442695
        %v6697 = vpow.pop %v6696
        %v6698 = vmul.f32 %v6688, 1.442695
        %v6699 = vpow.pop %v6698
        %v6700 = vmul.f32 %v6689, 1.442695
        %v6701 = vpow.pop %v6700
        %v6702 = vmul.f32 %v6690, 1.442695
        %v6703 = vpow.pop %v6702
        %v6704 = vmul.f32 %v6691, 1.442695
        %v6705 = vpow.pop %v6704
        %v6706 = vmul.f32 %v6692, 1.442695
        %v6707 = vpow.pop %v6706
        %v6708 = vmul.f32 %v6693, 1.442695
        %v6709 = vpow.pop %v6708
        %v6710 = vadd.f32 %v6695, 1.0
        %v6711 = vadd.f32 %v6697, 1.0
        %v6712 = vadd.f32 %v6699, 1.0
        %v6713 = vadd.f32 %v6701, 1.0
        %v6714 = vadd.f32 %v6703, 1.0
        %v6715 = vadd.f32 %v6705, 1.0
        %v6716 = vadd.f32 %v6707, 1.0
        %v6717 = vadd.f32 %v6709, 1.0
        %v6718 = vrcp.pop %v6710
        %v6719 = vmul.f32 %v6710, %v6718
        %v6720 = vsub.f32 1.0, %v6719
        %v6721 = vmul.f32 %v6718, %v6720
        %v6722 = vadd.f32 %v6718, %v6721
        %vm6723 = vweird.f32 %v6710
        %vm6724 = vweird.f32 %v6718
        %vm6725 = vmor %vm6723, %vm6724
        %v6726 = vsel %vm6725, %v6718, %v6722
        %v6727 = vand.u32 2147483647, %v6710
        %vm6728 = vcmp.eq.f32.partialorder %v6727, 8.507059e+37
        %v6729 = vand.u32 %v6710, 2147483648
        %v6730 = vor.u32 1.1754944e-38, %v6729
        %v6731 = vsel %vm6728, %v6730, %v6726
        %v6732 = vmul.f32 1.0, %v6731
        %v6733 = vrcp.pop %v6711
        %v6734 = vmul.f32 %v6711, %v6733
        %v6735 = vsub.f32 1.0, %v6734
        %v6736 = vmul.f32 %v6733, %v6735
        %v6737 = vadd.f32 %v6733, %v6736
        %vm6738 = vweird.f32 %v6711
        %vm6739 = vweird.f32 %v6733
        %vm6740 = vmor %vm6738, %vm6739
        %v6741 = vsel %vm6740, %v6733, %v6737
        %v6742 = vand.u32 2147483647, %v6711
        %vm6743 = vcmp.eq.f32.partialorder %v6742, 8.507059e+37
        %v6744 = vand.u32 %v6711, 2147483648
        %v6745 = vor.u32 1.1754944e-38, %v6744
        %v6746 = vsel %vm6743, %v6745, %v6741
        %v6747 = vmul.f32 1.0, %v6746
        %v6748 = vrcp.pop %v6712
        %v6749 = vmul.f32 %v6712, %v6748
        %v6750 = vsub.f32 1.0, %v6749
        %v6751 = vmul.f32 %v6748, %v6750
        %v6752 = vadd.f32 %v6748, %v6751
        %vm6753 = vweird.f32 %v6712
        %vm6754 = vweird.f32 %v6748
        %vm6755 = vmor %vm6753, %vm6754
        %v6756 = vsel %vm6755, %v6748, %v6752
        %v6757 = vand.u32 2147483647, %v6712
        %vm6758 = vcmp.eq.f32.partialorder %v6757, 8.507059e+37
        %v6759 = vand.u32 %v6712, 2147483648
        %v6760 = vor.u32 1.1754944e-38, %v6759
        %v6761 = vsel %vm6758, %v6760, %v6756
        %v6762 = vmul.f32 1.0, %v6761
        %v6763 = vrcp.pop %v6713
        %v6764 = vmul.f32 %v6713, %v6763
        %v6765 = vsub.f32 1.0, %v6764
        %v6766 = vmul.f32 %v6763, %v6765
        %v6767 = vadd.f32 %v6763, %v6766
        %vm6768 = vweird.f32 %v6713
        %vm6769 = vweird.f32 %v6763
        %vm6770 = vmor %vm6768, %vm6769
        %v6771 = vsel %vm6770, %v6763, %v6767
        %v6772 = vand.u32 2147483647, %v6713
        %vm6773 = vcmp.eq.f32.partialorder %v6772, 8.507059e+37
        %v6774 = vand.u32 %v6713, 2147483648
        %v6775 = vor.u32 1.1754944e-38, %v6774
        %v6776 = vsel %vm6773, %v6775, %v6771
        %v6777 = vmul.f32 1.0, %v6776
        %v6778 = vrcp.pop %v6714
        %v6779 = vmul.f32 %v6714, %v6778
        %v6780 = vsub.f32 1.0, %v6779
        %v6781 = vmul.f32 %v6778, %v6780
        %v6782 = vadd.f32 %v6778, %v6781
        %vm6783 = vweird.f32 %v6714
        %vm6784 = vweird.f32 %v6778
        %vm6785 = vmor %vm6783, %vm6784
        %v6786 = vsel %vm6785, %v6778, %v6782
        %v6787 = vand.u32 2147483647, %v6714
        %vm6788 = vcmp.eq.f32.partialorder %v6787, 8.507059e+37
        %v6789 = vand.u32 %v6714, 2147483648
        %v6790 = vor.u32 1.1754944e-38, %v6789
        %v6791 = vsel %vm6788, %v6790, %v6786
        %v6792 = vmul.f32 1.0, %v6791
        %v6793 = vrcp.pop %v6715
        %v6794 = vmul.f32 %v6715, %v6793
        %v6795 = vsub.f32 1.0, %v6794
        %v6796 = vmul.f32 %v6793, %v6795
        %v6797 = vadd.f32 %v6793, %v6796
        %vm6798 = vweird.f32 %v6715
        %vm6799 = vweird.f32 %v6793
        %vm6800 = vmor %vm6798, %vm6799
        %v6801 = vsel %vm6800, %v6793, %v6797
        %v6802 = vand.u32 2147483647, %v6715
        %vm6803 = vcmp.eq.f32.partialorder %v6802, 8.507059e+37
        %v6804 = vand.u32 %v6715, 2147483648
        %v6805 = vor.u32 1.1754944e-38, %v6804
        %v6806 = vsel %vm6803, %v6805, %v6801
        %v6807 = vmul.f32 1.0, %v6806
        %v6808 = vrcp.pop %v6716
        %v6809 = vmul.f32 %v6716, %v6808
        %v6810 = vsub.f32 1.0, %v6809
        %v6811 = vmul.f32 %v6808, %v6810
        %v6812 = vadd.f32 %v6808, %v6811
        %vm6813 = vweird.f32 %v6716
        %vm6814 = vweird.f32 %v6808
        %vm6815 = vmor %vm6813, %vm6814
        %v6816 = vsel %vm6815, %v6808, %v6812
        %v6817 = vand.u32 2147483647, %v6716
        %vm6818 = vcmp.eq.f32.partialorder %v6817, 8.507059e+37
        %v6819 = vand.u32 %v6716, 2147483648
        %v6820 = vor.u32 1.1754944e-38, %v6819
        %v6821 = vsel %vm6818, %v6820, %v6816
        %v6822 = vmul.f32 1.0, %v6821
        %v6823 = vrcp.pop %v6717
        %v6824 = vmul.f32 %v6717, %v6823
        %v6825 = vsub.f32 1.0, %v6824
        %v6826 = vmul.f32 %v6823, %v6825
        %v6827 = vadd.f32 %v6823, %v6826
        %vm6828 = vweird.f32 %v6717
        %vm6829 = vweird.f32 %v6823
        %vm6830 = vmor %vm6828, %vm6829
        %v6831 = vsel %vm6830, %v6823, %v6827
        %v6832 = vand.u32 2147483647, %v6717
        %vm6833 = vcmp.eq.f32.partialorder %v6832, 8.507059e+37
        %v6834 = vand.u32 %v6717, 2147483648
        %v6835 = vor.u32 1.1754944e-38, %v6834
        %v6836 = vsel %vm6833, %v6835, %v6831
        %v6837 = vmul.f32 1.0, %v6836
        %v6838 = vmul.f32 %v6678, %v6732
        %v6839 = vmul.f32 %v6679, %v6747
        %v6840 = vmul.f32 %v6680, %v6762
        %v6841 = vmul.f32 %v6681, %v6777
        %v6842 = vmul.f32 %v6682, %v6792
        %v6843 = vmul.f32 %v6683, %v6807
        %v6844 = vmul.f32 %v6684, %v6822
        %v6845 = vmul.f32 %v6685, %v6837
        %v6846 = vld [vmem:[%s4] sm:$0xff]
        %v6847 = vld [vmem:[%s4 + $0x8] sm:$0xff]
        %v6849 = vsel %vm4106, %v6846, 0
        %v6852 = vsel %vm4106, %v6847, 0
        %6854 = vmatpush.msra.mxu0 0.0
        %6855 = vmatpush.msra.mxu0 0.0
        %6856 = vmatpush.msra.mxu0 0.0
        %6857 = vmatpush.msra.mxu0 0.0
        %6858 = vmatpush.msra.mxu0 0.0
        %6859 = vmatpush.msra.mxu0 0.0
        %6860 = vmatpush.msra.mxu0 0.0
        %6861 = vmatpush.msra.mxu0 0.0
        %6862 = vmatpush.msra.mxu0 %v5620
        %6863 = vmatpush.msra.mxu0 %v5619
        %6864 = vmatpush.msra.mxu0 %v5618
        %6865 = vmatpush.msra.mxu0 %v5617
        %6866 = vmatpush.msra.mxu0 %v5616
        %6867 = vmatpush.msra.mxu0 %v5615
        %6868 = vmatpush.msra.mxu0 %v5614
        %6869 = vmatpush.msra.mxu0 %v5613
        %6870 = vmatmul.f32.gmra.mxu0 %v6849
        %v6871 = vpop.f32.mrf.mxu0
        %v6872 = vadd.f32 0.0, %v6871
        %6873 = vmatmul.f32.gmra.mxu0 %v6852
        %v6874 = vpop.f32.mrf.mxu0
        %v6875 = vadd.f32 0.0, %v6874
        %6876 = vdwg.mxu0
        %v6877 = vld [vmem:[%s12] sm:$0xff]
        %v6878 = vld [vmem:[%s12 + $0x8] sm:$0xff]
        %s6879 = scalar_lea.vmem %s4, 16
        %v6880 = vld [vmem:[%s6879] sm:$0xff]
        %v6881 = vld [vmem:[%s6879 + $0x8] sm:$0xff]
        %v6883 = vsel %vm4106, %v6880, 0
        %v6886 = vsel %vm4106, %v6881, 0
        %6888 = vmatpush.msra.mxu0 0.0
        %6889 = vmatpush.msra.mxu0 0.0
        %6890 = vmatpush.msra.mxu0 0.0
        %6891 = vmatpush.msra.mxu0 0.0
        %6892 = vmatpush.msra.mxu0 0.0
        %6893 = vmatpush.msra.mxu0 0.0
        %6894 = vmatpush.msra.mxu0 0.0
        %6895 = vmatpush.msra.mxu0 0.0
        %6896 = vmatpush.msra.mxu0 %v5620
        %6897 = vmatpush.msra.mxu0 %v5619
        %6898 = vmatpush.msra.mxu0 %v5618
        %6899 = vmatpush.msra.mxu0 %v5617
        %6900 = vmatpush.msra.mxu0 %v5616
        %6901 = vmatpush.msra.mxu0 %v5615
        %6902 = vmatpush.msra.mxu0 %v5614
        %6903 = vmatpush.msra.mxu0 %v5613
        %6904 = vmatmul.f32.gmra.mxu0 %v6883
        %v6905 = vpop.f32.mrf.mxu0
        %v6906 = vadd.f32 0.0, %v6905
        %6907 = vmatmul.f32.gmra.mxu0 %v6886
        %v6908 = vpop.f32.mrf.mxu0
        %v6909 = vadd.f32 0.0, %v6908
        %6910 = vdwg.mxu0
        %s6911 = scalar_lea.vmem %s12, 16
        %v6912 = vld [vmem:[%s6911] sm:$0xff]
        %v6913 = vld [vmem:[%s6911 + $0x8] sm:$0xff]
        %vm6914 = vcmask 130048
        %v6916 = vsel %vm6914, %v6906, 0
        %v6919 = vsel %vm6914, %v6909, 0
        %6921 = vmatpush.msra.mxu0 0.0
        %6922 = vmatpush.msra.mxu0 0.0
        %6923 = vmatpush.msra.mxu0 0.0
        %6924 = vmatpush.msra.mxu0 0.0
        %6925 = vmatpush.msra.mxu0 0.0
        %6926 = vmatpush.msra.mxu0 0.0
        %6927 = vmatpush.msra.mxu0 0.0
        %6928 = vmatpush.msra.mxu0 0.0
        %6929 = vmatpush.msra.mxu0 0.0
        %6930 = vmatpush.msra.mxu0 0.0
        %6931 = vmatpush.msra.mxu0 0.0
        %6932 = vmatpush.msra.mxu0 0.0
        %6933 = vmatpush.msra.mxu0 0.0
        %6934 = vmatpush.msra.mxu0 0.0
        %6935 = vmatpush.msra.mxu0 %v6913
        %6936 = vmatpush.msra.mxu0 %v6912
        %6937 = vmatmul.f32.gmra.mxu0 %v6916
        %v6938 = vpop.f32.mrf.mxu0
        %v6939 = vadd.f32 0.0, %v6938
        %6940 = vmatmul.f32.gmra.mxu0 %v6919
        %v6941 = vpop.f32.mrf.mxu0
        %v6942 = vadd.f32 0.0, %v6941
        %6943 = vdwg.mxu0
        %v6945 = vsel %vm6914, %v6872, 0
        %v6948 = vsel %vm6914, %v6875, 0
        %6950 = vmatpush.msra.mxu0 0.0
        %6951 = vmatpush.msra.mxu0 0.0
        %6952 = vmatpush.msra.mxu0 0.0
        %6953 = vmatpush.msra.mxu0 0.0
        %6954 = vmatpush.msra.mxu0 0.0
        %6955 = vmatpush.msra.mxu0 0.0
        %6956 = vmatpush.msra.mxu0 0.0
        %6957 = vmatpush.msra.mxu0 0.0
        %6958 = vmatpush.msra.mxu0 0.0
        %6959 = vmatpush.msra.mxu0 0.0
        %6960 = vmatpush.msra.mxu0 0.0
        %6961 = vmatpush.msra.mxu0 0.0
        %6962 = vmatpush.msra.mxu0 0.0
        %6963 = vmatpush.msra.mxu0 0.0
        %6964 = vmatpush.msra.mxu0 %v6878
        %6965 = vmatpush.msra.mxu0 %v6877
        %6966 = vmatmul.f32.gmra.mxu0 %v6945
        %v6967 = vpop.f32.mrf.mxu0
        %v6968 = vadd.f32 %v6939, %v6967
        %6969 = vmatmul.f32.gmra.mxu0 %v6948
        %v6970 = vpop.f32.mrf.mxu0
        %v6971 = vadd.f32 %v6942, %v6970
        %6972 = vdwg.mxu0
        %s6973 = scalar_lea.vmem %s4, 32
        %v6974 = vld [vmem:[%s6973] sm:$0xff]
        %v6975 = vld [vmem:[%s6973 + $0x8] sm:$0xff]
        %v6977 = vsel %vm4106, %v6974, 0
        %v6980 = vsel %vm4106, %v6975, 0
        %6982 = vmatpush.msra.mxu0 0.0
        %6983 = vmatpush.msra.mxu0 0.0
        %6984 = vmatpush.msra.mxu0 0.0
        %6985 = vmatpush.msra.mxu0 0.0
        %6986 = vmatpush.msra.mxu0 0.0
        %6987 = vmatpush.msra.mxu0 0.0
        %6988 = vmatpush.msra.mxu0 0.0
        %6989 = vmatpush.msra.mxu0 0.0
        %6990 = vmatpush.msra.mxu0 %v5620
        %6991 = vmatpush.msra.mxu0 %v5619
        %6992 = vmatpush.msra.mxu0 %v5618
        %6993 = vmatpush.msra.mxu0 %v5617
        %6994 = vmatpush.msra.mxu0 %v5616
        %6995 = vmatpush.msra.mxu0 %v5615
        %6996 = vmatpush.msra.mxu0 %v5614
        %6997 = vmatpush.msra.mxu0 %v5613
        %6998 = vmatmul.f32.gmra.mxu0 %v6977
        %v6999 = vpop.f32.mrf.mxu0
        %v7000 = vadd.f32 0.0, %v6999
        %7001 = vmatmul.f32.gmra.mxu0 %v6980
        %v7002 = vpop.f32.mrf.mxu0
        %v7003 = vadd.f32 0.0, %v7002
        %7004 = vdwg.mxu0
        %s7005 = scalar_lea.vmem %s12, 32
        %v7006 = vld [vmem:[%s7005] sm:$0xff]
        %v7007 = vld [vmem:[%s7005 + $0x8] sm:$0xff]
        %v7009 = vsel %vm6914, %v7000, 0
        %v7012 = vsel %vm6914, %v7003, 0
        %7014 = vmatpush.msra.mxu0 0.0
        %7015 = vmatpush.msra.mxu0 0.0
        %7016 = vmatpush.msra.mxu0 0.0
        %7017 = vmatpush.msra.mxu0 0.0
        %7018 = vmatpush.msra.mxu0 0.0
        %7019 = vmatpush.msra.mxu0 0.0
        %7020 = vmatpush.msra.mxu0 0.0
        %7021 = vmatpush.msra.mxu0 0.0
        %7022 = vmatpush.msra.mxu0 0.0
        %7023 = vmatpush.msra.mxu0 0.0
        %7024 = vmatpush.msra.mxu0 0.0
        %7025 = vmatpush.msra.mxu0 0.0
        %7026 = vmatpush.msra.mxu0 0.0
        %7027 = vmatpush.msra.mxu0 0.0
        %7028 = vmatpush.msra.mxu0 %v7007
        %7029 = vmatpush.msra.mxu0 %v7006
        %7030 = vmatmul.f32.gmra.mxu0 %v7009
        %v7031 = vpop.f32.mrf.mxu0
        %v7032 = vadd.f32 0.0, %v7031
        %7033 = vmatmul.f32.gmra.mxu0 %v7012
        %v7034 = vpop.f32.mrf.mxu0
        %v7035 = vadd.f32 0.0, %v7034
        %7036 = vdwg.mxu0
        %v7037 = vadd.f32 %v6968, %v7032
        %v7038 = vadd.f32 %v6971, %v7035
        %s7039 = scalar_lea.vmem %s4, 48
        %v7040 = vld [vmem:[%s7039] sm:$0xff]
        %v7041 = vld [vmem:[%s7039 + $0x8] sm:$0xff]
        %v7043 = vsel %vm4106, %v7040, 0
        %v7046 = vsel %vm4106, %v7041, 0
        %7048 = vmatpush.msra.mxu0 0.0
        %7049 = vmatpush.msra.mxu0 0.0
        %7050 = vmatpush.msra.mxu0 0.0
        %7051 = vmatpush.msra.mxu0 0.0
        %7052 = vmatpush.msra.mxu0 0.0
        %7053 = vmatpush.msra.mxu0 0.0
        %7054 = vmatpush.msra.mxu0 0.0
        %7055 = vmatpush.msra.mxu0 0.0
        %7056 = vmatpush.msra.mxu0 %v5620
        %7057 = vmatpush.msra.mxu0 %v5619
        %7058 = vmatpush.msra.mxu0 %v5618
        %7059 = vmatpush.msra.mxu0 %v5617
        %7060 = vmatpush.msra.mxu0 %v5616
        %7061 = vmatpush.msra.mxu0 %v5615
        %7062 = vmatpush.msra.mxu0 %v5614
        %7063 = vmatpush.msra.mxu0 %v5613
        %7064 = vmatmul.f32.gmra.mxu0 %v7043
        %v7065 = vpop.f32.mrf.mxu0
        %v7066 = vadd.f32 0.0, %v7065
        %7067 = vmatmul.f32.gmra.mxu0 %v7046
        %v7068 = vpop.f32.mrf.mxu0
        %v7069 = vadd.f32 0.0, %v7068
        %7070 = vdwg.mxu0
        %s7071 = scalar_lea.vmem %s12, 48
        %v7072 = vld [vmem:[%s7071] sm:$0xff]
        %v7073 = vld [vmem:[%s7071 + $0x8] sm:$0xff]
        %v7075 = vsel %vm6914, %v7066, 0
        %v7078 = vsel %vm6914, %v7069, 0
        %7080 = vmatpush.msra.mxu0 0.0
        %7081 = vmatpush.msra.mxu0 0.0
        %7082 = vmatpush.msra.mxu0 0.0
        %7083 = vmatpush.msra.mxu0 0.0
        %7084 = vmatpush.msra.mxu0 0.0
        %7085 = vmatpush.msra.mxu0 0.0
        %7086 = vmatpush.msra.mxu0 0.0
        %7087 = vmatpush.msra.mxu0 0.0
        %7088 = vmatpush.msra.mxu0 0.0
        %7089 = vmatpush.msra.mxu0 0.0
        %7090 = vmatpush.msra.mxu0 0.0
        %7091 = vmatpush.msra.mxu0 0.0
        %7092 = vmatpush.msra.mxu0 0.0
        %7093 = vmatpush.msra.mxu0 0.0
        %7094 = vmatpush.msra.mxu0 %v7073
        %7095 = vmatpush.msra.mxu0 %v7072
        %7096 = vmatmul.f32.gmra.mxu0 %v7075
        %v7097 = vpop.f32.mrf.mxu0
        %v7098 = vadd.f32 0.0, %v7097
        %7099 = vmatmul.f32.gmra.mxu0 %v7078
        %v7100 = vpop.f32.mrf.mxu0
        %v7101 = vadd.f32 0.0, %v7100
        %7102 = vdwg.mxu0
        %v7103 = vadd.f32 %v7037, %v7098
        %v7104 = vadd.f32 %v7038, %v7101
        %s7105 = scalar_lea.vmem %s4, 64
        %v7106 = vld [vmem:[%s7105] sm:$0xff]
        %v7107 = vld [vmem:[%s7105 + $0x8] sm:$0xff]
        %v7109 = vsel %vm4106, %v7106, 0
        %v7112 = vsel %vm4106, %v7107, 0
        %7114 = vmatpush.msra.mxu0 0.0
        %7115 = vmatpush.msra.mxu0 0.0
        %7116 = vmatpush.msra.mxu0 0.0
        %7117 = vmatpush.msra.mxu0 0.0
        %7118 = vmatpush.msra.mxu0 0.0
        %7119 = vmatpush.msra.mxu0 0.0
        %7120 = vmatpush.msra.mxu0 0.0
        %7121 = vmatpush.msra.mxu0 0.0
        %7122 = vmatpush.msra.mxu0 %v5620
        %7123 = vmatpush.msra.mxu0 %v5619
        %7124 = vmatpush.msra.mxu0 %v5618
        %7125 = vmatpush.msra.mxu0 %v5617
        %7126 = vmatpush.msra.mxu0 %v5616
        %7127 = vmatpush.msra.mxu0 %v5615
        %7128 = vmatpush.msra.mxu0 %v5614
        %7129 = vmatpush.msra.mxu0 %v5613
        %7130 = vmatmul.f32.gmra.mxu0 %v7109
        %v7131 = vpop.f32.mrf.mxu0
        %v7132 = vadd.f32 0.0, %v7131
        %7133 = vmatmul.f32.gmra.mxu0 %v7112
        %v7134 = vpop.f32.mrf.mxu0
        %v7135 = vadd.f32 0.0, %v7134
        %7136 = vdwg.mxu0
        %s7137 = scalar_lea.vmem %s12, 64
        %v7138 = vld [vmem:[%s7137] sm:$0xff]
        %v7139 = vld [vmem:[%s7137 + $0x8] sm:$0xff]
        %v7141 = vsel %vm6914, %v7132, 0
        %v7144 = vsel %vm6914, %v7135, 0
        %7146 = vmatpush.msra.mxu0 0.0
        %7147 = vmatpush.msra.mxu0 0.0
        %7148 = vmatpush.msra.mxu0 0.0
        %7149 = vmatpush.msra.mxu0 0.0
        %7150 = vmatpush.msra.mxu0 0.0
        %7151 = vmatpush.msra.mxu0 0.0
        %7152 = vmatpush.msra.mxu0 0.0
        %7153 = vmatpush.msra.mxu0 0.0
        %7154 = vmatpush.msra.mxu0 0.0
        %7155 = vmatpush.msra.mxu0 0.0
        %7156 = vmatpush.msra.mxu0 0.0
        %7157 = vmatpush.msra.mxu0 0.0
        %7158 = vmatpush.msra.mxu0 0.0
        %7159 = vmatpush.msra.mxu0 0.0
        %7160 = vmatpush.msra.mxu0 %v7139
        %7161 = vmatpush.msra.mxu0 %v7138
        %7162 = vmatmul.f32.gmra.mxu0 %v7141
        %v7163 = vpop.f32.mrf.mxu0
        %v7164 = vadd.f32 0.0, %v7163
        %7165 = vmatmul.f32.gmra.mxu0 %v7144
        %v7166 = vpop.f32.mrf.mxu0
        %v7167 = vadd.f32 0.0, %v7166
        %7168 = vdwg.mxu0
        %v7169 = vadd.f32 %v7103, %v7164
        %v7170 = vadd.f32 %v7104, %v7167
        %s7171 = scalar_lea.vmem %s4, 80
        %v7172 = vld [vmem:[%s7171] sm:$0xff]
        %v7173 = vld [vmem:[%s7171 + $0x8] sm:$0xff]
        %v7175 = vsel %vm4106, %v7172, 0
        %v7178 = vsel %vm4106, %v7173, 0
        %7180 = vmatpush.msra.mxu0 0.0
        %7181 = vmatpush.msra.mxu0 0.0
        %7182 = vmatpush.msra.mxu0 0.0
        %7183 = vmatpush.msra.mxu0 0.0
        %7184 = vmatpush.msra.mxu0 0.0
        %7185 = vmatpush.msra.mxu0 0.0
        %7186 = vmatpush.msra.mxu0 0.0
        %7187 = vmatpush.msra.mxu0 0.0
        %7188 = vmatpush.msra.mxu0 %v5620
        %7189 = vmatpush.msra.mxu0 %v5619
        %7190 = vmatpush.msra.mxu0 %v5618
        %7191 = vmatpush.msra.mxu0 %v5617
        %7192 = vmatpush.msra.mxu0 %v5616
        %7193 = vmatpush.msra.mxu0 %v5615
        %7194 = vmatpush.msra.mxu0 %v5614
        %7195 = vmatpush.msra.mxu0 %v5613
        %7196 = vmatmul.f32.gmra.mxu0 %v7175
        %v7197 = vpop.f32.mrf.mxu0
        %v7198 = vadd.f32 0.0, %v7197
        %7199 = vmatmul.f32.gmra.mxu0 %v7178
        %v7200 = vpop.f32.mrf.mxu0
        %v7201 = vadd.f32 0.0, %v7200
        %7202 = vdwg.mxu0
        %s7203 = scalar_lea.vmem %s12, 80
        %v7204 = vld [vmem:[%s7203] sm:$0xff]
        %v7205 = vld [vmem:[%s7203 + $0x8] sm:$0xff]
        %v7207 = vsel %vm6914, %v7198, 0
        %v7210 = vsel %vm6914, %v7201, 0
        %7212 = vmatpush.msra.mxu0 0.0
        %7213 = vmatpush.msra.mxu0 0.0
        %7214 = vmatpush.msra.mxu0 0.0
        %7215 = vmatpush.msra.mxu0 0.0
        %7216 = vmatpush.msra.mxu0 0.0
        %7217 = vmatpush.msra.mxu0 0.0
        %7218 = vmatpush.msra.mxu0 0.0
        %7219 = vmatpush.msra.mxu0 0.0
        %7220 = vmatpush.msra.mxu0 0.0
        %7221 = vmatpush.msra.mxu0 0.0
        %7222 = vmatpush.msra.mxu0 0.0
        %7223 = vmatpush.msra.mxu0 0.0
        %7224 = vmatpush.msra.mxu0 0.0
        %7225 = vmatpush.msra.mxu0 0.0
        %7226 = vmatpush.msra.mxu0 %v7205
        %7227 = vmatpush.msra.mxu0 %v7204
        %7228 = vmatmul.f32.gmra.mxu0 %v7207
        %v7229 = vpop.f32.mrf.mxu0
        %v7230 = vadd.f32 0.0, %v7229
        %7231 = vmatmul.f32.gmra.mxu0 %v7210
        %v7232 = vpop.f32.mrf.mxu0
        %v7233 = vadd.f32 0.0, %v7232
        %7234 = vdwg.mxu0
        %v7235 = vadd.f32 %v7169, %v7230
        %v7236 = vadd.f32 %v7170, %v7233
        %s7237 = scalar_lea.vmem %s4, 96
        %v7238 = vld [vmem:[%s7237] sm:$0xff]
        %v7239 = vld [vmem:[%s7237 + $0x8] sm:$0xff]
        %v7241 = vsel %vm4106, %v7238, 0
        %v7244 = vsel %vm4106, %v7239, 0
        %7246 = vmatpush.msra.mxu0 0.0
        %7247 = vmatpush.msra.mxu0 0.0
        %7248 = vmatpush.msra.mxu0 0.0
        %7249 = vmatpush.msra.mxu0 0.0
        %7250 = vmatpush.msra.mxu0 0.0
        %7251 = vmatpush.msra.mxu0 0.0
        %7252 = vmatpush.msra.mxu0 0.0
        %7253 = vmatpush.msra.mxu0 0.0
        %7254 = vmatpush.msra.mxu0 %v5620
        %7255 = vmatpush.msra.mxu0 %v5619
        %7256 = vmatpush.msra.mxu0 %v5618
        %7257 = vmatpush.msra.mxu0 %v5617
        %7258 = vmatpush.msra.mxu0 %v5616
        %7259 = vmatpush.msra.mxu0 %v5615
        %7260 = vmatpush.msra.mxu0 %v5614
        %7261 = vmatpush.msra.mxu0 %v5613
        %7262 = vmatmul.f32.gmra.mxu0 %v7241
        %v7263 = vpop.f32.mrf.mxu0
        %v7264 = vadd.f32 0.0, %v7263
        %7265 = vmatmul.f32.gmra.mxu0 %v7244
        %v7266 = vpop.f32.mrf.mxu0
        %v7267 = vadd.f32 0.0, %v7266
        %7268 = vdwg.mxu0
        %s7269 = scalar_lea.vmem %s12, 96
        %v7270 = vld [vmem:[%s7269] sm:$0xff]
        %v7271 = vld [vmem:[%s7269 + $0x8] sm:$0xff]
        %v7273 = vsel %vm6914, %v7264, 0
        %v7276 = vsel %vm6914, %v7267, 0
        %7278 = vmatpush.msra.mxu0 0.0
        %7279 = vmatpush.msra.mxu0 0.0
        %7280 = vmatpush.msra.mxu0 0.0
        %7281 = vmatpush.msra.mxu0 0.0
        %7282 = vmatpush.msra.mxu0 0.0
        %7283 = vmatpush.msra.mxu0 0.0
        %7284 = vmatpush.msra.mxu0 0.0
        %7285 = vmatpush.msra.mxu0 0.0
        %7286 = vmatpush.msra.mxu0 0.0
        %7287 = vmatpush.msra.mxu0 0.0
        %7288 = vmatpush.msra.mxu0 0.0
        %7289 = vmatpush.msra.mxu0 0.0
        %7290 = vmatpush.msra.mxu0 0.0
        %7291 = vmatpush.msra.mxu0 0.0
        %7292 = vmatpush.msra.mxu0 %v7271
        %7293 = vmatpush.msra.mxu0 %v7270
        %7294 = vmatmul.f32.gmra.mxu0 %v7273
        %v7295 = vpop.f32.mrf.mxu0
        %v7296 = vadd.f32 0.0, %v7295
        %7297 = vmatmul.f32.gmra.mxu0 %v7276
        %v7298 = vpop.f32.mrf.mxu0
        %v7299 = vadd.f32 0.0, %v7298
        %7300 = vdwg.mxu0
        %v7301 = vadd.f32 %v7235, %v7296
        %v7302 = vadd.f32 %v7236, %v7299
        %s7303 = scalar_lea.vmem %s4, 112
        %v7304 = vld [vmem:[%s7303] sm:$0xff]
        %v7305 = vld [vmem:[%s7303 + $0x8] sm:$0xff]
        %v7307 = vsel %vm4106, %v7304, 0
        %v7310 = vsel %vm4106, %v7305, 0
        %7312 = vmatpush.msra.mxu0 0.0
        %7313 = vmatpush.msra.mxu0 0.0
        %7314 = vmatpush.msra.mxu0 0.0
        %7315 = vmatpush.msra.mxu0 0.0
        %7316 = vmatpush.msra.mxu0 0.0
        %7317 = vmatpush.msra.mxu0 0.0
        %7318 = vmatpush.msra.mxu0 0.0
        %7319 = vmatpush.msra.mxu0 0.0
        %7320 = vmatpush.msra.mxu0 %v5620
        %7321 = vmatpush.msra.mxu0 %v5619
        %7322 = vmatpush.msra.mxu0 %v5618
        %7323 = vmatpush.msra.mxu0 %v5617
        %7324 = vmatpush.msra.mxu0 %v5616
        %7325 = vmatpush.msra.mxu0 %v5615
        %7326 = vmatpush.msra.mxu0 %v5614
        %7327 = vmatpush.msra.mxu0 %v5613
        %7328 = vmatmul.f32.gmra.mxu0 %v7307
        %v7329 = vpop.f32.mrf.mxu0
        %v7330 = vadd.f32 0.0, %v7329
        %7331 = vmatmul.f32.gmra.mxu0 %v7310
        %v7332 = vpop.f32.mrf.mxu0
        %v7333 = vadd.f32 0.0, %v7332
        %7334 = vdwg.mxu0
        %s7335 = scalar_lea.vmem %s12, 112
        %v7336 = vld [vmem:[%s7335] sm:$0xff]
        %v7337 = vld [vmem:[%s7335 + $0x8] sm:$0xff]
        %v7339 = vsel %vm6914, %v7330, 0
        %v7342 = vsel %vm6914, %v7333, 0
        %7344 = vmatpush.msra.mxu0 0.0
        %7345 = vmatpush.msra.mxu0 0.0
        %7346 = vmatpush.msra.mxu0 0.0
        %7347 = vmatpush.msra.mxu0 0.0
        %7348 = vmatpush.msra.mxu0 0.0
        %7349 = vmatpush.msra.mxu0 0.0
        %7350 = vmatpush.msra.mxu0 0.0
        %7351 = vmatpush.msra.mxu0 0.0
        %7352 = vmatpush.msra.mxu0 0.0
        %7353 = vmatpush.msra.mxu0 0.0
        %7354 = vmatpush.msra.mxu0 0.0
        %7355 = vmatpush.msra.mxu0 0.0
        %7356 = vmatpush.msra.mxu0 0.0
        %7357 = vmatpush.msra.mxu0 0.0
        %7358 = vmatpush.msra.mxu0 %v7337
        %7359 = vmatpush.msra.mxu0 %v7336
        %7360 = vmatmul.f32.gmra.mxu0 %v7339
        %v7361 = vpop.f32.mrf.mxu0
        %v7362 = vadd.f32 0.0, %v7361
        %7363 = vmatmul.f32.gmra.mxu0 %v7342
        %v7364 = vpop.f32.mrf.mxu0
        %v7365 = vadd.f32 0.0, %v7364
        %7366 = vdwg.mxu0
        %v7367 = vadd.f32 %v7301, %v7362
        %v7368 = vadd.f32 %v7302, %v7365
        %s7369 = scalar_lea.vmem %s4, 128
        %v7370 = vld [vmem:[%s7369] sm:$0xff]
        %v7371 = vld [vmem:[%s7369 + $0x8] sm:$0xff]
        %v7373 = vsel %vm4106, %v7370, 0
        %v7376 = vsel %vm4106, %v7371, 0
        %7378 = vmatpush.msra.mxu0 0.0
        %7379 = vmatpush.msra.mxu0 0.0
        %7380 = vmatpush.msra.mxu0 0.0
        %7381 = vmatpush.msra.mxu0 0.0
        %7382 = vmatpush.msra.mxu0 0.0
        %7383 = vmatpush.msra.mxu0 0.0
        %7384 = vmatpush.msra.mxu0 0.0
        %7385 = vmatpush.msra.mxu0 0.0
        %7386 = vmatpush.msra.mxu0 %v5620
        %7387 = vmatpush.msra.mxu0 %v5619
        %7388 = vmatpush.msra.mxu0 %v5618
        %7389 = vmatpush.msra.mxu0 %v5617
        %7390 = vmatpush.msra.mxu0 %v5616
        %7391 = vmatpush.msra.mxu0 %v5615
        %7392 = vmatpush.msra.mxu0 %v5614
        %7393 = vmatpush.msra.mxu0 %v5613
        %7394 = vmatmul.f32.gmra.mxu0 %v7373
        %v7395 = vpop.f32.mrf.mxu0
        %v7396 = vadd.f32 0.0, %v7395
        %7397 = vmatmul.f32.gmra.mxu0 %v7376
        %v7398 = vpop.f32.mrf.mxu0
        %v7399 = vadd.f32 0.0, %v7398
        %7400 = vdwg.mxu0
        %s7401 = scalar_lea.vmem %s12, 128
        %v7402 = vld [vmem:[%s7401] sm:$0xff]
        %v7403 = vld [vmem:[%s7401 + $0x8] sm:$0xff]
        %v7405 = vsel %vm6914, %v7396, 0
        %v7408 = vsel %vm6914, %v7399, 0
        %7410 = vmatpush.msra.mxu0 0.0
        %7411 = vmatpush.msra.mxu0 0.0
        %7412 = vmatpush.msra.mxu0 0.0
        %7413 = vmatpush.msra.mxu0 0.0
        %7414 = vmatpush.msra.mxu0 0.0
        %7415 = vmatpush.msra.mxu0 0.0
        %7416 = vmatpush.msra.mxu0 0.0
        %7417 = vmatpush.msra.mxu0 0.0
        %7418 = vmatpush.msra.mxu0 0.0
        %7419 = vmatpush.msra.mxu0 0.0
        %7420 = vmatpush.msra.mxu0 0.0
        %7421 = vmatpush.msra.mxu0 0.0
        %7422 = vmatpush.msra.mxu0 0.0
        %7423 = vmatpush.msra.mxu0 0.0
        %7424 = vmatpush.msra.mxu0 %v7403
        %7425 = vmatpush.msra.mxu0 %v7402
        %7426 = vmatmul.f32.gmra.mxu0 %v7405
        %v7427 = vpop.f32.mrf.mxu0
        %v7428 = vadd.f32 0.0, %v7427
        %7429 = vmatmul.f32.gmra.mxu0 %v7408
        %v7430 = vpop.f32.mrf.mxu0
        %v7431 = vadd.f32 0.0, %v7430
        %7432 = vdwg.mxu0
        %v7433 = vadd.f32 %v7367, %v7428
        %v7434 = vadd.f32 %v7368, %v7431
        %s7435 = scalar_lea.vmem %s12, 144
        %v7436 = vld [vmem:[%s7435] sm:$0x1]
        %v7437 = vperm.slane %v7436, 0
        %v7438 = vadd.f32 %v7433, %v7437
        %v7439 = vadd.f32 %v7434, %v7437
        %v7440 = vxor.u32 %v7438, 2147483648
        %v7441 = vxor.u32 %v7439, 2147483648
        %v7442 = vmul.f32 %v7440, 1.442695
        %v7443 = vpow.pop %v7442
        %v7444 = vmul.f32 %v7441, 1.442695
        %v7445 = vpow.pop %v7444
        %v7446 = vadd.f32 %v7443, 1.0
        %v7447 = vadd.f32 %v7445, 1.0
        %v7448 = vrcp.pop %v7446
        %v7449 = vmul.f32 %v7446, %v7448
        %v7450 = vsub.f32 1.0, %v7449
        %v7451 = vmul.f32 %v7448, %v7450
        %v7452 = vadd.f32 %v7448, %v7451
        %vm7453 = vweird.f32 %v7446
        %vm7454 = vweird.f32 %v7448
        %vm7455 = vmor %vm7453, %vm7454
        %v7456 = vsel %vm7455, %v7448, %v7452
        %v7457 = vand.u32 2147483647, %v7446
        %vm7458 = vcmp.eq.f32.partialorder %v7457, 8.507059e+37
        %v7459 = vand.u32 %v7446, 2147483648
        %v7460 = vor.u32 1.1754944e-38, %v7459
        %v7461 = vsel %vm7458, %v7460, %v7456
        %v7462 = vmul.f32 1.0, %v7461
        %v7463 = vrcp.pop %v7447
        %v7464 = vmul.f32 %v7447, %v7463
        %v7465 = vsub.f32 1.0, %v7464
        %v7466 = vmul.f32 %v7463, %v7465
        %v7467 = vadd.f32 %v7463, %v7466
        %vm7468 = vweird.f32 %v7447
        %vm7469 = vweird.f32 %v7463
        %vm7470 = vmor %vm7468, %vm7469
        %v7471 = vsel %vm7470, %v7463, %v7467
        %v7472 = vand.u32 2147483647, %v7447
        %vm7473 = vcmp.eq.f32.partialorder %v7472, 8.507059e+37
        %v7474 = vand.u32 %v7447, 2147483648
        %v7475 = vor.u32 1.1754944e-38, %v7474
        %v7476 = vsel %vm7473, %v7475, %v7471
        %v7477 = vmul.f32 1.0, %v7476
        %v7478 = vmul.f32 %v7438, %v7462
        %v7479 = vmul.f32 %v7439, %v7477
        %7480 = vmatpush.msra.mxu0 0.0
        %7481 = vmatpush.msra.mxu0 0.0
        %7482 = vmatpush.msra.mxu0 0.0
        %7483 = vmatpush.msra.mxu0 0.0
        %7484 = vmatpush.msra.mxu0 0.0
        %7485 = vmatpush.msra.mxu0 0.0
        %7486 = vmatpush.msra.mxu0 0.0
        %7487 = vmatpush.msra.mxu0 0.0
        %7488 = vmatpush.msra.mxu0 %v6845
        %7489 = vmatpush.msra.mxu0 %v6844
        %7490 = vmatpush.msra.mxu0 %v6843
        %7491 = vmatpush.msra.mxu0 %v6842
        %7492 = vmatpush.msra.mxu0 %v6841
        %7493 = vmatpush.msra.mxu0 %v6840
        %7494 = vmatpush.msra.mxu0 %v6839
        %7495 = vmatpush.msra.mxu0 %v6838
        %7496 = vmatmul.f32.gmra.mxu0 %v6849
        %v7497 = vpop.f32.mrf.mxu0
        %v7498 = vadd.f32 0.0, %v7497
        %7499 = vmatmul.f32.gmra.mxu0 %v6852
        %v7500 = vpop.f32.mrf.mxu0
        %v7501 = vadd.f32 0.0, %v7500
        %7502 = vdwg.mxu0
        %v7503 = vld [vmem:[%s8] sm:$0xff]
        %v7504 = vld [vmem:[%s8 + $0x8] sm:$0xff]
        %7505 = vmatpush.msra.mxu0 0.0
        %7506 = vmatpush.msra.mxu0 0.0
        %7507 = vmatpush.msra.mxu0 0.0
        %7508 = vmatpush.msra.mxu0 0.0
        %7509 = vmatpush.msra.mxu0 0.0
        %7510 = vmatpush.msra.mxu0 0.0
        %7511 = vmatpush.msra.mxu0 0.0
        %7512 = vmatpush.msra.mxu0 0.0
        %7513 = vmatpush.msra.mxu0 %v6845
        %7514 = vmatpush.msra.mxu0 %v6844
        %7515 = vmatpush.msra.mxu0 %v6843
        %7516 = vmatpush.msra.mxu0 %v6842
        %7517 = vmatpush.msra.mxu0 %v6841
        %7518 = vmatpush.msra.mxu0 %v6840
        %7519 = vmatpush.msra.mxu0 %v6839
        %7520 = vmatpush.msra.mxu0 %v6838
        %7521 = vmatmul.f32.gmra.mxu0 %v6883
        %v7522 = vpop.f32.mrf.mxu0
        %v7523 = vadd.f32 0.0, %v7522
        %7524 = vmatmul.f32.gmra.mxu0 %v6886
        %v7525 = vpop.f32.mrf.mxu0
        %v7526 = vadd.f32 0.0, %v7525
        %7527 = vdwg.mxu0
        %s7528 = scalar_lea.vmem %s8, 16
        %v7529 = vld [vmem:[%s7528] sm:$0xff]
        %v7530 = vld [vmem:[%s7528 + $0x8] sm:$0xff]
        %v7532 = vsel %vm6914, %v7523, 0
        %v7535 = vsel %vm6914, %v7526, 0
        %7537 = vmatpush.msra.mxu0 0.0
        %7538 = vmatpush.msra.mxu0 0.0
        %7539 = vmatpush.msra.mxu0 0.0
        %7540 = vmatpush.msra.mxu0 0.0
        %7541 = vmatpush.msra.mxu0 0.0
        %7542 = vmatpush.msra.mxu0 0.0
        %7543 = vmatpush.msra.mxu0 0.0
        %7544 = vmatpush.msra.mxu0 0.0
        %7545 = vmatpush.msra.mxu0 0.0
        %7546 = vmatpush.msra.mxu0 0.0
        %7547 = vmatpush.msra.mxu0 0.0
        %7548 = vmatpush.msra.mxu0 0.0
        %7549 = vmatpush.msra.mxu0 0.0
        %7550 = vmatpush.msra.mxu0 0.0
        %7551 = vmatpush.msra.mxu0 %v7530
        %7552 = vmatpush.msra.mxu0 %v7529
        %7553 = vmatmul.f32.gmra.mxu0 %v7532
        %v7554 = vpop.f32.mrf.mxu0
        %v7555 = vadd.f32 0.0, %v7554
        %7556 = vmatmul.f32.gmra.mxu0 %v7535
        %v7557 = vpop.f32.mrf.mxu0
        %v7558 = vadd.f32 0.0, %v7557
        %7559 = vdwg.mxu0
        %v7561 = vsel %vm6914, %v7498, 0
        %v7564 = vsel %vm6914, %v7501, 0
        %7566 = vmatpush.msra.mxu0 0.0
        %7567 = vmatpush.msra.mxu0 0.0
        %7568 = vmatpush.msra.mxu0 0.0
        %7569 = vmatpush.msra.mxu0 0.0
        %7570 = vmatpush.msra.mxu0 0.0
        %7571 = vmatpush.msra.mxu0 0.0
        %7572 = vmatpush.msra.mxu0 0.0
        %7573 = vmatpush.msra.mxu0 0.0
        %7574 = vmatpush.msra.mxu0 0.0
        %7575 = vmatpush.msra.mxu0 0.0
        %7576 = vmatpush.msra.mxu0 0.0
        %7577 = vmatpush.msra.mxu0 0.0
        %7578 = vmatpush.msra.mxu0 0.0
        %7579 = vmatpush.msra.mxu0 0.0
        %7580 = vmatpush.msra.mxu0 %v7504
        %7581 = vmatpush.msra.mxu0 %v7503
        %7582 = vmatmul.f32.gmra.mxu0 %v7561
        %v7583 = vpop.f32.mrf.mxu0
        %v7584 = vadd.f32 %v7555, %v7583
        %7585 = vmatmul.f32.gmra.mxu0 %v7564
        %v7586 = vpop.f32.mrf.mxu0
        %v7587 = vadd.f32 %v7558, %v7586
        %7588 = vdwg.mxu0
        %7589 = vmatpush.msra.mxu0 0.0
        %7590 = vmatpush.msra.mxu0 0.0
        %7591 = vmatpush.msra.mxu0 0.0
        %7592 = vmatpush.msra.mxu0 0.0
        %7593 = vmatpush.msra.mxu0 0.0
        %7594 = vmatpush.msra.mxu0 0.0
        %7595 = vmatpush.msra.mxu0 0.0
        %7596 = vmatpush.msra.mxu0 0.0
        %7597 = vmatpush.msra.mxu0 %v6845
        %7598 = vmatpush.msra.mxu0 %v6844
        %7599 = vmatpush.msra.mxu0 %v6843
        %7600 = vmatpush.msra.mxu0 %v6842
        %7601 = vmatpush.msra.mxu0 %v6841
        %7602 = vmatpush.msra.mxu0 %v6840
        %7603 = vmatpush.msra.mxu0 %v6839
        %7604 = vmatpush.msra.mxu0 %v6838
        %7605 = vmatmul.f32.gmra.mxu0 %v6977
        %v7606 = vpop.f32.mrf.mxu0
        %v7607 = vadd.f32 0.0, %v7606
        %7608 = vmatmul.f32.gmra.mxu0 %v6980
        %v7609 = vpop.f32.mrf.mxu0
        %v7610 = vadd.f32 0.0, %v7609
        %7611 = vdwg.mxu0
        %s7612 = scalar_lea.vmem %s8, 32
        %v7613 = vld [vmem:[%s7612] sm:$0xff]
        %v7614 = vld [vmem:[%s7612 + $0x8] sm:$0xff]
        %v7616 = vsel %vm6914, %v7607, 0
        %v7619 = vsel %vm6914, %v7610, 0
        %7621 = vmatpush.msra.mxu0 0.0
        %7622 = vmatpush.msra.mxu0 0.0
        %7623 = vmatpush.msra.mxu0 0.0
        %7624 = vmatpush.msra.mxu0 0.0
        %7625 = vmatpush.msra.mxu0 0.0
        %7626 = vmatpush.msra.mxu0 0.0
        %7627 = vmatpush.msra.mxu0 0.0
        %7628 = vmatpush.msra.mxu0 0.0
        %7629 = vmatpush.msra.mxu0 0.0
        %7630 = vmatpush.msra.mxu0 0.0
        %7631 = vmatpush.msra.mxu0 0.0
        %7632 = vmatpush.msra.mxu0 0.0
        %7633 = vmatpush.msra.mxu0 0.0
        %7634 = vmatpush.msra.mxu0 0.0
        %7635 = vmatpush.msra.mxu0 %v7614
        %7636 = vmatpush.msra.mxu0 %v7613
        %7637 = vmatmul.f32.gmra.mxu0 %v7616
        %v7638 = vpop.f32.mrf.mxu0
        %v7639 = vadd.f32 0.0, %v7638
        %7640 = vmatmul.f32.gmra.mxu0 %v7619
        %v7641 = vpop.f32.mrf.mxu0
        %v7642 = vadd.f32 0.0, %v7641
        %7643 = vdwg.mxu0
        %v7644 = vadd.f32 %v7584, %v7639
        %v7645 = vadd.f32 %v7587, %v7642
        %7646 = vmatpush.msra.mxu0 0.0
        %7647 = vmatpush.msra.mxu0 0.0
        %7648 = vmatpush.msra.mxu0 0.0
        %7649 = vmatpush.msra.mxu0 0.0
        %7650 = vmatpush.msra.mxu0 0.0
        %7651 = vmatpush.msra.mxu0 0.0
        %7652 = vmatpush.msra.mxu0 0.0
        %7653 = vmatpush.msra.mxu0 0.0
        %7654 = vmatpush.msra.mxu0 %v6845
        %7655 = vmatpush.msra.mxu0 %v6844
        %7656 = vmatpush.msra.mxu0 %v6843
        %7657 = vmatpush.msra.mxu0 %v6842
        %7658 = vmatpush.msra.mxu0 %v6841
        %7659 = vmatpush.msra.mxu0 %v6840
        %7660 = vmatpush.msra.mxu0 %v6839
        %7661 = vmatpush.msra.mxu0 %v6838
        %7662 = vmatmul.f32.gmra.mxu0 %v7043
        %v7663 = vpop.f32.mrf.mxu0
        %v7664 = vadd.f32 0.0, %v7663
        %7665 = vmatmul.f32.gmra.mxu0 %v7046
        %v7666 = vpop.f32.mrf.mxu0
        %v7667 = vadd.f32 0.0, %v7666
        %7668 = vdwg.mxu0
        %s7669 = scalar_lea.vmem %s8, 48
        %v7670 = vld [vmem:[%s7669] sm:$0xff]
        %v7671 = vld [vmem:[%s7669 + $0x8] sm:$0xff]
        %v7673 = vsel %vm6914, %v7664, 0
        %v7676 = vsel %vm6914, %v7667, 0
        %7678 = vmatpush.msra.mxu0 0.0
        %7679 = vmatpush.msra.mxu0 0.0
        %7680 = vmatpush.msra.mxu0 0.0
        %7681 = vmatpush.msra.mxu0 0.0
        %7682 = vmatpush.msra.mxu0 0.0
        %7683 = vmatpush.msra.mxu0 0.0
        %7684 = vmatpush.msra.mxu0 0.0
        %7685 = vmatpush.msra.mxu0 0.0
        %7686 = vmatpush.msra.mxu0 0.0
        %7687 = vmatpush.msra.mxu0 0.0
        %7688 = vmatpush.msra.mxu0 0.0
        %7689 = vmatpush.msra.mxu0 0.0
        %7690 = vmatpush.msra.mxu0 0.0
        %7691 = vmatpush.msra.mxu0 0.0
        %7692 = vmatpush.msra.mxu0 %v7671
        %7693 = vmatpush.msra.mxu0 %v7670
        %7694 = vmatmul.f32.gmra.mxu0 %v7673
        %v7695 = vpop.f32.mrf.mxu0
        %v7696 = vadd.f32 0.0, %v7695
        %7697 = vmatmul.f32.gmra.mxu0 %v7676
        %v7698 = vpop.f32.mrf.mxu0
        %v7699 = vadd.f32 0.0, %v7698
        %7700 = vdwg.mxu0
        %v7701 = vadd.f32 %v7644, %v7696
        %v7702 = vadd.f32 %v7645, %v7699
        %7703 = vmatpush.msra.mxu0 0.0
        %7704 = vmatpush.msra.mxu0 0.0
        %7705 = vmatpush.msra.mxu0 0.0
        %7706 = vmatpush.msra.mxu0 0.0
        %7707 = vmatpush.msra.mxu0 0.0
        %7708 = vmatpush.msra.mxu0 0.0
        %7709 = vmatpush.msra.mxu0 0.0
        %7710 = vmatpush.msra.mxu0 0.0
        %7711 = vmatpush.msra.mxu0 %v6845
        %7712 = vmatpush.msra.mxu0 %v6844
        %7713 = vmatpush.msra.mxu0 %v6843
        %7714 = vmatpush.msra.mxu0 %v6842
        %7715 = vmatpush.msra.mxu0 %v6841
        %7716 = vmatpush.msra.mxu0 %v6840
        %7717 = vmatpush.msra.mxu0 %v6839
        %7718 = vmatpush.msra.mxu0 %v6838
        %7719 = vmatmul.f32.gmra.mxu0 %v7109
        %v7720 = vpop.f32.mrf.mxu0
        %v7721 = vadd.f32 0.0, %v7720
        %7722 = vmatmul.f32.gmra.mxu0 %v7112
        %v7723 = vpop.f32.mrf.mxu0
        %v7724 = vadd.f32 0.0, %v7723
        %7725 = vdwg.mxu0
        %s7726 = scalar_lea.vmem %s8, 64
        %v7727 = vld [vmem:[%s7726] sm:$0xff]
        %v7728 = vld [vmem:[%s7726 + $0x8] sm:$0xff]
        %v7730 = vsel %vm6914, %v7721, 0
        %v7733 = vsel %vm6914, %v7724, 0
        %7735 = vmatpush.msra.mxu0 0.0
        %7736 = vmatpush.msra.mxu0 0.0
        %7737 = vmatpush.msra.mxu0 0.0
        %7738 = vmatpush.msra.mxu0 0.0
        %7739 = vmatpush.msra.mxu0 0.0
        %7740 = vmatpush.msra.mxu0 0.0
        %7741 = vmatpush.msra.mxu0 0.0
        %7742 = vmatpush.msra.mxu0 0.0
        %7743 = vmatpush.msra.mxu0 0.0
        %7744 = vmatpush.msra.mxu0 0.0
        %7745 = vmatpush.msra.mxu0 0.0
        %7746 = vmatpush.msra.mxu0 0.0
        %7747 = vmatpush.msra.mxu0 0.0
        %7748 = vmatpush.msra.mxu0 0.0
        %7749 = vmatpush.msra.mxu0 %v7728
        %7750 = vmatpush.msra.mxu0 %v7727
        %7751 = vmatmul.f32.gmra.mxu0 %v7730
        %v7752 = vpop.f32.mrf.mxu0
        %v7753 = vadd.f32 0.0, %v7752
        %7754 = vmatmul.f32.gmra.mxu0 %v7733
        %v7755 = vpop.f32.mrf.mxu0
        %v7756 = vadd.f32 0.0, %v7755
        %7757 = vdwg.mxu0
        %v7758 = vadd.f32 %v7701, %v7753
        %v7759 = vadd.f32 %v7702, %v7756
        %7760 = vmatpush.msra.mxu0 0.0
        %7761 = vmatpush.msra.mxu0 0.0
        %7762 = vmatpush.msra.mxu0 0.0
        %7763 = vmatpush.msra.mxu0 0.0
        %7764 = vmatpush.msra.mxu0 0.0
        %7765 = vmatpush.msra.mxu0 0.0
        %7766 = vmatpush.msra.mxu0 0.0
        %7767 = vmatpush.msra.mxu0 0.0
        %7768 = vmatpush.msra.mxu0 %v6845
        %7769 = vmatpush.msra.mxu0 %v6844
        %7770 = vmatpush.msra.mxu0 %v6843
        %7771 = vmatpush.msra.mxu0 %v6842
        %7772 = vmatpush.msra.mxu0 %v6841
        %7773 = vmatpush.msra.mxu0 %v6840
        %7774 = vmatpush.msra.mxu0 %v6839
        %7775 = vmatpush.msra.mxu0 %v6838
        %7776 = vmatmul.f32.gmra.mxu0 %v7175
        %v7777 = vpop.f32.mrf.mxu0
        %v7778 = vadd.f32 0.0, %v7777
        %7779 = vmatmul.f32.gmra.mxu0 %v7178
        %v7780 = vpop.f32.mrf.mxu0
        %v7781 = vadd.f32 0.0, %v7780
        %7782 = vdwg.mxu0
        %s7783 = scalar_lea.vmem %s8, 80
        %v7784 = vld [vmem:[%s7783] sm:$0xff]
        %v7785 = vld [vmem:[%s7783 + $0x8] sm:$0xff]
        %v7787 = vsel %vm6914, %v7778, 0
        %v7790 = vsel %vm6914, %v7781, 0
        %7792 = vmatpush.msra.mxu0 0.0
        %7793 = vmatpush.msra.mxu0 0.0
        %7794 = vmatpush.msra.mxu0 0.0
        %7795 = vmatpush.msra.mxu0 0.0
        %7796 = vmatpush.msra.mxu0 0.0
        %7797 = vmatpush.msra.mxu0 0.0
        %7798 = vmatpush.msra.mxu0 0.0
        %7799 = vmatpush.msra.mxu0 0.0
        %7800 = vmatpush.msra.mxu0 0.0
        %7801 = vmatpush.msra.mxu0 0.0
        %7802 = vmatpush.msra.mxu0 0.0
        %7803 = vmatpush.msra.mxu0 0.0
        %7804 = vmatpush.msra.mxu0 0.0
        %7805 = vmatpush.msra.mxu0 0.0
        %7806 = vmatpush.msra.mxu0 %v7785
        %7807 = vmatpush.msra.mxu0 %v7784
        %7808 = vmatmul.f32.gmra.mxu0 %v7787
        %v7809 = vpop.f32.mrf.mxu0
        %v7810 = vadd.f32 0.0, %v7809
        %7811 = vmatmul.f32.gmra.mxu0 %v7790
        %v7812 = vpop.f32.mrf.mxu0
        %v7813 = vadd.f32 0.0, %v7812
        %7814 = vdwg.mxu0
        %v7815 = vadd.f32 %v7758, %v7810
        %v7816 = vadd.f32 %v7759, %v7813
        %7817 = vmatpush.msra.mxu0 0.0
        %7818 = vmatpush.msra.mxu0 0.0
        %7819 = vmatpush.msra.mxu0 0.0
        %7820 = vmatpush.msra.mxu0 0.0
        %7821 = vmatpush.msra.mxu0 0.0
        %7822 = vmatpush.msra.mxu0 0.0
        %7823 = vmatpush.msra.mxu0 0.0
        %7824 = vmatpush.msra.mxu0 0.0
        %7825 = vmatpush.msra.mxu0 %v6845
        %7826 = vmatpush.msra.mxu0 %v6844
        %7827 = vmatpush.msra.mxu0 %v6843
        %7828 = vmatpush.msra.mxu0 %v6842
        %7829 = vmatpush.msra.mxu0 %v6841
        %7830 = vmatpush.msra.mxu0 %v6840
        %7831 = vmatpush.msra.mxu0 %v6839
        %7832 = vmatpush.msra.mxu0 %v6838
        %7833 = vmatmul.f32.gmra.mxu0 %v7241
        %v7834 = vpop.f32.mrf.mxu0
        %v7835 = vadd.f32 0.0, %v7834
        %7836 = vmatmul.f32.gmra.mxu0 %v7244
        %v7837 = vpop.f32.mrf.mxu0
        %v7838 = vadd.f32 0.0, %v7837
        %7839 = vdwg.mxu0
        %s7840 = scalar_lea.vmem %s8, 96
        %v7841 = vld [vmem:[%s7840] sm:$0xff]
        %v7842 = vld [vmem:[%s7840 + $0x8] sm:$0xff]
        %v7844 = vsel %vm6914, %v7835, 0
        %v7847 = vsel %vm6914, %v7838, 0
        %7849 = vmatpush.msra.mxu0 0.0
        %7850 = vmatpush.msra.mxu0 0.0
        %7851 = vmatpush.msra.mxu0 0.0
        %7852 = vmatpush.msra.mxu0 0.0
        %7853 = vmatpush.msra.mxu0 0.0
        %7854 = vmatpush.msra.mxu0 0.0
        %7855 = vmatpush.msra.mxu0 0.0
        %7856 = vmatpush.msra.mxu0 0.0
        %7857 = vmatpush.msra.mxu0 0.0
        %7858 = vmatpush.msra.mxu0 0.0
        %7859 = vmatpush.msra.mxu0 0.0
        %7860 = vmatpush.msra.mxu0 0.0
        %7861 = vmatpush.msra.mxu0 0.0
        %7862 = vmatpush.msra.mxu0 0.0
        %7863 = vmatpush.msra.mxu0 %v7842
        %7864 = vmatpush.msra.mxu0 %v7841
        %7865 = vmatmul.f32.gmra.mxu0 %v7844
        %v7866 = vpop.f32.mrf.mxu0
        %v7867 = vadd.f32 0.0, %v7866
        %7868 = vmatmul.f32.gmra.mxu0 %v7847
        %v7869 = vpop.f32.mrf.mxu0
        %v7870 = vadd.f32 0.0, %v7869
        %7871 = vdwg.mxu0
        %v7872 = vadd.f32 %v7815, %v7867
        %v7873 = vadd.f32 %v7816, %v7870
        %7874 = vmatpush.msra.mxu0 0.0
        %7875 = vmatpush.msra.mxu0 0.0
        %7876 = vmatpush.msra.mxu0 0.0
        %7877 = vmatpush.msra.mxu0 0.0
        %7878 = vmatpush.msra.mxu0 0.0
        %7879 = vmatpush.msra.mxu0 0.0
        %7880 = vmatpush.msra.mxu0 0.0
        %7881 = vmatpush.msra.mxu0 0.0
        %7882 = vmatpush.msra.mxu0 %v6845
        %7883 = vmatpush.msra.mxu0 %v6844
        %7884 = vmatpush.msra.mxu0 %v6843
        %7885 = vmatpush.msra.mxu0 %v6842
        %7886 = vmatpush.msra.mxu0 %v6841
        %7887 = vmatpush.msra.mxu0 %v6840
        %7888 = vmatpush.msra.mxu0 %v6839
        %7889 = vmatpush.msra.mxu0 %v6838
        %7890 = vmatmul.f32.gmra.mxu0 %v7307
        %v7891 = vpop.f32.mrf.mxu0
        %v7892 = vadd.f32 0.0, %v7891
        %7893 = vmatmul.f32.gmra.mxu0 %v7310
        %v7894 = vpop.f32.mrf.mxu0
        %v7895 = vadd.f32 0.0, %v7894
        %7896 = vdwg.mxu0
        %s7897 = scalar_lea.vmem %s8, 112
        %v7898 = vld [vmem:[%s7897] sm:$0xff]
        %v7899 = vld [vmem:[%s7897 + $0x8] sm:$0xff]
        %v7901 = vsel %vm6914, %v7892, 0
        %v7904 = vsel %vm6914, %v7895, 0
        %7906 = vmatpush.msra.mxu0 0.0
        %7907 = vmatpush.msra.mxu0 0.0
        %7908 = vmatpush.msra.mxu0 0.0
        %7909 = vmatpush.msra.mxu0 0.0
        %7910 = vmatpush.msra.mxu0 0.0
        %7911 = vmatpush.msra.mxu0 0.0
        %7912 = vmatpush.msra.mxu0 0.0
        %7913 = vmatpush.msra.mxu0 0.0
        %7914 = vmatpush.msra.mxu0 0.0
        %7915 = vmatpush.msra.mxu0 0.0
        %7916 = vmatpush.msra.mxu0 0.0
        %7917 = vmatpush.msra.mxu0 0.0
        %7918 = vmatpush.msra.mxu0 0.0
        %7919 = vmatpush.msra.mxu0 0.0
        %7920 = vmatpush.msra.mxu0 %v7899
        %7921 = vmatpush.msra.mxu0 %v7898
        %7922 = vmatmul.f32.gmra.mxu0 %v7901
        %v7923 = vpop.f32.mrf.mxu0
        %v7924 = vadd.f32 0.0, %v7923
        %7925 = vmatmul.f32.gmra.mxu0 %v7904
        %v7926 = vpop.f32.mrf.mxu0
        %v7927 = vadd.f32 0.0, %v7926
        %7928 = vdwg.mxu0
        %v7929 = vadd.f32 %v7872, %v7924
        %v7930 = vadd.f32 %v7873, %v7927
        %7931 = vmatpush.msra.mxu0 0.0
        %7932 = vmatpush.msra.mxu0 0.0
        %7933 = vmatpush.msra.mxu0 0.0
        %7934 = vmatpush.msra.mxu0 0.0
        %7935 = vmatpush.msra.mxu0 0.0
        %7936 = vmatpush.msra.mxu0 0.0
        %7937 = vmatpush.msra.mxu0 0.0
        %7938 = vmatpush.msra.mxu0 0.0
        %7939 = vmatpush.msra.mxu0 %v6845
        %7940 = vmatpush.msra.mxu0 %v6844
        %7941 = vmatpush.msra.mxu0 %v6843
        %7942 = vmatpush.msra.mxu0 %v6842
        %7943 = vmatpush.msra.mxu0 %v6841
        %7944 = vmatpush.msra.mxu0 %v6840
        %7945 = vmatpush.msra.mxu0 %v6839
        %7946 = vmatpush.msra.mxu0 %v6838
        %7947 = vmatmul.f32.gmra.mxu0 %v7373
        %v7948 = vpop.f32.mrf.mxu0
        %v7949 = vadd.f32 0.0, %v7948
        %7950 = vmatmul.f32.gmra.mxu0 %v7376
        %v7951 = vpop.f32.mrf.mxu0
        %v7952 = vadd.f32 0.0, %v7951
        %7953 = vdwg.mxu0
        %s7954 = scalar_lea.vmem %s8, 128
        %v7955 = vld [vmem:[%s7954] sm:$0xff]
        %v7956 = vld [vmem:[%s7954 + $0x8] sm:$0xff]
        %v7958 = vsel %vm6914, %v7949, 0
        %v7961 = vsel %vm6914, %v7952, 0
        %7963 = vmatpush.msra.mxu0 0.0
        %7964 = vmatpush.msra.mxu0 0.0
        %7965 = vmatpush.msra.mxu0 0.0
        %7966 = vmatpush.msra.mxu0 0.0
        %7967 = vmatpush.msra.mxu0 0.0
        %7968 = vmatpush.msra.mxu0 0.0
        %7969 = vmatpush.msra.mxu0 0.0
        %7970 = vmatpush.msra.mxu0 0.0
        %7971 = vmatpush.msra.mxu0 0.0
        %7972 = vmatpush.msra.mxu0 0.0
        %7973 = vmatpush.msra.mxu0 0.0
        %7974 = vmatpush.msra.mxu0 0.0
        %7975 = vmatpush.msra.mxu0 0.0
        %7976 = vmatpush.msra.mxu0 0.0
        %7977 = vmatpush.msra.mxu0 %v7956
        %7978 = vmatpush.msra.mxu0 %v7955
        %7979 = vmatmul.f32.gmra.mxu0 %v7958
        %v7980 = vpop.f32.mrf.mxu0
        %v7981 = vadd.f32 0.0, %v7980
        %7982 = vmatmul.f32.gmra.mxu0 %v7961
        %v7983 = vpop.f32.mrf.mxu0
        %v7984 = vadd.f32 0.0, %v7983
        %7985 = vdwg.mxu0
        %v7986 = vadd.f32 %v7929, %v7981
        %v7987 = vadd.f32 %v7930, %v7984
        %s7988 = scalar_lea.vmem %s8, 144
        %v7989 = vld [vmem:[%s7988] sm:$0x1]
        %v7990 = vperm.slane %v7989, 0
        %v7991 = vadd.f32 %v7986, %v7990
        %v7992 = vadd.f32 %v7987, %v7990
        %v7993 = vxor.u32 %v7991, 2147483648
        %v7994 = vxor.u32 %v7992, 2147483648
        %v7995 = vmul.f32 %v7993, 1.442695
        %v7996 = vpow.pop %v7995
        %v7997 = vmul.f32 %v7994, 1.442695
        %v7998 = vpow.pop %v7997
        %v7999 = vadd.f32 %v7996, 1.0
        %v8000 = vadd.f32 %v7998, 1.0
        %v8001 = vrcp.pop %v7999
        %v8002 = vmul.f32 %v7999, %v8001
        %v8003 = vsub.f32 1.0, %v8002
        %v8004 = vmul.f32 %v8001, %v8003
        %v8005 = vadd.f32 %v8001, %v8004
        %vm8006 = vweird.f32 %v7999
        %vm8007 = vweird.f32 %v8001
        %vm8008 = vmor %vm8006, %vm8007
        %v8009 = vsel %vm8008, %v8001, %v8005
        %v8010 = vand.u32 2147483647, %v7999
        %vm8011 = vcmp.eq.f32.partialorder %v8010, 8.507059e+37
        %v8012 = vand.u32 %v7999, 2147483648
        %v8013 = vor.u32 1.1754944e-38, %v8012
        %v8014 = vsel %vm8011, %v8013, %v8009
        %v8015 = vmul.f32 1.0, %v8014
        %v8016 = vrcp.pop %v8000
        %v8017 = vmul.f32 %v8000, %v8016
        %v8018 = vsub.f32 1.0, %v8017
        %v8019 = vmul.f32 %v8016, %v8018
        %v8020 = vadd.f32 %v8016, %v8019
        %vm8021 = vweird.f32 %v8000
        %vm8022 = vweird.f32 %v8016
        %vm8023 = vmor %vm8021, %vm8022
        %v8024 = vsel %vm8023, %v8016, %v8020
        %v8025 = vand.u32 2147483647, %v8000
        %vm8026 = vcmp.eq.f32.partialorder %v8025, 8.507059e+37
        %v8027 = vand.u32 %v8000, 2147483648
        %v8028 = vor.u32 1.1754944e-38, %v8027
        %v8029 = vsel %vm8026, %v8028, %v8024
        %v8030 = vmul.f32 1.0, %v8029
        %v8031 = vmul.f32 %v7991, %v8015
        %v8032 = vmul.f32 %v7992, %v8030
        %v8033 = vld [vmem:[%s14] sm:$0xff]
        %v8034 = vld [vmem:[%s14 + $0x8] sm:$0xff]
        %v8035 = vld [vmem:[%s14 + $0x10] sm:$0xff]
        %v8036 = vld [vmem:[%s14 + $0x18] sm:$0x1]
        %v8037 = vperm.slane %v8036, 0
        %vm8038 = vcmask 195584
        %v8040 = vsel %vm8038, %v7478, 0
        %v8043 = vsel %vm8038, %v7479, 0
        %8045 = vmatpush.msra.mxu0 0.0
        %8046 = vmatpush.msra.mxu0 0.0
        %8047 = vmatpush.msra.mxu0 0.0
        %8048 = vmatpush.msra.mxu0 0.0
        %8049 = vmatpush.msra.mxu0 0.0
        %8050 = vmatpush.msra.mxu0 0.0
        %8051 = vmatpush.msra.mxu0 0.0
        %8052 = vmatpush.msra.mxu0 0.0
        %8053 = vmatpush.msra.mxu0 0.0
        %8054 = vmatpush.msra.mxu0 0.0
        %8055 = vmatpush.msra.mxu0 0.0
        %8056 = vmatpush.msra.mxu0 0.0
        %8057 = vmatpush.msra.mxu0 0.0
        %8058 = vmatpush.msra.mxu0 %v8035
        %8059 = vmatpush.msra.mxu0 %v8034
        %8060 = vmatpush.msra.mxu0 %v8033
        %8061 = vmatmul.f32.gmra.mxu0 %v8040
        %v8062 = vpop.f32.mrf.mxu0
        %v8063 = vadd.f32 %v8037, %v8062
        %8064 = vmatmul.f32.gmra.mxu0 %v8043
        %v8065 = vpop.f32.mrf.mxu0
        %v8066 = vadd.f32 %v8037, %v8065
        %8067 = vdwg.mxu0
        %s8068 = scalar_lea.vmem %s14, 32
        %v8069 = vld [vmem:[%s8068] sm:$0xff]
        %v8070 = vld [vmem:[%s8068 + $0x8] sm:$0xff]
        %v8071 = vld [vmem:[%s8068 + $0x10] sm:$0xff]
        %v8072 = vld [vmem:[%s8068 + $0x18] sm:$0x1]
        %v8073 = vperm.slane %v8072, 0
        %v8075 = vsel %vm8038, %v8031, 0
        %v8078 = vsel %vm8038, %v8032, 0
        %8080 = vmatpush.msra.mxu0 0.0
        %8081 = vmatpush.msra.mxu0 0.0
        %8082 = vmatpush.msra.mxu0 0.0
        %8083 = vmatpush.msra.mxu0 0.0
        %8084 = vmatpush.msra.mxu0 0.0
        %8085 = vmatpush.msra.mxu0 0.0
        %8086 = vmatpush.msra.mxu0 0.0
        %8087 = vmatpush.msra.mxu0 0.0
        %8088 = vmatpush.msra.mxu0 0.0
        %8089 = vmatpush.msra.mxu0 0.0
        %8090 = vmatpush.msra.mxu0 0.0
        %8091 = vmatpush.msra.mxu0 0.0
        %8092 = vmatpush.msra.mxu0 0.0
        %8093 = vmatpush.msra.mxu0 %v8071
        %8094 = vmatpush.msra.mxu0 %v8070
        %8095 = vmatpush.msra.mxu0 %v8069
        %8096 = vmatmul.f32.gmra.mxu0 %v8075
        %v8097 = vpop.f32.mrf.mxu0
        %v8098 = vadd.f32 %v8073, %v8097
        %8099 = vmatmul.f32.gmra.mxu0 %v8078
        %v8100 = vpop.f32.mrf.mxu0
        %v8101 = vadd.f32 %v8073, %v8100
        %8102 = vdwg.mxu0
        %s8103 = scalar_lea.vmem %s14, 64
        %v8104 = vld [vmem:[%s8103] sm:$0xff]
        %v8105 = vld [vmem:[%s8103 + $0x8] sm:$0xff]
        %v8106 = vld [vmem:[%s8103 + $0x10] sm:$0xff]
        %v8107 = vld [vmem:[%s8103 + $0x18] sm:$0x1]
        %v8108 = vperm.slane %v8107, 0
        %8109 = vmatpush.msra.mxu0 0.0
        %8110 = vmatpush.msra.mxu0 0.0
        %8111 = vmatpush.msra.mxu0 0.0
        %8112 = vmatpush.msra.mxu0 0.0
        %8113 = vmatpush.msra.mxu0 0.0
        %8114 = vmatpush.msra.mxu0 0.0
        %8115 = vmatpush.msra.mxu0 0.0
        %8116 = vmatpush.msra.mxu0 0.0
        %8117 = vmatpush.msra.mxu0 0.0
        %8118 = vmatpush.msra.mxu0 0.0
        %8119 = vmatpush.msra.mxu0 0.0
        %8120 = vmatpush.msra.mxu0 0.0
        %8121 = vmatpush.msra.mxu0 0.0
        %8122 = vmatpush.msra.mxu0 %v8106
        %8123 = vmatpush.msra.mxu0 %v8105
        %8124 = vmatpush.msra.mxu0 %v8104
        %8125 = vmatmul.f32.gmra.mxu0 %v8075
        %v8126 = vpop.f32.mrf.mxu0
        %v8127 = vadd.f32 %v8108, %v8126
        %8128 = vmatmul.f32.gmra.mxu0 %v8078
        %v8129 = vpop.f32.mrf.mxu0
        %v8130 = vadd.f32 %v8108, %v8129
        %8131 = vdwg.mxu0
        %v8133 = vsel %vm6914, %v8063, 0
        %v8136 = vsel %vm6914, %v8066, 0
        %v8139 = vsel %vm6914, %v8098, 0
        %v8142 = vsel %vm6914, %v8101, 0
        %8144 = vmatpush.xpose.msra.mxu0 0.0
        %8145 = vmatpush.xpose.msra.mxu0 0.0
        %8146 = vmatpush.xpose.msra.mxu0 0.0
        %8147 = vmatpush.xpose.msra.mxu0 0.0
        %8148 = vmatpush.xpose.msra.mxu0 0.0
        %8149 = vmatpush.xpose.msra.mxu0 0.0
        %8150 = vmatpush.xpose.msra.mxu0 0.0
        %8151 = vmatpush.xpose.msra.mxu0 0.0
        %8152 = vmatpush.xpose.msra.mxu0 0.0
        %8153 = vmatpush.xpose.msra.mxu0 0.0
        %8154 = vmatpush.xpose.msra.mxu0 0.0
        %8155 = vmatpush.xpose.msra.mxu0 0.0
        %8156 = vmatpush.xpose.msra.mxu0 0.0
        %8157 = vmatpush.xpose.msra.mxu0 0.0
        %8158 = vmatpush.xpose.msra.mxu0 %v8142
        %8159 = vmatpush.xpose.msra.mxu0 %v8139
        %8160 = vmatmul.f32.gmra.mxu0 %v8133
        %v8161 = vpop.f32.mrf.mxu0
        %v8162 = vadd.f32 0.0, %v8161
        %8163 = vmatmul.f32.gmra.mxu0 %v8136
        %v8164 = vpop.f32.mrf.mxu0
        %v8165 = vadd.f32 0.0, %v8164
        %8166 = vdwg.mxu0
        %v8167 = vmul.f32 %v8162, 0.25
        %v8168 = vmul.f32 %v8165, 0.25
        %v8169 = vld [vmem:[%s18] sm:$0xff]
        %v8170 = vld [vmem:[%s18 + $0x8] sm:$0xff]
        %v8171 = vadd.f32 %v8167, %v8169
        %v8172 = vadd.f32 %v8168, %v8170
        %v8173 = vsel %vm6914, %v8171, -inf
        %8174 = vmax.xlane.f32.xlu0 %v8173
        %v8175 = vpop.xlane.xlu0 %8174
        %v8176 = vsel %vm6914, %v8172, -inf
        %8177 = vmax.xlane.f32.xlu0 %v8176
        %v8178 = vpop.xlane.xlu0 %8177
        %v8179 = vsub.f32 %v8171, %v8175
        %v8180 = vsub.f32 %v8172, %v8178
        %v8181 = vmul.f32 %v8179, 1.442695
        %v8182 = vpow.pop %v8181
        %v8183 = vmul.f32 %v8180, 1.442695
        %v8184 = vpow.pop %v8183
        %v8185 = vsel %vm6914, %v8182, 0.0
        %8186 = vadd.xlane.f32.xlu0 %v8185
        %v8187 = vpop.xlane.xlu0 %8186
        %v8188 = vsel %vm6914, %v8184, 0.0
        %8189 = vadd.xlane.f32.xlu0 %v8188
        %v8190 = vpop.xlane.xlu0 %8189
        %v8191 = vrcp.pop %v8187
        %v8192 = vrcp.pop %v8190
        %v8193 = vmul.f32 %v8182, %v8191
        %v8194 = vmul.f32 %v8184, %v8192
        %s8195 = scalar_lea.vmem %s18, 16
        %v8196 = vld [vmem:[%s8195] sm:$0xff]
        %v8197 = vld [vmem:[%s8195 + $0x8] sm:$0xff]
        %v8198 = vadd.f32 %v8167, %v8196
        %v8199 = vadd.f32 %v8168, %v8197
        %v8200 = vsel %vm6914, %v8198, -inf
        %8201 = vmax.xlane.f32.xlu0 %v8200
        %v8202 = vpop.xlane.xlu0 %8201
        %v8203 = vsel %vm6914, %v8199, -inf
        %8204 = vmax.xlane.f32.xlu0 %v8203
        %v8205 = vpop.xlane.xlu0 %8204
        %v8206 = vsub.f32 %v8198, %v8202
        %v8207 = vsub.f32 %v8199, %v8205
        %v8208 = vmul.f32 %v8206, 1.442695
        %v8209 = vpow.pop %v8208
        %v8210 = vmul.f32 %v8207, 1.442695
        %v8211 = vpow.pop %v8210
        %v8212 = vsel %vm6914, %v8209, 0.0
        %8213 = vadd.xlane.f32.xlu0 %v8212
        %v8214 = vpop.xlane.xlu0 %8213
        %v8215 = vsel %vm6914, %v8211, 0.0
        %8216 = vadd.xlane.f32.xlu0 %v8215
        %v8217 = vpop.xlane.xlu0 %8216
        %v8218 = vrcp.pop %v8214
        %v8219 = vrcp.pop %v8217
        %v8220 = vmul.f32 %v8209, %v8218
        %v8221 = vmul.f32 %v8211, %v8219
        %v8223 = vsel %vm6914, %v8220, 0
        %v8226 = vsel %vm6914, %v8221, 0
        %8228 = vmatpush.msra.mxu0 0.0
        %8229 = vmatpush.msra.mxu0 0.0
        %8230 = vmatpush.msra.mxu0 0.0
        %8231 = vmatpush.msra.mxu0 0.0
        %8232 = vmatpush.msra.mxu0 0.0
        %8233 = vmatpush.msra.mxu0 0.0
        %8234 = vmatpush.msra.mxu0 0.0
        %8235 = vmatpush.msra.mxu0 0.0
        %8236 = vmatpush.msra.mxu0 0.0
        %8237 = vmatpush.msra.mxu0 0.0
        %8238 = vmatpush.msra.mxu0 0.0
        %8239 = vmatpush.msra.mxu0 0.0
        %8240 = vmatpush.msra.mxu0 0.0
        %8241 = vmatpush.msra.mxu0 0.0
        %8242 = vmatpush.msra.mxu0 %v8130
        %8243 = vmatpush.msra.mxu0 %v8127
        %8244 = vmatmul.f32.gmra.mxu0 %v8223
        %v8245 = vpop.f32.mrf.mxu0
        %v8246 = vadd.f32 0.0, %v8245
        %8247 = vmatmul.f32.gmra.mxu0 %v8226
        %v8248 = vpop.f32.mrf.mxu0
        %v8249 = vadd.f32 0.0, %v8248
        %8250 = vdwg.mxu0
        %v8252 = vsel %vm6914, %v8193, 0
        %v8255 = vsel %vm6914, %v8194, 0
        %8257 = vmatpush.msra.mxu0 0.0
        %8258 = vmatpush.msra.mxu0 0.0
        %8259 = vmatpush.msra.mxu0 0.0
        %8260 = vmatpush.msra.mxu0 0.0
        %8261 = vmatpush.msra.mxu0 0.0
        %8262 = vmatpush.msra.mxu0 0.0
        %8263 = vmatpush.msra.mxu0 0.0
        %8264 = vmatpush.msra.mxu0 0.0
        %8265 = vmatpush.msra.mxu0 0.0
        %8266 = vmatpush.msra.mxu0 0.0
        %8267 = vmatpush.msra.mxu0 0.0
        %8268 = vmatpush.msra.mxu0 0.0
        %8269 = vmatpush.msra.mxu0 0.0
        %8270 = vmatpush.msra.mxu0 0.0
        %8271 = vmatpush.msra.mxu0 %v8130
        %8272 = vmatpush.msra.mxu0 %v8127
        %8273 = vmatmul.f32.gmra.mxu0 %v8252
        %v8274 = vpop.f32.mrf.mxu0
        %v8275 = vadd.f32 %v8246, %v8274
        %8276 = vmatmul.f32.gmra.mxu0 %v8255
        %v8277 = vpop.f32.mrf.mxu0
        %v8278 = vadd.f32 %v8249, %v8277
        %8279 = vdwg.mxu0
        %v8280 = vld [vmem:[%s15] sm:$0xff]
        %v8281 = vld [vmem:[%s15 + $0x8] sm:$0xff]
        %v8282 = vld [vmem:[%s15 + $0x10] sm:$0x1]
        %v8283 = vperm.slane %v8282, 0
        %v8285 = vsel %vm6914, %v8275, 0
        %v8288 = vsel %vm6914, %v8278, 0
        %8290 = vmatpush.msra.mxu0 0.0
        %8291 = vmatpush.msra.mxu0 0.0
        %8292 = vmatpush.msra.mxu0 0.0
        %8293 = vmatpush.msra.mxu0 0.0
        %8294 = vmatpush.msra.mxu0 0.0
        %8295 = vmatpush.msra.mxu0 0.0
        %8296 = vmatpush.msra.mxu0 0.0
        %8297 = vmatpush.msra.mxu0 0.0
        %8298 = vmatpush.msra.mxu0 0.0
        %8299 = vmatpush.msra.mxu0 0.0
        %8300 = vmatpush.msra.mxu0 0.0
        %8301 = vmatpush.msra.mxu0 0.0
        %8302 = vmatpush.msra.mxu0 0.0
        %8303 = vmatpush.msra.mxu0 0.0
        %8304 = vmatpush.msra.mxu0 %v8281
        %8305 = vmatpush.msra.mxu0 %v8280
        %8306 = vmatmul.f32.gmra.mxu0 %v8285
        %v8307 = vpop.f32.mrf.mxu0
        %v8308 = vadd.f32 %v8283, %v8307
        %8309 = vmatmul.f32.gmra.mxu0 %v8288
        %v8310 = vpop.f32.mrf.mxu0
        %v8311 = vadd.f32 %v8283, %v8310
        %8312 = vdwg.mxu0
        %v8313 = vld [vmem:[%s5] sm:$0xf]
        %v8315 = vsel %vm6914, %v8313, 0
        %8317 = vmatpush.msra.mxu0 0.0
        %8318 = vmatpush.msra.mxu0 0.0
        %8319 = vmatpush.msra.mxu0 0.0
        %8320 = vmatpush.msra.mxu0 0.0
        %8321 = vmatpush.msra.mxu0 0.0
        %8322 = vmatpush.msra.mxu0 0.0
        %8323 = vmatpush.msra.mxu0 0.0
        %8324 = vmatpush.msra.mxu0 0.0
        %8325 = vmatpush.msra.mxu0 0.0
        %8326 = vmatpush.msra.mxu0 0.0
        %8327 = vmatpush.msra.mxu0 0.0
        %8328 = vmatpush.msra.mxu0 0.0
        %8329 = vmatpush.msra.mxu0 0.0
        %8330 = vmatpush.msra.mxu0 0.0
        %8331 = vmatpush.msra.mxu0 %v8311
        %8332 = vmatpush.msra.mxu0 %v8308
        %8333 = vmatmul.f32.gmra.mxu0 %v8315
        %v8334 = vpop.f32.mrf.mxu0
        %v8335 = vadd.f32 0.0, %v8334
        %8336 = vdwg.mxu0
        %v8337 = vld [vmem:[%s13] sm:$0xff]
        %v8338 = vld [vmem:[%s13 + $0x8] sm:$0xff]
        %v8339 = vld [vmem:[%s13 + $0x10] sm:$0xff]
        %s8340 = scalar_lea.vmem %s5, 4
        %v8341 = vld [vmem:[%s8340] sm:$0xf]
        %v8343 = vsel %vm6914, %v8341, 0
        %8345 = vmatpush.msra.mxu0 0.0
        %8346 = vmatpush.msra.mxu0 0.0
        %8347 = vmatpush.msra.mxu0 0.0
        %8348 = vmatpush.msra.mxu0 0.0
        %8349 = vmatpush.msra.mxu0 0.0
        %8350 = vmatpush.msra.mxu0 0.0
        %8351 = vmatpush.msra.mxu0 0.0
        %8352 = vmatpush.msra.mxu0 0.0
        %8353 = vmatpush.msra.mxu0 0.0
        %8354 = vmatpush.msra.mxu0 0.0
        %8355 = vmatpush.msra.mxu0 0.0
        %8356 = vmatpush.msra.mxu0 0.0
        %8357 = vmatpush.msra.mxu0 0.0
        %8358 = vmatpush.msra.mxu0 0.0
        %8359 = vmatpush.msra.mxu0 %v8311
        %8360 = vmatpush.msra.mxu0 %v8308
        %8361 = vmatmul.f32.gmra.mxu0 %v8343
        %v8362 = vpop.f32.mrf.mxu0
        %v8363 = vadd.f32 0.0, %v8362
        %8364 = vdwg.mxu0
        %s8365 = scalar_lea.vmem %s13, 24
        %v8366 = vld [vmem:[%s8365] sm:$0xff]
        %v8367 = vld [vmem:[%s8365 + $0x8] sm:$0xff]
        %v8368 = vld [vmem:[%s8365 + $0x10] sm:$0xff]
        %v8370 = vsel %vm8038, %v8363, 0
        %8372 = vmatpush.msra.mxu0 0.0
        %8373 = vmatpush.msra.mxu0 0.0
        %8374 = vmatpush.msra.mxu0 0.0
        %8375 = vmatpush.msra.mxu0 0.0
        %8376 = vmatpush.msra.mxu0 0.0
        %8377 = vmatpush.msra.mxu0 0.0
        %8378 = vmatpush.msra.mxu0 0.0
        %8379 = vmatpush.msra.mxu0 0.0
        %8380 = vmatpush.msra.mxu0 0.0
        %8381 = vmatpush.msra.mxu0 0.0
        %8382 = vmatpush.msra.mxu0 0.0
        %8383 = vmatpush.msra.mxu0 0.0
        %8384 = vmatpush.msra.mxu0 0.0
        %8385 = vmatpush.msra.mxu0 %v8368
        %8386 = vmatpush.msra.mxu0 %v8367
        %8387 = vmatpush.msra.mxu0 %v8366
        %8388 = vmatmul.f32.gmra.mxu0 %v8370
        %v8389 = vpop.f32.mrf.mxu0
        %v8390 = vadd.f32 0.0, %v8389
        %8391 = vdwg.mxu0
        %v8393 = vsel %vm8038, %v8335, 0
        %8395 = vmatpush.msra.mxu0 0.0
        %8396 = vmatpush.msra.mxu0 0.0
        %8397 = vmatpush.msra.mxu0 0.0
        %8398 = vmatpush.msra.mxu0 0.0
        %8399 = vmatpush.msra.mxu0 0.0
        %8400 = vmatpush.msra.mxu0 0.0
        %8401 = vmatpush.msra.mxu0 0.0
        %8402 = vmatpush.msra.mxu0 0.0
        %8403 = vmatpush.msra.mxu0 0.0
        %8404 = vmatpush.msra.mxu0 0.0
        %8405 = vmatpush.msra.mxu0 0.0
        %8406 = vmatpush.msra.mxu0 0.0
        %8407 = vmatpush.msra.mxu0 0.0
        %8408 = vmatpush.msra.mxu0 %v8339
        %8409 = vmatpush.msra.mxu0 %v8338
        %8410 = vmatpush.msra.mxu0 %v8337
        %8411 = vmatmul.f32.gmra.mxu0 %v8393
        %v8412 = vpop.f32.mrf.mxu0
        %v8413 = vadd.f32 %v8390, %v8412
        %8414 = vdwg.mxu0
        %s8415 = scalar_lea.vmem %s5, 8
        %v8416 = vld [vmem:[%s8415] sm:$0xf]
        %v8418 = vsel %vm6914, %v8416, 0
        %8420 = vmatpush.msra.mxu0 0.0
        %8421 = vmatpush.msra.mxu0 0.0
        %8422 = vmatpush.msra.mxu0 0.0
        %8423 = vmatpush.msra.mxu0 0.0
        %8424 = vmatpush.msra.mxu0 0.0
        %8425 = vmatpush.msra.mxu0 0.0
        %8426 = vmatpush.msra.mxu0 0.0
        %8427 = vmatpush.msra.mxu0 0.0
        %8428 = vmatpush.msra.mxu0 0.0
        %8429 = vmatpush.msra.mxu0 0.0
        %8430 = vmatpush.msra.mxu0 0.0
        %8431 = vmatpush.msra.mxu0 0.0
        %8432 = vmatpush.msra.mxu0 0.0
        %8433 = vmatpush.msra.mxu0 0.0
        %8434 = vmatpush.msra.mxu0 %v8311
        %8435 = vmatpush.msra.mxu0 %v8308
        %8436 = vmatmul.f32.gmra.mxu0 %v8418
        %v8437 = vpop.f32.mrf.mxu0
        %v8438 = vadd.f32 0.0, %v8437
        %8439 = vdwg.mxu0
        %s8440 = scalar_lea.vmem %s13, 48
        %v8441 = vld [vmem:[%s8440] sm:$0xff]
        %v8442 = vld [vmem:[%s8440 + $0x8] sm:$0xff]
        %v8443 = vld [vmem:[%s8440 + $0x10] sm:$0xff]
        %v8445 = vsel %vm8038, %v8438, 0
        %8447 = vmatpush.msra.mxu0 0.0
        %8448 = vmatpush.msra.mxu0 0.0
        %8449 = vmatpush.msra.mxu0 0.0
        %8450 = vmatpush.msra.mxu0 0.0
        %8451 = vmatpush.msra.mxu0 0.0
        %8452 = vmatpush.msra.mxu0 0.0
        %8453 = vmatpush.msra.mxu0 0.0
        %8454 = vmatpush.msra.mxu0 0.0
        %8455 = vmatpush.msra.mxu0 0.0
        %8456 = vmatpush.msra.mxu0 0.0
        %8457 = vmatpush.msra.mxu0 0.0
        %8458 = vmatpush.msra.mxu0 0.0
        %8459 = vmatpush.msra.mxu0 0.0
        %8460 = vmatpush.msra.mxu0 %v8443
        %8461 = vmatpush.msra.mxu0 %v8442
        %8462 = vmatpush.msra.mxu0 %v8441
        %8463 = vmatmul.f32.gmra.mxu0 %v8445
        %v8464 = vpop.f32.mrf.mxu0
        %v8465 = vadd.f32 0.0, %v8464
        %8466 = vdwg.mxu0
        %v8467 = vadd.f32 %v8413, %v8465
        %s8468 = scalar_lea.vmem %s5, 12
        %v8469 = vld [vmem:[%s8468] sm:$0xf]
        %v8471 = vsel %vm6914, %v8469, 0
        %8473 = vmatpush.msra.mxu0 0.0
        %8474 = vmatpush.msra.mxu0 0.0
        %8475 = vmatpush.msra.mxu0 0.0
        %8476 = vmatpush.msra.mxu0 0.0
        %8477 = vmatpush.msra.mxu0 0.0
        %8478 = vmatpush.msra.mxu0 0.0
        %8479 = vmatpush.msra.mxu0 0.0
        %8480 = vmatpush.msra.mxu0 0.0
        %8481 = vmatpush.msra.mxu0 0.0
        %8482 = vmatpush.msra.mxu0 0.0
        %8483 = vmatpush.msra.mxu0 0.0
        %8484 = vmatpush.msra.mxu0 0.0
        %8485 = vmatpush.msra.mxu0 0.0
        %8486 = vmatpush.msra.mxu0 0.0
        %8487 = vmatpush.msra.mxu0 %v8311
        %8488 = vmatpush.msra.mxu0 %v8308
        %8489 = vmatmul.f32.gmra.mxu0 %v8471
        %v8490 = vpop.f32.mrf.mxu0
        %v8491 = vadd.f32 0.0, %v8490
        %8492 = vdwg.mxu0
        %s8493 = scalar_lea.vmem %s13, 72
        %v8494 = vld [vmem:[%s8493] sm:$0xff]
        %v8495 = vld [vmem:[%s8493 + $0x8] sm:$0xff]
        %v8496 = vld [vmem:[%s8493 + $0x10] sm:$0xff]
        %v8498 = vsel %vm8038, %v8491, 0
        %8500 = vmatpush.msra.mxu0 0.0
        %8501 = vmatpush.msra.mxu0 0.0
        %8502 = vmatpush.msra.mxu0 0.0
        %8503 = vmatpush.msra.mxu0 0.0
        %8504 = vmatpush.msra.mxu0 0.0
        %8505 = vmatpush.msra.mxu0 0.0
        %8506 = vmatpush.msra.mxu0 0.0
        %8507 = vmatpush.msra.mxu0 0.0
        %8508 = vmatpush.msra.mxu0 0.0
        %8509 = vmatpush.msra.mxu0 0.0
        %8510 = vmatpush.msra.mxu0 0.0
        %8511 = vmatpush.msra.mxu0 0.0
        %8512 = vmatpush.msra.mxu0 0.0
        %8513 = vmatpush.msra.mxu0 %v8496
        %8514 = vmatpush.msra.mxu0 %v8495
        %8515 = vmatpush.msra.mxu0 %v8494
        %8516 = vmatmul.f32.gmra.mxu0 %v8498
        %v8517 = vpop.f32.mrf.mxu0
        %v8518 = vadd.f32 0.0, %v8517
        %8519 = vdwg.mxu0
        %v8520 = vadd.f32 %v8467, %v8518
        %s8521 = scalar_lea.vmem %s5, 16
        %v8522 = vld [vmem:[%s8521] sm:$0xf]
        %v8524 = vsel %vm6914, %v8522, 0
        %8526 = vmatpush.msra.mxu0 0.0
        %8527 = vmatpush.msra.mxu0 0.0
        %8528 = vmatpush.msra.mxu0 0.0
        %8529 = vmatpush.msra.mxu0 0.0
        %8530 = vmatpush.msra.mxu0 0.0
        %8531 = vmatpush.msra.mxu0 0.0
        %8532 = vmatpush.msra.mxu0 0.0
        %8533 = vmatpush.msra.mxu0 0.0
        %8534 = vmatpush.msra.mxu0 0.0
        %8535 = vmatpush.msra.mxu0 0.0
        %8536 = vmatpush.msra.mxu0 0.0
        %8537 = vmatpush.msra.mxu0 0.0
        %8538 = vmatpush.msra.mxu0 0.0
        %8539 = vmatpush.msra.mxu0 0.0
        %8540 = vmatpush.msra.mxu0 %v8311
        %8541 = vmatpush.msra.mxu0 %v8308
        %8542 = vmatmul.f32.gmra.mxu0 %v8524
        %v8543 = vpop.f32.mrf.mxu0
        %v8544 = vadd.f32 0.0, %v8543
        %8545 = vdwg.mxu0
        %s8546 = scalar_lea.vmem %s13, 96
        %v8547 = vld [vmem:[%s8546] sm:$0xff]
        %v8548 = vld [vmem:[%s8546 + $0x8] sm:$0xff]
        %v8549 = vld [vmem:[%s8546 + $0x10] sm:$0xff]
        %v8551 = vsel %vm8038, %v8544, 0
        %8553 = vmatpush.msra.mxu0 0.0
        %8554 = vmatpush.msra.mxu0 0.0
        %8555 = vmatpush.msra.mxu0 0.0
        %8556 = vmatpush.msra.mxu0 0.0
        %8557 = vmatpush.msra.mxu0 0.0
        %8558 = vmatpush.msra.mxu0 0.0
        %8559 = vmatpush.msra.mxu0 0.0
        %8560 = vmatpush.msra.mxu0 0.0
        %8561 = vmatpush.msra.mxu0 0.0
        %8562 = vmatpush.msra.mxu0 0.0
        %8563 = vmatpush.msra.mxu0 0.0
        %8564 = vmatpush.msra.mxu0 0.0
        %8565 = vmatpush.msra.mxu0 0.0
        %8566 = vmatpush.msra.mxu0 %v8549
        %8567 = vmatpush.msra.mxu0 %v8548
        %8568 = vmatpush.msra.mxu0 %v8547
        %8569 = vmatmul.f32.gmra.mxu0 %v8551
        %v8570 = vpop.f32.mrf.mxu0
        %v8571 = vadd.f32 0.0, %v8570
        %8572 = vdwg.mxu0
        %v8573 = vadd.f32 %v8520, %v8571
        %s8574 = scalar_lea.vmem %s5, 20
        %v8575 = vld [vmem:[%s8574] sm:$0xf]
        %v8577 = vsel %vm6914, %v8575, 0
        %8579 = vmatpush.msra.mxu0 0.0
        %8580 = vmatpush.msra.mxu0 0.0
        %8581 = vmatpush.msra.mxu0 0.0
        %8582 = vmatpush.msra.mxu0 0.0
        %8583 = vmatpush.msra.mxu0 0.0
        %8584 = vmatpush.msra.mxu0 0.0
        %8585 = vmatpush.msra.mxu0 0.0
        %8586 = vmatpush.msra.mxu0 0.0
        %8587 = vmatpush.msra.mxu0 0.0
        %8588 = vmatpush.msra.mxu0 0.0
        %8589 = vmatpush.msra.mxu0 0.0
        %8590 = vmatpush.msra.mxu0 0.0
        %8591 = vmatpush.msra.mxu0 0.0
        %8592 = vmatpush.msra.mxu0 0.0
        %8593 = vmatpush.msra.mxu0 %v8311
        %8594 = vmatpush.msra.mxu0 %v8308
        %8595 = vmatmul.f32.gmra.mxu0 %v8577
        %v8596 = vpop.f32.mrf.mxu0
        %v8597 = vadd.f32 0.0, %v8596
        %8598 = vdwg.mxu0
        %s8599 = scalar_lea.vmem %s13, 120
        %v8600 = vld [vmem:[%s8599] sm:$0xff]
        %v8601 = vld [vmem:[%s8599 + $0x8] sm:$0xff]
        %v8602 = vld [vmem:[%s8599 + $0x10] sm:$0xff]
        %v8604 = vsel %vm8038, %v8597, 0
        %8606 = vmatpush.msra.mxu0 0.0
        %8607 = vmatpush.msra.mxu0 0.0
        %8608 = vmatpush.msra.mxu0 0.0
        %8609 = vmatpush.msra.mxu0 0.0
        %8610 = vmatpush.msra.mxu0 0.0
        %8611 = vmatpush.msra.mxu0 0.0
        %8612 = vmatpush.msra.mxu0 0.0
        %8613 = vmatpush.msra.mxu0 0.0
        %8614 = vmatpush.msra.mxu0 0.0
        %8615 = vmatpush.msra.mxu0 0.0
        %8616 = vmatpush.msra.mxu0 0.0
        %8617 = vmatpush.msra.mxu0 0.0
        %8618 = vmatpush.msra.mxu0 0.0
        %8619 = vmatpush.msra.mxu0 %v8602
        %8620 = vmatpush.msra.mxu0 %v8601
        %8621 = vmatpush.msra.mxu0 %v8600
        %8622 = vmatmul.f32.gmra.mxu0 %v8604
        %v8623 = vpop.f32.mrf.mxu0
        %v8624 = vadd.f32 0.0, %v8623
        %8625 = vdwg.mxu0
        %v8626 = vadd.f32 %v8573, %v8624
        %s8627 = scalar_lea.vmem %s5, 24
        %v8628 = vld [vmem:[%s8627] sm:$0xf]
        %v8630 = vsel %vm6914, %v8628, 0
        %8632 = vmatpush.msra.mxu0 0.0
        %8633 = vmatpush.msra.mxu0 0.0
        %8634 = vmatpush.msra.mxu0 0.0
        %8635 = vmatpush.msra.mxu0 0.0
        %8636 = vmatpush.msra.mxu0 0.0
        %8637 = vmatpush.msra.mxu0 0.0
        %8638 = vmatpush.msra.mxu0 0.0
        %8639 = vmatpush.msra.mxu0 0.0
        %8640 = vmatpush.msra.mxu0 0.0
        %8641 = vmatpush.msra.mxu0 0.0
        %8642 = vmatpush.msra.mxu0 0.0
        %8643 = vmatpush.msra.mxu0 0.0
        %8644 = vmatpush.msra.mxu0 0.0
        %8645 = vmatpush.msra.mxu0 0.0
        %8646 = vmatpush.msra.mxu0 %v8311
        %8647 = vmatpush.msra.mxu0 %v8308
        %8648 = vmatmul.f32.gmra.mxu0 %v8630
        %v8649 = vpop.f32.mrf.mxu0
        %v8650 = vadd.f32 0.0, %v8649
        %8651 = vdwg.mxu0
        %s8652 = scalar_lea.vmem %s13, 144
        %v8653 = vld [vmem:[%s8652] sm:$0xff]
        %v8654 = vld [vmem:[%s8652 + $0x8] sm:$0xff]
        %v8655 = vld [vmem:[%s8652 + $0x10] sm:$0xff]
        %v8657 = vsel %vm8038, %v8650, 0
        %8659 = vmatpush.msra.mxu0 0.0
        %8660 = vmatpush.msra.mxu0 0.0
        %8661 = vmatpush.msra.mxu0 0.0
        %8662 = vmatpush.msra.mxu0 0.0
        %8663 = vmatpush.msra.mxu0 0.0
        %8664 = vmatpush.msra.mxu0 0.0
        %8665 = vmatpush.msra.mxu0 0.0
        %8666 = vmatpush.msra.mxu0 0.0
        %8667 = vmatpush.msra.mxu0 0.0
        %8668 = vmatpush.msra.mxu0 0.0
        %8669 = vmatpush.msra.mxu0 0.0
        %8670 = vmatpush.msra.mxu0 0.0
        %8671 = vmatpush.msra.mxu0 0.0
        %8672 = vmatpush.msra.mxu0 %v8655
        %8673 = vmatpush.msra.mxu0 %v8654
        %8674 = vmatpush.msra.mxu0 %v8653
        %8675 = vmatmul.f32.gmra.mxu0 %v8657
        %v8676 = vpop.f32.mrf.mxu0
        %v8677 = vadd.f32 0.0, %v8676
        %8678 = vdwg.mxu0
        %v8679 = vadd.f32 %v8626, %v8677
        %s8680 = scalar_lea.vmem %s5, 28
        %v8681 = vld [vmem:[%s8680] sm:$0xf]
        %v8683 = vsel %vm6914, %v8681, 0
        %8685 = vmatpush.msra.mxu0 0.0
        %8686 = vmatpush.msra.mxu0 0.0
        %8687 = vmatpush.msra.mxu0 0.0
        %8688 = vmatpush.msra.mxu0 0.0
        %8689 = vmatpush.msra.mxu0 0.0
        %8690 = vmatpush.msra.mxu0 0.0
        %8691 = vmatpush.msra.mxu0 0.0
        %8692 = vmatpush.msra.mxu0 0.0
        %8693 = vmatpush.msra.mxu0 0.0
        %8694 = vmatpush.msra.mxu0 0.0
        %8695 = vmatpush.msra.mxu0 0.0
        %8696 = vmatpush.msra.mxu0 0.0
        %8697 = vmatpush.msra.mxu0 0.0
        %8698 = vmatpush.msra.mxu0 0.0
        %8699 = vmatpush.msra.mxu0 %v8311
        %8700 = vmatpush.msra.mxu0 %v8308
        %8701 = vmatmul.f32.gmra.mxu0 %v8683
        %v8702 = vpop.f32.mrf.mxu0
        %v8703 = vadd.f32 0.0, %v8702
        %8704 = vdwg.mxu0
        %s8705 = scalar_lea.vmem %s13, 168
        %v8706 = vld [vmem:[%s8705] sm:$0xff]
        %v8707 = vld [vmem:[%s8705 + $0x8] sm:$0xff]
        %v8708 = vld [vmem:[%s8705 + $0x10] sm:$0xff]
        %v8710 = vsel %vm8038, %v8703, 0
        %8712 = vmatpush.msra.mxu0 0.0
        %8713 = vmatpush.msra.mxu0 0.0
        %8714 = vmatpush.msra.mxu0 0.0
        %8715 = vmatpush.msra.mxu0 0.0
        %8716 = vmatpush.msra.mxu0 0.0
        %8717 = vmatpush.msra.mxu0 0.0
        %8718 = vmatpush.msra.mxu0 0.0
        %8719 = vmatpush.msra.mxu0 0.0
        %8720 = vmatpush.msra.mxu0 0.0
        %8721 = vmatpush.msra.mxu0 0.0
        %8722 = vmatpush.msra.mxu0 0.0
        %8723 = vmatpush.msra.mxu0 0.0
        %8724 = vmatpush.msra.mxu0 0.0
        %8725 = vmatpush.msra.mxu0 %v8708
        %8726 = vmatpush.msra.mxu0 %v8707
        %8727 = vmatpush.msra.mxu0 %v8706
        %8728 = vmatmul.f32.gmra.mxu0 %v8710
        %v8729 = vpop.f32.mrf.mxu0
        %v8730 = vadd.f32 0.0, %v8729
        %8731 = vdwg.mxu0
        %v8732 = vadd.f32 %v8679, %v8730
        %s8733 = scalar_lea.vmem %s5, 32
        %v8734 = vld [vmem:[%s8733] sm:$0xf]
        %v8736 = vsel %vm6914, %v8734, 0
        %8738 = vmatpush.msra.mxu0 0.0
        %8739 = vmatpush.msra.mxu0 0.0
        %8740 = vmatpush.msra.mxu0 0.0
        %8741 = vmatpush.msra.mxu0 0.0
        %8742 = vmatpush.msra.mxu0 0.0
        %8743 = vmatpush.msra.mxu0 0.0
        %8744 = vmatpush.msra.mxu0 0.0
        %8745 = vmatpush.msra.mxu0 0.0
        %8746 = vmatpush.msra.mxu0 0.0
        %8747 = vmatpush.msra.mxu0 0.0
        %8748 = vmatpush.msra.mxu0 0.0
        %8749 = vmatpush.msra.mxu0 0.0
        %8750 = vmatpush.msra.mxu0 0.0
        %8751 = vmatpush.msra.mxu0 0.0
        %8752 = vmatpush.msra.mxu0 %v8311
        %8753 = vmatpush.msra.mxu0 %v8308
        %8754 = vmatmul.f32.gmra.mxu0 %v8736
        %v8755 = vpop.f32.mrf.mxu0
        %v8756 = vadd.f32 0.0, %v8755
        %8757 = vdwg.mxu0
        %s8758 = scalar_lea.vmem %s13, 192
        %v8759 = vld [vmem:[%s8758] sm:$0xff]
        %v8760 = vld [vmem:[%s8758 + $0x8] sm:$0xff]
        %v8761 = vld [vmem:[%s8758 + $0x10] sm:$0xff]
        %v8763 = vsel %vm8038, %v8756, 0
        %8765 = vmatpush.msra.mxu0 0.0
        %8766 = vmatpush.msra.mxu0 0.0
        %8767 = vmatpush.msra.mxu0 0.0
        %8768 = vmatpush.msra.mxu0 0.0
        %8769 = vmatpush.msra.mxu0 0.0
        %8770 = vmatpush.msra.mxu0 0.0
        %8771 = vmatpush.msra.mxu0 0.0
        %8772 = vmatpush.msra.mxu0 0.0
        %8773 = vmatpush.msra.mxu0 0.0
        %8774 = vmatpush.msra.mxu0 0.0
        %8775 = vmatpush.msra.mxu0 0.0
        %8776 = vmatpush.msra.mxu0 0.0
        %8777 = vmatpush.msra.mxu0 0.0
        %8778 = vmatpush.msra.mxu0 %v8761
        %8779 = vmatpush.msra.mxu0 %v8760
        %8780 = vmatpush.msra.mxu0 %v8759
        %8781 = vmatmul.f32.gmra.mxu0 %v8763
        %v8782 = vpop.f32.mrf.mxu0
        %v8783 = vadd.f32 0.0, %v8782
        %8784 = vdwg.mxu0
        %v8785 = vadd.f32 %v8732, %v8783
        %s8786 = scalar_lea.vmem %s13, 216
        %v8787 = vld [vmem:[%s8786] sm:$0x1]
        %v8788 = vperm.slane %v8787, 0
        %v8789 = vadd.f32 %v8785, %v8788
        %v8790 = vxor.u32 %v8789, 2147483648
        %v8791 = vmul.f32 %v8790, 1.442695
        %v8792 = vpow.pop %v8791
        %v8793 = vadd.f32 %v8792, 1.0
        %v8794 = vrcp.pop %v8793
        %v8795 = vmul.f32 %v8793, %v8794
        %v8796 = vsub.f32 1.0, %v8795
        %v8797 = vmul.f32 %v8794, %v8796
        %v8798 = vadd.f32 %v8794, %v8797
        %vm8799 = vweird.f32 %v8793
        %vm8800 = vweird.f32 %v8794
        %vm8801 = vmor %vm8799, %vm8800
        %v8802 = vsel %vm8801, %v8794, %v8798
        %v8803 = vand.u32 2147483647, %v8793
        %vm8804 = vcmp.eq.f32.partialorder %v8803, 8.507059e+37
        %v8805 = vand.u32 %v8793, 2147483648
        %v8806 = vor.u32 1.1754944e-38, %v8805
        %v8807 = vsel %vm8804, %v8806, %v8802
        %v8808 = vmul.f32 1.0, %v8807
        %v8809 = vmul.f32 %v8789, %v8808
        %8810 = vmatpush.msra.mxu0 0.0
        %8811 = vmatpush.msra.mxu0 0.0
        %8812 = vmatpush.msra.mxu0 0.0
        %8813 = vmatpush.msra.mxu0 0.0
        %8814 = vmatpush.msra.mxu0 0.0
        %8815 = vmatpush.msra.mxu0 0.0
        %8816 = vmatpush.msra.mxu0 0.0
        %8817 = vmatpush.msra.mxu0 0.0
        %8818 = vmatpush.msra.mxu0 0.0
        %8819 = vmatpush.msra.mxu0 0.0
        %8820 = vmatpush.msra.mxu0 0.0
        %8821 = vmatpush.msra.mxu0 0.0
        %8822 = vmatpush.msra.mxu0 0.0
        %8823 = vmatpush.msra.mxu0 0.0
        %8824 = vmatpush.msra.mxu0 %v8032
        %8825 = vmatpush.msra.mxu0 %v8031
        %8826 = vmatmul.f32.gmra.mxu0 %v8315
        %v8827 = vpop.f32.mrf.mxu0
        %v8828 = vadd.f32 0.0, %v8827
        %8829 = vdwg.mxu0
        %v8830 = vld [vmem:[%s9] sm:$0xff]
        %v8831 = vld [vmem:[%s9 + $0x8] sm:$0xff]
        %v8832 = vld [vmem:[%s9 + $0x10] sm:$0xff]
        %8833 = vmatpush.msra.mxu0 0.0
        %8834 = vmatpush.msra.mxu0 0.0
        %8835 = vmatpush.msra.mxu0 0.0
        %8836 = vmatpush.msra.mxu0 0.0
        %8837 = vmatpush.msra.mxu0 0.0
        %8838 = vmatpush.msra.mxu0 0.0
        %8839 = vmatpush.msra.mxu0 0.0
        %8840 = vmatpush.msra.mxu0 0.0
        %8841 = vmatpush.msra.mxu0 0.0
        %8842 = vmatpush.msra.mxu0 0.0
        %8843 = vmatpush.msra.mxu0 0.0
        %8844 = vmatpush.msra.mxu0 0.0
        %8845 = vmatpush.msra.mxu0 0.0
        %8846 = vmatpush.msra.mxu0 0.0
        %8847 = vmatpush.msra.mxu0 %v8032
        %8848 = vmatpush.msra.mxu0 %v8031
        %8849 = vmatmul.f32.gmra.mxu0 %v8343
        %v8850 = vpop.f32.mrf.mxu0
        %v8851 = vadd.f32 0.0, %v8850
        %8852 = vdwg.mxu0
        %s8853 = scalar_lea.vmem %s9, 24
        %v8854 = vld [vmem:[%s8853] sm:$0xff]
        %v8855 = vld [vmem:[%s8853 + $0x8] sm:$0xff]
        %v8856 = vld [vmem:[%s8853 + $0x10] sm:$0xff]
        %v8858 = vsel %vm8038, %v8851, 0
        %8860 = vmatpush.msra.mxu0 0.0
        %8861 = vmatpush.msra.mxu0 0.0
        %8862 = vmatpush.msra.mxu0 0.0
        %8863 = vmatpush.msra.mxu0 0.0
        %8864 = vmatpush.msra.mxu0 0.0
        %8865 = vmatpush.msra.mxu0 0.0
        %8866 = vmatpush.msra.mxu0 0.0
        %8867 = vmatpush.msra.mxu0 0.0
        %8868 = vmatpush.msra.mxu0 0.0
        %8869 = vmatpush.msra.mxu0 0.0
        %8870 = vmatpush.msra.mxu0 0.0
        %8871 = vmatpush.msra.mxu0 0.0
        %8872 = vmatpush.msra.mxu0 0.0
        %8873 = vmatpush.msra.mxu0 %v8856
        %8874 = vmatpush.msra.mxu0 %v8855
        %8875 = vmatpush.msra.mxu0 %v8854
        %8876 = vmatmul.f32.gmra.mxu0 %v8858
        %v8877 = vpop.f32.mrf.mxu0
        %v8878 = vadd.f32 0.0, %v8877
        %8879 = vdwg.mxu0
        %v8881 = vsel %vm8038, %v8828, 0
        %8883 = vmatpush.msra.mxu0 0.0
        %8884 = vmatpush.msra.mxu0 0.0
        %8885 = vmatpush.msra.mxu0 0.0
        %8886 = vmatpush.msra.mxu0 0.0
        %8887 = vmatpush.msra.mxu0 0.0
        %8888 = vmatpush.msra.mxu0 0.0
        %8889 = vmatpush.msra.mxu0 0.0
        %8890 = vmatpush.msra.mxu0 0.0
        %8891 = vmatpush.msra.mxu0 0.0
        %8892 = vmatpush.msra.mxu0 0.0
        %8893 = vmatpush.msra.mxu0 0.0
        %8894 = vmatpush.msra.mxu0 0.0
        %8895 = vmatpush.msra.mxu0 0.0
        %8896 = vmatpush.msra.mxu0 %v8832
        %8897 = vmatpush.msra.mxu0 %v8831
        %8898 = vmatpush.msra.mxu0 %v8830
        %8899 = vmatmul.f32.gmra.mxu0 %v8881
        %v8900 = vpop.f32.mrf.mxu0
        %v8901 = vadd.f32 %v8878, %v8900
        %8902 = vdwg.mxu0
        %8903 = vmatpush.msra.mxu0 0.0
        %8904 = vmatpush.msra.mxu0 0.0
        %8905 = vmatpush.msra.mxu0 0.0
        %8906 = vmatpush.msra.mxu0 0.0
        %8907 = vmatpush.msra.mxu0 0.0
        %8908 = vmatpush.msra.mxu0 0.0
        %8909 = vmatpush.msra.mxu0 0.0
        %8910 = vmatpush.msra.mxu0 0.0
        %8911 = vmatpush.msra.mxu0 0.0
        %8912 = vmatpush.msra.mxu0 0.0
        %8913 = vmatpush.msra.mxu0 0.0
        %8914 = vmatpush.msra.mxu0 0.0
        %8915 = vmatpush.msra.mxu0 0.0
        %8916 = vmatpush.msra.mxu0 0.0
        %8917 = vmatpush.msra.mxu0 %v8032
        %8918 = vmatpush.msra.mxu0 %v8031
        %8919 = vmatmul.f32.gmra.mxu0 %v8418
        %v8920 = vpop.f32.mrf.mxu0
        %v8921 = vadd.f32 0.0, %v8920
        %8922 = vdwg.mxu0
        %s8923 = scalar_lea.vmem %s9, 48
        %v8924 = vld [vmem:[%s8923] sm:$0xff]
        %v8925 = vld [vmem:[%s8923 + $0x8] sm:$0xff]
        %v8926 = vld [vmem:[%s8923 + $0x10] sm:$0xff]
        %v8928 = vsel %vm8038, %v8921, 0
        %8930 = vmatpush.msra.mxu0 0.0
        %8931 = vmatpush.msra.mxu0 0.0
        %8932 = vmatpush.msra.mxu0 0.0
        %8933 = vmatpush.msra.mxu0 0.0
        %8934 = vmatpush.msra.mxu0 0.0
        %8935 = vmatpush.msra.mxu0 0.0
        %8936 = vmatpush.msra.mxu0 0.0
        %8937 = vmatpush.msra.mxu0 0.0
        %8938 = vmatpush.msra.mxu0 0.0
        %8939 = vmatpush.msra.mxu0 0.0
        %8940 = vmatpush.msra.mxu0 0.0
        %8941 = vmatpush.msra.mxu0 0.0
        %8942 = vmatpush.msra.mxu0 0.0
        %8943 = vmatpush.msra.mxu0 %v8926
        %8944 = vmatpush.msra.mxu0 %v8925
        %8945 = vmatpush.msra.mxu0 %v8924
        %8946 = vmatmul.f32.gmra.mxu0 %v8928
        %v8947 = vpop.f32.mrf.mxu0
        %v8948 = vadd.f32 0.0, %v8947
        %8949 = vdwg.mxu0
        %v8950 = vadd.f32 %v8901, %v8948
        %8951 = vmatpush.msra.mxu0 0.0
        %8952 = vmatpush.msra.mxu0 0.0
        %8953 = vmatpush.msra.mxu0 0.0
        %8954 = vmatpush.msra.mxu0 0.0
        %8955 = vmatpush.msra.mxu0 0.0
        %8956 = vmatpush.msra.mxu0 0.0
        %8957 = vmatpush.msra.mxu0 0.0
        %8958 = vmatpush.msra.mxu0 0.0
        %8959 = vmatpush.msra.mxu0 0.0
        %8960 = vmatpush.msra.mxu0 0.0
        %8961 = vmatpush.msra.mxu0 0.0
        %8962 = vmatpush.msra.mxu0 0.0
        %8963 = vmatpush.msra.mxu0 0.0
        %8964 = vmatpush.msra.mxu0 0.0
        %8965 = vmatpush.msra.mxu0 %v8032
        %8966 = vmatpush.msra.mxu0 %v8031
        %8967 = vmatmul.f32.gmra.mxu0 %v8471
        %v8968 = vpop.f32.mrf.mxu0
        %v8969 = vadd.f32 0.0, %v8968
        %8970 = vdwg.mxu0
        %s8971 = scalar_lea.vmem %s9, 72
        %v8972 = vld [vmem:[%s8971] sm:$0xff]
        %v8973 = vld [vmem:[%s8971 + $0x8] sm:$0xff]
        %v8974 = vld [vmem:[%s8971 + $0x10] sm:$0xff]
        %v8976 = vsel %vm8038, %v8969, 0
        %8978 = vmatpush.msra.mxu0 0.0
        %8979 = vmatpush.msra.mxu0 0.0
        %8980 = vmatpush.msra.mxu0 0.0
        %8981 = vmatpush.msra.mxu0 0.0
        %8982 = vmatpush.msra.mxu0 0.0
        %8983 = vmatpush.msra.mxu0 0.0
        %8984 = vmatpush.msra.mxu0 0.0
        %8985 = vmatpush.msra.mxu0 0.0
        %8986 = vmatpush.msra.mxu0 0.0
        %8987 = vmatpush.msra.mxu0 0.0
        %8988 = vmatpush.msra.mxu0 0.0
        %8989 = vmatpush.msra.mxu0 0.0
        %8990 = vmatpush.msra.mxu0 0.0
        %8991 = vmatpush.msra.mxu0 %v8974
        %8992 = vmatpush.msra.mxu0 %v8973
        %8993 = vmatpush.msra.mxu0 %v8972
        %8994 = vmatmul.f32.gmra.mxu0 %v8976
        %v8995 = vpop.f32.mrf.mxu0
        %v8996 = vadd.f32 0.0, %v8995
        %8997 = vdwg.mxu0
        %v8998 = vadd.f32 %v8950, %v8996
        %8999 = vmatpush.msra.mxu0 0.0
        %9000 = vmatpush.msra.mxu0 0.0
        %9001 = vmatpush.msra.mxu0 0.0
        %9002 = vmatpush.msra.mxu0 0.0
        %9003 = vmatpush.msra.mxu0 0.0
        %9004 = vmatpush.msra.mxu0 0.0
        %9005 = vmatpush.msra.mxu0 0.0
        %9006 = vmatpush.msra.mxu0 0.0
        %9007 = vmatpush.msra.mxu0 0.0
        %9008 = vmatpush.msra.mxu0 0.0
        %9009 = vmatpush.msra.mxu0 0.0
        %9010 = vmatpush.msra.mxu0 0.0
        %9011 = vmatpush.msra.mxu0 0.0
        %9012 = vmatpush.msra.mxu0 0.0
        %9013 = vmatpush.msra.mxu0 %v8032
        %9014 = vmatpush.msra.mxu0 %v8031
        %9015 = vmatmul.f32.gmra.mxu0 %v8524
        %v9016 = vpop.f32.mrf.mxu0
        %v9017 = vadd.f32 0.0, %v9016
        %9018 = vdwg.mxu0
        %s9019 = scalar_lea.vmem %s9, 96
        %v9020 = vld [vmem:[%s9019] sm:$0xff]
        %v9021 = vld [vmem:[%s9019 + $0x8] sm:$0xff]
        %v9022 = vld [vmem:[%s9019 + $0x10] sm:$0xff]
        %v9024 = vsel %vm8038, %v9017, 0
        %9026 = vmatpush.msra.mxu0 0.0
        %9027 = vmatpush.msra.mxu0 0.0
        %9028 = vmatpush.msra.mxu0 0.0
        %9029 = vmatpush.msra.mxu0 0.0
        %9030 = vmatpush.msra.mxu0 0.0
        %9031 = vmatpush.msra.mxu0 0.0
        %9032 = vmatpush.msra.mxu0 0.0
        %9033 = vmatpush.msra.mxu0 0.0
        %9034 = vmatpush.msra.mxu0 0.0
        %9035 = vmatpush.msra.mxu0 0.0
        %9036 = vmatpush.msra.mxu0 0.0
        %9037 = vmatpush.msra.mxu0 0.0
        %9038 = vmatpush.msra.mxu0 0.0
        %9039 = vmatpush.msra.mxu0 %v9022
        %9040 = vmatpush.msra.mxu0 %v9021
        %9041 = vmatpush.msra.mxu0 %v9020
        %9042 = vmatmul.f32.gmra.mxu0 %v9024
        %v9043 = vpop.f32.mrf.mxu0
        %v9044 = vadd.f32 0.0, %v9043
        %9045 = vdwg.mxu0
        %v9046 = vadd.f32 %v8998, %v9044
        %9047 = vmatpush.msra.mxu0 0.0
        %9048 = vmatpush.msra.mxu0 0.0
        %9049 = vmatpush.msra.mxu0 0.0
        %9050 = vmatpush.msra.mxu0 0.0
        %9051 = vmatpush.msra.mxu0 0.0
        %9052 = vmatpush.msra.mxu0 0.0
        %9053 = vmatpush.msra.mxu0 0.0
        %9054 = vmatpush.msra.mxu0 0.0
        %9055 = vmatpush.msra.mxu0 0.0
        %9056 = vmatpush.msra.mxu0 0.0
        %9057 = vmatpush.msra.mxu0 0.0
        %9058 = vmatpush.msra.mxu0 0.0
        %9059 = vmatpush.msra.mxu0 0.0
        %9060 = vmatpush.msra.mxu0 0.0
        %9061 = vmatpush.msra.mxu0 %v8032
        %9062 = vmatpush.msra.mxu0 %v8031
        %9063 = vmatmul.f32.gmra.mxu0 %v8577
        %v9064 = vpop.f32.mrf.mxu0
        %v9065 = vadd.f32 0.0, %v9064
        %9066 = vdwg.mxu0
        %s9067 = scalar_lea.vmem %s9, 120
        %v9068 = vld [vmem:[%s9067] sm:$0xff]
        %v9069 = vld [vmem:[%s9067 + $0x8] sm:$0xff]
        %v9070 = vld [vmem:[%s9067 + $0x10] sm:$0xff]
        %v9072 = vsel %vm8038, %v9065, 0
        %9074 = vmatpush.msra.mxu0 0.0
        %9075 = vmatpush.msra.mxu0 0.0
        %9076 = vmatpush.msra.mxu0 0.0
        %9077 = vmatpush.msra.mxu0 0.0
        %9078 = vmatpush.msra.mxu0 0.0
        %9079 = vmatpush.msra.mxu0 0.0
        %9080 = vmatpush.msra.mxu0 0.0
        %9081 = vmatpush.msra.mxu0 0.0
        %9082 = vmatpush.msra.mxu0 0.0
        %9083 = vmatpush.msra.mxu0 0.0
        %9084 = vmatpush.msra.mxu0 0.0
        %9085 = vmatpush.msra.mxu0 0.0
        %9086 = vmatpush.msra.mxu0 0.0
        %9087 = vmatpush.msra.mxu0 %v9070
        %9088 = vmatpush.msra.mxu0 %v9069
        %9089 = vmatpush.msra.mxu0 %v9068
        %9090 = vmatmul.f32.gmra.mxu0 %v9072
        %v9091 = vpop.f32.mrf.mxu0
        %v9092 = vadd.f32 0.0, %v9091
        %9093 = vdwg.mxu0
        %v9094 = vadd.f32 %v9046, %v9092
        %9095 = vmatpush.msra.mxu0 0.0
        %9096 = vmatpush.msra.mxu0 0.0
        %9097 = vmatpush.msra.mxu0 0.0
        %9098 = vmatpush.msra.mxu0 0.0
        %9099 = vmatpush.msra.mxu0 0.0
        %9100 = vmatpush.msra.mxu0 0.0
        %9101 = vmatpush.msra.mxu0 0.0
        %9102 = vmatpush.msra.mxu0 0.0
        %9103 = vmatpush.msra.mxu0 0.0
        %9104 = vmatpush.msra.mxu0 0.0
        %9105 = vmatpush.msra.mxu0 0.0
        %9106 = vmatpush.msra.mxu0 0.0
        %9107 = vmatpush.msra.mxu0 0.0
        %9108 = vmatpush.msra.mxu0 0.0
        %9109 = vmatpush.msra.mxu0 %v8032
        %9110 = vmatpush.msra.mxu0 %v8031
        %9111 = vmatmul.f32.gmra.mxu0 %v8630
        %v9112 = vpop.f32.mrf.mxu0
        %v9113 = vadd.f32 0.0, %v9112
        %9114 = vdwg.mxu0
        %s9115 = scalar_lea.vmem %s9, 144
        %v9116 = vld [vmem:[%s9115] sm:$0xff]
        %v9117 = vld [vmem:[%s9115 + $0x8] sm:$0xff]
        %v9118 = vld [vmem:[%s9115 + $0x10] sm:$0xff]
        %v9120 = vsel %vm8038, %v9113, 0
        %9122 = vmatpush.msra.mxu0 0.0
        %9123 = vmatpush.msra.mxu0 0.0
        %9124 = vmatpush.msra.mxu0 0.0
        %9125 = vmatpush.msra.mxu0 0.0
        %9126 = vmatpush.msra.mxu0 0.0
        %9127 = vmatpush.msra.mxu0 0.0
        %9128 = vmatpush.msra.mxu0 0.0
        %9129 = vmatpush.msra.mxu0 0.0
        %9130 = vmatpush.msra.mxu0 0.0
        %9131 = vmatpush.msra.mxu0 0.0
        %9132 = vmatpush.msra.mxu0 0.0
        %9133 = vmatpush.msra.mxu0 0.0
        %9134 = vmatpush.msra.mxu0 0.0
        %9135 = vmatpush.msra.mxu0 %v9118
        %9136 = vmatpush.msra.mxu0 %v9117
        %9137 = vmatpush.msra.mxu0 %v9116
        %9138 = vmatmul.f32.gmra.mxu0 %v9120
        %v9139 = vpop.f32.mrf.mxu0
        %v9140 = vadd.f32 0.0, %v9139
        %9141 = vdwg.mxu0
        %v9142 = vadd.f32 %v9094, %v9140
        %9143 = vmatpush.msra.mxu0 0.0
        %9144 = vmatpush.msra.mxu0 0.0
        %9145 = vmatpush.msra.mxu0 0.0
        %9146 = vmatpush.msra.mxu0 0.0
        %9147 = vmatpush.msra.mxu0 0.0
        %9148 = vmatpush.msra.mxu0 0.0
        %9149 = vmatpush.msra.mxu0 0.0
        %9150 = vmatpush.msra.mxu0 0.0
        %9151 = vmatpush.msra.mxu0 0.0
        %9152 = vmatpush.msra.mxu0 0.0
        %9153 = vmatpush.msra.mxu0 0.0
        %9154 = vmatpush.msra.mxu0 0.0
        %9155 = vmatpush.msra.mxu0 0.0
        %9156 = vmatpush.msra.mxu0 0.0
        %9157 = vmatpush.msra.mxu0 %v8032
        %9158 = vmatpush.msra.mxu0 %v8031
        %9159 = vmatmul.f32.gmra.mxu0 %v8683
        %v9160 = vpop.f32.mrf.mxu0
        %v9161 = vadd.f32 0.0, %v9160
        %9162 = vdwg.mxu0
        %s9163 = scalar_lea.vmem %s9, 168
        %v9164 = vld [vmem:[%s9163] sm:$0xff]
        %v9165 = vld [vmem:[%s9163 + $0x8] sm:$0xff]
        %v9166 = vld [vmem:[%s9163 + $0x10] sm:$0xff]
        %v9168 = vsel %vm8038, %v9161, 0
        %9170 = vmatpush.msra.mxu0 0.0
        %9171 = vmatpush.msra.mxu0 0.0
        %9172 = vmatpush.msra.mxu0 0.0
        %9173 = vmatpush.msra.mxu0 0.0
        %9174 = vmatpush.msra.mxu0 0.0
        %9175 = vmatpush.msra.mxu0 0.0
        %9176 = vmatpush.msra.mxu0 0.0
        %9177 = vmatpush.msra.mxu0 0.0
        %9178 = vmatpush.msra.mxu0 0.0
        %9179 = vmatpush.msra.mxu0 0.0
        %9180 = vmatpush.msra.mxu0 0.0
        %9181 = vmatpush.msra.mxu0 0.0
        %9182 = vmatpush.msra.mxu0 0.0
        %9183 = vmatpush.msra.mxu0 %v9166
        %9184 = vmatpush.msra.mxu0 %v9165
        %9185 = vmatpush.msra.mxu0 %v9164
        %9186 = vmatmul.f32.gmra.mxu0 %v9168
        %v9187 = vpop.f32.mrf.mxu0
        %v9188 = vadd.f32 0.0, %v9187
        %9189 = vdwg.mxu0
        %v9190 = vadd.f32 %v9142, %v9188
        %9191 = vmatpush.msra.mxu0 0.0
        %9192 = vmatpush.msra.mxu0 0.0
        %9193 = vmatpush.msra.mxu0 0.0
        %9194 = vmatpush.msra.mxu0 0.0
        %9195 = vmatpush.msra.mxu0 0.0
        %9196 = vmatpush.msra.mxu0 0.0
        %9197 = vmatpush.msra.mxu0 0.0
        %9198 = vmatpush.msra.mxu0 0.0
        %9199 = vmatpush.msra.mxu0 0.0
        %9200 = vmatpush.msra.mxu0 0.0
        %9201 = vmatpush.msra.mxu0 0.0
        %9202 = vmatpush.msra.mxu0 0.0
        %9203 = vmatpush.msra.mxu0 0.0
        %9204 = vmatpush.msra.mxu0 0.0
        %9205 = vmatpush.msra.mxu0 %v8032
        %9206 = vmatpush.msra.mxu0 %v8031
        %9207 = vmatmul.f32.gmra.mxu0 %v8736
        %v9208 = vpop.f32.mrf.mxu0
        %v9209 = vadd.f32 0.0, %v9208
        %9210 = vdwg.mxu0
        %s9211 = scalar_lea.vmem %s9, 192
        %v9212 = vld [vmem:[%s9211] sm:$0xff]
        %v9213 = vld [vmem:[%s9211 + $0x8] sm:$0xff]
        %v9214 = vld [vmem:[%s9211 + $0x10] sm:$0xff]
        %v9216 = vsel %vm8038, %v9209, 0
        %9218 = vmatpush.msra.mxu0 0.0
        %9219 = vmatpush.msra.mxu0 0.0
        %9220 = vmatpush.msra.mxu0 0.0
        %9221 = vmatpush.msra.mxu0 0.0
        %9222 = vmatpush.msra.mxu0 0.0
        %9223 = vmatpush.msra.mxu0 0.0
        %9224 = vmatpush.msra.mxu0 0.0
        %9225 = vmatpush.msra.mxu0 0.0
        %9226 = vmatpush.msra.mxu0 0.0
        %9227 = vmatpush.msra.mxu0 0.0
        %9228 = vmatpush.msra.mxu0 0.0
        %9229 = vmatpush.msra.mxu0 0.0
        %9230 = vmatpush.msra.mxu0 0.0
        %9231 = vmatpush.msra.mxu0 %v9214
        %9232 = vmatpush.msra.mxu0 %v9213
        %9233 = vmatpush.msra.mxu0 %v9212
        %9234 = vmatmul.f32.gmra.mxu0 %v9216
        %v9235 = vpop.f32.mrf.mxu0
        %v9236 = vadd.f32 0.0, %v9235
        %9237 = vdwg.mxu0
        %v9238 = vadd.f32 %v9190, %v9236
        %s9239 = scalar_lea.vmem %s9, 216
        %v9240 = vld [vmem:[%s9239] sm:$0x1]
        %v9241 = vperm.slane %v9240, 0
        %v9242 = vadd.f32 %v9238, %v9241
        %v9243 = vxor.u32 %v9242, 2147483648
        %v9244 = vmul.f32 %v9243, 1.442695
        %v9245 = vpow.pop %v9244
        %v9246 = vadd.f32 %v9245, 1.0
        %v9247 = vrcp.pop %v9246
        %v9248 = vmul.f32 %v9246, %v9247
        %v9249 = vsub.f32 1.0, %v9248
        %v9250 = vmul.f32 %v9247, %v9249
        %v9251 = vadd.f32 %v9247, %v9250
        %vm9252 = vweird.f32 %v9246
        %vm9253 = vweird.f32 %v9247
        %vm9254 = vmor %vm9252, %vm9253
        %v9255 = vsel %vm9254, %v9247, %v9251
        %v9256 = vand.u32 2147483647, %v9246
        %vm9257 = vcmp.eq.f32.partialorder %v9256, 8.507059e+37
        %v9258 = vand.u32 %v9246, 2147483648
        %v9259 = vor.u32 1.1754944e-38, %v9258
        %v9260 = vsel %vm9257, %v9259, %v9255
        %v9261 = vmul.f32 1.0, %v9260
        %v9262 = vmul.f32 %v9242, %v9261
        %v9263 = vld [vmem:[%s16] sm:$0xff]
        %v9264 = vld [vmem:[%s16 + $0x8] sm:$0xff]
        %v9265 = vld [vmem:[%s16 + $0x10] sm:$0xff]
        %v9266 = vld [vmem:[%s16 + $0x18] sm:$0xff]
        %v9267 = vld [vmem:[%s16 + $0x20] sm:$0xff]
        %v9268 = vld [vmem:[%s16 + $0x28] sm:$0x1]
        %v9269 = vperm.slane %v9268, 0
        %vm9270 = vcmask 326656
        %v9272 = vsel %vm9270, %v8809, 0
        %9274 = vmatpush.msra.mxu0 0.0
        %9275 = vmatpush.msra.mxu0 0.0
        %9276 = vmatpush.msra.mxu0 0.0
        %9277 = vmatpush.msra.mxu0 0.0
        %9278 = vmatpush.msra.mxu0 0.0
        %9279 = vmatpush.msra.mxu0 0.0
        %9280 = vmatpush.msra.mxu0 0.0
        %9281 = vmatpush.msra.mxu0 0.0
        %9282 = vmatpush.msra.mxu0 0.0
        %9283 = vmatpush.msra.mxu0 0.0
        %9284 = vmatpush.msra.mxu0 0.0
        %9285 = vmatpush.msra.mxu0 %v9267
        %9286 = vmatpush.msra.mxu0 %v9266
        %9287 = vmatpush.msra.mxu0 %v9265
        %9288 = vmatpush.msra.mxu0 %v9264
        %9289 = vmatpush.msra.mxu0 %v9263
        %9290 = vmatmul.f32.gmra.mxu0 %v9272
        %v9291 = vpop.f32.mrf.mxu0
        %v9292 = vadd.f32 %v9269, %v9291
        %9293 = vdwg.mxu0
        %s9294 = scalar_lea.vmem %s16, 48
        %v9295 = vld [vmem:[%s9294] sm:$0xff]
        %v9296 = vld [vmem:[%s9294 + $0x8] sm:$0xff]
        %v9297 = vld [vmem:[%s9294 + $0x10] sm:$0xff]
        %v9298 = vld [vmem:[%s9294 + $0x18] sm:$0xff]
        %v9299 = vld [vmem:[%s9294 + $0x20] sm:$0xff]
        %v9300 = vld [vmem:[%s9294 + $0x28] sm:$0x1]
        %v9301 = vperm.slane %v9300, 0
        %v9303 = vsel %vm9270, %v9262, 0
        %9305 = vmatpush.msra.mxu0 0.0
        %9306 = vmatpush.msra.mxu0 0.0
        %9307 = vmatpush.msra.mxu0 0.0
        %9308 = vmatpush.msra.mxu0 0.0
        %9309 = vmatpush.msra.mxu0 0.0
        %9310 = vmatpush.msra.mxu0 0.0
        %9311 = vmatpush.msra.mxu0 0.0
        %9312 = vmatpush.msra.mxu0 0.0
        %9313 = vmatpush.msra.mxu0 0.0
        %9314 = vmatpush.msra.mxu0 0.0
        %9315 = vmatpush.msra.mxu0 0.0
        %9316 = vmatpush.msra.mxu0 %v9299
        %9317 = vmatpush.msra.mxu0 %v9298
        %9318 = vmatpush.msra.mxu0 %v9297
        %9319 = vmatpush.msra.mxu0 %v9296
        %9320 = vmatpush.msra.mxu0 %v9295
        %9321 = vmatmul.f32.gmra.mxu0 %v9303
        %v9322 = vpop.f32.mrf.mxu0
        %v9323 = vadd.f32 %v9301, %v9322
        %9324 = vdwg.mxu0
        %s9325 = scalar_lea.vmem %s16, 96
        %v9326 = vld [vmem:[%s9325] sm:$0xff]
        %v9327 = vld [vmem:[%s9325 + $0x8] sm:$0xff]
        %v9328 = vld [vmem:[%s9325 + $0x10] sm:$0xff]
        %v9329 = vld [vmem:[%s9325 + $0x18] sm:$0xff]
        %v9330 = vld [vmem:[%s9325 + $0x20] sm:$0xff]
        %v9331 = vld [vmem:[%s9325 + $0x28] sm:$0x1]
        %v9332 = vperm.slane %v9331, 0
        %9333 = vmatpush.msra.mxu0 0.0
        %9334 = vmatpush.msra.mxu0 0.0
        %9335 = vmatpush.msra.mxu0 0.0
        %9336 = vmatpush.msra.mxu0 0.0
        %9337 = vmatpush.msra.mxu0 0.0
        %9338 = vmatpush.msra.mxu0 0.0
        %9339 = vmatpush.msra.mxu0 0.0
        %9340 = vmatpush.msra.mxu0 0.0
        %9341 = vmatpush.msra.mxu0 0.0
        %9342 = vmatpush.msra.mxu0 0.0
        %9343 = vmatpush.msra.mxu0 0.0
        %9344 = vmatpush.msra.mxu0 %v9330
        %9345 = vmatpush.msra.mxu0 %v9329
        %9346 = vmatpush.msra.mxu0 %v9328
        %9347 = vmatpush.msra.mxu0 %v9327
        %9348 = vmatpush.msra.mxu0 %v9326
        %9349 = vmatmul.f32.gmra.mxu0 %v9303
        %v9350 = vpop.f32.mrf.mxu0
        %v9351 = vadd.f32 %v9332, %v9350
        %9352 = vdwg.mxu0
        %v9354 = vsel %vm6914, %v9292, 0
        %v9357 = vsel %vm6914, %v9323, 0
        %9359 = vmatpush.xpose.msra.mxu0 0.0
        %9360 = vmatpush.xpose.msra.mxu0 0.0
        %9361 = vmatpush.xpose.msra.mxu0 0.0
        %9362 = vmatpush.xpose.msra.mxu0 0.0
        %9363 = vmatpush.xpose.msra.mxu0 0.0
        %9364 = vmatpush.xpose.msra.mxu0 0.0
        %9365 = vmatpush.xpose.msra.mxu0 0.0
        %9366 = vmatpush.xpose.msra.mxu0 0.0
        %9367 = vmatpush.xpose.msra.mxu0 0.0
        %9368 = vmatpush.xpose.msra.mxu0 0.0
        %9369 = vmatpush.xpose.msra.mxu0 0.0
        %9370 = vmatpush.xpose.msra.mxu0 0.0
        %9371 = vmatpush.xpose.msra.mxu0 0.0
        %9372 = vmatpush.xpose.msra.mxu0 0.0
        %9373 = vmatpush.xpose.msra.mxu0 0.0
        %9374 = vmatpush.xpose.msra.mxu0 %v9357
        %9375 = vmatmul.f32.gmra.mxu0 %v9354
        %v9376 = vpop.f32.mrf.mxu0
        %v9377 = vadd.f32 0.0, %v9376
        %9378 = vdwg.mxu0
        %v9379 = vmul.f32 %v9377, 0.25
        %v9380 = vld [vmem:[%s19] sm:$0xf]
        %v9381 = vadd.f32 %v9379, %v9380
        %vm9382 = vcmask 27648
        %v9383 = vsel %vm9382, %v9381, -inf
        %9384 = vmax.xlane.f32.xlu0 %v9383
        %v9385 = vpop.xlane.xlu0 %9384
        %v9386 = vsub.f32 %v9381, %v9385
        %v9387 = vmul.f32 %v9386, 1.442695
        %v9388 = vpow.pop %v9387
        %v9389 = vsel %vm9382, %v9388, 0.0
        %9390 = vadd.xlane.f32.xlu0 %v9389
        %v9391 = vpop.xlane.xlu0 %9390
        %v9392 = vrcp.pop %v9391
        %v9393 = vmul.f32 %v9388, %v9392
        %s9394 = scalar_lea.vmem %s19, 4
        %v9395 = vld [vmem:[%s9394] sm:$0xf]
        %v9396 = vadd.f32 %v9379, %v9395
        %v9397 = vsel %vm9382, %v9396, -inf
        %9398 = vmax.xlane.f32.xlu0 %v9397
        %v9399 = vpop.xlane.xlu0 %9398
        %v9400 = vsub.f32 %v9396, %v9399
        %v9401 = vmul.f32 %v9400, 1.442695
        %v9402 = vpow.pop %v9401
        %v9403 = vsel %vm9382, %v9402, 0.0
        %9404 = vadd.xlane.f32.xlu0 %v9403
        %v9405 = vpop.xlane.xlu0 %9404
        %v9406 = vrcp.pop %v9405
        %v9407 = vmul.f32 %v9402, %v9406
        %vm9408 = vcmask 31744
        %v9410 = vsel %vm9408, %v9407, 0
        %vm9412 = vcmask 1043456
        %v9414 = vsel %vm9412, %v9351, 0
        %9416 = vmatpush.msra.mxu0 0.0
        %9417 = vmatpush.msra.mxu0 0.0
        %9418 = vmatpush.msra.mxu0 0.0
        %9419 = vmatpush.msra.mxu0 0.0
        %9420 = vmatpush.msra.mxu0 0.0
        %9421 = vmatpush.msra.mxu0 0.0
        %9422 = vmatpush.msra.mxu0 0.0
        %9423 = vmatpush.msra.mxu0 0.0
        %9424 = vmatpush.msra.mxu0 0.0
        %9425 = vmatpush.msra.mxu0 0.0
        %9426 = vmatpush.msra.mxu0 0.0
        %9427 = vmatpush.msra.mxu0 0.0
        %9428 = vmatpush.msra.mxu0 0.0
        %9429 = vmatpush.msra.mxu0 0.0
        %9430 = vmatpush.msra.mxu0 0.0
        %9431 = vmatpush.msra.mxu0 %v9414
        %9432 = vmatmul.f32.gmra.mxu0 %v9410
        %v9433 = vpop.f32.mrf.mxu0
        %v9434 = vadd.f32 0.0, %v9433
        %9435 = vdwg.mxu0
        %v9437 = vsel %vm9408, %v9393, 0
        %9439 = vmatpush.msra.mxu0 0.0
        %9440 = vmatpush.msra.mxu0 0.0
        %9441 = vmatpush.msra.mxu0 0.0
        %9442 = vmatpush.msra.mxu0 0.0
        %9443 = vmatpush.msra.mxu0 0.0
        %9444 = vmatpush.msra.mxu0 0.0
        %9445 = vmatpush.msra.mxu0 0.0
        %9446 = vmatpush.msra.mxu0 0.0
        %9447 = vmatpush.msra.mxu0 0.0
        %9448 = vmatpush.msra.mxu0 0.0
        %9449 = vmatpush.msra.mxu0 0.0
        %9450 = vmatpush.msra.mxu0 0.0
        %9451 = vmatpush.msra.mxu0 0.0
        %9452 = vmatpush.msra.mxu0 0.0
        %9453 = vmatpush.msra.mxu0 0.0
        %9454 = vmatpush.msra.mxu0 %v9414
        %9455 = vmatmul.f32.gmra.mxu0 %v9437
        %v9456 = vpop.f32.mrf.mxu0
        %v9457 = vadd.f32 %v9434, %v9456
        %9458 = vdwg.mxu0
        %v9459 = vld [vmem:[%s17] sm:$0xff]
        %v9460 = vld [vmem:[%s17 + $0x8] sm:$0xff]
        %v9461 = vld [vmem:[%s17 + $0x10] sm:$0x1]
        %v9462 = vperm.slane %v9461, 0
        %v9464 = vsel %vm6914, %v9457, 0
        %9466 = vmatpush.msra.mxu0 0.0
        %9467 = vmatpush.msra.mxu0 0.0
        %9468 = vmatpush.msra.mxu0 0.0
        %9469 = vmatpush.msra.mxu0 0.0
        %9470 = vmatpush.msra.mxu0 0.0
        %9471 = vmatpush.msra.mxu0 0.0
        %9472 = vmatpush.msra.mxu0 0.0
        %9473 = vmatpush.msra.mxu0 0.0
        %9474 = vmatpush.msra.mxu0 0.0
        %9475 = vmatpush.msra.mxu0 0.0
        %9476 = vmatpush.msra.mxu0 0.0
        %9477 = vmatpush.msra.mxu0 0.0
        %9478 = vmatpush.msra.mxu0 0.0
        %9479 = vmatpush.msra.mxu0 0.0
        %9480 = vmatpush.msra.mxu0 %v9460
        %9481 = vmatpush.msra.mxu0 %v9459
        %9482 = vmatmul.f32.gmra.mxu0 %v9464
        %v9483 = vpop.f32.mrf.mxu0
        %v9484 = vadd.f32 %v9462, %v9483
        %9485 = vdwg.mxu0
        %v9486 = vmul.f32 %v9484, %v9484
        %vm9487 = vcmask 322560
        %v9488 = vsel %vm9487, %v9486, 0.0
        %9489 = vadd.xlane.f32.xlu0 %v9488
        %v9490 = vpop.xlane.xlu0 %9489
        %v9491 = vmul.f32 %v9262, %v9262
        %v9492 = vsel %vm9487, %v9491, 0.0
        %9493 = vadd.xlane.f32.xlu0 %v9492
        %v9494 = vpop.xlane.xlu0 %9493
        %v9495 = vmul.f32 %v9484, %v9262
        %v9496 = vmul.f32 %v9490, %v9494
        %v9497 = vadd.f32 %v9496, 1e-06
        %v9498 = vrsqrt.pop %v9497
        %v9499 = vmul.f32 %v9498, %v9497
        %v9500 = vmul.f32 %v9499, %v9498
        %v9501 = vmul.f32 0.5, %v9500
        %v9502 = vsub.f32 1.5, %v9501
        %v9503 = vmul.f32 %v9498, %v9502
        %vm9504 = vweird.f32 %v9497
        %vm9505 = vweird.f32 %v9498
        %vm9506 = vmor %vm9504, %vm9505
        %v9507 = vsel %vm9506, %v9498, %v9503
        %v9508 = vmul.f32 %v9495, %v9507
        %v9509 = vsel %vm9487, %v9508, 0.0
        %v9510 = vrot.slane %v9509, 4
        %v9511 = vadd.f32 %v9509, %v9510
        %v9512 = vrot.slane %v9511, 2
        %v9513 = vadd.f32 %v9511, %v9512
        %v9514 = vrot.slane %v9513, 1
        %v9515 = vadd.f32 %v9513, %v9514
        %v9516 = vmul.f32 %v9515, 0.25
        %v9517 = vld [vmem:[%s20] sm:$0xff]
        %v9518 = vld [vmem:[%s20 + $0x8] sm:$0xff]
        %v9519 = vld [vmem:[%s20 + $0x10] sm:$0xff]
        %v9520 = vld [vmem:[%s20 + $0x18] sm:$0xff]
        %v9521 = vld [vmem:[%s20 + $0x20] sm:$0xff]
        %v9522 = vld [vmem:[%s20 + $0x28] sm:$0x1]
        %v9524 = vsel %vm9270, %v9516, 0
        %9526 = vmatpush.msra.mxu0 0.0
        %9527 = vmatpush.msra.mxu0 0.0
        %9528 = vmatpush.msra.mxu0 0.0
        %9529 = vmatpush.msra.mxu0 0.0
        %9530 = vmatpush.msra.mxu0 0.0
        %9531 = vmatpush.msra.mxu0 0.0
        %9532 = vmatpush.msra.mxu0 0.0
        %9533 = vmatpush.msra.mxu0 0.0
        %9534 = vmatpush.msra.mxu0 0.0
        %9535 = vmatpush.msra.mxu0 0.0
        %9536 = vmatpush.msra.mxu0 0.0
        %9537 = vmatpush.msra.mxu0 %v9521
        %9538 = vmatpush.msra.mxu0 %v9520
        %9539 = vmatpush.msra.mxu0 %v9519
        %9540 = vmatpush.msra.mxu0 %v9518
        %9541 = vmatpush.msra.mxu0 %v9517
        %9542 = vmatmul.f32.gmra.mxu0 %v9524
        %v9543 = vpop.f32.mrf.mxu0
        %v9544 = vadd.f32 %v9522, %v9543
        %9545 = vdwg.mxu0
        %v9546 = vperm.slane %v9544, 0
        %9547 = vst [vmem:[%s691] sm:$0xff] %v9546
        %p9548 = scmp.lt.s32.totalorder %s33, 1
        %s9549 = scalar_select %p9548, %s33, 1
        %s9550 = smul.addr %s9549, 8
        %s9551 = scalar_lea.vmem %s21, %s9550
        // Predicated region
        $region109: #{attentive_forward.1} parent=103 // pred_check
          %p9552 = pneg %p502
        $region110: #{attentive_forward.1} parent=103 // pred_check_branch
          %9554 = sbr.rel (%p9552) target = $region112
        $region111: #{attentive_forward.1} parent=103 // pred_region
          _
        $region112: #{attentive_forward.1} parent=103 // pred_fallthru
          _
      $region104: #{attentive_forward.1} parent=5 // pred_fallthru
        _
      %p9555 = scmp.le.s32.totalorder 2, %s28
      // Predicated region
      $region113: #{attentive_forward.1} parent=5 // pred_check
        %p9556 = pneg %p9555
      $region114: #{attentive_forward.1} parent=5 // pred_check_branch
        %9558 = sbr.rel (%p9556) target = $region116
      $region115: #{attentive_forward.1} parent=5 // pred_region
        %s9559 = ssub.s32 %s28, 2
        // Predicated region
        $region117: #{attentive_forward.1} parent=115 // pred_check
          %p9560 = pneg %p508
        $region118: #{attentive_forward.1} parent=115 // pred_check_branch
          %9562 = sbr.rel (%p9560) target = $region120
        $region119: #{attentive_forward.1} parent=115 // pred_region
          %p9563 = scmp.lt.s32.totalorder %s34, 1
          %s9564 = scalar_select %p9563, %s34, 1
          %s9565 = smul.addr %s9564, 8
          %s9566 = scalar_lea.vmem %s21, %s9565
        $region120: #{attentive_forward.1} parent=115 // pred_fallthru
          _
      $region116: #{attentive_forward.1} parent=5 // pred_fallthru
        _
    $region6: #{attentive_forward.1} parent=1 // loop_footer
      %s32 = sadd.s32 1, %s28
    $region7: #{attentive_forward.1} parent=1 // loop_footer_branch
      %27 = sbr.rel target = $region3
    $region8: #{attentive_forward.1} parent=1 // loop_exit
      _
    %9567 = vsyncpa [#allocation3], 1
    %s9568 = scalar_lea.sflag [#allocation3], 1
    %9569 = vsyncpa %s9568, 1

</llo_original>
